<compile_context>
chip_gen: v7x
topology: tpu7x:2x2x1
jax: 0.10.0
libtpu: 0.0.40
codegen_flags: <defaults>
</compile_context>

<pallas_src>
import math
import numpy as np

import jax
import jax.numpy as jnp
from jax.experimental import pallas as pl
from jax.experimental.pallas import tpu as pltpu

INPUT_DIM = 3     # forward() stacks [x, y, t]
HIDDEN_DIM = 32
OUTPUT_DIM = 2    # column 0 = stream function s, column 1 = pressure
TILE_N = 256      # batch tile per grid step (lane axis)

# derivative channels propagated through the network (order = lane-slab order)
_KEYS = ('v', 'x', 'y', 't', 'xx', 'yy', 'xy', 'xt', 'yt',
         'xxx', 'yyy', 'xxy', 'xyy')
_I = {k: i for i, k in enumerate(_KEYS)}


def _first_layer(inp, w1, b1, M):
    """First Linear+Tanh, specialized: input higher-order channels are zero and
    first-order channels are constant one-hot seeds -> W1 column broadcasts."""
    H = HIDDEN_DIM
    zx = jnp.broadcast_to(w1[:, 0:1], (H, M))   # d z / d x
    zy = jnp.broadcast_to(w1[:, 1:2], (H, M))   # d z / d y
    zt = jnp.broadcast_to(w1[:, 2:3], (H, M))   # d z / d t
    # value channel as 3 outer-product MACs (K=3 matmul not worth the MXU)
    zv = zx * inp[0:1, :] + zy * inp[1:2, :] + zt * inp[2:3, :] + b1

    T = jnp.tanh(zv)
    T1 = 1.0 - T * T
    T2 = -2.0 * T * T1
    T3 = -2.0 * (T1 * T1 + T * T2)

    T2x, T2y = T2 * zx, T2 * zy
    T3xx, T3yy = T3 * (zx * zx), T3 * (zy * zy)

    o_v = T
    o_x, o_y, o_t = T1 * zx, T1 * zy, T1 * zt
    o_xx, o_yy = T2x * zx, T2y * zy
    o_xy, o_xt, o_yt = T2x * zy, T2x * zt, T2y * zt
    o_xxx, o_yyy = T3xx * zx, T3yy * zy
    o_xxy, o_xyy = T3xx * zy, T3yy * zx

    return jnp.concatenate(
        [o_v, o_x, o_y, o_t, o_xx, o_yy, o_xy, o_xt, o_yt,
         o_xxx, o_yyy, o_xxy, o_xyy], axis=1)


def _tanh_prop_slab(z, b, M):
    """Tanh + chain rule (Faa di Bruno) on a (H, 13*M) pre-activation slab.
    Bias b (H,1) applies to the value channel only. Common products hoisted."""
    def c(k):
        i = _I[k]
        return z[:, i * M:(i + 1) * M]

    zv = c('v') + b
    zx, zy, zt = c('x'), c('y'), c('t')
    zxx, zyy, zxy, zxt, zyt = c('xx'), c('yy'), c('xy'), c('xt'), c('yt')
    zxxx, zyyy, zxxy, zxyy = c('xxx'), c('yyy'), c('xxy'), c('xyy')

    T = jnp.tanh(zv)
    T1 = 1.0 - T * T
    T2 = -2.0 * T * T1
    T3 = -2.0 * (T1 * T1 + T * T2)

    T2x, T2y = T2 * zx, T2 * zy
    T2xx, T2yy = T2 * zxx, T2 * zyy
    T3xx, T3yy = T3 * (zx * zx), T3 * (zy * zy)

    o_v = T
    o_x, o_y, o_t = T1 * zx, T1 * zy, T1 * zt
    o_xx = T2x * zx + T1 * zxx
    o_yy = T2y * zy + T1 * zyy
    o_xy = T2x * zy + T1 * zxy
    o_xt = T2x * zt + T1 * zxt
    o_yt = T2y * zt + T1 * zyt
    o_xxx = (T3xx + 3.0 * T2xx) * zx + T1 * zxxx
    o_yyy = (T3yy + 3.0 * T2yy) * zy + T1 * zyyy
    o_xxy = (T3xx + T2xx) * zy + 2.0 * T2x * zxy + T1 * zxxy
    o_xyy = (T3yy + T2yy) * zx + 2.0 * T2y * zxy + T1 * zxyy

    return jnp.concatenate(
        [o_v, o_x, o_y, o_t, o_xx, o_yy, o_xy, o_xt, o_yt,
         o_xxx, o_yyy, o_xxy, o_xyy], axis=1)


def _mtl_pinn_kernel(xyz_ref, wstack_ref, whead_ref, bstack_ref, lam_ref, out_ref):
    f32 = jnp.float32
    M = xyz_ref.shape[1]          # TILE_N
    inp = xyz_ref[...]            # (3, M), rows = [x, y, t]

    w1 = wstack_ref[0]            # (H, H), real W1 in columns 0..2
    w2 = wstack_ref[1]
    w3 = wstack_ref[2]
    wp1 = wstack_ref[3]
    wd1 = wstack_ref[4]
    wp2 = whead_ref[0]            # (2, H)
    wd2 = whead_ref[1]            # (2, H)

    b1 = bstack_ref[:, 0:1]
    b2 = bstack_ref[:, 1:2]
    b3 = bstack_ref[:, 2:3]
    bp1 = bstack_ref[:, 3:4]
    bd1 = bstack_ref[:, 4:5]
    # bp2 (col 5) only shifts the pde head's value channel, which is never read
    # (only its derivatives feed f/g), so it is mathematically irrelevant here.
    bd2_p = bstack_ref[1:2, 6:7]  # data-head pressure bias, (1, 1)

    # shared trunk: 3 x (Linear -> Tanh), one matmul per layer on the 13-channel slab
    h = _first_layer(inp, w1, b1, M)                                        # (H, 13M)
    h = _tanh_prop_slab(jnp.dot(w2, h, preferred_element_type=f32), b2, M)  # (H, 13M)
    h = _tanh_prop_slab(jnp.dot(w3, h, preferred_element_type=f32), b3, M)  # (H, 13M)

    # pde head: Linear -> Tanh -> Linear (needs all 13 channels)
    hp = _tanh_prop_slab(jnp.dot(wp1, h, preferred_element_type=f32), bp1, M)
    po = jnp.dot(wp2, hp, preferred_element_type=f32)                       # (2, 13M)

    # data head: only value/x/y channels are ever consumed downstream
    zd = jnp.dot(wd1, h[:, :3 * M], preferred_element_type=f32)             # (H, 3M)
    Td = jnp.tanh(zd[:, 0:M] + bd1)
    Td1 = 1.0 - Td * Td
    hd = jnp.concatenate([Td, Td1 * zd[:, M:2 * M], Td1 * zd[:, 2 * M:3 * M]], axis=1)
    do = jnp.dot(wd2, hd, preferred_element_type=f32)                       # (2, 3M)

    lam1 = lam_ref[0]
    lam2 = lam_ref[1]

    def s(k):   # derivatives of pde-head stream function (row 0)
        i = _I[k]
        return po[0:1, i * M:(i + 1) * M]

    def pp(k):  # derivatives of pde-head pressure (row 1)
        i = _I[k]
        return po[1:2, i * M:(i + 1) * M]

    u = s('y')                    # u_pred = d s / d y
    v = -s('x')                   # v_pred = -d s / d x
    u_t, u_x, u_y = s('yt'), s('xy'), s('yy')
    v_t, v_x, v_y = -s('xt'), -s('xx'), -s('xy')
    p_x, p_y = pp('x'), pp('y')
    u_xx, u_yy = s('xxy'), s('yyy')
    v_xx, v_yy = -s('xxx'), -s('xyy')

    f = lam1 * (u_t + u * u_x + v * u_y) + p_x - lam2 * (u_xx + u_yy)
    g = lam1 * (v_t + u * v_x + v * v_y) + p_y - lam2 * (v_xx + v_yy)

    p_pred_data = do[1:2, 0:M] + bd2_p        # data-head pressure
    u_pred_data = do[0:1, 2 * M:3 * M]        # d s_data / d y
    v_pred_data = -do[0:1, M:2 * M]           # -d s_data / d x

    # lane-dense packed output: rows [p_pred, u_pred, v_pred, f, g, 0, 0, 0]
    out_ref[...] = jnp.concatenate(
        [p_pred_data, u_pred_data, v_pred_data, f, g,
         jnp.zeros((3, M), f32)], axis=0)


def mtl_pinn_forward(params, x, y, t, p=None, u=None, v=None):
    """Pallas forward pass. p, u, v are accepted (like the torch forward) but unused."""
    (W1, b1, W2, b2, W3, b3, Wp1, bp1, Wp2, bp2, Wd1, bd1, Wd2, bd2,
     lam1, lam2) = params
    H = HIDDEN_DIM
    N = x.shape[0]
    N_pad = ((N + TILE_N - 1) // TILE_N) * TILE_N

    # feature-major input (3, N): rows = [x, y, t]
    xyz = jnp.stack([x, y, t], axis=0).astype(jnp.float32)
    if N_pad != N:
        xyz = jnp.pad(xyz, ((0, 0), (0, N_pad - N)))

    # pack the 7 weight matrices (torch (out, in) layout kept) into 2 constant stacks
    w1p = jnp.zeros((H, H), jnp.float32).at[:, :INPUT_DIM].set(W1.astype(jnp.float32))
    wstack = jnp.stack([w1p,
                        W2.astype(jnp.float32), W3.astype(jnp.float32),
                        Wp1.astype(jnp.float32), Wd1.astype(jnp.float32)])  # (5, H, H)
    whead = jnp.stack([Wp2.astype(jnp.float32), Wd2.astype(jnp.float32)])   # (2, 2, H)

    # pack the biases as columns of a single (H, 8) array
    bstack = jnp.zeros((H, 8), jnp.float32)
    bstack = bstack.at[:, 0].set(b1.astype(jnp.float32))
    bstack = bstack.at[:, 1].set(b2.astype(jnp.float32))
    bstack = bstack.at[:, 2].set(b3.astype(jnp.float32))
    bstack = bstack.at[:, 3].set(bp1.astype(jnp.float32))
    bstack = bstack.at[:, 4].set(bd1.astype(jnp.float32))
    bstack = bstack.at[:OUTPUT_DIM, 5].set(bp2.astype(jnp.float32))
    bstack = bstack.at[:OUTPUT_DIM, 6].set(bd2.astype(jnp.float32))

    lam = jnp.array([lam1, lam2], jnp.float32)

    out = pl.pallas_call(
        _mtl_pinn_kernel,
        out_shape=jax.ShapeDtypeStruct((8, N_pad), jnp.float32),
        grid_spec=pltpu.PrefetchScalarGridSpec(
            num_scalar_prefetch=0,
            grid=(N_pad // TILE_N,),
            in_specs=[
                pl.BlockSpec((INPUT_DIM, TILE_N), lambda i: (0, i)),
                pl.BlockSpec(wstack.shape, lambda i: (0, 0, 0)),
                pl.BlockSpec(whead.shape, lambda i: (0, 0, 0)),
                pl.BlockSpec(bstack.shape, lambda i: (0, 0)),
                pl.BlockSpec(memory_space=pltpu.MemorySpace.SMEM),   # lambdas
            ],
            out_specs=pl.BlockSpec((8, TILE_N), lambda i: (0, i)),
        ),
        compiler_params=pltpu.CompilerParams(
            dimension_semantics=("parallel",)),
    )(xyz, wstack, whead, bstack, lam)

    # only rows 0..4 / columns 0..N-1 are valid; pad rows are never read
    return {'p_pred': out[0, :N], 'u_pred': out[1, :N], 'v_pred': out[2, :N],
            'f': out[3, :N], 'g': out[4, :N]}


def reference_forward(params, x, y, t):
    """Pure-JAX reference using nested jax.grad (mirrors torch.autograd.grad)."""
    (W1, b1, W2, b2, W3, b3, Wp1, bp1, Wp2, bp2, Wd1, bd1, Wd2, bd2,
     lam1, lam2) = params

    def shared(xi, yi, ti):
        h = jnp.stack([xi, yi, ti])
        h = jnp.tanh(W1 @ h + b1)
        h = jnp.tanh(W2 @ h + b2)
        h = jnp.tanh(W3 @ h + b3)
        return h

    def pde_head(xi, yi, ti):
        h = jnp.tanh(Wp1 @ shared(xi, yi, ti) + bp1)
        return Wp2 @ h + bp2

    def data_head(xi, yi, ti):
        h = jnp.tanh(Wd1 @ shared(xi, yi, ti) + bd1)
        return Wd2 @ h + bd2

    s = lambda xi, yi, ti: pde_head(xi, yi, ti)[0]
    pr = lambda xi, yi, ti: pde_head(xi, yi, ti)[1]
    sd = lambda xi, yi, ti: data_head(xi, yi, ti)[0]
    pd = lambda xi, yi, ti: data_head(xi, yi, ti)[1]

    u_fn = jax.grad(s, argnums=1)
    v_fn = lambda xi, yi, ti: -jax.grad(s, argnums=0)(xi, yi, ti)

    def per_sample(xi, yi, ti):
        u = u_fn(xi, yi, ti)
        v = v_fn(xi, yi, ti)
        u_t = jax.grad(u_fn, 2)(xi, yi, ti)
        v_t = jax.grad(v_fn, 2)(xi, yi, ti)
        u_x = jax.grad(u_fn, 0)(xi, yi, ti)
        v_x = jax.grad(v_fn, 0)(xi, yi, ti)
        p_x = jax.grad(pr, 0)(xi, yi, ti)
        u_y = jax.grad(u_fn, 1)(xi, yi, ti)
        v_y = jax.grad(v_fn, 1)(xi, yi, ti)
        p_y = jax.grad(pr, 1)(xi, yi, ti)
        u_xx = jax.grad(jax.grad(u_fn, 0), 0)(xi, yi, ti)
        v_xx = jax.grad(jax.grad(v_fn, 0), 0)(xi, yi, ti)
        u_yy = jax.grad(jax.grad(u_fn, 1), 1)(xi, yi, ti)
        v_yy = jax.grad(jax.grad(v_fn, 1), 1)(xi, yi, ti)
        f = lam1 * (u_t + u * u_x + v * u_y) + p_x - lam2 * (u_xx + u_yy)
        g = lam1 * (v_t + u * v_x + v * v_y) + p_y - lam2 * (v_xx + v_yy)
        return jnp.stack([pd(xi, yi, ti),
                          jax.grad(sd, 1)(xi, yi, ti),
                          -jax.grad(sd, 0)(xi, yi, ti),
                          f, g])

    return jax.vmap(per_sample)(x, y, t)


def xavier_normal(key, shape):
    fan_out, fan_in = shape
    std = math.sqrt(2.0 / (fan_in + fan_out))
    return std * jax.random.normal(key, shape, jnp.float32)


if __name__ == "__main__":
    H, O = HIDDEN_DIM, OUTPUT_DIM
    N = 512   # 2 tiles of 256 -> keeps a >=2-step parallel grid (v7x megacore)

    key = jax.random.PRNGKey(0)
    keys = jax.random.split(key, 16)

    # deterministic Xavier-normal weights, zero biases (matches init_weights)
    W1 = xavier_normal(keys[0], (H, INPUT_DIM)); b1 = jnp.zeros((H,), jnp.float32)
    W2 = xavier_normal(keys[1], (H, H));         b2 = jnp.zeros((H,), jnp.float32)
    W3 = xavier_normal(keys[2], (H, H));         b3 = jnp.zeros((H,), jnp.float32)
    Wp1 = xavier_normal(keys[3], (H, H));        bp1 = jnp.zeros((H,), jnp.float32)
    Wp2 = xavier_normal(keys[4], (O, H));        bp2 = jnp.zeros((O,), jnp.float32)
    Wd1 = xavier_normal(keys[5], (H, H));        bd1 = jnp.zeros((H,), jnp.float32)
    Wd2 = xavier_normal(keys[6], (O, H));        bd2 = jnp.zeros((O,), jnp.float32)
    lam1 = jnp.float32(1.0)
    lam2 = jnp.float32(0.2)

    params = (W1, b1, W2, b2, W3, b3, Wp1, bp1, Wp2, bp2,
              Wd1, bd1, Wd2, bd2, lam1, lam2)

    x = jax.random.normal(keys[7], (N,), jnp.float32)
    y = jax.random.normal(keys[8], (N,), jnp.float32)
    t = jax.random.normal(keys[9], (N,), jnp.float32)
    # p, u, v are part of the torch forward() signature but unused by forward()
    p_in = jax.random.normal(keys[10], (N,), jnp.float32)
    u_in = jax.random.normal(keys[11], (N,), jnp.float32)
    v_in = jax.random.normal(keys[12], (N,), jnp.float32)

    res = mtl_pinn_forward(params, x, y, t, p_in, u_in, v_in)
    jax.block_until_ready(res)

    # correctness check against a nested-autodiff pure-JAX reference
    ref = jax.jit(reference_forward)(params, x, y, t)
    ref = np.asarray(jax.block_until_ready(ref))
    names = ['p_pred', 'u_pred', 'v_pred', 'f', 'g']
    for i, name in enumerate(names):
        a = np.asarray(res[name])
        b = ref[:, i]
        err = np.max(np.abs(a - b)) / (np.max(np.abs(b)) + 1e-6)
        if not err < 5e-2:
            raise AssertionError(f"{name}: relative error {err}")

    print("KERNEL_OK")
</pallas_src>

<mosaic_0001>
module attributes {stable_mosaic.version = 11 : i64} {
  func.func @_mtl_pinn_kernel(%arg0: i32, %arg1: memref<3x256xf32, #tpu.memory_space<vmem>>, %arg2: memref<5x32x32xf32, #tpu.memory_space<vmem>>, %arg3: memref<2x2x32xf32, #tpu.memory_space<vmem>>, %arg4: memref<32x8xf32, #tpu.memory_space<vmem>>, %arg5: memref<2xf32, #tpu.memory_space<smem>>, %arg6: memref<8x256xf32, #tpu.memory_space<vmem>>) attributes {dimension_semantics = [#tpu.dimension_semantics<parallel>], iteration_bounds = array<i64: 2>, scalar_prefetch = 0 : i64, scratch_operands = 0 : i64, tpu.core_type = #tpu.core_type<tc>, window_params = [{transform_indices = @transform_0, window_bounds = array<i64: 3, 256>}, {pipeline_mode = #tpu.pipeline_mode<synchronous>, transform_indices = @transform_1, window_bounds = array<i64: 5, 32, 32>}, {pipeline_mode = #tpu.pipeline_mode<synchronous>, transform_indices = @transform_2, window_bounds = array<i64: 2, 2, 32>}, {pipeline_mode = #tpu.pipeline_mode<synchronous>, transform_indices = @transform_3, window_bounds = array<i64: 32, 8>}, {transform_indices = @transform_4, window_bounds = array<i64: 2>}, {transform_indices = @transform_5, window_bounds = array<i64: 8, 256>}]} {
    %c0 = arith.constant 0 : index
    %c0_0 = arith.constant 0 : index
    %0 = vector.load %arg1[%c0, %c0_0] : memref<3x256xf32, #tpu.memory_space<vmem>>, vector<3x256xf32>
    %c0_1 = arith.constant 0 : index
    %c0_2 = arith.constant 0 : index
    %c0_3 = arith.constant 0 : index
    %1 = vector.load %arg2[%c0_1, %c0_2, %c0_3] : memref<5x32x32xf32, #tpu.memory_space<vmem>>, vector<1x32x32xf32>
    %2 = vector.shape_cast %1 : vector<1x32x32xf32> to vector<32x32xf32>
    %c1 = arith.constant 1 : index
    %c0_4 = arith.constant 0 : index
    %c0_5 = arith.constant 0 : index
    %3 = vector.load %arg2[%c1, %c0_4, %c0_5] : memref<5x32x32xf32, #tpu.memory_space<vmem>>, vector<1x32x32xf32>
    %4 = vector.shape_cast %3 : vector<1x32x32xf32> to vector<32x32xf32>
    %c2 = arith.constant 2 : index
    %c0_6 = arith.constant 0 : index
    %c0_7 = arith.constant 0 : index
    %5 = vector.load %arg2[%c2, %c0_6, %c0_7] : memref<5x32x32xf32, #tpu.memory_space<vmem>>, vector<1x32x32xf32>
    %6 = vector.shape_cast %5 : vector<1x32x32xf32> to vector<32x32xf32>
    %c3 = arith.constant 3 : index
    %c0_8 = arith.constant 0 : index
    %c0_9 = arith.constant 0 : index
    %7 = vector.load %arg2[%c3, %c0_8, %c0_9] : memref<5x32x32xf32, #tpu.memory_space<vmem>>, vector<1x32x32xf32>
    %8 = vector.shape_cast %7 : vector<1x32x32xf32> to vector<32x32xf32>
    %c4 = arith.constant 4 : index
    %c0_10 = arith.constant 0 : index
    %c0_11 = arith.constant 0 : index
    %9 = vector.load %arg2[%c4, %c0_10, %c0_11] : memref<5x32x32xf32, #tpu.memory_space<vmem>>, vector<1x32x32xf32>
    %10 = vector.shape_cast %9 : vector<1x32x32xf32> to vector<32x32xf32>
    %c0_12 = arith.constant 0 : index
    %c0_13 = arith.constant 0 : index
    %c0_14 = arith.constant 0 : index
    %11 = vector.load %arg3[%c0_12, %c0_13, %c0_14] : memref<2x2x32xf32, #tpu.memory_space<vmem>>, vector<1x2x32xf32>
    %12 = vector.shape_cast %11 : vector<1x2x32xf32> to vector<2x32xf32>
    %c1_15 = arith.constant 1 : index
    %c0_16 = arith.constant 0 : index
    %c0_17 = arith.constant 0 : index
    %13 = vector.load %arg3[%c1_15, %c0_16, %c0_17] : memref<2x2x32xf32, #tpu.memory_space<vmem>>, vector<1x2x32xf32>
    %14 = vector.shape_cast %13 : vector<1x2x32xf32> to vector<2x32xf32>
    %c0_18 = arith.constant 0 : index
    %c0_19 = arith.constant 0 : index
    %15 = vector.load %arg4[%c0_18, %c0_19] : memref<32x8xf32, #tpu.memory_space<vmem>>, vector<32x1xf32>
    %c0_20 = arith.constant 0 : index
    %c1_21 = arith.constant 1 : index
    %16 = vector.load %arg4[%c0_20, %c1_21] : memref<32x8xf32, #tpu.memory_space<vmem>>, vector<32x1xf32>
    %c0_22 = arith.constant 0 : index
    %c2_23 = arith.constant 2 : index
    %17 = vector.load %arg4[%c0_22, %c2_23] : memref<32x8xf32, #tpu.memory_space<vmem>>, vector<32x1xf32>
    %c0_24 = arith.constant 0 : index
    %c3_25 = arith.constant 3 : index
    %18 = vector.load %arg4[%c0_24, %c3_25] : memref<32x8xf32, #tpu.memory_space<vmem>>, vector<32x1xf32>
    %c0_26 = arith.constant 0 : index
    %c4_27 = arith.constant 4 : index
    %19 = vector.load %arg4[%c0_26, %c4_27] : memref<32x8xf32, #tpu.memory_space<vmem>>, vector<32x1xf32>
    %c1_28 = arith.constant 1 : index
    %c6 = arith.constant 6 : index
    %20 = vector.load %arg4[%c1_28, %c6] : memref<32x8xf32, #tpu.memory_space<vmem>>, vector<1x1xf32>
    %21 = vector.extract_strided_slice %2 {offsets = [0, 0], sizes = [32, 1], strides = [1, 1]} : vector<32x32xf32> to vector<32x1xf32>
    %22 = vector.shape_cast %21 : vector<32x1xf32> to vector<32x1xf32>
    %23 = vector.broadcast %22 : vector<32x1xf32> to vector<32x256xf32>
    %24 = vector.extract_strided_slice %2 {offsets = [0, 1], sizes = [32, 1], strides = [1, 1]} : vector<32x32xf32> to vector<32x1xf32>
    %25 = vector.shape_cast %24 : vector<32x1xf32> to vector<32x1xf32>
    %26 = vector.broadcast %25 : vector<32x1xf32> to vector<32x256xf32>
    %27 = vector.extract_strided_slice %2 {offsets = [0, 2], sizes = [32, 1], strides = [1, 1]} : vector<32x32xf32> to vector<32x1xf32>
    %28 = vector.shape_cast %27 : vector<32x1xf32> to vector<32x1xf32>
    %29 = vector.broadcast %28 : vector<32x1xf32> to vector<32x256xf32>
    %30 = vector.extract_strided_slice %0 {offsets = [0, 0], sizes = [1, 256], strides = [1, 1]} : vector<3x256xf32> to vector<1x256xf32>
    %31 = vector.broadcast %30 : vector<1x256xf32> to vector<32x256xf32>
    %32 = arith.mulf %23, %31 : vector<32x256xf32>
    %33 = vector.extract_strided_slice %0 {offsets = [1, 0], sizes = [1, 256], strides = [1, 1]} : vector<3x256xf32> to vector<1x256xf32>
    %34 = vector.broadcast %33 : vector<1x256xf32> to vector<32x256xf32>
    %35 = arith.mulf %26, %34 : vector<32x256xf32>
    %36 = arith.addf %32, %35 : vector<32x256xf32>
    %37 = vector.extract_strided_slice %0 {offsets = [2, 0], sizes = [1, 256], strides = [1, 1]} : vector<3x256xf32> to vector<1x256xf32>
    %38 = vector.broadcast %37 : vector<1x256xf32> to vector<32x256xf32>
    %39 = arith.mulf %29, %38 : vector<32x256xf32>
    %40 = arith.addf %36, %39 : vector<32x256xf32>
    %41 = vector.broadcast %15 : vector<32x1xf32> to vector<32x256xf32>
    %42 = arith.addf %40, %41 : vector<32x256xf32>
    %43 = math.tanh %42 : vector<32x256xf32>
    %44 = arith.mulf %43, %43 : vector<32x256xf32>
    %cst = arith.constant 1.000000e+00 : f32
    %45 = vector.broadcast %cst : f32 to vector<32x256xf32>
    %46 = arith.subf %45, %44 : vector<32x256xf32>
    %cst_29 = arith.constant -2.000000e+00 : f32
    %47 = vector.broadcast %cst_29 : f32 to vector<32x256xf32>
    %48 = arith.mulf %47, %43 : vector<32x256xf32>
    %49 = arith.mulf %48, %46 : vector<32x256xf32>
    %50 = arith.mulf %46, %46 : vector<32x256xf32>
    %51 = arith.mulf %43, %49 : vector<32x256xf32>
    %52 = arith.addf %50, %51 : vector<32x256xf32>
    %cst_30 = arith.constant -2.000000e+00 : f32
    %53 = vector.broadcast %cst_30 : f32 to vector<32x256xf32>
    %54 = arith.mulf %53, %52 : vector<32x256xf32>
    %55 = arith.mulf %49, %23 : vector<32x256xf32>
    %56 = arith.mulf %49, %26 : vector<32x256xf32>
    %57 = arith.mulf %23, %23 : vector<32x256xf32>
    %58 = arith.mulf %54, %57 : vector<32x256xf32>
    %59 = arith.mulf %26, %26 : vector<32x256xf32>
    %60 = arith.mulf %54, %59 : vector<32x256xf32>
    %61 = arith.mulf %46, %23 : vector<32x256xf32>
    %62 = arith.mulf %46, %26 : vector<32x256xf32>
    %63 = arith.mulf %46, %29 : vector<32x256xf32>
    %64 = arith.mulf %55, %23 : vector<32x256xf32>
    %65 = arith.mulf %56, %26 : vector<32x256xf32>
    %66 = arith.mulf %55, %26 : vector<32x256xf32>
    %67 = arith.mulf %55, %29 : vector<32x256xf32>
    %68 = arith.mulf %56, %29 : vector<32x256xf32>
    %69 = arith.mulf %58, %23 : vector<32x256xf32>
    %70 = arith.mulf %60, %26 : vector<32x256xf32>
    %71 = arith.mulf %58, %26 : vector<32x256xf32>
    %72 = arith.mulf %60, %23 : vector<32x256xf32>
    %73 = tpu.concatenate %43, %61, %62, %63, %64, %65, %66, %67, %68, %69, %70, %71, %72 in 1 : vector<32x256xf32>, vector<32x256xf32>, vector<32x256xf32>, vector<32x256xf32>, vector<32x256xf32>, vector<32x256xf32>, vector<32x256xf32>, vector<32x256xf32>, vector<32x256xf32>, vector<32x256xf32>, vector<32x256xf32>, vector<32x256xf32>, vector<32x256xf32> -> vector<32x3328xf32>
    %cst_31 = arith.constant dense<0.000000e+00> : vector<32x3328xf32>
    %74 = tpu.matmul %4, %73, %cst_31 {dimension_numbers = #tpu.dot_dimension_numbers<[1], [0], [0], [1], [0, 0, 1, 1], [], []>} : vector<32x32xf32>, vector<32x3328xf32>, vector<32x3328xf32> -> vector<32x3328xf32>
    %75 = vector.extract_strided_slice %74 {offsets = [0, 0], sizes = [32, 256], strides = [1, 1]} : vector<32x3328xf32> to vector<32x256xf32>
    %76 = vector.broadcast %16 : vector<32x1xf32> to vector<32x256xf32>
    %77 = arith.addf %75, %76 : vector<32x256xf32>
    %78 = vector.extract_strided_slice %74 {offsets = [0, 256], sizes = [32, 256], strides = [1, 1]} : vector<32x3328xf32> to vector<32x256xf32>
    %79 = vector.extract_strided_slice %74 {offsets = [0, 512], sizes = [32, 256], strides = [1, 1]} : vector<32x3328xf32> to vector<32x256xf32>
    %80 = vector.extract_strided_slice %74 {offsets = [0, 768], sizes = [32, 256], strides = [1, 1]} : vector<32x3328xf32> to vector<32x256xf32>
    %81 = vector.extract_strided_slice %74 {offsets = [0, 1024], sizes = [32, 256], strides = [1, 1]} : vector<32x3328xf32> to vector<32x256xf32>
    %82 = vector.extract_strided_slice %74 {offsets = [0, 1280], sizes = [32, 256], strides = [1, 1]} : vector<32x3328xf32> to vector<32x256xf32>
    %83 = vector.extract_strided_slice %74 {offsets = [0, 1536], sizes = [32, 256], strides = [1, 1]} : vector<32x3328xf32> to vector<32x256xf32>
    %84 = vector.extract_strided_slice %74 {offsets = [0, 1792], sizes = [32, 256], strides = [1, 1]} : vector<32x3328xf32> to vector<32x256xf32>
    %85 = vector.extract_strided_slice %74 {offsets = [0, 2048], sizes = [32, 256], strides = [1, 1]} : vector<32x3328xf32> to vector<32x256xf32>
    %86 = vector.extract_strided_slice %74 {offsets = [0, 2304], sizes = [32, 256], strides = [1, 1]} : vector<32x3328xf32> to vector<32x256xf32>
    %87 = vector.extract_strided_slice %74 {offsets = [0, 2560], sizes = [32, 256], strides = [1, 1]} : vector<32x3328xf32> to vector<32x256xf32>
    %88 = vector.extract_strided_slice %74 {offsets = [0, 2816], sizes = [32, 256], strides = [1, 1]} : vector<32x3328xf32> to vector<32x256xf32>
    %89 = vector.extract_strided_slice %74 {offsets = [0, 3072], sizes = [32, 256], strides = [1, 1]} : vector<32x3328xf32> to vector<32x256xf32>
    %90 = math.tanh %77 : vector<32x256xf32>
    %91 = arith.mulf %90, %90 : vector<32x256xf32>
    %cst_32 = arith.constant 1.000000e+00 : f32
    %92 = vector.broadcast %cst_32 : f32 to vector<32x256xf32>
    %93 = arith.subf %92, %91 : vector<32x256xf32>
    %cst_33 = arith.constant -2.000000e+00 : f32
    %94 = vector.broadcast %cst_33 : f32 to vector<32x256xf32>
    %95 = arith.mulf %94, %90 : vector<32x256xf32>
    %96 = arith.mulf %95, %93 : vector<32x256xf32>
    %97 = arith.mulf %93, %93 : vector<32x256xf32>
    %98 = arith.mulf %90, %96 : vector<32x256xf32>
    %99 = arith.addf %97, %98 : vector<32x256xf32>
    %cst_34 = arith.constant -2.000000e+00 : f32
    %100 = vector.broadcast %cst_34 : f32 to vector<32x256xf32>
    %101 = arith.mulf %100, %99 : vector<32x256xf32>
    %102 = arith.mulf %96, %78 : vector<32x256xf32>
    %103 = arith.mulf %96, %79 : vector<32x256xf32>
    %104 = arith.mulf %96, %81 : vector<32x256xf32>
    %105 = arith.mulf %96, %82 : vector<32x256xf32>
    %106 = arith.mulf %78, %78 : vector<32x256xf32>
    %107 = arith.mulf %101, %106 : vector<32x256xf32>
    %108 = arith.mulf %79, %79 : vector<32x256xf32>
    %109 = arith.mulf %101, %108 : vector<32x256xf32>
    %110 = arith.mulf %93, %78 : vector<32x256xf32>
    %111 = arith.mulf %93, %79 : vector<32x256xf32>
    %112 = arith.mulf %93, %80 : vector<32x256xf32>
    %113 = arith.mulf %102, %78 : vector<32x256xf32>
    %114 = arith.mulf %93, %81 : vector<32x256xf32>
    %115 = arith.addf %113, %114 : vector<32x256xf32>
    %116 = arith.mulf %103, %79 : vector<32x256xf32>
    %117 = arith.mulf %93, %82 : vector<32x256xf32>
    %118 = arith.addf %116, %117 : vector<32x256xf32>
    %119 = arith.mulf %102, %79 : vector<32x256xf32>
    %120 = arith.mulf %93, %83 : vector<32x256xf32>
    %121 = arith.addf %119, %120 : vector<32x256xf32>
    %122 = arith.mulf %102, %80 : vector<32x256xf32>
    %123 = arith.mulf %93, %84 : vector<32x256xf32>
    %124 = arith.addf %122, %123 : vector<32x256xf32>
    %125 = arith.mulf %103, %80 : vector<32x256xf32>
    %126 = arith.mulf %93, %85 : vector<32x256xf32>
    %127 = arith.addf %125, %126 : vector<32x256xf32>
    %cst_35 = arith.constant 3.000000e+00 : f32
    %128 = vector.broadcast %cst_35 : f32 to vector<32x256xf32>
    %129 = arith.mulf %128, %104 : vector<32x256xf32>
    %130 = arith.addf %107, %129 : vector<32x256xf32>
    %131 = arith.mulf %130, %78 : vector<32x256xf32>
    %132 = arith.mulf %93, %86 : vector<32x256xf32>
    %133 = arith.addf %131, %132 : vector<32x256xf32>
    %cst_36 = arith.constant 3.000000e+00 : f32
    %134 = vector.broadcast %cst_36 : f32 to vector<32x256xf32>
    %135 = arith.mulf %134, %105 : vector<32x256xf32>
    %136 = arith.addf %109, %135 : vector<32x256xf32>
    %137 = arith.mulf %136, %79 : vector<32x256xf32>
    %138 = arith.mulf %93, %87 : vector<32x256xf32>
    %139 = arith.addf %137, %138 : vector<32x256xf32>
    %140 = arith.addf %107, %104 : vector<32x256xf32>
    %141 = arith.mulf %140, %79 : vector<32x256xf32>
    %cst_37 = arith.constant 2.000000e+00 : f32
    %142 = vector.broadcast %cst_37 : f32 to vector<32x256xf32>
    %143 = arith.mulf %142, %102 : vector<32x256xf32>
    %144 = arith.mulf %143, %83 : vector<32x256xf32>
    %145 = arith.addf %141, %144 : vector<32x256xf32>
    %146 = arith.mulf %93, %88 : vector<32x256xf32>
    %147 = arith.addf %145, %146 : vector<32x256xf32>
    %148 = arith.addf %109, %105 : vector<32x256xf32>
    %149 = arith.mulf %148, %78 : vector<32x256xf32>
    %cst_38 = arith.constant 2.000000e+00 : f32
    %150 = vector.broadcast %cst_38 : f32 to vector<32x256xf32>
    %151 = arith.mulf %150, %103 : vector<32x256xf32>
    %152 = arith.mulf %151, %83 : vector<32x256xf32>
    %153 = arith.addf %149, %152 : vector<32x256xf32>
    %154 = arith.mulf %93, %89 : vector<32x256xf32>
    %155 = arith.addf %153, %154 : vector<32x256xf32>
    %156 = tpu.concatenate %90, %110, %111, %112, %115, %118, %121, %124, %127, %133, %139, %147, %155 in 1 : vector<32x256xf32>, vector<32x256xf32>, vector<32x256xf32>, vector<32x256xf32>, vector<32x256xf32>, vector<32x256xf32>, vector<32x256xf32>, vector<32x256xf32>, vector<32x256xf32>, vector<32x256xf32>, vector<32x256xf32>, vector<32x256xf32>, vector<32x256xf32> -> vector<32x3328xf32>
    %cst_39 = arith.constant dense<0.000000e+00> : vector<32x3328xf32>
    %157 = tpu.matmul %6, %156, %cst_39 {dimension_numbers = #tpu.dot_dimension_numbers<[1], [0], [0], [1], [0, 0, 1, 1], [], []>} : vector<32x32xf32>, vector<32x3328xf32>, vector<32x3328xf32> -> vector<32x3328xf32>
    %158 = vector.extract_strided_slice %157 {offsets = [0, 0], sizes = [32, 256], strides = [1, 1]} : vector<32x3328xf32> to vector<32x256xf32>
    %159 = vector.broadcast %17 : vector<32x1xf32> to vector<32x256xf32>
    %160 = arith.addf %158, %159 : vector<32x256xf32>
    %161 = vector.extract_strided_slice %157 {offsets = [0, 256], sizes = [32, 256], strides = [1, 1]} : vector<32x3328xf32> to vector<32x256xf32>
    %162 = vector.extract_strided_slice %157 {offsets = [0, 512], sizes = [32, 256], strides = [1, 1]} : vector<32x3328xf32> to vector<32x256xf32>
    %163 = vector.extract_strided_slice %157 {offsets = [0, 768], sizes = [32, 256], strides = [1, 1]} : vector<32x3328xf32> to vector<32x256xf32>
    %164 = vector.extract_strided_slice %157 {offsets = [0, 1024], sizes = [32, 256], strides = [1, 1]} : vector<32x3328xf32> to vector<32x256xf32>
    %165 = vector.extract_strided_slice %157 {offsets = [0, 1280], sizes = [32, 256], strides = [1, 1]} : vector<32x3328xf32> to vector<32x256xf32>
    %166 = vector.extract_strided_slice %157 {offsets = [0, 1536], sizes = [32, 256], strides = [1, 1]} : vector<32x3328xf32> to vector<32x256xf32>
    %167 = vector.extract_strided_slice %157 {offsets = [0, 1792], sizes = [32, 256], strides = [1, 1]} : vector<32x3328xf32> to vector<32x256xf32>
    %168 = vector.extract_strided_slice %157 {offsets = [0, 2048], sizes = [32, 256], strides = [1, 1]} : vector<32x3328xf32> to vector<32x256xf32>
    %169 = vector.extract_strided_slice %157 {offsets = [0, 2304], sizes = [32, 256], strides = [1, 1]} : vector<32x3328xf32> to vector<32x256xf32>
    %170 = vector.extract_strided_slice %157 {offsets = [0, 2560], sizes = [32, 256], strides = [1, 1]} : vector<32x3328xf32> to vector<32x256xf32>
    %171 = vector.extract_strided_slice %157 {offsets = [0, 2816], sizes = [32, 256], strides = [1, 1]} : vector<32x3328xf32> to vector<32x256xf32>
    %172 = vector.extract_strided_slice %157 {offsets = [0, 3072], sizes = [32, 256], strides = [1, 1]} : vector<32x3328xf32> to vector<32x256xf32>
    %173 = math.tanh %160 : vector<32x256xf32>
    %174 = arith.mulf %173, %173 : vector<32x256xf32>
    %cst_40 = arith.constant 1.000000e+00 : f32
    %175 = vector.broadcast %cst_40 : f32 to vector<32x256xf32>
    %176 = arith.subf %175, %174 : vector<32x256xf32>
    %cst_41 = arith.constant -2.000000e+00 : f32
    %177 = vector.broadcast %cst_41 : f32 to vector<32x256xf32>
    %178 = arith.mulf %177, %173 : vector<32x256xf32>
    %179 = arith.mulf %178, %176 : vector<32x256xf32>
    %180 = arith.mulf %176, %176 : vector<32x256xf32>
    %181 = arith.mulf %173, %179 : vector<32x256xf32>
    %182 = arith.addf %180, %181 : vector<32x256xf32>
    %cst_42 = arith.constant -2.000000e+00 : f32
    %183 = vector.broadcast %cst_42 : f32 to vector<32x256xf32>
    %184 = arith.mulf %183, %182 : vector<32x256xf32>
    %185 = arith.mulf %179, %161 : vector<32x256xf32>
    %186 = arith.mulf %179, %162 : vector<32x256xf32>
    %187 = arith.mulf %179, %164 : vector<32x256xf32>
    %188 = arith.mulf %179, %165 : vector<32x256xf32>
    %189 = arith.mulf %161, %161 : vector<32x256xf32>
    %190 = arith.mulf %184, %189 : vector<32x256xf32>
    %191 = arith.mulf %162, %162 : vector<32x256xf32>
    %192 = arith.mulf %184, %191 : vector<32x256xf32>
    %193 = arith.mulf %176, %161 : vector<32x256xf32>
    %194 = arith.mulf %176, %162 : vector<32x256xf32>
    %195 = arith.mulf %176, %163 : vector<32x256xf32>
    %196 = arith.mulf %185, %161 : vector<32x256xf32>
    %197 = arith.mulf %176, %164 : vector<32x256xf32>
    %198 = arith.addf %196, %197 : vector<32x256xf32>
    %199 = arith.mulf %186, %162 : vector<32x256xf32>
    %200 = arith.mulf %176, %165 : vector<32x256xf32>
    %201 = arith.addf %199, %200 : vector<32x256xf32>
    %202 = arith.mulf %185, %162 : vector<32x256xf32>
    %203 = arith.mulf %176, %166 : vector<32x256xf32>
    %204 = arith.addf %202, %203 : vector<32x256xf32>
    %205 = arith.mulf %185, %163 : vector<32x256xf32>
    %206 = arith.mulf %176, %167 : vector<32x256xf32>
    %207 = arith.addf %205, %206 : vector<32x256xf32>
    %208 = arith.mulf %186, %163 : vector<32x256xf32>
    %209 = arith.mulf %176, %168 : vector<32x256xf32>
    %210 = arith.addf %208, %209 : vector<32x256xf32>
    %cst_43 = arith.constant 3.000000e+00 : f32
    %211 = vector.broadcast %cst_43 : f32 to vector<32x256xf32>
    %212 = arith.mulf %211, %187 : vector<32x256xf32>
    %213 = arith.addf %190, %212 : vector<32x256xf32>
    %214 = arith.mulf %213, %161 : vector<32x256xf32>
    %215 = arith.mulf %176, %169 : vector<32x256xf32>
    %216 = arith.addf %214, %215 : vector<32x256xf32>
    %cst_44 = arith.constant 3.000000e+00 : f32
    %217 = vector.broadcast %cst_44 : f32 to vector<32x256xf32>
    %218 = arith.mulf %217, %188 : vector<32x256xf32>
    %219 = arith.addf %192, %218 : vector<32x256xf32>
    %220 = arith.mulf %219, %162 : vector<32x256xf32>
    %221 = arith.mulf %176, %170 : vector<32x256xf32>
    %222 = arith.addf %220, %221 : vector<32x256xf32>
    %223 = arith.addf %190, %187 : vector<32x256xf32>
    %224 = arith.mulf %223, %162 : vector<32x256xf32>
    %cst_45 = arith.constant 2.000000e+00 : f32
    %225 = vector.broadcast %cst_45 : f32 to vector<32x256xf32>
    %226 = arith.mulf %225, %185 : vector<32x256xf32>
    %227 = arith.mulf %226, %166 : vector<32x256xf32>
    %228 = arith.addf %224, %227 : vector<32x256xf32>
    %229 = arith.mulf %176, %171 : vector<32x256xf32>
    %230 = arith.addf %228, %229 : vector<32x256xf32>
    %231 = arith.addf %192, %188 : vector<32x256xf32>
    %232 = arith.mulf %231, %161 : vector<32x256xf32>
    %cst_46 = arith.constant 2.000000e+00 : f32
    %233 = vector.broadcast %cst_46 : f32 to vector<32x256xf32>
    %234 = arith.mulf %233, %186 : vector<32x256xf32>
    %235 = arith.mulf %234, %166 : vector<32x256xf32>
    %236 = arith.addf %232, %235 : vector<32x256xf32>
    %237 = arith.mulf %176, %172 : vector<32x256xf32>
    %238 = arith.addf %236, %237 : vector<32x256xf32>
    %239 = tpu.concatenate %173, %193, %194, %195, %198, %201, %204, %207, %210, %216, %222, %230, %238 in 1 : vector<32x256xf32>, vector<32x256xf32>, vector<32x256xf32>, vector<32x256xf32>, vector<32x256xf32>, vector<32x256xf32>, vector<32x256xf32>, vector<32x256xf32>, vector<32x256xf32>, vector<32x256xf32>, vector<32x256xf32>, vector<32x256xf32>, vector<32x256xf32> -> vector<32x3328xf32>
    %cst_47 = arith.constant dense<0.000000e+00> : vector<32x3328xf32>
    %240 = tpu.matmul %8, %239, %cst_47 {dimension_numbers = #tpu.dot_dimension_numbers<[1], [0], [0], [1], [0, 0, 1, 1], [], []>} : vector<32x32xf32>, vector<32x3328xf32>, vector<32x3328xf32> -> vector<32x3328xf32>
    %241 = vector.extract_strided_slice %240 {offsets = [0, 0], sizes = [32, 256], strides = [1, 1]} : vector<32x3328xf32> to vector<32x256xf32>
    %242 = vector.broadcast %18 : vector<32x1xf32> to vector<32x256xf32>
    %243 = arith.addf %241, %242 : vector<32x256xf32>
    %244 = vector.extract_strided_slice %240 {offsets = [0, 256], sizes = [32, 256], strides = [1, 1]} : vector<32x3328xf32> to vector<32x256xf32>
    %245 = vector.extract_strided_slice %240 {offsets = [0, 512], sizes = [32, 256], strides = [1, 1]} : vector<32x3328xf32> to vector<32x256xf32>
    %246 = vector.extract_strided_slice %240 {offsets = [0, 768], sizes = [32, 256], strides = [1, 1]} : vector<32x3328xf32> to vector<32x256xf32>
    %247 = vector.extract_strided_slice %240 {offsets = [0, 1024], sizes = [32, 256], strides = [1, 1]} : vector<32x3328xf32> to vector<32x256xf32>
    %248 = vector.extract_strided_slice %240 {offsets = [0, 1280], sizes = [32, 256], strides = [1, 1]} : vector<32x3328xf32> to vector<32x256xf32>
    %249 = vector.extract_strided_slice %240 {offsets = [0, 1536], sizes = [32, 256], strides = [1, 1]} : vector<32x3328xf32> to vector<32x256xf32>
    %250 = vector.extract_strided_slice %240 {offsets = [0, 1792], sizes = [32, 256], strides = [1, 1]} : vector<32x3328xf32> to vector<32x256xf32>
    %251 = vector.extract_strided_slice %240 {offsets = [0, 2048], sizes = [32, 256], strides = [1, 1]} : vector<32x3328xf32> to vector<32x256xf32>
    %252 = vector.extract_strided_slice %240 {offsets = [0, 2304], sizes = [32, 256], strides = [1, 1]} : vector<32x3328xf32> to vector<32x256xf32>
    %253 = vector.extract_strided_slice %240 {offsets = [0, 2560], sizes = [32, 256], strides = [1, 1]} : vector<32x3328xf32> to vector<32x256xf32>
    %254 = vector.extract_strided_slice %240 {offsets = [0, 2816], sizes = [32, 256], strides = [1, 1]} : vector<32x3328xf32> to vector<32x256xf32>
    %255 = vector.extract_strided_slice %240 {offsets = [0, 3072], sizes = [32, 256], strides = [1, 1]} : vector<32x3328xf32> to vector<32x256xf32>
    %256 = math.tanh %243 : vector<32x256xf32>
    %257 = arith.mulf %256, %256 : vector<32x256xf32>
    %cst_48 = arith.constant 1.000000e+00 : f32
    %258 = vector.broadcast %cst_48 : f32 to vector<32x256xf32>
    %259 = arith.subf %258, %257 : vector<32x256xf32>
    %cst_49 = arith.constant -2.000000e+00 : f32
    %260 = vector.broadcast %cst_49 : f32 to vector<32x256xf32>
    %261 = arith.mulf %260, %256 : vector<32x256xf32>
    %262 = arith.mulf %261, %259 : vector<32x256xf32>
    %263 = arith.mulf %259, %259 : vector<32x256xf32>
    %264 = arith.mulf %256, %262 : vector<32x256xf32>
    %265 = arith.addf %263, %264 : vector<32x256xf32>
    %cst_50 = arith.constant -2.000000e+00 : f32
    %266 = vector.broadcast %cst_50 : f32 to vector<32x256xf32>
    %267 = arith.mulf %266, %265 : vector<32x256xf32>
    %268 = arith.mulf %262, %244 : vector<32x256xf32>
    %269 = arith.mulf %262, %245 : vector<32x256xf32>
    %270 = arith.mulf %262, %247 : vector<32x256xf32>
    %271 = arith.mulf %262, %248 : vector<32x256xf32>
    %272 = arith.mulf %244, %244 : vector<32x256xf32>
    %273 = arith.mulf %267, %272 : vector<32x256xf32>
    %274 = arith.mulf %245, %245 : vector<32x256xf32>
    %275 = arith.mulf %267, %274 : vector<32x256xf32>
    %276 = arith.mulf %259, %244 : vector<32x256xf32>
    %277 = arith.mulf %259, %245 : vector<32x256xf32>
    %278 = arith.mulf %259, %246 : vector<32x256xf32>
    %279 = arith.mulf %268, %244 : vector<32x256xf32>
    %280 = arith.mulf %259, %247 : vector<32x256xf32>
    %281 = arith.addf %279, %280 : vector<32x256xf32>
    %282 = arith.mulf %269, %245 : vector<32x256xf32>
    %283 = arith.mulf %259, %248 : vector<32x256xf32>
    %284 = arith.addf %282, %283 : vector<32x256xf32>
    %285 = arith.mulf %268, %245 : vector<32x256xf32>
    %286 = arith.mulf %259, %249 : vector<32x256xf32>
    %287 = arith.addf %285, %286 : vector<32x256xf32>
    %288 = arith.mulf %268, %246 : vector<32x256xf32>
    %289 = arith.mulf %259, %250 : vector<32x256xf32>
    %290 = arith.addf %288, %289 : vector<32x256xf32>
    %291 = arith.mulf %269, %246 : vector<32x256xf32>
    %292 = arith.mulf %259, %251 : vector<32x256xf32>
    %293 = arith.addf %291, %292 : vector<32x256xf32>
    %cst_51 = arith.constant 3.000000e+00 : f32
    %294 = vector.broadcast %cst_51 : f32 to vector<32x256xf32>
    %295 = arith.mulf %294, %270 : vector<32x256xf32>
    %296 = arith.addf %273, %295 : vector<32x256xf32>
    %297 = arith.mulf %296, %244 : vector<32x256xf32>
    %298 = arith.mulf %259, %252 : vector<32x256xf32>
    %299 = arith.addf %297, %298 : vector<32x256xf32>
    %cst_52 = arith.constant 3.000000e+00 : f32
    %300 = vector.broadcast %cst_52 : f32 to vector<32x256xf32>
    %301 = arith.mulf %300, %271 : vector<32x256xf32>
    %302 = arith.addf %275, %301 : vector<32x256xf32>
    %303 = arith.mulf %302, %245 : vector<32x256xf32>
    %304 = arith.mulf %259, %253 : vector<32x256xf32>
    %305 = arith.addf %303, %304 : vector<32x256xf32>
    %306 = arith.addf %273, %270 : vector<32x256xf32>
    %307 = arith.mulf %306, %245 : vector<32x256xf32>
    %cst_53 = arith.constant 2.000000e+00 : f32
    %308 = vector.broadcast %cst_53 : f32 to vector<32x256xf32>
    %309 = arith.mulf %308, %268 : vector<32x256xf32>
    %310 = arith.mulf %309, %249 : vector<32x256xf32>
    %311 = arith.addf %307, %310 : vector<32x256xf32>
    %312 = arith.mulf %259, %254 : vector<32x256xf32>
    %313 = arith.addf %311, %312 : vector<32x256xf32>
    %314 = arith.addf %275, %271 : vector<32x256xf32>
    %315 = arith.mulf %314, %244 : vector<32x256xf32>
    %cst_54 = arith.constant 2.000000e+00 : f32
    %316 = vector.broadcast %cst_54 : f32 to vector<32x256xf32>
    %317 = arith.mulf %316, %269 : vector<32x256xf32>
    %318 = arith.mulf %317, %249 : vector<32x256xf32>
    %319 = arith.addf %315, %318 : vector<32x256xf32>
    %320 = arith.mulf %259, %255 : vector<32x256xf32>
    %321 = arith.addf %319, %320 : vector<32x256xf32>
    %322 = tpu.concatenate %256, %276, %277, %278, %281, %284, %287, %290, %293, %299, %305, %313, %321 in 1 : vector<32x256xf32>, vector<32x256xf32>, vector<32x256xf32>, vector<32x256xf32>, vector<32x256xf32>, vector<32x256xf32>, vector<32x256xf32>, vector<32x256xf32>, vector<32x256xf32>, vector<32x256xf32>, vector<32x256xf32>, vector<32x256xf32>, vector<32x256xf32> -> vector<32x3328xf32>
    %cst_55 = arith.constant dense<0.000000e+00> : vector<2x3328xf32>
    %323 = tpu.matmul %12, %322, %cst_55 {dimension_numbers = #tpu.dot_dimension_numbers<[1], [0], [0], [1], [0, 0, 1, 1], [], []>} : vector<2x32xf32>, vector<32x3328xf32>, vector<2x3328xf32> -> vector<2x3328xf32>
    %324 = vector.extract_strided_slice %239 {offsets = [0, 0], sizes = [32, 768], strides = [1, 1]} : vector<32x3328xf32> to vector<32x768xf32>
    %cst_56 = arith.constant dense<0.000000e+00> : vector<32x768xf32>
    %325 = tpu.matmul %10, %324, %cst_56 {dimension_numbers = #tpu.dot_dimension_numbers<[1], [0], [0], [1], [0, 0, 1, 1], [], []>} : vector<32x32xf32>, vector<32x768xf32>, vector<32x768xf32> -> vector<32x768xf32>
    %326 = vector.extract_strided_slice %325 {offsets = [0, 0], sizes = [32, 256], strides = [1, 1]} : vector<32x768xf32> to vector<32x256xf32>
    %327 = vector.broadcast %19 : vector<32x1xf32> to vector<32x256xf32>
    %328 = arith.addf %326, %327 : vector<32x256xf32>
    %329 = math.tanh %328 : vector<32x256xf32>
    %330 = arith.mulf %329, %329 : vector<32x256xf32>
    %cst_57 = arith.constant 1.000000e+00 : f32
    %331 = vector.broadcast %cst_57 : f32 to vector<32x256xf32>
    %332 = arith.subf %331, %330 : vector<32x256xf32>
    %333 = vector.extract_strided_slice %325 {offsets = [0, 256], sizes = [32, 256], strides = [1, 1]} : vector<32x768xf32> to vector<32x256xf32>
    %334 = arith.mulf %332, %333 : vector<32x256xf32>
    %335 = vector.extract_strided_slice %325 {offsets = [0, 512], sizes = [32, 256], strides = [1, 1]} : vector<32x768xf32> to vector<32x256xf32>
    %336 = arith.mulf %332, %335 : vector<32x256xf32>
    %337 = tpu.concatenate %329, %334, %336 in 1 : vector<32x256xf32>, vector<32x256xf32>, vector<32x256xf32> -> vector<32x768xf32>
    %cst_58 = arith.constant dense<0.000000e+00> : vector<2x768xf32>
    %338 = tpu.matmul %14, %337, %cst_58 {dimension_numbers = #tpu.dot_dimension_numbers<[1], [0], [0], [1], [0, 0, 1, 1], [], []>} : vector<2x32xf32>, vector<32x768xf32>, vector<2x768xf32> -> vector<2x768xf32>
    %c0_59 = arith.constant 0 : index
    %339 = memref.load %arg5[%c0_59] : memref<2xf32, #tpu.memory_space<smem>>
    %c1_60 = arith.constant 1 : index
    %340 = memref.load %arg5[%c1_60] : memref<2xf32, #tpu.memory_space<smem>>
    %341 = vector.extract_strided_slice %323 {offsets = [0, 512], sizes = [1, 256], strides = [1, 1]} : vector<2x3328xf32> to vector<1x256xf32>
    %342 = vector.extract_strided_slice %323 {offsets = [0, 256], sizes = [1, 256], strides = [1, 1]} : vector<2x3328xf32> to vector<1x256xf32>
    %cst_61 = arith.constant 0.000000e+00 : f32
    %343 = vector.broadcast %cst_61 : f32 to vector<1x256xf32>
    %344 = arith.subf %343, %342 : vector<1x256xf32>
    %345 = vector.extract_strided_slice %323 {offsets = [0, 2048], sizes = [1, 256], strides = [1, 1]} : vector<2x3328xf32> to vector<1x256xf32>
    %346 = vector.extract_strided_slice %323 {offsets = [0, 1536], sizes = [1, 256], strides = [1, 1]} : vector<2x3328xf32> to vector<1x256xf32>
    %347 = vector.extract_strided_slice %323 {offsets = [0, 1280], sizes = [1, 256], strides = [1, 1]} : vector<2x3328xf32> to vector<1x256xf32>
    %348 = vector.extract_strided_slice %323 {offsets = [0, 1792], sizes = [1, 256], strides = [1, 1]} : vector<2x3328xf32> to vector<1x256xf32>
    %cst_62 = arith.constant 0.000000e+00 : f32
    %349 = vector.broadcast %cst_62 : f32 to vector<1x256xf32>
    %350 = arith.subf %349, %348 : vector<1x256xf32>
    %351 = vector.extract_strided_slice %323 {offsets = [0, 1024], sizes = [1, 256], strides = [1, 1]} : vector<2x3328xf32> to vector<1x256xf32>
    %cst_63 = arith.constant 0.000000e+00 : f32
    %352 = vector.broadcast %cst_63 : f32 to vector<1x256xf32>
    %353 = arith.subf %352, %351 : vector<1x256xf32>
    %354 = vector.extract_strided_slice %323 {offsets = [0, 1536], sizes = [1, 256], strides = [1, 1]} : vector<2x3328xf32> to vector<1x256xf32>
    %cst_64 = arith.constant 0.000000e+00 : f32
    %355 = vector.broadcast %cst_64 : f32 to vector<1x256xf32>
    %356 = arith.subf %355, %354 : vector<1x256xf32>
    %357 = vector.extract_strided_slice %323 {offsets = [1, 256], sizes = [1, 256], strides = [1, 1]} : vector<2x3328xf32> to vector<1x256xf32>
    %358 = vector.extract_strided_slice %323 {offsets = [1, 512], sizes = [1, 256], strides = [1, 1]} : vector<2x3328xf32> to vector<1x256xf32>
    %359 = vector.extract_strided_slice %323 {offsets = [0, 2816], sizes = [1, 256], strides = [1, 1]} : vector<2x3328xf32> to vector<1x256xf32>
    %360 = vector.extract_strided_slice %323 {offsets = [0, 2560], sizes = [1, 256], strides = [1, 1]} : vector<2x3328xf32> to vector<1x256xf32>
    %361 = vector.extract_strided_slice %323 {offsets = [0, 2304], sizes = [1, 256], strides = [1, 1]} : vector<2x3328xf32> to vector<1x256xf32>
    %cst_65 = arith.constant 0.000000e+00 : f32
    %362 = vector.broadcast %cst_65 : f32 to vector<1x256xf32>
    %363 = arith.subf %362, %361 : vector<1x256xf32>
    %364 = vector.extract_strided_slice %323 {offsets = [0, 3072], sizes = [1, 256], strides = [1, 1]} : vector<2x3328xf32> to vector<1x256xf32>
    %cst_66 = arith.constant 0.000000e+00 : f32
    %365 = vector.broadcast %cst_66 : f32 to vector<1x256xf32>
    %366 = arith.subf %365, %364 : vector<1x256xf32>
    %367 = arith.mulf %341, %346 : vector<1x256xf32>
    %368 = arith.addf %345, %367 : vector<1x256xf32>
    %369 = arith.mulf %344, %347 : vector<1x256xf32>
    %370 = arith.addf %368, %369 : vector<1x256xf32>
    %371 = vector.broadcast %339 : f32 to vector<1x256xf32>
    %372 = arith.mulf %371, %370 : vector<1x256xf32>
    %373 = arith.addf %372, %357 : vector<1x256xf32>
    %374 = arith.addf %359, %360 : vector<1x256xf32>
    %375 = vector.broadcast %340 : f32 to vector<1x256xf32>
    %376 = arith.mulf %375, %374 : vector<1x256xf32>
    %377 = arith.subf %373, %376 : vector<1x256xf32>
    %378 = arith.mulf %341, %353 : vector<1x256xf32>
    %379 = arith.addf %350, %378 : vector<1x256xf32>
    %380 = arith.mulf %344, %356 : vector<1x256xf32>
    %381 = arith.addf %379, %380 : vector<1x256xf32>
    %382 = vector.broadcast %339 : f32 to vector<1x256xf32>
    %383 = arith.mulf %382, %381 : vector<1x256xf32>
    %384 = arith.addf %383, %358 : vector<1x256xf32>
    %385 = arith.addf %363, %366 : vector<1x256xf32>
    %386 = vector.broadcast %340 : f32 to vector<1x256xf32>
    %387 = arith.mulf %386, %385 : vector<1x256xf32>
    %388 = arith.subf %384, %387 : vector<1x256xf32>
    %389 = vector.extract_strided_slice %338 {offsets = [1, 0], sizes = [1, 256], strides = [1, 1]} : vector<2x768xf32> to vector<1x256xf32>
    %390 = vector.broadcast %20 : vector<1x1xf32> to vector<1x256xf32>
    %391 = arith.addf %389, %390 : vector<1x256xf32>
    %392 = vector.extract_strided_slice %338 {offsets = [0, 512], sizes = [1, 256], strides = [1, 1]} : vector<2x768xf32> to vector<1x256xf32>
    %393 = vector.extract_strided_slice %338 {offsets = [0, 256], sizes = [1, 256], strides = [1, 1]} : vector<2x768xf32> to vector<1x256xf32>
    %cst_67 = arith.constant 0.000000e+00 : f32
    %394 = vector.broadcast %cst_67 : f32 to vector<1x256xf32>
    %395 = arith.subf %394, %393 : vector<1x256xf32>
    %cst_68 = arith.constant 0.000000e+00 : f32
    %396 = vector.broadcast %cst_68 : f32 to vector<3x256xf32>
    %397 = tpu.concatenate %391, %392, %395, %377, %388, %396 in 0 : vector<1x256xf32>, vector<1x256xf32>, vector<1x256xf32>, vector<1x256xf32>, vector<1x256xf32>, vector<3x256xf32> -> vector<8x256xf32>
    %c0_69 = arith.constant 0 : index
    %c0_70 = arith.constant 0 : index
    %398 = vector.load %arg6[%c0_69, %c0_70] : memref<8x256xf32, #tpu.memory_space<vmem>>, vector<8x256xf32>
    tpu.vector_store %arg6[%c0_69, %c0_70], %397 {strides = array<i32>} : memref<8x256xf32, #tpu.memory_space<vmem>>, vector<8x256xf32>,
    return
  }
  func.func @transform_0(%arg0: i32) -> (i32, i32) {
    %c0_i32 = arith.constant 0 : i32
    %c0_i32_0 = arith.constant 0 : i32
    return %c0_i32, %arg0 : i32, i32
  }
  func.func @transform_1(%arg0: i32) -> (i32, i32, i32) {
    %c0_i32 = arith.constant 0 : i32
    %c0_i32_0 = arith.constant 0 : i32
    %c0_i32_1 = arith.constant 0 : i32
    %c0_i32_2 = arith.constant 0 : i32
    return %c0_i32, %c0_i32_0, %c0_i32_1 : i32, i32, i32
  }
  func.func @transform_2(%arg0: i32) -> (i32, i32, i32) {
    %c0_i32 = arith.constant 0 : i32
    %c0_i32_0 = arith.constant 0 : i32
    %c0_i32_1 = arith.constant 0 : i32
    %c0_i32_2 = arith.constant 0 : i32
    return %c0_i32, %c0_i32_0, %c0_i32_1 : i32, i32, i32
  }
  func.func @transform_3(%arg0: i32) -> (i32, i32) {
    %c0_i32 = arith.constant 0 : i32
    %c0_i32_0 = arith.constant 0 : i32
    %c0_i32_1 = arith.constant 0 : i32
    return %c0_i32, %c0_i32_0 : i32, i32
  }
  func.func @transform_4(%arg0: i32) -> i32 {
    %c0_i32 = arith.constant 0 : i32
    %c0_i32_0 = arith.constant 0 : i32
    return %c0_i32 : i32
  }
  func.func @transform_5(%arg0: i32) -> (i32, i32) {
    %c0_i32 = arith.constant 0 : i32
    %c0_i32_0 = arith.constant 0 : i32
    return %c0_i32, %arg0 : i32, i32
  }
}

</mosaic_0001>

<llo_original>
// kernel: tpu_custom_call.1
$region0: #{tpu_custom_call.1}
  #allocation0 [shape = 'u32[]', space=smem, size = 0x4, offset = 0x4, fixed_abs, tag = 'smem constant byte address 0x4 - core index']
  #allocation1 [shape = 'u32[144,128]{1,0:T(1,128)}', space=vmem, size = 0x12000, scoped, tag = 'internal scratch']
  %s0 = inlined_call_operand.vmem [shape: f32[3,512], index: 0, kind: input, shape index: {}]
  %s1 = inlined_call_operand.hbm [shape: f32[5,32,32], index: 1, kind: input, shape index: {}]
  %s2 = inlined_call_operand.vmem [shape: f32[2,2,32], index: 2, kind: input, shape index: {}]
  %s3 = inlined_call_operand.vmem [shape: f32[32,8], index: 3, kind: input, shape index: {}]
  %s4 = inlined_call_operand.vmem [shape: f32[2], index: 4, kind: input, shape index: {}]
  %s5 = inlined_call_operand.hbm [shape: f32[8,512], index: 5, kind: output, shape index: {}]
  %s6 = sld [smem:[#allocation0]]
  $region61: #{tpu_custom_call.1} parent=0
    _
  %s8 = ssub.s32 1, %s6
  %s9 = scalar_select 0, %s8, %s6
  $region1: #{tpu_custom_call.1} parent=0
    #allocation2 [shape = 'u8[81920]{0}', space=vmem, size = 0x14000, scoped, tag = 'input window, operand 1, single buffered']
    #allocation3 [shape = 's32[2]{0}', space=sflag, size = 0x8, scoped, tag = 'scoped memory for tpu_custom_call.1']
    #allocation4 [shape = 's32[2]{0}', space=sflag, size = 0x8, scoped, tag = 'scoped memory for tpu_custom_call.1']
    #allocation5 [shape = 's32[2]{0}', space=sflag, size = 0x8, scoped, tag = 'scoped memory for tpu_custom_call.1']
    #allocation6 [shape = 'u8[512]{0}', space=smem, size = 0x200, scoped, tag = 'input window, operand 4, single buffered']
    #allocation7 [shape = 'u8[16384]{0}', space=vmem, size = 0x4000, scoped, tag = 'output window, operand 0']
    %10 = vsyncpa [#allocation3], 0
    %11 = vsyncpa [#allocation5], 0
    %12 = vsyncpa [#allocation4], 0
    %s13 = scalar_lea.sflag [#allocation4], 1
    %14 = vsyncpa %s13, 0
    loop: start=0, step=1, limit=4
    $region2: #{tpu_custom_call.1} parent=1 // loop_pre_header
      _
    $region3: #{tpu_custom_call.1} parent=1 // loop_header
      %s16 = sphi 0, %s20
      %p17 = scmp.ge.s32.totalorder %s16, 4
      %s26 = sphi 0, %s28
      %s29 = sphi 0, %s26
      %s30 = sphi 0, %s29
      %s46 = sphi 0, %s30
      %s50 = sphi 0, %s50
      %s52 = sphi 0, %s50
      %s53 = sphi 0, %s52
      %s67 = sphi 0, %s53
      %s71 = sphi 0, %s71
      %s73 = sphi 0, %s71
      %s74 = sphi 0, %s73
      %s88 = sphi 0, %s74
      %s92 = sphi 0, %s92
      %s94 = sphi 0, %s92
      %s95 = sphi 0, %s94
      %s109 = sphi 0, %s95
      %s113 = sphi 0, %s113
      %s115 = sphi 0, %s113
      %s116 = sphi 0, %s115
      %s130 = sphi 0, %s116
      %s136 = sphi 0, %s138
      %s139 = sphi 0, %s136
      %s140 = sphi 0, %s139
      %s156 = sphi 0, %s140
    $region4: #{tpu_custom_call.1} parent=1 // loop_header_branch
      %19 = sbr.rel (%p17) target = $region8
    $region5: #{tpu_custom_call.1} parent=1 // loop_body
      %s21 = ssub.s32 %s16, 1
      %s22 = ssub.s32 %s16, 2
      %s23 = sadd.s32 %s16, 1
      %s24 = ssub.s32 %s16, %s23
      %p25 = scmp.eq.s32.totalorder %s24, 0
      %s27 = sadd.s32 %s26, 1
      %s28 = scalar_select %p25, %s26, %s27
      %p31 = pneg %p25
      %p32 = scmp.eq.s32.totalorder %s16, 1
      %p33 = por %p31, %p32
      %p34 = scmp.ne.s32.totalorder %s26, %s29
      %p35 = scmp.eq.s32.totalorder %s16, 0
      %p36 = por %p34, %p35
      %p37 = scmp.ne.s32.totalorder %s26, %s29
      %p38 = scmp.eq.s32.totalorder %s21, 1
      %p39 = por %p37, %p38
      %p40 = scmp.ne.s32.totalorder %s29, %s30
      %p41 = scmp.eq.s32.totalorder %s21, 0
      %p42 = por %p40, %p41
      %p43 = scmp.ne.s32.totalorder %s29, %s30
      %p44 = scmp.eq.s32.totalorder %s22, 1
      %p45 = por %p43, %p44
      %p47 = scmp.ne.s32.totalorder %s30, %s46
      %p48 = scmp.eq.s32.totalorder %s22, 0
      %p49 = por %p47, %p48
      %s51 = sadd.s32 %s50, 1
      %p54 = scmp.eq.s32.totalorder %s16, 1
      %p55 = scmp.ne.s32.totalorder %s50, %s52
      %p56 = scmp.eq.s32.totalorder %s16, 0
      %p57 = por %p55, %p56
      %p58 = scmp.ne.s32.totalorder %s50, %s52
      %p59 = scmp.eq.s32.totalorder %s21, 1
      %p60 = por %p58, %p59
      %p61 = scmp.ne.s32.totalorder %s52, %s53
      %p62 = scmp.eq.s32.totalorder %s21, 0
      %p63 = por %p61, %p62
      %p64 = scmp.ne.s32.totalorder %s52, %s53
      %p65 = scmp.eq.s32.totalorder %s22, 1
      %p66 = por %p64, %p65
      %p68 = scmp.ne.s32.totalorder %s53, %s67
      %p69 = scmp.eq.s32.totalorder %s22, 0
      %p70 = por %p68, %p69
      %s72 = sadd.s32 %s71, 1
      %p75 = scmp.eq.s32.totalorder %s16, 1
      %p76 = scmp.ne.s32.totalorder %s71, %s73
      %p77 = scmp.eq.s32.totalorder %s16, 0
      %p78 = por %p76, %p77
      %p79 = scmp.ne.s32.totalorder %s71, %s73
      %p80 = scmp.eq.s32.totalorder %s21, 1
      %p81 = por %p79, %p80
      %p82 = scmp.ne.s32.totalorder %s73, %s74
      %p83 = scmp.eq.s32.totalorder %s21, 0
      %p84 = por %p82, %p83
      %p85 = scmp.ne.s32.totalorder %s73, %s74
      %p86 = scmp.eq.s32.totalorder %s22, 1
      %p87 = por %p85, %p86
      %p89 = scmp.ne.s32.totalorder %s74, %s88
      %p90 = scmp.eq.s32.totalorder %s22, 0
      %p91 = por %p89, %p90
      %s93 = sadd.s32 %s92, 1
      %p96 = scmp.eq.s32.totalorder %s16, 1
      %p97 = scmp.ne.s32.totalorder %s92, %s94
      %p98 = scmp.eq.s32.totalorder %s16, 0
      %p99 = por %p97, %p98
      %p100 = scmp.ne.s32.totalorder %s92, %s94
      %p101 = scmp.eq.s32.totalorder %s21, 1
      %p102 = por %p100, %p101
      %p103 = scmp.ne.s32.totalorder %s94, %s95
      %p104 = scmp.eq.s32.totalorder %s21, 0
      %p105 = por %p103, %p104
      %p106 = scmp.ne.s32.totalorder %s94, %s95
      %p107 = scmp.eq.s32.totalorder %s22, 1
      %p108 = por %p106, %p107
      %p110 = scmp.ne.s32.totalorder %s95, %s109
      %p111 = scmp.eq.s32.totalorder %s22, 0
      %p112 = por %p110, %p111
      %s114 = sadd.s32 %s113, 1
      %p117 = scmp.eq.s32.totalorder %s16, 1
      %p118 = scmp.ne.s32.totalorder %s113, %s115
      %p119 = scmp.eq.s32.totalorder %s16, 0
      %p120 = por %p118, %p119
      %p121 = scmp.ne.s32.totalorder %s113, %s115
      %p122 = scmp.eq.s32.totalorder %s21, 1
      %p123 = por %p121, %p122
      %p124 = scmp.ne.s32.totalorder %s115, %s116
      %p125 = scmp.eq.s32.totalorder %s21, 0
      %p126 = por %p124, %p125
      %p127 = scmp.ne.s32.totalorder %s115, %s116
      %p128 = scmp.eq.s32.totalorder %s22, 1
      %p129 = por %p127, %p128
      %p131 = scmp.ne.s32.totalorder %s116, %s130
      %p132 = scmp.eq.s32.totalorder %s22, 0
      %p133 = por %p131, %p132
      %s134 = ssub.s32 %s16, %s23
      %p135 = scmp.eq.s32.totalorder %s134, 0
      %s137 = sadd.s32 %s136, 1
      %s138 = scalar_select %p135, %s136, %s137
      %p141 = pneg %p135
      %p142 = scmp.eq.s32.totalorder %s16, 1
      %p143 = por %p141, %p142
      %p144 = scmp.ne.s32.totalorder %s136, %s139
      %p145 = scmp.eq.s32.totalorder %s16, 0
      %p146 = por %p144, %p145
      %p147 = scmp.ne.s32.totalorder %s136, %s139
      %p148 = scmp.eq.s32.totalorder %s21, 1
      %p149 = por %p147, %p148
      %p150 = scmp.ne.s32.totalorder %s139, %s140
      %p151 = scmp.eq.s32.totalorder %s21, 0
      %p152 = por %p150, %p151
      %p153 = scmp.ne.s32.totalorder %s139, %s140
      %p154 = scmp.eq.s32.totalorder %s22, 1
      %p155 = por %p153, %p154
      %p157 = scmp.ne.s32.totalorder %s140, %s156
      %p158 = scmp.eq.s32.totalorder %s22, 0
      %p159 = por %p157, %p158
      %p160 = scmp.le.s32.totalorder 1, %s16
      %p161 = scmp.lt.s32.totalorder %s16, 3
      %p162 = pnand %p160, %p161
      %p163 = pneg %p162
      // Predicated region
      $region9: #{tpu_custom_call.1} parent=5 // pred_check
        _
      $region10: #{tpu_custom_call.1} parent=5 // pred_check_branch
        %165 = sbr.rel (%p162) target = $region12
      $region11: #{tpu_custom_call.1} parent=5 // pred_region
        %s166 = ssub.s32 %s16, 1
        // Predicated region
        $region13: #{tpu_custom_call.1} parent=11 // pred_check
          %p167 = pneg %p63
        $region14: #{tpu_custom_call.1} parent=11 // pred_check_branch
          %169 = sbr.rel (%p167) target = $region16
        $region15: #{tpu_custom_call.1} parent=11 // pred_region
          %s171 = ssub.s32 2560, 2560
          %172 = vsyncadd [#allocation3], %s171
          %s173 = sshll.u32 [#allocation2], 4
          %s174 = int_to_ptr.vmem [resolvable:$true] %s173
          %179 = dma.hbm_to_vmem [thread:$0]  %s1, 2560, %s174, [#allocation3], 128, 128, 8
        $region16: #{tpu_custom_call.1} parent=11 // pred_fallthru
          _
        // Predicated region
        $region17: #{tpu_custom_call.1} parent=11 // pred_check
          %p180 = pneg %p84
        $region18: #{tpu_custom_call.1} parent=11 // pred_check_branch
          %182 = sbr.rel (%p180) target = $region20
        $region19: #{tpu_custom_call.1} parent=11 // pred_region
          _
        $region20: #{tpu_custom_call.1} parent=11 // pred_fallthru
          _
        // Predicated region
        $region21: #{tpu_custom_call.1} parent=11 // pred_check
          %p183 = pneg %p105
        $region22: #{tpu_custom_call.1} parent=11 // pred_check_branch
          %185 = sbr.rel (%p183) target = $region24
        $region23: #{tpu_custom_call.1} parent=11 // pred_region
          _
        $region24: #{tpu_custom_call.1} parent=11 // pred_fallthru
          _
        // Predicated region
        $region25: #{tpu_custom_call.1} parent=11 // pred_check
          %p186 = pneg %p126
        $region26: #{tpu_custom_call.1} parent=11 // pred_check_branch
          %188 = sbr.rel (%p186) target = $region28
        $region27: #{tpu_custom_call.1} parent=11 // pred_region
          %s190 = ssub.s32 16, 16
          %191 = vsyncadd [#allocation5], %s190
          %s193 = sshll.u32 %s4, 4
          %s194 = int_to_ptr.vmem [resolvable:$true] %s193
          %196 = dma.vmem_to_smem %s194, 16, [#allocation6], [#allocation5]
        $region28: #{tpu_custom_call.1} parent=11 // pred_fallthru
          _
      $region12: #{tpu_custom_call.1} parent=5 // pred_fallthru
        _
      %p197 = scmp.lt.s32.totalorder %s16, 2
      // Predicated region
      $region29: #{tpu_custom_call.1} parent=5 // pred_check
        %p198 = pneg %p197
      $region30: #{tpu_custom_call.1} parent=5 // pred_check_branch
        %200 = sbr.rel (%p198) target = $region32
      $region31: #{tpu_custom_call.1} parent=5 // pred_region
        // Predicated region
        $region33: #{tpu_custom_call.1} parent=31 // pred_check
          %p201 = pneg %p36
        $region34: #{tpu_custom_call.1} parent=31 // pred_check_branch
          %203 = sbr.rel (%p201) target = $region36
        $region35: #{tpu_custom_call.1} parent=31 // pred_region
          %s204 = smul.u32 2, %s16
          %p205 = scmp.lt.s32.totalorder %s204, 3
          %s206 = scalar_select %p205, %s204, 3
          %s207 = smul.addr %s206, 4
          %s208 = scalar_lea.vmem %s0, %s207
          %s209 = smul.u32 2, %s16
        $region36: #{tpu_custom_call.1} parent=31 // pred_fallthru
          _
      $region32: #{tpu_custom_call.1} parent=5 // pred_fallthru
        _
      %p210 = scmp.le.s32.totalorder 1, %s16
      %p211 = scmp.lt.s32.totalorder %s16, 3
      %p212 = pnand %p210, %p211
      %p213 = pneg %p212
      // Predicated region
      $region37: #{tpu_custom_call.1} parent=5 // pred_check
        _
      $region38: #{tpu_custom_call.1} parent=5 // pred_check_branch
        %215 = sbr.rel (%p212) target = $region40
      $region39: #{tpu_custom_call.1} parent=5 // pred_region
        %s216 = ssub.s32 %s16, 1
        // Predicated region
        $region41: #{tpu_custom_call.1} parent=39 // pred_check
          %p217 = pneg %p63
        $region42: #{tpu_custom_call.1} parent=39 // pred_check_branch
          %219 = sbr.rel (%p217) target = $region44
        $region43: #{tpu_custom_call.1} parent=39 // pred_region
          %220 = dma.done [#allocation3], 2560
        $region44: #{tpu_custom_call.1} parent=39 // pred_fallthru
          _
        // Predicated region
        $region45: #{tpu_custom_call.1} parent=39 // pred_check
          %p221 = pneg %p126
        $region46: #{tpu_custom_call.1} parent=39 // pred_check_branch
          %223 = sbr.rel (%p221) target = $region48
        $region47: #{tpu_custom_call.1} parent=39 // pred_region
          %224 = dma.done [#allocation5], 16
        $region48: #{tpu_custom_call.1} parent=39 // pred_fallthru
          _
        %225 = sfence
        %s226 = smul.u32 2, %s21
        %p227 = scmp.lt.s32.totalorder %s226, 3
        %s228 = scalar_select %p227, %s226, 3
        %s229 = smul.addr %s228, 4
        %s230 = scalar_lea.vmem %s0, %s229
        %p231 = pneg %p42
        %p232 = pneg %p39
        %p233 = pneg %p63
        %p234 = pneg %p60
        %p235 = pneg %p84
        %p236 = pneg %p81
        %p237 = pneg %p105
        %p238 = pneg %p102
        %p239 = pneg %p126
        %p240 = pneg %p123
        %p241 = pneg %p152
        %p242 = pneg %p149
        %s243 = sand.u32 %s139, 1
        %s244 = scalar_lea.sflag [#allocation4], %s243
        %s245 = sand.u32 %s139, 1
        %s246 = smul.addr %s245, 16
        %s247 = scalar_lea.vmem [#allocation7], %s246
        %s248 = smul.u32 2, %s21
        %p249 = scmp.lt.s32.totalorder %s248, 3
        %s250 = scalar_select %p249, %s248, 3
        %s251 = smul.addr %s250, 4
        %s252 = scalar_lea.vmem %s0, %s251
        %s253 = smul.u32 2, %s21
        %s254 = smul.u32 2, %s21
        %v255 = vld [vmem:[%s252] sm:$0x77]
        %v256 = vld [vmem:[#allocation2] sm:$0xff]
        %v257 = vld [vmem:[#allocation2 + $0x8] sm:$0xff]
        %v258 = vld [vmem:[#allocation2 + $0x10] sm:$0xff]
        %v259 = vld [vmem:[#allocation2 + $0x18] sm:$0xff]
        %s260 = scalar_lea.vmem [#allocation2], 32
        %v261 = vld [vmem:[%s260] sm:$0xff]
        %v262 = vld [vmem:[%s260 + $0x8] sm:$0xff]
        %v263 = vld [vmem:[%s260 + $0x10] sm:$0xff]
        %v264 = vld [vmem:[%s260 + $0x18] sm:$0xff]
        %s265 = scalar_lea.vmem [#allocation2], 64
        %v266 = vld [vmem:[%s265] sm:$0xff]
        %v267 = vld [vmem:[%s265 + $0x8] sm:$0xff]
        %v268 = vld [vmem:[%s265 + $0x10] sm:$0xff]
        %v269 = vld [vmem:[%s265 + $0x18] sm:$0xff]
        %s270 = scalar_lea.vmem [#allocation2], 96
        %v271 = vld [vmem:[%s270] sm:$0xff]
        %v272 = vld [vmem:[%s270 + $0x8] sm:$0xff]
        %v273 = vld [vmem:[%s270 + $0x10] sm:$0xff]
        %v274 = vld [vmem:[%s270 + $0x18] sm:$0xff]
        %s275 = scalar_lea.vmem [#allocation2], 128
        %v276 = vld [vmem:[%s275] sm:$0xff]
        %v277 = vld [vmem:[%s275 + $0x8] sm:$0xff]
        %v278 = vld [vmem:[%s275 + $0x10] sm:$0xff]
        %v279 = vld [vmem:[%s275 + $0x18] sm:$0xff]
        %v280 = vld [vmem:[%s2] sm:$0x3]
        %s281 = scalar_lea.vmem %s2, 2
        %v282 = vld [vmem:[%s281] sm:$0x3]
        %v283 = vld [vmem:[%s3] sm:$0xff]
        %v284 = vld [vmem:[%s3 + $0x8] sm:$0xff]
        %v285 = vld [vmem:[%s3 + $0x10] sm:$0xff]
        %v286 = vld [vmem:[%s3 + $0x18] sm:$0xff]
        %v287 = vld [vmem:[%s3 + $0x1] sm:$0x1]
        %289 = vset.pattern.permute.xlu0 0
        %290 = vperm.xlu0 %289, %v256
        %v291 = vpop.permute.xlu0 %290
        %294 = vset.pattern.permute.xlu0 0
        %295 = vperm.xlu0 %294, %v257
        %v296 = vpop.permute.xlu0 %295
        %299 = vset.pattern.permute.xlu0 0
        %300 = vperm.xlu0 %299, %v258
        %v301 = vpop.permute.xlu0 %300
        %304 = vset.pattern.permute.xlu0 0
        %305 = vperm.xlu0 %304, %v259
        %v306 = vpop.permute.xlu0 %305
        %308 = vset.pattern.permute.xlu0 1
        %309 = vperm.xlu0 %308, %v256
        %v310 = vpop.permute.xlu0 %309
        %312 = vset.pattern.permute.xlu0 1
        %313 = vperm.xlu0 %312, %v257
        %v314 = vpop.permute.xlu0 %313
        %316 = vset.pattern.permute.xlu0 1
        %317 = vperm.xlu0 %316, %v258
        %v318 = vpop.permute.xlu0 %317
        %320 = vset.pattern.permute.xlu0 1
        %321 = vperm.xlu0 %320, %v259
        %v322 = vpop.permute.xlu0 %321
        %324 = vset.pattern.permute.xlu0 2
        %325 = vperm.xlu0 %324, %v256
        %v326 = vpop.permute.xlu0 %325
        %328 = vset.pattern.permute.xlu0 2
        %329 = vperm.xlu0 %328, %v257
        %v330 = vpop.permute.xlu0 %329
        %332 = vset.pattern.permute.xlu0 2
        %333 = vperm.xlu0 %332, %v258
        %v334 = vpop.permute.xlu0 %333
        %336 = vset.pattern.permute.xlu0 2
        %337 = vperm.xlu0 %336, %v259
        %v338 = vpop.permute.xlu0 %337
        %v341 = vlaneseq
        %v342 = vshrl.u32 %v341, 7
        %v343 = vsub.s32 0, %v342
        %v344 = vrot.slane %v255, %v343
        %v345 = vlaneseq
        %v346 = vshrl.u32 %v345, 7
        %v347 = vsub.s32 4, %v346
        %v348 = vrot.slane %v255, %v347
        %v351 = vlaneseq
        %v352 = vshrl.u32 %v351, 7
        %v353 = vsub.s32 0, %v352
        %v354 = vrot.slane %v344, %v353
        %v355 = vlaneseq
        %v356 = vshrl.u32 %v355, 7
        %v357 = vsub.s32 0, %v356
        %v358 = vrot.slane %v348, %v357
        %v359 = vmul.f32 %v291, %v354
        %v360 = vmul.f32 %v291, %v358
        %v361 = vmul.f32 %v296, %v354
        %v362 = vmul.f32 %v296, %v358
        %v363 = vmul.f32 %v301, %v354
        %v364 = vmul.f32 %v301, %v358
        %v365 = vmul.f32 %v306, %v354
        %v366 = vmul.f32 %v306, %v358
        %v367 = vlaneseq
        %v368 = vshrl.u32 %v367, 7
        %v369 = vsub.s32 1, %v368
        %v370 = vrot.slane %v255, %v369
        %v371 = vlaneseq
        %v372 = vshrl.u32 %v371, 7
        %v373 = vsub.s32 5, %v372
        %v374 = vrot.slane %v255, %v373
        %v377 = vlaneseq
        %v378 = vshrl.u32 %v377, 7
        %v379 = vsub.s32 1, %v378
        %v380 = vrot.slane %v370, %v379
        %v381 = vlaneseq
        %v382 = vshrl.u32 %v381, 7
        %v383 = vsub.s32 1, %v382
        %v384 = vrot.slane %v374, %v383
        %v385 = vmul.f32 %v310, %v380
        %v386 = vmul.f32 %v310, %v384
        %v387 = vmul.f32 %v314, %v380
        %v388 = vmul.f32 %v314, %v384
        %v389 = vmul.f32 %v318, %v380
        %v390 = vmul.f32 %v318, %v384
        %v391 = vmul.f32 %v322, %v380
        %v392 = vmul.f32 %v322, %v384
        %v393 = vadd.f32 %v359, %v385
        %v394 = vadd.f32 %v360, %v386
        %v395 = vadd.f32 %v361, %v387
        %v396 = vadd.f32 %v362, %v388
        %v397 = vadd.f32 %v363, %v389
        %v398 = vadd.f32 %v364, %v390
        %v399 = vadd.f32 %v365, %v391
        %v400 = vadd.f32 %v366, %v392
        %v401 = vlaneseq
        %v402 = vshrl.u32 %v401, 7
        %v403 = vsub.s32 2, %v402
        %v404 = vrot.slane %v255, %v403
        %v405 = vlaneseq
        %v406 = vshrl.u32 %v405, 7
        %v407 = vsub.s32 6, %v406
        %v408 = vrot.slane %v255, %v407
        %v411 = vlaneseq
        %v412 = vshrl.u32 %v411, 7
        %v413 = vsub.s32 2, %v412
        %v414 = vrot.slane %v404, %v413
        %v415 = vlaneseq
        %v416 = vshrl.u32 %v415, 7
        %v417 = vsub.s32 2, %v416
        %v418 = vrot.slane %v408, %v417
        %v419 = vmul.f32 %v326, %v414
        %v420 = vmul.f32 %v326, %v418
        %v421 = vmul.f32 %v330, %v414
        %v422 = vmul.f32 %v330, %v418
        %v423 = vmul.f32 %v334, %v414
        %v424 = vmul.f32 %v334, %v418
        %v425 = vmul.f32 %v338, %v414
        %v426 = vmul.f32 %v338, %v418
        %v427 = vadd.f32 %v393, %v419
        %v428 = vadd.f32 %v394, %v420
        %v429 = vadd.f32 %v395, %v421
        %v430 = vadd.f32 %v396, %v422
        %v431 = vadd.f32 %v397, %v423
        %v432 = vadd.f32 %v398, %v424
        %v433 = vadd.f32 %v399, %v425
        %v434 = vadd.f32 %v400, %v426
        %436 = vset.pattern.permute.xlu0 0
        %437 = vperm.xlu0 %436, %v283
        %v438 = vpop.permute.xlu0 %437
        %441 = vset.pattern.permute.xlu0 0
        %442 = vperm.xlu0 %441, %v284
        %v443 = vpop.permute.xlu0 %442
        %446 = vset.pattern.permute.xlu0 0
        %447 = vperm.xlu0 %446, %v285
        %v448 = vpop.permute.xlu0 %447
        %451 = vset.pattern.permute.xlu0 0
        %452 = vperm.xlu0 %451, %v286
        %v453 = vpop.permute.xlu0 %452
        %v455 = vadd.f32 %v427, %v438
        %v456 = vadd.f32 %v428, %v438
        %v457 = vadd.f32 %v429, %v443
        %v458 = vadd.f32 %v430, %v443
        %v459 = vadd.f32 %v431, %v448
        %v460 = vadd.f32 %v432, %v448
        %v461 = vadd.f32 %v433, %v453
        %v462 = vadd.f32 %v434, %v453
        %v463 = vtanh.pop %v455
        %v464 = vtanh.pop %v456
        %v465 = vtanh.pop %v457
        %v466 = vtanh.pop %v458
        %v467 = vtanh.pop %v459
        %v468 = vtanh.pop %v460
        %v469 = vtanh.pop %v461
        %v470 = vtanh.pop %v462
        %v471 = vmul.f32 %v463, %v463
        %v472 = vmul.f32 %v464, %v464
        %v473 = vmul.f32 %v465, %v465
        %v474 = vmul.f32 %v466, %v466
        %v475 = vmul.f32 %v467, %v467
        %v476 = vmul.f32 %v468, %v468
        %v477 = vmul.f32 %v469, %v469
        %v478 = vmul.f32 %v470, %v470
        %v479 = vsub.f32 1.0, %v471
        %v480 = vsub.f32 1.0, %v472
        %v481 = vsub.f32 1.0, %v473
        %v482 = vsub.f32 1.0, %v474
        %v483 = vsub.f32 1.0, %v475
        %v484 = vsub.f32 1.0, %v476
        %v485 = vsub.f32 1.0, %v477
        %v486 = vsub.f32 1.0, %v478
        %v487 = vmul.f32 %v463, -2.0
        %v488 = vmul.f32 %v464, -2.0
        %v489 = vmul.f32 %v465, -2.0
        %v490 = vmul.f32 %v466, -2.0
        %v491 = vmul.f32 %v467, -2.0
        %v492 = vmul.f32 %v468, -2.0
        %v493 = vmul.f32 %v469, -2.0
        %v494 = vmul.f32 %v470, -2.0
        %v495 = vmul.f32 %v487, %v479
        %v496 = vmul.f32 %v488, %v480
        %v497 = vmul.f32 %v489, %v481
        %v498 = vmul.f32 %v490, %v482
        %v499 = vmul.f32 %v491, %v483
        %v500 = vmul.f32 %v492, %v484
        %v501 = vmul.f32 %v493, %v485
        %v502 = vmul.f32 %v494, %v486
        %v503 = vmul.f32 %v479, %v479
        %v504 = vmul.f32 %v480, %v480
        %v505 = vmul.f32 %v481, %v481
        %v506 = vmul.f32 %v482, %v482
        %v507 = vmul.f32 %v483, %v483
        %v508 = vmul.f32 %v484, %v484
        %v509 = vmul.f32 %v485, %v485
        %v510 = vmul.f32 %v486, %v486
        %v511 = vmul.f32 %v463, %v495
        %v512 = vmul.f32 %v464, %v496
        %v513 = vmul.f32 %v465, %v497
        %v514 = vmul.f32 %v466, %v498
        %v515 = vmul.f32 %v467, %v499
        %v516 = vmul.f32 %v468, %v500
        %v517 = vmul.f32 %v469, %v501
        %v518 = vmul.f32 %v470, %v502
        %v519 = vadd.f32 %v503, %v511
        %v520 = vadd.f32 %v504, %v512
        %v521 = vadd.f32 %v505, %v513
        %v522 = vadd.f32 %v506, %v514
        %v523 = vadd.f32 %v507, %v515
        %v524 = vadd.f32 %v508, %v516
        %v525 = vadd.f32 %v509, %v517
        %v526 = vadd.f32 %v510, %v518
        %v527 = vmul.f32 %v519, -2.0
        %v528 = vmul.f32 %v520, -2.0
        %v529 = vmul.f32 %v521, -2.0
        %v530 = vmul.f32 %v522, -2.0
        %v531 = vmul.f32 %v523, -2.0
        %v532 = vmul.f32 %v524, -2.0
        %v533 = vmul.f32 %v525, -2.0
        %v534 = vmul.f32 %v526, -2.0
        %v535 = vmul.f32 %v495, %v291
        %v536 = vmul.f32 %v496, %v291
        %v537 = vmul.f32 %v497, %v296
        %v538 = vmul.f32 %v498, %v296
        %v539 = vmul.f32 %v499, %v301
        %v540 = vmul.f32 %v500, %v301
        %v541 = vmul.f32 %v501, %v306
        %v542 = vmul.f32 %v502, %v306
        %v543 = vmul.f32 %v495, %v310
        %v544 = vmul.f32 %v496, %v310
        %v545 = vmul.f32 %v497, %v314
        %v546 = vmul.f32 %v498, %v314
        %v547 = vmul.f32 %v499, %v318
        %v548 = vmul.f32 %v500, %v318
        %v549 = vmul.f32 %v501, %v322
        %v550 = vmul.f32 %v502, %v322
        %v551 = vmul.f32 %v291, %v291
        %v552 = vmul.f32 %v296, %v296
        %v553 = vmul.f32 %v301, %v301
        %v554 = vmul.f32 %v306, %v306
        %v555 = vmul.f32 %v527, %v551
        %v556 = vmul.f32 %v528, %v551
        %v557 = vmul.f32 %v529, %v552
        %v558 = vmul.f32 %v530, %v552
        %v559 = vmul.f32 %v531, %v553
        %v560 = vmul.f32 %v532, %v553
        %v561 = vmul.f32 %v533, %v554
        %v562 = vmul.f32 %v534, %v554
        %v563 = vmul.f32 %v310, %v310
        %v564 = vmul.f32 %v314, %v314
        %v565 = vmul.f32 %v318, %v318
        %v566 = vmul.f32 %v322, %v322
        %v567 = vmul.f32 %v527, %v563
        %v568 = vmul.f32 %v528, %v563
        %v569 = vmul.f32 %v529, %v564
        %v570 = vmul.f32 %v530, %v564
        %v571 = vmul.f32 %v531, %v565
        %v572 = vmul.f32 %v532, %v565
        %v573 = vmul.f32 %v533, %v566
        %v574 = vmul.f32 %v534, %v566
        %v575 = vmul.f32 %v479, %v291
        %v576 = vmul.f32 %v480, %v291
        %v577 = vmul.f32 %v481, %v296
        %v578 = vmul.f32 %v482, %v296
        %v579 = vmul.f32 %v483, %v301
        %v580 = vmul.f32 %v484, %v301
        %v581 = vmul.f32 %v485, %v306
        %v582 = vmul.f32 %v486, %v306
        %v583 = vmul.f32 %v479, %v310
        %v584 = vmul.f32 %v480, %v310
        %v585 = vmul.f32 %v481, %v314
        %v586 = vmul.f32 %v482, %v314
        %v587 = vmul.f32 %v483, %v318
        %v588 = vmul.f32 %v484, %v318
        %v589 = vmul.f32 %v485, %v322
        %v590 = vmul.f32 %v486, %v322
        %v591 = vmul.f32 %v479, %v326
        %v592 = vmul.f32 %v480, %v326
        %v593 = vmul.f32 %v481, %v330
        %v594 = vmul.f32 %v482, %v330
        %v595 = vmul.f32 %v483, %v334
        %v596 = vmul.f32 %v484, %v334
        %v597 = vmul.f32 %v485, %v338
        %v598 = vmul.f32 %v486, %v338
        %v599 = vmul.f32 %v535, %v291
        %v600 = vmul.f32 %v536, %v291
        %v601 = vmul.f32 %v537, %v296
        %v602 = vmul.f32 %v538, %v296
        %v603 = vmul.f32 %v539, %v301
        %v604 = vmul.f32 %v540, %v301
        %v605 = vmul.f32 %v541, %v306
        %v606 = vmul.f32 %v542, %v306
        %v607 = vmul.f32 %v543, %v310
        %v608 = vmul.f32 %v544, %v310
        %v609 = vmul.f32 %v545, %v314
        %v610 = vmul.f32 %v546, %v314
        %v611 = vmul.f32 %v547, %v318
        %v612 = vmul.f32 %v548, %v318
        %v613 = vmul.f32 %v549, %v322
        %v614 = vmul.f32 %v550, %v322
        %v615 = vmul.f32 %v535, %v310
        %v616 = vmul.f32 %v536, %v310
        %v617 = vmul.f32 %v537, %v314
        %v618 = vmul.f32 %v538, %v314
        %v619 = vmul.f32 %v539, %v318
        %v620 = vmul.f32 %v540, %v318
        %v621 = vmul.f32 %v541, %v322
        %v622 = vmul.f32 %v542, %v322
        %v623 = vmul.f32 %v535, %v326
        %v624 = vmul.f32 %v536, %v326
        %v625 = vmul.f32 %v537, %v330
        %v626 = vmul.f32 %v538, %v330
        %v627 = vmul.f32 %v539, %v334
        %v628 = vmul.f32 %v540, %v334
        %v629 = vmul.f32 %v541, %v338
        %v630 = vmul.f32 %v542, %v338
        %v631 = vmul.f32 %v543, %v326
        %v632 = vmul.f32 %v544, %v326
        %v633 = vmul.f32 %v545, %v330
        %v634 = vmul.f32 %v546, %v330
        %v635 = vmul.f32 %v547, %v334
        %v636 = vmul.f32 %v548, %v334
        %v637 = vmul.f32 %v549, %v338
        %v638 = vmul.f32 %v550, %v338
        %v639 = vmul.f32 %v555, %v291
        %v640 = vmul.f32 %v556, %v291
        %v641 = vmul.f32 %v557, %v296
        %v642 = vmul.f32 %v558, %v296
        %v643 = vmul.f32 %v559, %v301
        %v644 = vmul.f32 %v560, %v301
        %v645 = vmul.f32 %v561, %v306
        %v646 = vmul.f32 %v562, %v306
        %v647 = vmul.f32 %v567, %v310
        %v648 = vmul.f32 %v568, %v310
        %v649 = vmul.f32 %v569, %v314
        %v650 = vmul.f32 %v570, %v314
        %v651 = vmul.f32 %v571, %v318
        %v652 = vmul.f32 %v572, %v318
        %v653 = vmul.f32 %v573, %v322
        %v654 = vmul.f32 %v574, %v322
        %v655 = vmul.f32 %v555, %v310
        %v656 = vmul.f32 %v556, %v310
        %v657 = vmul.f32 %v557, %v314
        %v658 = vmul.f32 %v558, %v314
        %v659 = vmul.f32 %v559, %v318
        %v660 = vmul.f32 %v560, %v318
        %v661 = vmul.f32 %v561, %v322
        %v662 = vmul.f32 %v562, %v322
        %v663 = vmul.f32 %v567, %v291
        %v664 = vmul.f32 %v568, %v291
        %v665 = vmul.f32 %v569, %v296
        %v666 = vmul.f32 %v570, %v296
        %v667 = vmul.f32 %v571, %v301
        %v668 = vmul.f32 %v572, %v301
        %v669 = vmul.f32 %v573, %v306
        %v670 = vmul.f32 %v574, %v306
        %vm671 = vcmask 261120
        %v673 = vsel %vm671, %v261, 0
        %v676 = vsel %vm671, %v262, 0
        %v679 = vsel %vm671, %v263, 0
        %v682 = vsel %vm671, %v264, 0
        %684 = vmatprep.subr.mxu0 %v464
        %685 = vmatpush1.msra.mxu0 %v463
        %686 = vmatprep.subr.mxu0 %v466
        %687 = vmatpush1.msra.mxu0 %v465
        %688 = vmatprep.subr.mxu0 %v468
        %689 = vmatpush1.msra.mxu0 %v467
        %690 = vmatprep.subr.mxu0 %v470
        %691 = vmatpush1.msra.mxu0 %v469
        %692 = vmatprep.subr.mxu0 0.0
        %693 = vmatpush1.msra.mxu0 0.0
        %694 = vmatprep.subr.mxu0 0.0
        %695 = vmatpush1.msra.mxu0 0.0
        %696 = vmatprep.subr.mxu0 0.0
        %697 = vmatpush1.msra.mxu0 0.0
        %698 = vmatprep.subr.mxu0 0.0
        %699 = vmatpush1.msra.mxu0 0.0
        %700 = vmatprep.subr.mxu0 0.0
        %701 = vmatpush1.msra.mxu0 0.0
        %702 = vmatprep.subr.mxu0 0.0
        %703 = vmatpush1.msra.mxu0 0.0
        %704 = vmatprep.subr.mxu0 0.0
        %705 = vmatpush1.msra.mxu0 0.0
        %706 = vmatprep.subr.mxu0 0.0
        %707 = vmatpush1.msra.mxu0 0.0
        %708 = vmatprep.subr.mxu0 0.0
        %709 = vmatpush1.msra.mxu0 0.0
        %710 = vmatprep.subr.mxu0 0.0
        %711 = vmatpush1.msra.mxu0 0.0
        %712 = vmatprep.subr.mxu0 0.0
        %713 = vmatpush1.msra.mxu0 0.0
        %714 = vmatprep.subr.mxu0 0.0
        %715 = vmatpush1.msra.mxu0 0.0
        %716 = vmatprep.subr.mxu0 0.0
        %717 = vmatpush1.msra.mxu0 0.0
        %718 = vmatprep.subr.mxu0 0.0
        %719 = vmatpush1.msra.mxu0 0.0
        %720 = vmatprep.subr.mxu0 0.0
        %721 = vmatpush1.msra.mxu0 0.0
        %722 = vmatprep.subr.mxu0 0.0
        %723 = vmatpush1.msra.mxu0 0.0
        %724 = vmatprep.subr.mxu0 0.0
        %725 = vmatpush1.msra.mxu0 0.0
        %726 = vmatprep.subr.mxu0 0.0
        %727 = vmatpush1.msra.mxu0 0.0
        %728 = vmatprep.subr.mxu0 0.0
        %729 = vmatpush1.msra.mxu0 0.0
        %730 = vmatprep.subr.mxu0 0.0
        %731 = vmatpush1.msra.mxu0 0.0
        %732 = vmatprep.subr.mxu0 0.0
        %733 = vmatpush1.msra.mxu0 0.0
        %734 = vmatprep.subr.mxu0 0.0
        %735 = vmatpush1.msra.mxu0 0.0
        %736 = vmatprep.subr.mxu0 0.0
        %737 = vmatpush1.msra.mxu0 0.0
        %738 = vmatprep.subr.mxu0 0.0
        %739 = vmatpush1.msra.mxu0 0.0
        %740 = vmatprep.subr.mxu0 0.0
        %741 = vmatpush1.msra.mxu0 0.0
        %742 = vmatprep.subr.mxu0 0.0
        %743 = vmatpush1.msra.mxu0 0.0
        %744 = vmatprep.subr.mxu0 0.0
        %745 = vmatpush1.msra.mxu0 0.0
        %746 = vmatprep.subr.mxu0 0.0
        %747 = vmatpush1.msra.mxu0 0.0
        %748 = vmatprep.mubr.f32.mxu0 0.0
        %749 = vmatmul.mubr.f32.gmra.mrb[0].mxu0 %v673
        %v750 = vpop.f32.mrb[0].mxu0
        %v751 = vadd.f32 0.0, %v750
        %v752 = vpop.f32.mrb[0].mxu0
        %v753 = vadd.f32 0.0, %v752
        %754 = vmatprep.mubr.f32.mxu0 0.0
        %755 = vmatmul.mubr.f32.gmra.mrb[0].mxu0 %v676
        %v756 = vpop.f32.mrb[0].mxu0
        %v757 = vadd.f32 0.0, %v756
        %v758 = vpop.f32.mrb[0].mxu0
        %v759 = vadd.f32 0.0, %v758
        %760 = vmatprep.mubr.f32.mxu0 0.0
        %761 = vmatmul.mubr.f32.gmra.mrb[0].mxu0 %v679
        %v762 = vpop.f32.mrb[0].mxu0
        %v763 = vadd.f32 0.0, %v762
        %v764 = vpop.f32.mrb[0].mxu0
        %v765 = vadd.f32 0.0, %v764
        %766 = vmatprep.mubr.f32.mxu0 0.0
        %767 = vmatmul.mubr.f32.gmra.mrb[0].mxu0 %v682
        %v768 = vpop.f32.mrb[0].mxu0
        %v769 = vadd.f32 0.0, %v768
        %v770 = vpop.f32.mrb[0].mxu0
        %v771 = vadd.f32 0.0, %v770
        %772 = vdwg.mxu0
        %773 = vmatprep.subr.mxu0 %v576
        %774 = vmatpush1.msra.mxu0 %v575
        %775 = vmatprep.subr.mxu0 %v578
        %776 = vmatpush1.msra.mxu0 %v577
        %777 = vmatprep.subr.mxu0 %v580
        %778 = vmatpush1.msra.mxu0 %v579
        %779 = vmatprep.subr.mxu0 %v582
        %780 = vmatpush1.msra.mxu0 %v581
        %781 = vmatprep.subr.mxu0 0.0
        %782 = vmatpush1.msra.mxu0 0.0
        %783 = vmatprep.subr.mxu0 0.0
        %784 = vmatpush1.msra.mxu0 0.0
        %785 = vmatprep.subr.mxu0 0.0
        %786 = vmatpush1.msra.mxu0 0.0
        %787 = vmatprep.subr.mxu0 0.0
        %788 = vmatpush1.msra.mxu0 0.0
        %789 = vmatprep.subr.mxu0 0.0
        %790 = vmatpush1.msra.mxu0 0.0
        %791 = vmatprep.subr.mxu0 0.0
        %792 = vmatpush1.msra.mxu0 0.0
        %793 = vmatprep.subr.mxu0 0.0
        %794 = vmatpush1.msra.mxu0 0.0
        %795 = vmatprep.subr.mxu0 0.0
        %796 = vmatpush1.msra.mxu0 0.0
        %797 = vmatprep.subr.mxu0 0.0
        %798 = vmatpush1.msra.mxu0 0.0
        %799 = vmatprep.subr.mxu0 0.0
        %800 = vmatpush1.msra.mxu0 0.0
        %801 = vmatprep.subr.mxu0 0.0
        %802 = vmatpush1.msra.mxu0 0.0
        %803 = vmatprep.subr.mxu0 0.0
        %804 = vmatpush1.msra.mxu0 0.0
        %805 = vmatprep.subr.mxu0 0.0
        %806 = vmatpush1.msra.mxu0 0.0
        %807 = vmatprep.subr.mxu0 0.0
        %808 = vmatpush1.msra.mxu0 0.0
        %809 = vmatprep.subr.mxu0 0.0
        %810 = vmatpush1.msra.mxu0 0.0
        %811 = vmatprep.subr.mxu0 0.0
        %812 = vmatpush1.msra.mxu0 0.0
        %813 = vmatprep.subr.mxu0 0.0
        %814 = vmatpush1.msra.mxu0 0.0
        %815 = vmatprep.subr.mxu0 0.0
        %816 = vmatpush1.msra.mxu0 0.0
        %817 = vmatprep.subr.mxu0 0.0
        %818 = vmatpush1.msra.mxu0 0.0
        %819 = vmatprep.subr.mxu0 0.0
        %820 = vmatpush1.msra.mxu0 0.0
        %821 = vmatprep.subr.mxu0 0.0
        %822 = vmatpush1.msra.mxu0 0.0
        %823 = vmatprep.subr.mxu0 0.0
        %824 = vmatpush1.msra.mxu0 0.0
        %825 = vmatprep.subr.mxu0 0.0
        %826 = vmatpush1.msra.mxu0 0.0
        %827 = vmatprep.subr.mxu0 0.0
        %828 = vmatpush1.msra.mxu0 0.0
        %829 = vmatprep.subr.mxu0 0.0
        %830 = vmatpush1.msra.mxu0 0.0
        %831 = vmatprep.subr.mxu0 0.0
        %832 = vmatpush1.msra.mxu0 0.0
        %833 = vmatprep.subr.mxu0 0.0
        %834 = vmatpush1.msra.mxu0 0.0
        %835 = vmatprep.subr.mxu0 0.0
        %836 = vmatpush1.msra.mxu0 0.0
        %837 = vmatprep.mubr.f32.mxu0 0.0
        %838 = vmatmul.mubr.f32.gmra.mrb[0].mxu0 %v673
        %v839 = vpop.f32.mrb[0].mxu0
        %v840 = vadd.f32 0.0, %v839
        %v841 = vpop.f32.mrb[0].mxu0
        %v842 = vadd.f32 0.0, %v841
        %843 = vmatprep.mubr.f32.mxu0 0.0
        %844 = vmatmul.mubr.f32.gmra.mrb[0].mxu0 %v676
        %v845 = vpop.f32.mrb[0].mxu0
        %v846 = vadd.f32 0.0, %v845
        %v847 = vpop.f32.mrb[0].mxu0
        %v848 = vadd.f32 0.0, %v847
        %849 = vmatprep.mubr.f32.mxu0 0.0
        %850 = vmatmul.mubr.f32.gmra.mrb[0].mxu0 %v679
        %v851 = vpop.f32.mrb[0].mxu0
        %v852 = vadd.f32 0.0, %v851
        %v853 = vpop.f32.mrb[0].mxu0
        %v854 = vadd.f32 0.0, %v853
        %855 = vmatprep.mubr.f32.mxu0 0.0
        %856 = vmatmul.mubr.f32.gmra.mrb[0].mxu0 %v682
        %v857 = vpop.f32.mrb[0].mxu0
        %v858 = vadd.f32 0.0, %v857
        %v859 = vpop.f32.mrb[0].mxu0
        %v860 = vadd.f32 0.0, %v859
        %861 = vdwg.mxu0
        %862 = vmatprep.subr.mxu0 %v584
        %863 = vmatpush1.msra.mxu0 %v583
        %864 = vmatprep.subr.mxu0 %v586
        %865 = vmatpush1.msra.mxu0 %v585
        %866 = vmatprep.subr.mxu0 %v588
        %867 = vmatpush1.msra.mxu0 %v587
        %868 = vmatprep.subr.mxu0 %v590
        %869 = vmatpush1.msra.mxu0 %v589
        %870 = vmatprep.subr.mxu0 0.0
        %871 = vmatpush1.msra.mxu0 0.0
        %872 = vmatprep.subr.mxu0 0.0
        %873 = vmatpush1.msra.mxu0 0.0
        %874 = vmatprep.subr.mxu0 0.0
        %875 = vmatpush1.msra.mxu0 0.0
        %876 = vmatprep.subr.mxu0 0.0
        %877 = vmatpush1.msra.mxu0 0.0
        %878 = vmatprep.subr.mxu0 0.0
        %879 = vmatpush1.msra.mxu0 0.0
        %880 = vmatprep.subr.mxu0 0.0
        %881 = vmatpush1.msra.mxu0 0.0
        %882 = vmatprep.subr.mxu0 0.0
        %883 = vmatpush1.msra.mxu0 0.0
        %884 = vmatprep.subr.mxu0 0.0
        %885 = vmatpush1.msra.mxu0 0.0
        %886 = vmatprep.subr.mxu0 0.0
        %887 = vmatpush1.msra.mxu0 0.0
        %888 = vmatprep.subr.mxu0 0.0
        %889 = vmatpush1.msra.mxu0 0.0
        %890 = vmatprep.subr.mxu0 0.0
        %891 = vmatpush1.msra.mxu0 0.0
        %892 = vmatprep.subr.mxu0 0.0
        %893 = vmatpush1.msra.mxu0 0.0
        %894 = vmatprep.subr.mxu0 0.0
        %895 = vmatpush1.msra.mxu0 0.0
        %896 = vmatprep.subr.mxu0 0.0
        %897 = vmatpush1.msra.mxu0 0.0
        %898 = vmatprep.subr.mxu0 0.0
        %899 = vmatpush1.msra.mxu0 0.0
        %900 = vmatprep.subr.mxu0 0.0
        %901 = vmatpush1.msra.mxu0 0.0
        %902 = vmatprep.subr.mxu0 0.0
        %903 = vmatpush1.msra.mxu0 0.0
        %904 = vmatprep.subr.mxu0 0.0
        %905 = vmatpush1.msra.mxu0 0.0
        %906 = vmatprep.subr.mxu0 0.0
        %907 = vmatpush1.msra.mxu0 0.0
        %908 = vmatprep.subr.mxu0 0.0
        %909 = vmatpush1.msra.mxu0 0.0
        %910 = vmatprep.subr.mxu0 0.0
        %911 = vmatpush1.msra.mxu0 0.0
        %912 = vmatprep.subr.mxu0 0.0
        %913 = vmatpush1.msra.mxu0 0.0
        %914 = vmatprep.subr.mxu0 0.0
        %915 = vmatpush1.msra.mxu0 0.0
        %916 = vmatprep.subr.mxu0 0.0
        %917 = vmatpush1.msra.mxu0 0.0
        %918 = vmatprep.subr.mxu0 0.0
        %919 = vmatpush1.msra.mxu0 0.0
        %920 = vmatprep.subr.mxu0 0.0
        %921 = vmatpush1.msra.mxu0 0.0
        %922 = vmatprep.subr.mxu0 0.0
        %923 = vmatpush1.msra.mxu0 0.0
        %924 = vmatprep.subr.mxu0 0.0
        %925 = vmatpush1.msra.mxu0 0.0
        %926 = vmatprep.mubr.f32.mxu0 0.0
        %927 = vmatmul.mubr.f32.gmra.mrb[0].mxu0 %v673
        %v928 = vpop.f32.mrb[0].mxu0
        %v929 = vadd.f32 0.0, %v928
        %v930 = vpop.f32.mrb[0].mxu0
        %v931 = vadd.f32 0.0, %v930
        %932 = vmatprep.mubr.f32.mxu0 0.0
        %933 = vmatmul.mubr.f32.gmra.mrb[0].mxu0 %v676
        %v934 = vpop.f32.mrb[0].mxu0
        %v935 = vadd.f32 0.0, %v934
        %v936 = vpop.f32.mrb[0].mxu0
        %v937 = vadd.f32 0.0, %v936
        %938 = vmatprep.mubr.f32.mxu0 0.0
        %939 = vmatmul.mubr.f32.gmra.mrb[0].mxu0 %v679
        %v940 = vpop.f32.mrb[0].mxu0
        %v941 = vadd.f32 0.0, %v940
        %v942 = vpop.f32.mrb[0].mxu0
        %v943 = vadd.f32 0.0, %v942
        %944 = vmatprep.mubr.f32.mxu0 0.0
        %945 = vmatmul.mubr.f32.gmra.mrb[0].mxu0 %v682
        %v946 = vpop.f32.mrb[0].mxu0
        %v947 = vadd.f32 0.0, %v946
        %v948 = vpop.f32.mrb[0].mxu0
        %v949 = vadd.f32 0.0, %v948
        %950 = vdwg.mxu0
        %951 = vmatprep.subr.mxu0 %v592
        %952 = vmatpush1.msra.mxu0 %v591
        %953 = vmatprep.subr.mxu0 %v594
        %954 = vmatpush1.msra.mxu0 %v593
        %955 = vmatprep.subr.mxu0 %v596
        %956 = vmatpush1.msra.mxu0 %v595
        %957 = vmatprep.subr.mxu0 %v598
        %958 = vmatpush1.msra.mxu0 %v597
        %959 = vmatprep.subr.mxu0 0.0
        %960 = vmatpush1.msra.mxu0 0.0
        %961 = vmatprep.subr.mxu0 0.0
        %962 = vmatpush1.msra.mxu0 0.0
        %963 = vmatprep.subr.mxu0 0.0
        %964 = vmatpush1.msra.mxu0 0.0
        %965 = vmatprep.subr.mxu0 0.0
        %966 = vmatpush1.msra.mxu0 0.0
        %967 = vmatprep.subr.mxu0 0.0
        %968 = vmatpush1.msra.mxu0 0.0
        %969 = vmatprep.subr.mxu0 0.0
        %970 = vmatpush1.msra.mxu0 0.0
        %971 = vmatprep.subr.mxu0 0.0
        %972 = vmatpush1.msra.mxu0 0.0
        %973 = vmatprep.subr.mxu0 0.0
        %974 = vmatpush1.msra.mxu0 0.0
        %975 = vmatprep.subr.mxu0 0.0
        %976 = vmatpush1.msra.mxu0 0.0
        %977 = vmatprep.subr.mxu0 0.0
        %978 = vmatpush1.msra.mxu0 0.0
        %979 = vmatprep.subr.mxu0 0.0
        %980 = vmatpush1.msra.mxu0 0.0
        %981 = vmatprep.subr.mxu0 0.0
        %982 = vmatpush1.msra.mxu0 0.0
        %983 = vmatprep.subr.mxu0 0.0
        %984 = vmatpush1.msra.mxu0 0.0
        %985 = vmatprep.subr.mxu0 0.0
        %986 = vmatpush1.msra.mxu0 0.0
        %987 = vmatprep.subr.mxu0 0.0
        %988 = vmatpush1.msra.mxu0 0.0
        %989 = vmatprep.subr.mxu0 0.0
        %990 = vmatpush1.msra.mxu0 0.0
        %991 = vmatprep.subr.mxu0 0.0
        %992 = vmatpush1.msra.mxu0 0.0
        %993 = vmatprep.subr.mxu0 0.0
        %994 = vmatpush1.msra.mxu0 0.0
        %995 = vmatprep.subr.mxu0 0.0
        %996 = vmatpush1.msra.mxu0 0.0
        %997 = vmatprep.subr.mxu0 0.0
        %998 = vmatpush1.msra.mxu0 0.0
        %999 = vmatprep.subr.mxu0 0.0
        %1000 = vmatpush1.msra.mxu0 0.0
        %1001 = vmatprep.subr.mxu0 0.0
        %1002 = vmatpush1.msra.mxu0 0.0
        %1003 = vmatprep.subr.mxu0 0.0
        %1004 = vmatpush1.msra.mxu0 0.0
        %1005 = vmatprep.subr.mxu0 0.0
        %1006 = vmatpush1.msra.mxu0 0.0
        %1007 = vmatprep.subr.mxu0 0.0
        %1008 = vmatpush1.msra.mxu0 0.0
        %1009 = vmatprep.subr.mxu0 0.0
        %1010 = vmatpush1.msra.mxu0 0.0
        %1011 = vmatprep.subr.mxu0 0.0
        %1012 = vmatpush1.msra.mxu0 0.0
        %1013 = vmatprep.subr.mxu0 0.0
        %1014 = vmatpush1.msra.mxu0 0.0
        %1015 = vmatprep.mubr.f32.mxu0 0.0
        %1016 = vmatmul.mubr.f32.gmra.mrb[0].mxu0 %v673
        %v1017 = vpop.f32.mrb[0].mxu0
        %v1018 = vadd.f32 0.0, %v1017
        %v1019 = vpop.f32.mrb[0].mxu0
        %v1020 = vadd.f32 0.0, %v1019
        %1021 = vmatprep.mubr.f32.mxu0 0.0
        %1022 = vmatmul.mubr.f32.gmra.mrb[0].mxu0 %v676
        %v1023 = vpop.f32.mrb[0].mxu0
        %v1024 = vadd.f32 0.0, %v1023
        %v1025 = vpop.f32.mrb[0].mxu0
        %v1026 = vadd.f32 0.0, %v1025
        %1027 = vmatprep.mubr.f32.mxu0 0.0
        %1028 = vmatmul.mubr.f32.gmra.mrb[0].mxu0 %v679
        %v1029 = vpop.f32.mrb[0].mxu0
        %v1030 = vadd.f32 0.0, %v1029
        %v1031 = vpop.f32.mrb[0].mxu0
        %v1032 = vadd.f32 0.0, %v1031
        %1033 = vmatprep.mubr.f32.mxu0 0.0
        %1034 = vmatmul.mubr.f32.gmra.mrb[0].mxu0 %v682
        %v1035 = vpop.f32.mrb[0].mxu0
        %v1036 = vadd.f32 0.0, %v1035
        %v1037 = vpop.f32.mrb[0].mxu0
        %v1038 = vadd.f32 0.0, %v1037
        %1039 = vdwg.mxu0
        %1040 = vmatprep.subr.mxu0 %v600
        %1041 = vmatpush1.msra.mxu0 %v599
        %1042 = vmatprep.subr.mxu0 %v602
        %1043 = vmatpush1.msra.mxu0 %v601
        %1044 = vmatprep.subr.mxu0 %v604
        %1045 = vmatpush1.msra.mxu0 %v603
        %1046 = vmatprep.subr.mxu0 %v606
        %1047 = vmatpush1.msra.mxu0 %v605
        %1048 = vmatprep.subr.mxu0 0.0
        %1049 = vmatpush1.msra.mxu0 0.0
        %1050 = vmatprep.subr.mxu0 0.0
        %1051 = vmatpush1.msra.mxu0 0.0
        %1052 = vmatprep.subr.mxu0 0.0
        %1053 = vmatpush1.msra.mxu0 0.0
        %1054 = vmatprep.subr.mxu0 0.0
        %1055 = vmatpush1.msra.mxu0 0.0
        %1056 = vmatprep.subr.mxu0 0.0
        %1057 = vmatpush1.msra.mxu0 0.0
        %1058 = vmatprep.subr.mxu0 0.0
        %1059 = vmatpush1.msra.mxu0 0.0
        %1060 = vmatprep.subr.mxu0 0.0
        %1061 = vmatpush1.msra.mxu0 0.0
        %1062 = vmatprep.subr.mxu0 0.0
        %1063 = vmatpush1.msra.mxu0 0.0
        %1064 = vmatprep.subr.mxu0 0.0
        %1065 = vmatpush1.msra.mxu0 0.0
        %1066 = vmatprep.subr.mxu0 0.0
        %1067 = vmatpush1.msra.mxu0 0.0
        %1068 = vmatprep.subr.mxu0 0.0
        %1069 = vmatpush1.msra.mxu0 0.0
        %1070 = vmatprep.subr.mxu0 0.0
        %1071 = vmatpush1.msra.mxu0 0.0
        %1072 = vmatprep.subr.mxu0 0.0
        %1073 = vmatpush1.msra.mxu0 0.0
        %1074 = vmatprep.subr.mxu0 0.0
        %1075 = vmatpush1.msra.mxu0 0.0
        %1076 = vmatprep.subr.mxu0 0.0
        %1077 = vmatpush1.msra.mxu0 0.0
        %1078 = vmatprep.subr.mxu0 0.0
        %1079 = vmatpush1.msra.mxu0 0.0
        %1080 = vmatprep.subr.mxu0 0.0
        %1081 = vmatpush1.msra.mxu0 0.0
        %1082 = vmatprep.subr.mxu0 0.0
        %1083 = vmatpush1.msra.mxu0 0.0
        %1084 = vmatprep.subr.mxu0 0.0
        %1085 = vmatpush1.msra.mxu0 0.0
        %1086 = vmatprep.subr.mxu0 0.0
        %1087 = vmatpush1.msra.mxu0 0.0
        %1088 = vmatprep.subr.mxu0 0.0
        %1089 = vmatpush1.msra.mxu0 0.0
        %1090 = vmatprep.subr.mxu0 0.0
        %1091 = vmatpush1.msra.mxu0 0.0
        %1092 = vmatprep.subr.mxu0 0.0
        %1093 = vmatpush1.msra.mxu0 0.0
        %1094 = vmatprep.subr.mxu0 0.0
        %1095 = vmatpush1.msra.mxu0 0.0
        %1096 = vmatprep.subr.mxu0 0.0
        %1097 = vmatpush1.msra.mxu0 0.0
        %1098 = vmatprep.subr.mxu0 0.0
        %1099 = vmatpush1.msra.mxu0 0.0
        %1100 = vmatprep.subr.mxu0 0.0
        %1101 = vmatpush1.msra.mxu0 0.0
        %1102 = vmatprep.subr.mxu0 0.0
        %1103 = vmatpush1.msra.mxu0 0.0
        %1104 = vmatprep.mubr.f32.mxu0 0.0
        %1105 = vmatmul.mubr.f32.gmra.mrb[0].mxu0 %v673
        %v1106 = vpop.f32.mrb[0].mxu0
        %v1107 = vadd.f32 0.0, %v1106
        %v1108 = vpop.f32.mrb[0].mxu0
        %v1109 = vadd.f32 0.0, %v1108
        %1110 = vmatprep.mubr.f32.mxu0 0.0
        %1111 = vmatmul.mubr.f32.gmra.mrb[0].mxu0 %v676
        %v1112 = vpop.f32.mrb[0].mxu0
        %v1113 = vadd.f32 0.0, %v1112
        %v1114 = vpop.f32.mrb[0].mxu0
        %v1115 = vadd.f32 0.0, %v1114
        %1116 = vmatprep.mubr.f32.mxu0 0.0
        %1117 = vmatmul.mubr.f32.gmra.mrb[0].mxu0 %v679
        %v1118 = vpop.f32.mrb[0].mxu0
        %v1119 = vadd.f32 0.0, %v1118
        %v1120 = vpop.f32.mrb[0].mxu0
        %v1121 = vadd.f32 0.0, %v1120
        %1122 = vmatprep.mubr.f32.mxu0 0.0
        %1123 = vmatmul.mubr.f32.gmra.mrb[0].mxu0 %v682
        %v1124 = vpop.f32.mrb[0].mxu0
        %v1125 = vadd.f32 0.0, %v1124
        %v1126 = vpop.f32.mrb[0].mxu0
        %v1127 = vadd.f32 0.0, %v1126
        %1128 = vdwg.mxu0
        %1129 = vmatprep.subr.mxu0 %v608
        %1130 = vmatpush1.msra.mxu0 %v607
        %1131 = vmatprep.subr.mxu0 %v610
        %1132 = vmatpush1.msra.mxu0 %v609
        %1133 = vmatprep.subr.mxu0 %v612
        %1134 = vmatpush1.msra.mxu0 %v611
        %1135 = vmatprep.subr.mxu0 %v614
        %1136 = vmatpush1.msra.mxu0 %v613
        %1137 = vmatprep.subr.mxu0 0.0
        %1138 = vmatpush1.msra.mxu0 0.0
        %1139 = vmatprep.subr.mxu0 0.0
        %1140 = vmatpush1.msra.mxu0 0.0
        %1141 = vmatprep.subr.mxu0 0.0
        %1142 = vmatpush1.msra.mxu0 0.0
        %1143 = vmatprep.subr.mxu0 0.0
        %1144 = vmatpush1.msra.mxu0 0.0
        %1145 = vmatprep.subr.mxu0 0.0
        %1146 = vmatpush1.msra.mxu0 0.0
        %1147 = vmatprep.subr.mxu0 0.0
        %1148 = vmatpush1.msra.mxu0 0.0
        %1149 = vmatprep.subr.mxu0 0.0
        %1150 = vmatpush1.msra.mxu0 0.0
        %1151 = vmatprep.subr.mxu0 0.0
        %1152 = vmatpush1.msra.mxu0 0.0
        %1153 = vmatprep.subr.mxu0 0.0
        %1154 = vmatpush1.msra.mxu0 0.0
        %1155 = vmatprep.subr.mxu0 0.0
        %1156 = vmatpush1.msra.mxu0 0.0
        %1157 = vmatprep.subr.mxu0 0.0
        %1158 = vmatpush1.msra.mxu0 0.0
        %1159 = vmatprep.subr.mxu0 0.0
        %1160 = vmatpush1.msra.mxu0 0.0
        %1161 = vmatprep.subr.mxu0 0.0
        %1162 = vmatpush1.msra.mxu0 0.0
        %1163 = vmatprep.subr.mxu0 0.0
        %1164 = vmatpush1.msra.mxu0 0.0
        %1165 = vmatprep.subr.mxu0 0.0
        %1166 = vmatpush1.msra.mxu0 0.0
        %1167 = vmatprep.subr.mxu0 0.0
        %1168 = vmatpush1.msra.mxu0 0.0
        %1169 = vmatprep.subr.mxu0 0.0
        %1170 = vmatpush1.msra.mxu0 0.0
        %1171 = vmatprep.subr.mxu0 0.0
        %1172 = vmatpush1.msra.mxu0 0.0
        %1173 = vmatprep.subr.mxu0 0.0
        %1174 = vmatpush1.msra.mxu0 0.0
        %1175 = vmatprep.subr.mxu0 0.0
        %1176 = vmatpush1.msra.mxu0 0.0
        %1177 = vmatprep.subr.mxu0 0.0
        %1178 = vmatpush1.msra.mxu0 0.0
        %1179 = vmatprep.subr.mxu0 0.0
        %1180 = vmatpush1.msra.mxu0 0.0
        %1181 = vmatprep.subr.mxu0 0.0
        %1182 = vmatpush1.msra.mxu0 0.0
        %1183 = vmatprep.subr.mxu0 0.0
        %1184 = vmatpush1.msra.mxu0 0.0
        %1185 = vmatprep.subr.mxu0 0.0
        %1186 = vmatpush1.msra.mxu0 0.0
        %1187 = vmatprep.subr.mxu0 0.0
        %1188 = vmatpush1.msra.mxu0 0.0
        %1189 = vmatprep.subr.mxu0 0.0
        %1190 = vmatpush1.msra.mxu0 0.0
        %1191 = vmatprep.subr.mxu0 0.0
        %1192 = vmatpush1.msra.mxu0 0.0
        %1193 = vmatprep.mubr.f32.mxu0 0.0
        %1194 = vmatmul.mubr.f32.gmra.mrb[0].mxu0 %v673
        %v1195 = vpop.f32.mrb[0].mxu0
        %v1196 = vadd.f32 0.0, %v1195
        %v1197 = vpop.f32.mrb[0].mxu0
        %v1198 = vadd.f32 0.0, %v1197
        %1199 = vmatprep.mubr.f32.mxu0 0.0
        %1200 = vmatmul.mubr.f32.gmra.mrb[0].mxu0 %v676
        %v1201 = vpop.f32.mrb[0].mxu0
        %v1202 = vadd.f32 0.0, %v1201
        %v1203 = vpop.f32.mrb[0].mxu0
        %v1204 = vadd.f32 0.0, %v1203
        %1205 = vmatprep.mubr.f32.mxu0 0.0
        %1206 = vmatmul.mubr.f32.gmra.mrb[0].mxu0 %v679
        %v1207 = vpop.f32.mrb[0].mxu0
        %v1208 = vadd.f32 0.0, %v1207
        %v1209 = vpop.f32.mrb[0].mxu0
        %v1210 = vadd.f32 0.0, %v1209
        %1211 = vmatprep.mubr.f32.mxu0 0.0
        %1212 = vmatmul.mubr.f32.gmra.mrb[0].mxu0 %v682
        %v1213 = vpop.f32.mrb[0].mxu0
        %v1214 = vadd.f32 0.0, %v1213
        %v1215 = vpop.f32.mrb[0].mxu0
        %v1216 = vadd.f32 0.0, %v1215
        %1217 = vdwg.mxu0
        %1218 = vmatprep.subr.mxu0 %v616
        %1219 = vmatpush1.msra.mxu0 %v615
        %1220 = vmatprep.subr.mxu0 %v618
        %1221 = vmatpush1.msra.mxu0 %v617
        %1222 = vmatprep.subr.mxu0 %v620
        %1223 = vmatpush1.msra.mxu0 %v619
        %1224 = vmatprep.subr.mxu0 %v622
        %1225 = vmatpush1.msra.mxu0 %v621
        %1226 = vmatprep.subr.mxu0 0.0
        %1227 = vmatpush1.msra.mxu0 0.0
        %1228 = vmatprep.subr.mxu0 0.0
        %1229 = vmatpush1.msra.mxu0 0.0
        %1230 = vmatprep.subr.mxu0 0.0
        %1231 = vmatpush1.msra.mxu0 0.0
        %1232 = vmatprep.subr.mxu0 0.0
        %1233 = vmatpush1.msra.mxu0 0.0
        %1234 = vmatprep.subr.mxu0 0.0
        %1235 = vmatpush1.msra.mxu0 0.0
        %1236 = vmatprep.subr.mxu0 0.0
        %1237 = vmatpush1.msra.mxu0 0.0
        %1238 = vmatprep.subr.mxu0 0.0
        %1239 = vmatpush1.msra.mxu0 0.0
        %1240 = vmatprep.subr.mxu0 0.0
        %1241 = vmatpush1.msra.mxu0 0.0
        %1242 = vmatprep.subr.mxu0 0.0
        %1243 = vmatpush1.msra.mxu0 0.0
        %1244 = vmatprep.subr.mxu0 0.0
        %1245 = vmatpush1.msra.mxu0 0.0
        %1246 = vmatprep.subr.mxu0 0.0
        %1247 = vmatpush1.msra.mxu0 0.0
        %1248 = vmatprep.subr.mxu0 0.0
        %1249 = vmatpush1.msra.mxu0 0.0
        %1250 = vmatprep.subr.mxu0 0.0
        %1251 = vmatpush1.msra.mxu0 0.0
        %1252 = vmatprep.subr.mxu0 0.0
        %1253 = vmatpush1.msra.mxu0 0.0
        %1254 = vmatprep.subr.mxu0 0.0
        %1255 = vmatpush1.msra.mxu0 0.0
        %1256 = vmatprep.subr.mxu0 0.0
        %1257 = vmatpush1.msra.mxu0 0.0
        %1258 = vmatprep.subr.mxu0 0.0
        %1259 = vmatpush1.msra.mxu0 0.0
        %1260 = vmatprep.subr.mxu0 0.0
        %1261 = vmatpush1.msra.mxu0 0.0
        %1262 = vmatprep.subr.mxu0 0.0
        %1263 = vmatpush1.msra.mxu0 0.0
        %1264 = vmatprep.subr.mxu0 0.0
        %1265 = vmatpush1.msra.mxu0 0.0
        %1266 = vmatprep.subr.mxu0 0.0
        %1267 = vmatpush1.msra.mxu0 0.0
        %1268 = vmatprep.subr.mxu0 0.0
        %1269 = vmatpush1.msra.mxu0 0.0
        %1270 = vmatprep.subr.mxu0 0.0
        %1271 = vmatpush1.msra.mxu0 0.0
        %1272 = vmatprep.subr.mxu0 0.0
        %1273 = vmatpush1.msra.mxu0 0.0
        %1274 = vmatprep.subr.mxu0 0.0
        %1275 = vmatpush1.msra.mxu0 0.0
        %1276 = vmatprep.subr.mxu0 0.0
        %1277 = vmatpush1.msra.mxu0 0.0
        %1278 = vmatprep.subr.mxu0 0.0
        %1279 = vmatpush1.msra.mxu0 0.0
        %1280 = vmatprep.subr.mxu0 0.0
        %1281 = vmatpush1.msra.mxu0 0.0
        %1282 = vmatprep.mubr.f32.mxu0 0.0
        %1283 = vmatmul.mubr.f32.gmra.mrb[0].mxu0 %v673
        %v1284 = vpop.f32.mrb[0].mxu0
        %v1285 = vadd.f32 0.0, %v1284
        %v1286 = vpop.f32.mrb[0].mxu0
        %v1287 = vadd.f32 0.0, %v1286
        %1288 = vmatprep.mubr.f32.mxu0 0.0
        %1289 = vmatmul.mubr.f32.gmra.mrb[0].mxu0 %v676
        %v1290 = vpop.f32.mrb[0].mxu0
        %v1291 = vadd.f32 0.0, %v1290
        %v1292 = vpop.f32.mrb[0].mxu0
        %v1293 = vadd.f32 0.0, %v1292
        %1294 = vmatprep.mubr.f32.mxu0 0.0
        %1295 = vmatmul.mubr.f32.gmra.mrb[0].mxu0 %v679
        %v1296 = vpop.f32.mrb[0].mxu0
        %v1297 = vadd.f32 0.0, %v1296
        %v1298 = vpop.f32.mrb[0].mxu0
        %v1299 = vadd.f32 0.0, %v1298
        %1300 = vmatprep.mubr.f32.mxu0 0.0
        %1301 = vmatmul.mubr.f32.gmra.mrb[0].mxu0 %v682
        %v1302 = vpop.f32.mrb[0].mxu0
        %v1303 = vadd.f32 0.0, %v1302
        %v1304 = vpop.f32.mrb[0].mxu0
        %v1305 = vadd.f32 0.0, %v1304
        %1306 = vdwg.mxu0
        %1307 = vmatprep.subr.mxu0 %v624
        %1308 = vmatpush1.msra.mxu0 %v623
        %1309 = vmatprep.subr.mxu0 %v626
        %1310 = vmatpush1.msra.mxu0 %v625
        %1311 = vmatprep.subr.mxu0 %v628
        %1312 = vmatpush1.msra.mxu0 %v627
        %1313 = vmatprep.subr.mxu0 %v630
        %1314 = vmatpush1.msra.mxu0 %v629
        %1315 = vmatprep.subr.mxu0 0.0
        %1316 = vmatpush1.msra.mxu0 0.0
        %1317 = vmatprep.subr.mxu0 0.0
        %1318 = vmatpush1.msra.mxu0 0.0
        %1319 = vmatprep.subr.mxu0 0.0
        %1320 = vmatpush1.msra.mxu0 0.0
        %1321 = vmatprep.subr.mxu0 0.0
        %1322 = vmatpush1.msra.mxu0 0.0
        %1323 = vmatprep.subr.mxu0 0.0
        %1324 = vmatpush1.msra.mxu0 0.0
        %1325 = vmatprep.subr.mxu0 0.0
        %1326 = vmatpush1.msra.mxu0 0.0
        %1327 = vmatprep.subr.mxu0 0.0
        %1328 = vmatpush1.msra.mxu0 0.0
        %1329 = vmatprep.subr.mxu0 0.0
        %1330 = vmatpush1.msra.mxu0 0.0
        %1331 = vmatprep.subr.mxu0 0.0
        %1332 = vmatpush1.msra.mxu0 0.0
        %1333 = vmatprep.subr.mxu0 0.0
        %1334 = vmatpush1.msra.mxu0 0.0
        %1335 = vmatprep.subr.mxu0 0.0
        %1336 = vmatpush1.msra.mxu0 0.0
        %1337 = vmatprep.subr.mxu0 0.0
        %1338 = vmatpush1.msra.mxu0 0.0
        %1339 = vmatprep.subr.mxu0 0.0
        %1340 = vmatpush1.msra.mxu0 0.0
        %1341 = vmatprep.subr.mxu0 0.0
        %1342 = vmatpush1.msra.mxu0 0.0
        %1343 = vmatprep.subr.mxu0 0.0
        %1344 = vmatpush1.msra.mxu0 0.0
        %1345 = vmatprep.subr.mxu0 0.0
        %1346 = vmatpush1.msra.mxu0 0.0
        %1347 = vmatprep.subr.mxu0 0.0
        %1348 = vmatpush1.msra.mxu0 0.0
        %1349 = vmatprep.subr.mxu0 0.0
        %1350 = vmatpush1.msra.mxu0 0.0
        %1351 = vmatprep.subr.mxu0 0.0
        %1352 = vmatpush1.msra.mxu0 0.0
        %1353 = vmatprep.subr.mxu0 0.0
        %1354 = vmatpush1.msra.mxu0 0.0
        %1355 = vmatprep.subr.mxu0 0.0
        %1356 = vmatpush1.msra.mxu0 0.0
        %1357 = vmatprep.subr.mxu0 0.0
        %1358 = vmatpush1.msra.mxu0 0.0
        %1359 = vmatprep.subr.mxu0 0.0
        %1360 = vmatpush1.msra.mxu0 0.0
        %1361 = vmatprep.subr.mxu0 0.0
        %1362 = vmatpush1.msra.mxu0 0.0
        %1363 = vmatprep.subr.mxu0 0.0
        %1364 = vmatpush1.msra.mxu0 0.0
        %1365 = vmatprep.subr.mxu0 0.0
        %1366 = vmatpush1.msra.mxu0 0.0
        %1367 = vmatprep.subr.mxu0 0.0
        %1368 = vmatpush1.msra.mxu0 0.0
        %1369 = vmatprep.subr.mxu0 0.0
        %1370 = vmatpush1.msra.mxu0 0.0
        %1371 = vmatprep.mubr.f32.mxu0 0.0
        %1372 = vmatmul.mubr.f32.gmra.mrb[0].mxu0 %v673
        %v1373 = vpop.f32.mrb[0].mxu0
        %v1374 = vadd.f32 0.0, %v1373
        %v1375 = vpop.f32.mrb[0].mxu0
        %v1376 = vadd.f32 0.0, %v1375
        %1377 = vmatprep.mubr.f32.mxu0 0.0
        %1378 = vmatmul.mubr.f32.gmra.mrb[0].mxu0 %v676
        %v1379 = vpop.f32.mrb[0].mxu0
        %v1380 = vadd.f32 0.0, %v1379
        %v1381 = vpop.f32.mrb[0].mxu0
        %v1382 = vadd.f32 0.0, %v1381
        %1383 = vmatprep.mubr.f32.mxu0 0.0
        %1384 = vmatmul.mubr.f32.gmra.mrb[0].mxu0 %v679
        %v1385 = vpop.f32.mrb[0].mxu0
        %v1386 = vadd.f32 0.0, %v1385
        %v1387 = vpop.f32.mrb[0].mxu0
        %v1388 = vadd.f32 0.0, %v1387
        %1389 = vmatprep.mubr.f32.mxu0 0.0
        %1390 = vmatmul.mubr.f32.gmra.mrb[0].mxu0 %v682
        %v1391 = vpop.f32.mrb[0].mxu0
        %v1392 = vadd.f32 0.0, %v1391
        %v1393 = vpop.f32.mrb[0].mxu0
        %v1394 = vadd.f32 0.0, %v1393
        %1395 = vdwg.mxu0
        %1396 = vmatprep.subr.mxu0 %v632
        %1397 = vmatpush1.msra.mxu0 %v631
        %1398 = vmatprep.subr.mxu0 %v634
        %1399 = vmatpush1.msra.mxu0 %v633
        %1400 = vmatprep.subr.mxu0 %v636
        %1401 = vmatpush1.msra.mxu0 %v635
        %1402 = vmatprep.subr.mxu0 %v638
        %1403 = vmatpush1.msra.mxu0 %v637
        %1404 = vmatprep.subr.mxu0 0.0
        %1405 = vmatpush1.msra.mxu0 0.0
        %1406 = vmatprep.subr.mxu0 0.0
        %1407 = vmatpush1.msra.mxu0 0.0
        %1408 = vmatprep.subr.mxu0 0.0
        %1409 = vmatpush1.msra.mxu0 0.0
        %1410 = vmatprep.subr.mxu0 0.0
        %1411 = vmatpush1.msra.mxu0 0.0
        %1412 = vmatprep.subr.mxu0 0.0
        %1413 = vmatpush1.msra.mxu0 0.0
        %1414 = vmatprep.subr.mxu0 0.0
        %1415 = vmatpush1.msra.mxu0 0.0
        %1416 = vmatprep.subr.mxu0 0.0
        %1417 = vmatpush1.msra.mxu0 0.0
        %1418 = vmatprep.subr.mxu0 0.0
        %1419 = vmatpush1.msra.mxu0 0.0
        %1420 = vmatprep.subr.mxu0 0.0
        %1421 = vmatpush1.msra.mxu0 0.0
        %1422 = vmatprep.subr.mxu0 0.0
        %1423 = vmatpush1.msra.mxu0 0.0
        %1424 = vmatprep.subr.mxu0 0.0
        %1425 = vmatpush1.msra.mxu0 0.0
        %1426 = vmatprep.subr.mxu0 0.0
        %1427 = vmatpush1.msra.mxu0 0.0
        %1428 = vmatprep.subr.mxu0 0.0
        %1429 = vmatpush1.msra.mxu0 0.0
        %1430 = vmatprep.subr.mxu0 0.0
        %1431 = vmatpush1.msra.mxu0 0.0
        %1432 = vmatprep.subr.mxu0 0.0
        %1433 = vmatpush1.msra.mxu0 0.0
        %1434 = vmatprep.subr.mxu0 0.0
        %1435 = vmatpush1.msra.mxu0 0.0
        %1436 = vmatprep.subr.mxu0 0.0
        %1437 = vmatpush1.msra.mxu0 0.0
        %1438 = vmatprep.subr.mxu0 0.0
        %1439 = vmatpush1.msra.mxu0 0.0
        %1440 = vmatprep.subr.mxu0 0.0
        %1441 = vmatpush1.msra.mxu0 0.0
        %1442 = vmatprep.subr.mxu0 0.0
        %1443 = vmatpush1.msra.mxu0 0.0
        %1444 = vmatprep.subr.mxu0 0.0
        %1445 = vmatpush1.msra.mxu0 0.0
        %1446 = vmatprep.subr.mxu0 0.0
        %1447 = vmatpush1.msra.mxu0 0.0
        %1448 = vmatprep.subr.mxu0 0.0
        %1449 = vmatpush1.msra.mxu0 0.0
        %1450 = vmatprep.subr.mxu0 0.0
        %1451 = vmatpush1.msra.mxu0 0.0
        %1452 = vmatprep.subr.mxu0 0.0
        %1453 = vmatpush1.msra.mxu0 0.0
        %1454 = vmatprep.subr.mxu0 0.0
        %1455 = vmatpush1.msra.mxu0 0.0
        %1456 = vmatprep.subr.mxu0 0.0
        %1457 = vmatpush1.msra.mxu0 0.0
        %1458 = vmatprep.subr.mxu0 0.0
        %1459 = vmatpush1.msra.mxu0 0.0
        %1460 = vmatprep.mubr.f32.mxu0 0.0
        %1461 = vmatmul.mubr.f32.gmra.mrb[0].mxu0 %v673
        %v1462 = vpop.f32.mrb[0].mxu0
        %v1463 = vadd.f32 0.0, %v1462
        %v1464 = vpop.f32.mrb[0].mxu0
        %v1465 = vadd.f32 0.0, %v1464
        %1466 = vmatprep.mubr.f32.mxu0 0.0
        %1467 = vmatmul.mubr.f32.gmra.mrb[0].mxu0 %v676
        %v1468 = vpop.f32.mrb[0].mxu0
        %v1469 = vadd.f32 0.0, %v1468
        %v1470 = vpop.f32.mrb[0].mxu0
        %v1471 = vadd.f32 0.0, %v1470
        %1472 = vmatprep.mubr.f32.mxu0 0.0
        %1473 = vmatmul.mubr.f32.gmra.mrb[0].mxu0 %v679
        %v1474 = vpop.f32.mrb[0].mxu0
        %v1475 = vadd.f32 0.0, %v1474
        %v1476 = vpop.f32.mrb[0].mxu0
        %v1477 = vadd.f32 0.0, %v1476
        %1478 = vmatprep.mubr.f32.mxu0 0.0
        %1479 = vmatmul.mubr.f32.gmra.mrb[0].mxu0 %v682
        %v1480 = vpop.f32.mrb[0].mxu0
        %v1481 = vadd.f32 0.0, %v1480
        %v1482 = vpop.f32.mrb[0].mxu0
        %v1483 = vadd.f32 0.0, %v1482
        %1484 = vdwg.mxu0
        %1485 = vmatprep.subr.mxu0 %v640
        %1486 = vmatpush1.msra.mxu0 %v639
        %1487 = vmatprep.subr.mxu0 %v642
        %1488 = vmatpush1.msra.mxu0 %v641
        %1489 = vmatprep.subr.mxu0 %v644
        %1490 = vmatpush1.msra.mxu0 %v643
        %1491 = vmatprep.subr.mxu0 %v646
        %1492 = vmatpush1.msra.mxu0 %v645
        %1493 = vmatprep.subr.mxu0 0.0
        %1494 = vmatpush1.msra.mxu0 0.0
        %1495 = vmatprep.subr.mxu0 0.0
        %1496 = vmatpush1.msra.mxu0 0.0
        %1497 = vmatprep.subr.mxu0 0.0
        %1498 = vmatpush1.msra.mxu0 0.0
        %1499 = vmatprep.subr.mxu0 0.0
        %1500 = vmatpush1.msra.mxu0 0.0
        %1501 = vmatprep.subr.mxu0 0.0
        %1502 = vmatpush1.msra.mxu0 0.0
        %1503 = vmatprep.subr.mxu0 0.0
        %1504 = vmatpush1.msra.mxu0 0.0
        %1505 = vmatprep.subr.mxu0 0.0
        %1506 = vmatpush1.msra.mxu0 0.0
        %1507 = vmatprep.subr.mxu0 0.0
        %1508 = vmatpush1.msra.mxu0 0.0
        %1509 = vmatprep.subr.mxu0 0.0
        %1510 = vmatpush1.msra.mxu0 0.0
        %1511 = vmatprep.subr.mxu0 0.0
        %1512 = vmatpush1.msra.mxu0 0.0
        %1513 = vmatprep.subr.mxu0 0.0
        %1514 = vmatpush1.msra.mxu0 0.0
        %1515 = vmatprep.subr.mxu0 0.0
        %1516 = vmatpush1.msra.mxu0 0.0
        %1517 = vmatprep.subr.mxu0 0.0
        %1518 = vmatpush1.msra.mxu0 0.0
        %1519 = vmatprep.subr.mxu0 0.0
        %1520 = vmatpush1.msra.mxu0 0.0
        %1521 = vmatprep.subr.mxu0 0.0
        %1522 = vmatpush1.msra.mxu0 0.0
        %1523 = vmatprep.subr.mxu0 0.0
        %1524 = vmatpush1.msra.mxu0 0.0
        %1525 = vmatprep.subr.mxu0 0.0
        %1526 = vmatpush1.msra.mxu0 0.0
        %1527 = vmatprep.subr.mxu0 0.0
        %1528 = vmatpush1.msra.mxu0 0.0
        %1529 = vmatprep.subr.mxu0 0.0
        %1530 = vmatpush1.msra.mxu0 0.0
        %1531 = vmatprep.subr.mxu0 0.0
        %1532 = vmatpush1.msra.mxu0 0.0
        %1533 = vmatprep.subr.mxu0 0.0
        %1534 = vmatpush1.msra.mxu0 0.0
        %1535 = vmatprep.subr.mxu0 0.0
        %1536 = vmatpush1.msra.mxu0 0.0
        %1537 = vmatprep.subr.mxu0 0.0
        %1538 = vmatpush1.msra.mxu0 0.0
        %1539 = vmatprep.subr.mxu0 0.0
        %1540 = vmatpush1.msra.mxu0 0.0
        %1541 = vmatprep.subr.mxu0 0.0
        %1542 = vmatpush1.msra.mxu0 0.0
        %1543 = vmatprep.subr.mxu0 0.0
        %1544 = vmatpush1.msra.mxu0 0.0
        %1545 = vmatprep.subr.mxu0 0.0
        %1546 = vmatpush1.msra.mxu0 0.0
        %1547 = vmatprep.subr.mxu0 0.0
        %1548 = vmatpush1.msra.mxu0 0.0
        %1549 = vmatprep.mubr.f32.mxu0 0.0
        %1550 = vmatmul.mubr.f32.gmra.mrb[0].mxu0 %v673
        %v1551 = vpop.f32.mrb[0].mxu0
        %v1552 = vadd.f32 0.0, %v1551
        %v1553 = vpop.f32.mrb[0].mxu0
        %v1554 = vadd.f32 0.0, %v1553
        %1555 = vmatprep.mubr.f32.mxu0 0.0
        %1556 = vmatmul.mubr.f32.gmra.mrb[0].mxu0 %v676
        %v1557 = vpop.f32.mrb[0].mxu0
        %v1558 = vadd.f32 0.0, %v1557
        %v1559 = vpop.f32.mrb[0].mxu0
        %v1560 = vadd.f32 0.0, %v1559
        %1561 = vmatprep.mubr.f32.mxu0 0.0
        %1562 = vmatmul.mubr.f32.gmra.mrb[0].mxu0 %v679
        %v1563 = vpop.f32.mrb[0].mxu0
        %v1564 = vadd.f32 0.0, %v1563
        %v1565 = vpop.f32.mrb[0].mxu0
        %v1566 = vadd.f32 0.0, %v1565
        %1567 = vmatprep.mubr.f32.mxu0 0.0
        %1568 = vmatmul.mubr.f32.gmra.mrb[0].mxu0 %v682
        %v1569 = vpop.f32.mrb[0].mxu0
        %v1570 = vadd.f32 0.0, %v1569
        %v1571 = vpop.f32.mrb[0].mxu0
        %v1572 = vadd.f32 0.0, %v1571
        %1573 = vdwg.mxu0
        %1574 = vmatprep.subr.mxu0 %v648
        %1575 = vmatpush1.msra.mxu0 %v647
        %1576 = vmatprep.subr.mxu0 %v650
        %1577 = vmatpush1.msra.mxu0 %v649
        %1578 = vmatprep.subr.mxu0 %v652
        %1579 = vmatpush1.msra.mxu0 %v651
        %1580 = vmatprep.subr.mxu0 %v654
        %1581 = vmatpush1.msra.mxu0 %v653
        %1582 = vmatprep.subr.mxu0 0.0
        %1583 = vmatpush1.msra.mxu0 0.0
        %1584 = vmatprep.subr.mxu0 0.0
        %1585 = vmatpush1.msra.mxu0 0.0
        %1586 = vmatprep.subr.mxu0 0.0
        %1587 = vmatpush1.msra.mxu0 0.0
        %1588 = vmatprep.subr.mxu0 0.0
        %1589 = vmatpush1.msra.mxu0 0.0
        %1590 = vmatprep.subr.mxu0 0.0
        %1591 = vmatpush1.msra.mxu0 0.0
        %1592 = vmatprep.subr.mxu0 0.0
        %1593 = vmatpush1.msra.mxu0 0.0
        %1594 = vmatprep.subr.mxu0 0.0
        %1595 = vmatpush1.msra.mxu0 0.0
        %1596 = vmatprep.subr.mxu0 0.0
        %1597 = vmatpush1.msra.mxu0 0.0
        %1598 = vmatprep.subr.mxu0 0.0
        %1599 = vmatpush1.msra.mxu0 0.0
        %1600 = vmatprep.subr.mxu0 0.0
        %1601 = vmatpush1.msra.mxu0 0.0
        %1602 = vmatprep.subr.mxu0 0.0
        %1603 = vmatpush1.msra.mxu0 0.0
        %1604 = vmatprep.subr.mxu0 0.0
        %1605 = vmatpush1.msra.mxu0 0.0
        %1606 = vmatprep.subr.mxu0 0.0
        %1607 = vmatpush1.msra.mxu0 0.0
        %1608 = vmatprep.subr.mxu0 0.0
        %1609 = vmatpush1.msra.mxu0 0.0
        %1610 = vmatprep.subr.mxu0 0.0
        %1611 = vmatpush1.msra.mxu0 0.0
        %1612 = vmatprep.subr.mxu0 0.0
        %1613 = vmatpush1.msra.mxu0 0.0
        %1614 = vmatprep.subr.mxu0 0.0
        %1615 = vmatpush1.msra.mxu0 0.0
        %1616 = vmatprep.subr.mxu0 0.0
        %1617 = vmatpush1.msra.mxu0 0.0
        %1618 = vmatprep.subr.mxu0 0.0
        %1619 = vmatpush1.msra.mxu0 0.0
        %1620 = vmatprep.subr.mxu0 0.0
        %1621 = vmatpush1.msra.mxu0 0.0
        %1622 = vmatprep.subr.mxu0 0.0
        %1623 = vmatpush1.msra.mxu0 0.0
        %1624 = vmatprep.subr.mxu0 0.0
        %1625 = vmatpush1.msra.mxu0 0.0
        %1626 = vmatprep.subr.mxu0 0.0
        %1627 = vmatpush1.msra.mxu0 0.0
        %1628 = vmatprep.subr.mxu0 0.0
        %1629 = vmatpush1.msra.mxu0 0.0
        %1630 = vmatprep.subr.mxu0 0.0
        %1631 = vmatpush1.msra.mxu0 0.0
        %1632 = vmatprep.subr.mxu0 0.0
        %1633 = vmatpush1.msra.mxu0 0.0
        %1634 = vmatprep.subr.mxu0 0.0
        %1635 = vmatpush1.msra.mxu0 0.0
        %1636 = vmatprep.subr.mxu0 0.0
        %1637 = vmatpush1.msra.mxu0 0.0
        %1638 = vmatprep.mubr.f32.mxu0 0.0
        %1639 = vmatmul.mubr.f32.gmra.mrb[0].mxu0 %v673
        %v1640 = vpop.f32.mrb[0].mxu0
        %v1641 = vadd.f32 0.0, %v1640
        %v1642 = vpop.f32.mrb[0].mxu0
        %v1643 = vadd.f32 0.0, %v1642
        %1644 = vmatprep.mubr.f32.mxu0 0.0
        %1645 = vmatmul.mubr.f32.gmra.mrb[0].mxu0 %v676
        %v1646 = vpop.f32.mrb[0].mxu0
        %v1647 = vadd.f32 0.0, %v1646
        %v1648 = vpop.f32.mrb[0].mxu0
        %v1649 = vadd.f32 0.0, %v1648
        %1650 = vmatprep.mubr.f32.mxu0 0.0
        %1651 = vmatmul.mubr.f32.gmra.mrb[0].mxu0 %v679
        %v1652 = vpop.f32.mrb[0].mxu0
        %v1653 = vadd.f32 0.0, %v1652
        %v1654 = vpop.f32.mrb[0].mxu0
        %v1655 = vadd.f32 0.0, %v1654
        %1656 = vmatprep.mubr.f32.mxu0 0.0
        %1657 = vmatmul.mubr.f32.gmra.mrb[0].mxu0 %v682
        %v1658 = vpop.f32.mrb[0].mxu0
        %v1659 = vadd.f32 0.0, %v1658
        %v1660 = vpop.f32.mrb[0].mxu0
        %v1661 = vadd.f32 0.0, %v1660
        %1662 = vdwg.mxu0
        %1663 = vmatprep.subr.mxu0 %v656
        %1664 = vmatpush1.msra.mxu0 %v655
        %1665 = vmatprep.subr.mxu0 %v658
        %1666 = vmatpush1.msra.mxu0 %v657
        %1667 = vmatprep.subr.mxu0 %v660
        %1668 = vmatpush1.msra.mxu0 %v659
        %1669 = vmatprep.subr.mxu0 %v662
        %1670 = vmatpush1.msra.mxu0 %v661
        %1671 = vmatprep.subr.mxu0 0.0
        %1672 = vmatpush1.msra.mxu0 0.0
        %1673 = vmatprep.subr.mxu0 0.0
        %1674 = vmatpush1.msra.mxu0 0.0
        %1675 = vmatprep.subr.mxu0 0.0
        %1676 = vmatpush1.msra.mxu0 0.0
        %1677 = vmatprep.subr.mxu0 0.0
        %1678 = vmatpush1.msra.mxu0 0.0
        %1679 = vmatprep.subr.mxu0 0.0
        %1680 = vmatpush1.msra.mxu0 0.0
        %1681 = vmatprep.subr.mxu0 0.0
        %1682 = vmatpush1.msra.mxu0 0.0
        %1683 = vmatprep.subr.mxu0 0.0
        %1684 = vmatpush1.msra.mxu0 0.0
        %1685 = vmatprep.subr.mxu0 0.0
        %1686 = vmatpush1.msra.mxu0 0.0
        %1687 = vmatprep.subr.mxu0 0.0
        %1688 = vmatpush1.msra.mxu0 0.0
        %1689 = vmatprep.subr.mxu0 0.0
        %1690 = vmatpush1.msra.mxu0 0.0
        %1691 = vmatprep.subr.mxu0 0.0
        %1692 = vmatpush1.msra.mxu0 0.0
        %1693 = vmatprep.subr.mxu0 0.0
        %1694 = vmatpush1.msra.mxu0 0.0
        %1695 = vmatprep.subr.mxu0 0.0
        %1696 = vmatpush1.msra.mxu0 0.0
        %1697 = vmatprep.subr.mxu0 0.0
        %1698 = vmatpush1.msra.mxu0 0.0
        %1699 = vmatprep.subr.mxu0 0.0
        %1700 = vmatpush1.msra.mxu0 0.0
        %1701 = vmatprep.subr.mxu0 0.0
        %1702 = vmatpush1.msra.mxu0 0.0
        %1703 = vmatprep.subr.mxu0 0.0
        %1704 = vmatpush1.msra.mxu0 0.0
        %1705 = vmatprep.subr.mxu0 0.0
        %1706 = vmatpush1.msra.mxu0 0.0
        %1707 = vmatprep.subr.mxu0 0.0
        %1708 = vmatpush1.msra.mxu0 0.0
        %1709 = vmatprep.subr.mxu0 0.0
        %1710 = vmatpush1.msra.mxu0 0.0
        %1711 = vmatprep.subr.mxu0 0.0
        %1712 = vmatpush1.msra.mxu0 0.0
        %1713 = vmatprep.subr.mxu0 0.0
        %1714 = vmatpush1.msra.mxu0 0.0
        %1715 = vmatprep.subr.mxu0 0.0
        %1716 = vmatpush1.msra.mxu0 0.0
        %1717 = vmatprep.subr.mxu0 0.0
        %1718 = vmatpush1.msra.mxu0 0.0
        %1719 = vmatprep.subr.mxu0 0.0
        %1720 = vmatpush1.msra.mxu0 0.0
        %1721 = vmatprep.subr.mxu0 0.0
        %1722 = vmatpush1.msra.mxu0 0.0
        %1723 = vmatprep.subr.mxu0 0.0
        %1724 = vmatpush1.msra.mxu0 0.0
        %1725 = vmatprep.subr.mxu0 0.0
        %1726 = vmatpush1.msra.mxu0 0.0
        %1727 = vmatprep.mubr.f32.mxu0 0.0
        %1728 = vmatmul.mubr.f32.gmra.mrb[0].mxu0 %v673
        %v1729 = vpop.f32.mrb[0].mxu0
        %v1730 = vadd.f32 0.0, %v1729
        %v1731 = vpop.f32.mrb[0].mxu0
        %v1732 = vadd.f32 0.0, %v1731
        %1733 = vmatprep.mubr.f32.mxu0 0.0
        %1734 = vmatmul.mubr.f32.gmra.mrb[0].mxu0 %v676
        %v1735 = vpop.f32.mrb[0].mxu0
        %v1736 = vadd.f32 0.0, %v1735
        %v1737 = vpop.f32.mrb[0].mxu0
        %v1738 = vadd.f32 0.0, %v1737
        %1739 = vmatprep.mubr.f32.mxu0 0.0
        %1740 = vmatmul.mubr.f32.gmra.mrb[0].mxu0 %v679
        %v1741 = vpop.f32.mrb[0].mxu0
        %v1742 = vadd.f32 0.0, %v1741
        %v1743 = vpop.f32.mrb[0].mxu0
        %v1744 = vadd.f32 0.0, %v1743
        %1745 = vmatprep.mubr.f32.mxu0 0.0
        %1746 = vmatmul.mubr.f32.gmra.mrb[0].mxu0 %v682
        %v1747 = vpop.f32.mrb[0].mxu0
        %v1748 = vadd.f32 0.0, %v1747
        %v1749 = vpop.f32.mrb[0].mxu0
        %v1750 = vadd.f32 0.0, %v1749
        %1751 = vdwg.mxu0
        %1752 = vmatprep.subr.mxu0 %v664
        %1753 = vmatpush1.msra.mxu0 %v663
        %1754 = vmatprep.subr.mxu0 %v666
        %1755 = vmatpush1.msra.mxu0 %v665
        %1756 = vmatprep.subr.mxu0 %v668
        %1757 = vmatpush1.msra.mxu0 %v667
        %1758 = vmatprep.subr.mxu0 %v670
        %1759 = vmatpush1.msra.mxu0 %v669
        %1760 = vmatprep.subr.mxu0 0.0
        %1761 = vmatpush1.msra.mxu0 0.0
        %1762 = vmatprep.subr.mxu0 0.0
        %1763 = vmatpush1.msra.mxu0 0.0
        %1764 = vmatprep.subr.mxu0 0.0
        %1765 = vmatpush1.msra.mxu0 0.0
        %1766 = vmatprep.subr.mxu0 0.0
        %1767 = vmatpush1.msra.mxu0 0.0
        %1768 = vmatprep.subr.mxu0 0.0
        %1769 = vmatpush1.msra.mxu0 0.0
        %1770 = vmatprep.subr.mxu0 0.0
        %1771 = vmatpush1.msra.mxu0 0.0
        %1772 = vmatprep.subr.mxu0 0.0
        %1773 = vmatpush1.msra.mxu0 0.0
        %1774 = vmatprep.subr.mxu0 0.0
        %1775 = vmatpush1.msra.mxu0 0.0
        %1776 = vmatprep.subr.mxu0 0.0
        %1777 = vmatpush1.msra.mxu0 0.0
        %1778 = vmatprep.subr.mxu0 0.0
        %1779 = vmatpush1.msra.mxu0 0.0
        %1780 = vmatprep.subr.mxu0 0.0
        %1781 = vmatpush1.msra.mxu0 0.0
        %1782 = vmatprep.subr.mxu0 0.0
        %1783 = vmatpush1.msra.mxu0 0.0
        %1784 = vmatprep.subr.mxu0 0.0
        %1785 = vmatpush1.msra.mxu0 0.0
        %1786 = vmatprep.subr.mxu0 0.0
        %1787 = vmatpush1.msra.mxu0 0.0
        %1788 = vmatprep.subr.mxu0 0.0
        %1789 = vmatpush1.msra.mxu0 0.0
        %1790 = vmatprep.subr.mxu0 0.0
        %1791 = vmatpush1.msra.mxu0 0.0
        %1792 = vmatprep.subr.mxu0 0.0
        %1793 = vmatpush1.msra.mxu0 0.0
        %1794 = vmatprep.subr.mxu0 0.0
        %1795 = vmatpush1.msra.mxu0 0.0
        %1796 = vmatprep.subr.mxu0 0.0
        %1797 = vmatpush1.msra.mxu0 0.0
        %1798 = vmatprep.subr.mxu0 0.0
        %1799 = vmatpush1.msra.mxu0 0.0
        %1800 = vmatprep.subr.mxu0 0.0
        %1801 = vmatpush1.msra.mxu0 0.0
        %1802 = vmatprep.subr.mxu0 0.0
        %1803 = vmatpush1.msra.mxu0 0.0
        %1804 = vmatprep.subr.mxu0 0.0
        %1805 = vmatpush1.msra.mxu0 0.0
        %1806 = vmatprep.subr.mxu0 0.0
        %1807 = vmatpush1.msra.mxu0 0.0
        %1808 = vmatprep.subr.mxu0 0.0
        %1809 = vmatpush1.msra.mxu0 0.0
        %1810 = vmatprep.subr.mxu0 0.0
        %1811 = vmatpush1.msra.mxu0 0.0
        %1812 = vmatprep.subr.mxu0 0.0
        %1813 = vmatpush1.msra.mxu0 0.0
        %1814 = vmatprep.subr.mxu0 0.0
        %1815 = vmatpush1.msra.mxu0 0.0
        %1816 = vmatprep.mubr.f32.mxu0 0.0
        %1817 = vmatmul.mubr.f32.gmra.mrb[0].mxu0 %v673
        %v1818 = vpop.f32.mrb[0].mxu0
        %v1819 = vadd.f32 0.0, %v1818
        %v1820 = vpop.f32.mrb[0].mxu0
        %v1821 = vadd.f32 0.0, %v1820
        %1822 = vmatprep.mubr.f32.mxu0 0.0
        %1823 = vmatmul.mubr.f32.gmra.mrb[0].mxu0 %v676
        %v1824 = vpop.f32.mrb[0].mxu0
        %v1825 = vadd.f32 0.0, %v1824
        %v1826 = vpop.f32.mrb[0].mxu0
        %v1827 = vadd.f32 0.0, %v1826
        %1828 = vmatprep.mubr.f32.mxu0 0.0
        %1829 = vmatmul.mubr.f32.gmra.mrb[0].mxu0 %v679
        %v1830 = vpop.f32.mrb[0].mxu0
        %v1831 = vadd.f32 0.0, %v1830
        %v1832 = vpop.f32.mrb[0].mxu0
        %v1833 = vadd.f32 0.0, %v1832
        %1834 = vmatprep.mubr.f32.mxu0 0.0
        %1835 = vmatmul.mubr.f32.gmra.mrb[0].mxu0 %v682
        %v1836 = vpop.f32.mrb[0].mxu0
        %v1837 = vadd.f32 0.0, %v1836
        %v1838 = vpop.f32.mrb[0].mxu0
        %v1839 = vadd.f32 0.0, %v1838
        %1840 = vdwg.mxu0
        %1841 = vset.pattern.permute.xlu0 1
        %1842 = vperm.xlu0 %1841, %v283
        %v1843 = vpop.permute.xlu0 %1842
        %1845 = vset.pattern.permute.xlu0 1
        %1846 = vperm.xlu0 %1845, %v284
        %v1847 = vpop.permute.xlu0 %1846
        %1849 = vset.pattern.permute.xlu0 1
        %1850 = vperm.xlu0 %1849, %v285
        %v1851 = vpop.permute.xlu0 %1850
        %1853 = vset.pattern.permute.xlu0 1
        %1854 = vperm.xlu0 %1853, %v286
        %v1855 = vpop.permute.xlu0 %1854
        %v1857 = vadd.f32 %v751, %v1843
        %v1858 = vadd.f32 %v753, %v1843
        %v1859 = vadd.f32 %v757, %v1847
        %v1860 = vadd.f32 %v759, %v1847
        %v1861 = vadd.f32 %v763, %v1851
        %v1862 = vadd.f32 %v765, %v1851
        %v1863 = vadd.f32 %v769, %v1855
        %v1864 = vadd.f32 %v771, %v1855
        %v1865 = vtanh.pop %v1857
        %v1866 = vtanh.pop %v1858
        %v1867 = vtanh.pop %v1859
        %v1868 = vtanh.pop %v1860
        %v1869 = vtanh.pop %v1861
        %v1870 = vtanh.pop %v1862
        %v1871 = vtanh.pop %v1863
        %v1872 = vtanh.pop %v1864
        %v1873 = vmul.f32 %v1865, %v1865
        %v1874 = vmul.f32 %v1866, %v1866
        %v1875 = vmul.f32 %v1867, %v1867
        %v1876 = vmul.f32 %v1868, %v1868
        %v1877 = vmul.f32 %v1869, %v1869
        %v1878 = vmul.f32 %v1870, %v1870
        %v1879 = vmul.f32 %v1871, %v1871
        %v1880 = vmul.f32 %v1872, %v1872
        %v1881 = vsub.f32 1.0, %v1873
        %v1882 = vsub.f32 1.0, %v1874
        %v1883 = vsub.f32 1.0, %v1875
        %v1884 = vsub.f32 1.0, %v1876
        %v1885 = vsub.f32 1.0, %v1877
        %v1886 = vsub.f32 1.0, %v1878
        %v1887 = vsub.f32 1.0, %v1879
        %v1888 = vsub.f32 1.0, %v1880
        %v1889 = vmul.f32 %v1865, -2.0
        %v1890 = vmul.f32 %v1866, -2.0
        %v1891 = vmul.f32 %v1867, -2.0
        %v1892 = vmul.f32 %v1868, -2.0
        %v1893 = vmul.f32 %v1869, -2.0
        %v1894 = vmul.f32 %v1870, -2.0
        %v1895 = vmul.f32 %v1871, -2.0
        %v1896 = vmul.f32 %v1872, -2.0
        %v1897 = vmul.f32 %v1889, %v1881
        %v1898 = vmul.f32 %v1890, %v1882
        %v1899 = vmul.f32 %v1891, %v1883
        %v1900 = vmul.f32 %v1892, %v1884
        %v1901 = vmul.f32 %v1893, %v1885
        %v1902 = vmul.f32 %v1894, %v1886
        %v1903 = vmul.f32 %v1895, %v1887
        %v1904 = vmul.f32 %v1896, %v1888
        %v1905 = vmul.f32 %v1881, %v1881
        %v1906 = vmul.f32 %v1882, %v1882
        %v1907 = vmul.f32 %v1883, %v1883
        %v1908 = vmul.f32 %v1884, %v1884
        %v1909 = vmul.f32 %v1885, %v1885
        %v1910 = vmul.f32 %v1886, %v1886
        %v1911 = vmul.f32 %v1887, %v1887
        %v1912 = vmul.f32 %v1888, %v1888
        %v1913 = vmul.f32 %v1865, %v1897
        %v1914 = vmul.f32 %v1866, %v1898
        %v1915 = vmul.f32 %v1867, %v1899
        %v1916 = vmul.f32 %v1868, %v1900
        %v1917 = vmul.f32 %v1869, %v1901
        %v1918 = vmul.f32 %v1870, %v1902
        %v1919 = vmul.f32 %v1871, %v1903
        %v1920 = vmul.f32 %v1872, %v1904
        %v1921 = vadd.f32 %v1905, %v1913
        %v1922 = vadd.f32 %v1906, %v1914
        %v1923 = vadd.f32 %v1907, %v1915
        %v1924 = vadd.f32 %v1908, %v1916
        %v1925 = vadd.f32 %v1909, %v1917
        %v1926 = vadd.f32 %v1910, %v1918
        %v1927 = vadd.f32 %v1911, %v1919
        %v1928 = vadd.f32 %v1912, %v1920
        %v1929 = vmul.f32 %v1921, -2.0
        %v1930 = vmul.f32 %v1922, -2.0
        %v1931 = vmul.f32 %v1923, -2.0
        %v1932 = vmul.f32 %v1924, -2.0
        %v1933 = vmul.f32 %v1925, -2.0
        %v1934 = vmul.f32 %v1926, -2.0
        %v1935 = vmul.f32 %v1927, -2.0
        %v1936 = vmul.f32 %v1928, -2.0
        %v1937 = vmul.f32 %v1897, %v840
        %v1938 = vmul.f32 %v1898, %v842
        %v1939 = vmul.f32 %v1899, %v846
        %v1940 = vmul.f32 %v1900, %v848
        %v1941 = vmul.f32 %v1901, %v852
        %v1942 = vmul.f32 %v1902, %v854
        %v1943 = vmul.f32 %v1903, %v858
        %v1944 = vmul.f32 %v1904, %v860
        %v1945 = vmul.f32 %v1897, %v929
        %v1946 = vmul.f32 %v1898, %v931
        %v1947 = vmul.f32 %v1899, %v935
        %v1948 = vmul.f32 %v1900, %v937
        %v1949 = vmul.f32 %v1901, %v941
        %v1950 = vmul.f32 %v1902, %v943
        %v1951 = vmul.f32 %v1903, %v947
        %v1952 = vmul.f32 %v1904, %v949
        %v1953 = vmul.f32 %v1897, %v1107
        %v1954 = vmul.f32 %v1898, %v1109
        %v1955 = vmul.f32 %v1899, %v1113
        %v1956 = vmul.f32 %v1900, %v1115
        %v1957 = vmul.f32 %v1901, %v1119
        %v1958 = vmul.f32 %v1902, %v1121
        %v1959 = vmul.f32 %v1903, %v1125
        %v1960 = vmul.f32 %v1904, %v1127
        %v1961 = vmul.f32 %v1897, %v1196
        %v1962 = vmul.f32 %v1898, %v1198
        %v1963 = vmul.f32 %v1899, %v1202
        %v1964 = vmul.f32 %v1900, %v1204
        %v1965 = vmul.f32 %v1901, %v1208
        %v1966 = vmul.f32 %v1902, %v1210
        %v1967 = vmul.f32 %v1903, %v1214
        %v1968 = vmul.f32 %v1904, %v1216
        %v1969 = vmul.f32 %v840, %v840
        %v1970 = vmul.f32 %v842, %v842
        %v1971 = vmul.f32 %v846, %v846
        %v1972 = vmul.f32 %v848, %v848
        %v1973 = vmul.f32 %v852, %v852
        %v1974 = vmul.f32 %v854, %v854
        %v1975 = vmul.f32 %v858, %v858
        %v1976 = vmul.f32 %v860, %v860
        %v1977 = vmul.f32 %v1929, %v1969
        %v1978 = vmul.f32 %v1930, %v1970
        %v1979 = vmul.f32 %v1931, %v1971
        %v1980 = vmul.f32 %v1932, %v1972
        %v1981 = vmul.f32 %v1933, %v1973
        %v1982 = vmul.f32 %v1934, %v1974
        %v1983 = vmul.f32 %v1935, %v1975
        %v1984 = vmul.f32 %v1936, %v1976
        %v1985 = vmul.f32 %v929, %v929
        %v1986 = vmul.f32 %v931, %v931
        %v1987 = vmul.f32 %v935, %v935
        %v1988 = vmul.f32 %v937, %v937
        %v1989 = vmul.f32 %v941, %v941
        %v1990 = vmul.f32 %v943, %v943
        %v1991 = vmul.f32 %v947, %v947
        %v1992 = vmul.f32 %v949, %v949
        %v1993 = vmul.f32 %v1929, %v1985
        %v1994 = vmul.f32 %v1930, %v1986
        %v1995 = vmul.f32 %v1931, %v1987
        %v1996 = vmul.f32 %v1932, %v1988
        %v1997 = vmul.f32 %v1933, %v1989
        %v1998 = vmul.f32 %v1934, %v1990
        %v1999 = vmul.f32 %v1935, %v1991
        %v2000 = vmul.f32 %v1936, %v1992
        %v2001 = vmul.f32 %v1881, %v840
        %v2002 = vmul.f32 %v1882, %v842
        %v2003 = vmul.f32 %v1883, %v846
        %v2004 = vmul.f32 %v1884, %v848
        %v2005 = vmul.f32 %v1885, %v852
        %v2006 = vmul.f32 %v1886, %v854
        %v2007 = vmul.f32 %v1887, %v858
        %v2008 = vmul.f32 %v1888, %v860
        %v2009 = vmul.f32 %v1881, %v929
        %v2010 = vmul.f32 %v1882, %v931
        %v2011 = vmul.f32 %v1883, %v935
        %v2012 = vmul.f32 %v1884, %v937
        %v2013 = vmul.f32 %v1885, %v941
        %v2014 = vmul.f32 %v1886, %v943
        %v2015 = vmul.f32 %v1887, %v947
        %v2016 = vmul.f32 %v1888, %v949
        %v2017 = vmul.f32 %v1881, %v1018
        %v2018 = vmul.f32 %v1882, %v1020
        %v2019 = vmul.f32 %v1883, %v1024
        %v2020 = vmul.f32 %v1884, %v1026
        %v2021 = vmul.f32 %v1885, %v1030
        %v2022 = vmul.f32 %v1886, %v1032
        %v2023 = vmul.f32 %v1887, %v1036
        %v2024 = vmul.f32 %v1888, %v1038
        %v2025 = vmul.f32 %v1937, %v840
        %v2026 = vmul.f32 %v1938, %v842
        %v2027 = vmul.f32 %v1939, %v846
        %v2028 = vmul.f32 %v1940, %v848
        %v2029 = vmul.f32 %v1941, %v852
        %v2030 = vmul.f32 %v1942, %v854
        %v2031 = vmul.f32 %v1943, %v858
        %v2032 = vmul.f32 %v1944, %v860
        %v2033 = vmul.f32 %v1881, %v1107
        %v2034 = vmul.f32 %v1882, %v1109
        %v2035 = vmul.f32 %v1883, %v1113
        %v2036 = vmul.f32 %v1884, %v1115
        %v2037 = vmul.f32 %v1885, %v1119
        %v2038 = vmul.f32 %v1886, %v1121
        %v2039 = vmul.f32 %v1887, %v1125
        %v2040 = vmul.f32 %v1888, %v1127
        %v2041 = vadd.f32 %v2025, %v2033
        %v2042 = vadd.f32 %v2026, %v2034
        %v2043 = vadd.f32 %v2027, %v2035
        %v2044 = vadd.f32 %v2028, %v2036
        %v2045 = vadd.f32 %v2029, %v2037
        %v2046 = vadd.f32 %v2030, %v2038
        %v2047 = vadd.f32 %v2031, %v2039
        %v2048 = vadd.f32 %v2032, %v2040
        %v2049 = vmul.f32 %v1945, %v929
        %v2050 = vmul.f32 %v1946, %v931
        %v2051 = vmul.f32 %v1947, %v935
        %v2052 = vmul.f32 %v1948, %v937
        %v2053 = vmul.f32 %v1949, %v941
        %v2054 = vmul.f32 %v1950, %v943
        %v2055 = vmul.f32 %v1951, %v947
        %v2056 = vmul.f32 %v1952, %v949
        %v2057 = vmul.f32 %v1881, %v1196
        %v2058 = vmul.f32 %v1882, %v1198
        %v2059 = vmul.f32 %v1883, %v1202
        %v2060 = vmul.f32 %v1884, %v1204
        %v2061 = vmul.f32 %v1885, %v1208
        %v2062 = vmul.f32 %v1886, %v1210
        %v2063 = vmul.f32 %v1887, %v1214
        %v2064 = vmul.f32 %v1888, %v1216
        %v2065 = vadd.f32 %v2049, %v2057
        %v2066 = vadd.f32 %v2050, %v2058
        %v2067 = vadd.f32 %v2051, %v2059
        %v2068 = vadd.f32 %v2052, %v2060
        %v2069 = vadd.f32 %v2053, %v2061
        %v2070 = vadd.f32 %v2054, %v2062
        %v2071 = vadd.f32 %v2055, %v2063
        %v2072 = vadd.f32 %v2056, %v2064
        %v2073 = vmul.f32 %v1937, %v929
        %v2074 = vmul.f32 %v1938, %v931
        %v2075 = vmul.f32 %v1939, %v935
        %v2076 = vmul.f32 %v1940, %v937
        %v2077 = vmul.f32 %v1941, %v941
        %v2078 = vmul.f32 %v1942, %v943
        %v2079 = vmul.f32 %v1943, %v947
        %v2080 = vmul.f32 %v1944, %v949
        %v2081 = vmul.f32 %v1881, %v1285
        %v2082 = vmul.f32 %v1882, %v1287
        %v2083 = vmul.f32 %v1883, %v1291
        %v2084 = vmul.f32 %v1884, %v1293
        %v2085 = vmul.f32 %v1885, %v1297
        %v2086 = vmul.f32 %v1886, %v1299
        %v2087 = vmul.f32 %v1887, %v1303
        %v2088 = vmul.f32 %v1888, %v1305
        %v2089 = vadd.f32 %v2073, %v2081
        %v2090 = vadd.f32 %v2074, %v2082
        %v2091 = vadd.f32 %v2075, %v2083
        %v2092 = vadd.f32 %v2076, %v2084
        %v2093 = vadd.f32 %v2077, %v2085
        %v2094 = vadd.f32 %v2078, %v2086
        %v2095 = vadd.f32 %v2079, %v2087
        %v2096 = vadd.f32 %v2080, %v2088
        %v2097 = vmul.f32 %v1937, %v1018
        %v2098 = vmul.f32 %v1938, %v1020
        %v2099 = vmul.f32 %v1939, %v1024
        %v2100 = vmul.f32 %v1940, %v1026
        %v2101 = vmul.f32 %v1941, %v1030
        %v2102 = vmul.f32 %v1942, %v1032
        %v2103 = vmul.f32 %v1943, %v1036
        %v2104 = vmul.f32 %v1944, %v1038
        %v2105 = vmul.f32 %v1881, %v1374
        %v2106 = vmul.f32 %v1882, %v1376
        %v2107 = vmul.f32 %v1883, %v1380
        %v2108 = vmul.f32 %v1884, %v1382
        %v2109 = vmul.f32 %v1885, %v1386
        %v2110 = vmul.f32 %v1886, %v1388
        %v2111 = vmul.f32 %v1887, %v1392
        %v2112 = vmul.f32 %v1888, %v1394
        %v2113 = vadd.f32 %v2097, %v2105
        %v2114 = vadd.f32 %v2098, %v2106
        %v2115 = vadd.f32 %v2099, %v2107
        %v2116 = vadd.f32 %v2100, %v2108
        %v2117 = vadd.f32 %v2101, %v2109
        %v2118 = vadd.f32 %v2102, %v2110
        %v2119 = vadd.f32 %v2103, %v2111
        %v2120 = vadd.f32 %v2104, %v2112
        %v2121 = vmul.f32 %v1945, %v1018
        %v2122 = vmul.f32 %v1946, %v1020
        %v2123 = vmul.f32 %v1947, %v1024
        %v2124 = vmul.f32 %v1948, %v1026
        %v2125 = vmul.f32 %v1949, %v1030
        %v2126 = vmul.f32 %v1950, %v1032
        %v2127 = vmul.f32 %v1951, %v1036
        %v2128 = vmul.f32 %v1952, %v1038
        %v2129 = vmul.f32 %v1881, %v1463
        %v2130 = vmul.f32 %v1882, %v1465
        %v2131 = vmul.f32 %v1883, %v1469
        %v2132 = vmul.f32 %v1884, %v1471
        %v2133 = vmul.f32 %v1885, %v1475
        %v2134 = vmul.f32 %v1886, %v1477
        %v2135 = vmul.f32 %v1887, %v1481
        %v2136 = vmul.f32 %v1888, %v1483
        %v2137 = vadd.f32 %v2121, %v2129
        %v2138 = vadd.f32 %v2122, %v2130
        %v2139 = vadd.f32 %v2123, %v2131
        %v2140 = vadd.f32 %v2124, %v2132
        %v2141 = vadd.f32 %v2125, %v2133
        %v2142 = vadd.f32 %v2126, %v2134
        %v2143 = vadd.f32 %v2127, %v2135
        %v2144 = vadd.f32 %v2128, %v2136
        %v2145 = vmul.f32 %v1953, 3.0
        %v2146 = vmul.f32 %v1954, 3.0
        %v2147 = vmul.f32 %v1955, 3.0
        %v2148 = vmul.f32 %v1956, 3.0
        %v2149 = vmul.f32 %v1957, 3.0
        %v2150 = vmul.f32 %v1958, 3.0
        %v2151 = vmul.f32 %v1959, 3.0
        %v2152 = vmul.f32 %v1960, 3.0
        %v2153 = vadd.f32 %v1977, %v2145
        %v2154 = vadd.f32 %v1978, %v2146
        %v2155 = vadd.f32 %v1979, %v2147
        %v2156 = vadd.f32 %v1980, %v2148
        %v2157 = vadd.f32 %v1981, %v2149
        %v2158 = vadd.f32 %v1982, %v2150
        %v2159 = vadd.f32 %v1983, %v2151
        %v2160 = vadd.f32 %v1984, %v2152
        %v2161 = vmul.f32 %v2153, %v840
        %v2162 = vmul.f32 %v2154, %v842
        %v2163 = vmul.f32 %v2155, %v846
        %v2164 = vmul.f32 %v2156, %v848
        %v2165 = vmul.f32 %v2157, %v852
        %v2166 = vmul.f32 %v2158, %v854
        %v2167 = vmul.f32 %v2159, %v858
        %v2168 = vmul.f32 %v2160, %v860
        %v2169 = vmul.f32 %v1881, %v1552
        %v2170 = vmul.f32 %v1882, %v1554
        %v2171 = vmul.f32 %v1883, %v1558
        %v2172 = vmul.f32 %v1884, %v1560
        %v2173 = vmul.f32 %v1885, %v1564
        %v2174 = vmul.f32 %v1886, %v1566
        %v2175 = vmul.f32 %v1887, %v1570
        %v2176 = vmul.f32 %v1888, %v1572
        %v2177 = vadd.f32 %v2161, %v2169
        %v2178 = vadd.f32 %v2162, %v2170
        %v2179 = vadd.f32 %v2163, %v2171
        %v2180 = vadd.f32 %v2164, %v2172
        %v2181 = vadd.f32 %v2165, %v2173
        %v2182 = vadd.f32 %v2166, %v2174
        %v2183 = vadd.f32 %v2167, %v2175
        %v2184 = vadd.f32 %v2168, %v2176
        %v2185 = vmul.f32 %v1961, 3.0
        %v2186 = vmul.f32 %v1962, 3.0
        %v2187 = vmul.f32 %v1963, 3.0
        %v2188 = vmul.f32 %v1964, 3.0
        %v2189 = vmul.f32 %v1965, 3.0
        %v2190 = vmul.f32 %v1966, 3.0
        %v2191 = vmul.f32 %v1967, 3.0
        %v2192 = vmul.f32 %v1968, 3.0
        %v2193 = vadd.f32 %v1993, %v2185
        %v2194 = vadd.f32 %v1994, %v2186
        %v2195 = vadd.f32 %v1995, %v2187
        %v2196 = vadd.f32 %v1996, %v2188
        %v2197 = vadd.f32 %v1997, %v2189
        %v2198 = vadd.f32 %v1998, %v2190
        %v2199 = vadd.f32 %v1999, %v2191
        %v2200 = vadd.f32 %v2000, %v2192
        %v2201 = vmul.f32 %v2193, %v929
        %v2202 = vmul.f32 %v2194, %v931
        %v2203 = vmul.f32 %v2195, %v935
        %v2204 = vmul.f32 %v2196, %v937
        %v2205 = vmul.f32 %v2197, %v941
        %v2206 = vmul.f32 %v2198, %v943
        %v2207 = vmul.f32 %v2199, %v947
        %v2208 = vmul.f32 %v2200, %v949
        %v2209 = vmul.f32 %v1881, %v1641
        %v2210 = vmul.f32 %v1882, %v1643
        %v2211 = vmul.f32 %v1883, %v1647
        %v2212 = vmul.f32 %v1884, %v1649
        %v2213 = vmul.f32 %v1885, %v1653
        %v2214 = vmul.f32 %v1886, %v1655
        %v2215 = vmul.f32 %v1887, %v1659
        %v2216 = vmul.f32 %v1888, %v1661
        %v2217 = vadd.f32 %v2201, %v2209
        %v2218 = vadd.f32 %v2202, %v2210
        %v2219 = vadd.f32 %v2203, %v2211
        %v2220 = vadd.f32 %v2204, %v2212
        %v2221 = vadd.f32 %v2205, %v2213
        %v2222 = vadd.f32 %v2206, %v2214
        %v2223 = vadd.f32 %v2207, %v2215
        %v2224 = vadd.f32 %v2208, %v2216
        %v2225 = vadd.f32 %v1977, %v1953
        %v2226 = vadd.f32 %v1978, %v1954
        %v2227 = vadd.f32 %v1979, %v1955
        %v2228 = vadd.f32 %v1980, %v1956
        %v2229 = vadd.f32 %v1981, %v1957
        %v2230 = vadd.f32 %v1982, %v1958
        %v2231 = vadd.f32 %v1983, %v1959
        %v2232 = vadd.f32 %v1984, %v1960
        %v2233 = vmul.f32 %v2225, %v929
        %v2234 = vmul.f32 %v2226, %v931
        %v2235 = vmul.f32 %v2227, %v935
        %v2236 = vmul.f32 %v2228, %v937
        %v2237 = vmul.f32 %v2229, %v941
        %v2238 = vmul.f32 %v2230, %v943
        %v2239 = vmul.f32 %v2231, %v947
        %v2240 = vmul.f32 %v2232, %v949
        %v2241 = vmul.f32 %v1937, 2.0
        %v2242 = vmul.f32 %v1938, 2.0
        %v2243 = vmul.f32 %v1939, 2.0
        %v2244 = vmul.f32 %v1940, 2.0
        %v2245 = vmul.f32 %v1941, 2.0
        %v2246 = vmul.f32 %v1942, 2.0
        %v2247 = vmul.f32 %v1943, 2.0
        %v2248 = vmul.f32 %v1944, 2.0
        %v2249 = vmul.f32 %v2241, %v1285
        %v2250 = vmul.f32 %v2242, %v1287
        %v2251 = vmul.f32 %v2243, %v1291
        %v2252 = vmul.f32 %v2244, %v1293
        %v2253 = vmul.f32 %v2245, %v1297
        %v2254 = vmul.f32 %v2246, %v1299
        %v2255 = vmul.f32 %v2247, %v1303
        %v2256 = vmul.f32 %v2248, %v1305
        %v2257 = vadd.f32 %v2233, %v2249
        %v2258 = vadd.f32 %v2234, %v2250
        %v2259 = vadd.f32 %v2235, %v2251
        %v2260 = vadd.f32 %v2236, %v2252
        %v2261 = vadd.f32 %v2237, %v2253
        %v2262 = vadd.f32 %v2238, %v2254
        %v2263 = vadd.f32 %v2239, %v2255
        %v2264 = vadd.f32 %v2240, %v2256
        %v2265 = vmul.f32 %v1881, %v1730
        %v2266 = vmul.f32 %v1882, %v1732
        %v2267 = vmul.f32 %v1883, %v1736
        %v2268 = vmul.f32 %v1884, %v1738
        %v2269 = vmul.f32 %v1885, %v1742
        %v2270 = vmul.f32 %v1886, %v1744
        %v2271 = vmul.f32 %v1887, %v1748
        %v2272 = vmul.f32 %v1888, %v1750
        %v2273 = vadd.f32 %v2257, %v2265
        %v2274 = vadd.f32 %v2258, %v2266
        %v2275 = vadd.f32 %v2259, %v2267
        %v2276 = vadd.f32 %v2260, %v2268
        %v2277 = vadd.f32 %v2261, %v2269
        %v2278 = vadd.f32 %v2262, %v2270
        %v2279 = vadd.f32 %v2263, %v2271
        %v2280 = vadd.f32 %v2264, %v2272
        %v2281 = vadd.f32 %v1993, %v1961
        %v2282 = vadd.f32 %v1994, %v1962
        %v2283 = vadd.f32 %v1995, %v1963
        %v2284 = vadd.f32 %v1996, %v1964
        %v2285 = vadd.f32 %v1997, %v1965
        %v2286 = vadd.f32 %v1998, %v1966
        %v2287 = vadd.f32 %v1999, %v1967
        %v2288 = vadd.f32 %v2000, %v1968
        %v2289 = vmul.f32 %v2281, %v840
        %v2290 = vmul.f32 %v2282, %v842
        %v2291 = vmul.f32 %v2283, %v846
        %v2292 = vmul.f32 %v2284, %v848
        %v2293 = vmul.f32 %v2285, %v852
        %v2294 = vmul.f32 %v2286, %v854
        %v2295 = vmul.f32 %v2287, %v858
        %v2296 = vmul.f32 %v2288, %v860
        %v2297 = vmul.f32 %v1945, 2.0
        %v2298 = vmul.f32 %v1946, 2.0
        %v2299 = vmul.f32 %v1947, 2.0
        %v2300 = vmul.f32 %v1948, 2.0
        %v2301 = vmul.f32 %v1949, 2.0
        %v2302 = vmul.f32 %v1950, 2.0
        %v2303 = vmul.f32 %v1951, 2.0
        %v2304 = vmul.f32 %v1952, 2.0
        %v2305 = vmul.f32 %v2297, %v1285
        %v2306 = vmul.f32 %v2298, %v1287
        %v2307 = vmul.f32 %v2299, %v1291
        %v2308 = vmul.f32 %v2300, %v1293
        %v2309 = vmul.f32 %v2301, %v1297
        %v2310 = vmul.f32 %v2302, %v1299
        %v2311 = vmul.f32 %v2303, %v1303
        %v2312 = vmul.f32 %v2304, %v1305
        %v2313 = vadd.f32 %v2289, %v2305
        %v2314 = vadd.f32 %v2290, %v2306
        %v2315 = vadd.f32 %v2291, %v2307
        %v2316 = vadd.f32 %v2292, %v2308
        %v2317 = vadd.f32 %v2293, %v2309
        %v2318 = vadd.f32 %v2294, %v2310
        %v2319 = vadd.f32 %v2295, %v2311
        %v2320 = vadd.f32 %v2296, %v2312
        %v2321 = vmul.f32 %v1881, %v1819
        %v2322 = vmul.f32 %v1882, %v1821
        %v2323 = vmul.f32 %v1883, %v1825
        %v2324 = vmul.f32 %v1884, %v1827
        %v2325 = vmul.f32 %v1885, %v1831
        %v2326 = vmul.f32 %v1886, %v1833
        %v2327 = vmul.f32 %v1887, %v1837
        %v2328 = vmul.f32 %v1888, %v1839
        %v2329 = vadd.f32 %v2313, %v2321
        %v2330 = vadd.f32 %v2314, %v2322
        %v2331 = vadd.f32 %v2315, %v2323
        %v2332 = vadd.f32 %v2316, %v2324
        %v2333 = vadd.f32 %v2317, %v2325
        %v2334 = vadd.f32 %v2318, %v2326
        %v2335 = vadd.f32 %v2319, %v2327
        %v2336 = vadd.f32 %v2320, %v2328
        %v2338 = vsel %vm671, %v266, 0
        %v2341 = vsel %vm671, %v267, 0
        %v2344 = vsel %vm671, %v268, 0
        %v2347 = vsel %vm671, %v269, 0
        %2349 = vmatprep.subr.mxu0 %v1866
        %2350 = vmatpush1.msra.mxu0 %v1865
        %2351 = vmatprep.subr.mxu0 %v1868
        %2352 = vmatpush1.msra.mxu0 %v1867
        %2353 = vmatprep.subr.mxu0 %v1870
        %2354 = vmatpush1.msra.mxu0 %v1869
        %2355 = vmatprep.subr.mxu0 %v1872
        %2356 = vmatpush1.msra.mxu0 %v1871
        %2357 = vmatprep.subr.mxu0 0.0
        %2358 = vmatpush1.msra.mxu0 0.0
        %2359 = vmatprep.subr.mxu0 0.0
        %2360 = vmatpush1.msra.mxu0 0.0
        %2361 = vmatprep.subr.mxu0 0.0
        %2362 = vmatpush1.msra.mxu0 0.0
        %2363 = vmatprep.subr.mxu0 0.0
        %2364 = vmatpush1.msra.mxu0 0.0
        %2365 = vmatprep.subr.mxu0 0.0
        %2366 = vmatpush1.msra.mxu0 0.0
        %2367 = vmatprep.subr.mxu0 0.0
        %2368 = vmatpush1.msra.mxu0 0.0
        %2369 = vmatprep.subr.mxu0 0.0
        %2370 = vmatpush1.msra.mxu0 0.0
        %2371 = vmatprep.subr.mxu0 0.0
        %2372 = vmatpush1.msra.mxu0 0.0
        %2373 = vmatprep.subr.mxu0 0.0
        %2374 = vmatpush1.msra.mxu0 0.0
        %2375 = vmatprep.subr.mxu0 0.0
        %2376 = vmatpush1.msra.mxu0 0.0
        %2377 = vmatprep.subr.mxu0 0.0
        %2378 = vmatpush1.msra.mxu0 0.0
        %2379 = vmatprep.subr.mxu0 0.0
        %2380 = vmatpush1.msra.mxu0 0.0
        %2381 = vmatprep.subr.mxu0 0.0
        %2382 = vmatpush1.msra.mxu0 0.0
        %2383 = vmatprep.subr.mxu0 0.0
        %2384 = vmatpush1.msra.mxu0 0.0
        %2385 = vmatprep.subr.mxu0 0.0
        %2386 = vmatpush1.msra.mxu0 0.0
        %2387 = vmatprep.subr.mxu0 0.0
        %2388 = vmatpush1.msra.mxu0 0.0
        %2389 = vmatprep.subr.mxu0 0.0
        %2390 = vmatpush1.msra.mxu0 0.0
        %2391 = vmatprep.subr.mxu0 0.0
        %2392 = vmatpush1.msra.mxu0 0.0
        %2393 = vmatprep.subr.mxu0 0.0
        %2394 = vmatpush1.msra.mxu0 0.0
        %2395 = vmatprep.subr.mxu0 0.0
        %2396 = vmatpush1.msra.mxu0 0.0
        %2397 = vmatprep.subr.mxu0 0.0
        %2398 = vmatpush1.msra.mxu0 0.0
        %2399 = vmatprep.subr.mxu0 0.0
        %2400 = vmatpush1.msra.mxu0 0.0
        %2401 = vmatprep.subr.mxu0 0.0
        %2402 = vmatpush1.msra.mxu0 0.0
        %2403 = vmatprep.subr.mxu0 0.0
        %2404 = vmatpush1.msra.mxu0 0.0
        %2405 = vmatprep.subr.mxu0 0.0
        %2406 = vmatpush1.msra.mxu0 0.0
        %2407 = vmatprep.subr.mxu0 0.0
        %2408 = vmatpush1.msra.mxu0 0.0
        %2409 = vmatprep.subr.mxu0 0.0
        %2410 = vmatpush1.msra.mxu0 0.0
        %2411 = vmatprep.subr.mxu0 0.0
        %2412 = vmatpush1.msra.mxu0 0.0
        %2413 = vmatprep.mubr.f32.mxu0 0.0
        %2414 = vmatmul.mubr.f32.gmra.mrb[0].mxu0 %v2338
        %v2415 = vpop.f32.mrb[0].mxu0
        %v2416 = vadd.f32 0.0, %v2415
        %v2417 = vpop.f32.mrb[0].mxu0
        %v2418 = vadd.f32 0.0, %v2417
        %2419 = vmatprep.mubr.f32.mxu0 0.0
        %2420 = vmatmul.mubr.f32.gmra.mrb[0].mxu0 %v2341
        %v2421 = vpop.f32.mrb[0].mxu0
        %v2422 = vadd.f32 0.0, %v2421
        %v2423 = vpop.f32.mrb[0].mxu0
        %v2424 = vadd.f32 0.0, %v2423
        %2425 = vmatprep.mubr.f32.mxu0 0.0
        %2426 = vmatmul.mubr.f32.gmra.mrb[0].mxu0 %v2344
        %v2427 = vpop.f32.mrb[0].mxu0
        %v2428 = vadd.f32 0.0, %v2427
        %v2429 = vpop.f32.mrb[0].mxu0
        %v2430 = vadd.f32 0.0, %v2429
        %2431 = vmatprep.mubr.f32.mxu0 0.0
        %2432 = vmatmul.mubr.f32.gmra.mrb[0].mxu0 %v2347
        %v2433 = vpop.f32.mrb[0].mxu0
        %v2434 = vadd.f32 0.0, %v2433
        %v2435 = vpop.f32.mrb[0].mxu0
        %v2436 = vadd.f32 0.0, %v2435
        %2437 = vdwg.mxu0
        %2438 = vmatprep.subr.mxu0 %v2002
        %2439 = vmatpush1.msra.mxu0 %v2001
        %2440 = vmatprep.subr.mxu0 %v2004
        %2441 = vmatpush1.msra.mxu0 %v2003
        %2442 = vmatprep.subr.mxu0 %v2006
        %2443 = vmatpush1.msra.mxu0 %v2005
        %2444 = vmatprep.subr.mxu0 %v2008
        %2445 = vmatpush1.msra.mxu0 %v2007
        %2446 = vmatprep.subr.mxu0 0.0
        %2447 = vmatpush1.msra.mxu0 0.0
        %2448 = vmatprep.subr.mxu0 0.0
        %2449 = vmatpush1.msra.mxu0 0.0
        %2450 = vmatprep.subr.mxu0 0.0
        %2451 = vmatpush1.msra.mxu0 0.0
        %2452 = vmatprep.subr.mxu0 0.0
        %2453 = vmatpush1.msra.mxu0 0.0
        %2454 = vmatprep.subr.mxu0 0.0
        %2455 = vmatpush1.msra.mxu0 0.0
        %2456 = vmatprep.subr.mxu0 0.0
        %2457 = vmatpush1.msra.mxu0 0.0
        %2458 = vmatprep.subr.mxu0 0.0
        %2459 = vmatpush1.msra.mxu0 0.0
        %2460 = vmatprep.subr.mxu0 0.0
        %2461 = vmatpush1.msra.mxu0 0.0
        %2462 = vmatprep.subr.mxu0 0.0
        %2463 = vmatpush1.msra.mxu0 0.0
        %2464 = vmatprep.subr.mxu0 0.0
        %2465 = vmatpush1.msra.mxu0 0.0
        %2466 = vmatprep.subr.mxu0 0.0
        %2467 = vmatpush1.msra.mxu0 0.0
        %2468 = vmatprep.subr.mxu0 0.0
        %2469 = vmatpush1.msra.mxu0 0.0
        %2470 = vmatprep.subr.mxu0 0.0
        %2471 = vmatpush1.msra.mxu0 0.0
        %2472 = vmatprep.subr.mxu0 0.0
        %2473 = vmatpush1.msra.mxu0 0.0
        %2474 = vmatprep.subr.mxu0 0.0
        %2475 = vmatpush1.msra.mxu0 0.0
        %2476 = vmatprep.subr.mxu0 0.0
        %2477 = vmatpush1.msra.mxu0 0.0
        %2478 = vmatprep.subr.mxu0 0.0
        %2479 = vmatpush1.msra.mxu0 0.0
        %2480 = vmatprep.subr.mxu0 0.0
        %2481 = vmatpush1.msra.mxu0 0.0
        %2482 = vmatprep.subr.mxu0 0.0
        %2483 = vmatpush1.msra.mxu0 0.0
        %2484 = vmatprep.subr.mxu0 0.0
        %2485 = vmatpush1.msra.mxu0 0.0
        %2486 = vmatprep.subr.mxu0 0.0
        %2487 = vmatpush1.msra.mxu0 0.0
        %2488 = vmatprep.subr.mxu0 0.0
        %2489 = vmatpush1.msra.mxu0 0.0
        %2490 = vmatprep.subr.mxu0 0.0
        %2491 = vmatpush1.msra.mxu0 0.0
        %2492 = vmatprep.subr.mxu0 0.0
        %2493 = vmatpush1.msra.mxu0 0.0
        %2494 = vmatprep.subr.mxu0 0.0
        %2495 = vmatpush1.msra.mxu0 0.0
        %2496 = vmatprep.subr.mxu0 0.0
        %2497 = vmatpush1.msra.mxu0 0.0
        %2498 = vmatprep.subr.mxu0 0.0
        %2499 = vmatpush1.msra.mxu0 0.0
        %2500 = vmatprep.subr.mxu0 0.0
        %2501 = vmatpush1.msra.mxu0 0.0
        %2502 = vmatprep.mubr.f32.mxu0 0.0
        %2503 = vmatmul.mubr.f32.gmra.mrb[0].mxu0 %v2338
        %v2504 = vpop.f32.mrb[0].mxu0
        %v2505 = vadd.f32 0.0, %v2504
        %v2506 = vpop.f32.mrb[0].mxu0
        %v2507 = vadd.f32 0.0, %v2506
        %2508 = vmatprep.mubr.f32.mxu0 0.0
        %2509 = vmatmul.mubr.f32.gmra.mrb[0].mxu0 %v2341
        %v2510 = vpop.f32.mrb[0].mxu0
        %v2511 = vadd.f32 0.0, %v2510
        %v2512 = vpop.f32.mrb[0].mxu0
        %v2513 = vadd.f32 0.0, %v2512
        %2514 = vmatprep.mubr.f32.mxu0 0.0
        %2515 = vmatmul.mubr.f32.gmra.mrb[0].mxu0 %v2344
        %v2516 = vpop.f32.mrb[0].mxu0
        %v2517 = vadd.f32 0.0, %v2516
        %v2518 = vpop.f32.mrb[0].mxu0
        %v2519 = vadd.f32 0.0, %v2518
        %2520 = vmatprep.mubr.f32.mxu0 0.0
        %2521 = vmatmul.mubr.f32.gmra.mrb[0].mxu0 %v2347
        %v2522 = vpop.f32.mrb[0].mxu0
        %v2523 = vadd.f32 0.0, %v2522
        %v2524 = vpop.f32.mrb[0].mxu0
        %v2525 = vadd.f32 0.0, %v2524
        %2526 = vdwg.mxu0
        %2527 = vmatprep.subr.mxu0 %v2010
        %2528 = vmatpush1.msra.mxu0 %v2009
        %2529 = vmatprep.subr.mxu0 %v2012
        %2530 = vmatpush1.msra.mxu0 %v2011
        %2531 = vmatprep.subr.mxu0 %v2014
        %2532 = vmatpush1.msra.mxu0 %v2013
        %2533 = vmatprep.subr.mxu0 %v2016
        %2534 = vmatpush1.msra.mxu0 %v2015
        %2535 = vmatprep.subr.mxu0 0.0
        %2536 = vmatpush1.msra.mxu0 0.0
        %2537 = vmatprep.subr.mxu0 0.0
        %2538 = vmatpush1.msra.mxu0 0.0
        %2539 = vmatprep.subr.mxu0 0.0
        %2540 = vmatpush1.msra.mxu0 0.0
        %2541 = vmatprep.subr.mxu0 0.0
        %2542 = vmatpush1.msra.mxu0 0.0
        %2543 = vmatprep.subr.mxu0 0.0
        %2544 = vmatpush1.msra.mxu0 0.0
        %2545 = vmatprep.subr.mxu0 0.0
        %2546 = vmatpush1.msra.mxu0 0.0
        %2547 = vmatprep.subr.mxu0 0.0
        %2548 = vmatpush1.msra.mxu0 0.0
        %2549 = vmatprep.subr.mxu0 0.0
        %2550 = vmatpush1.msra.mxu0 0.0
        %2551 = vmatprep.subr.mxu0 0.0
        %2552 = vmatpush1.msra.mxu0 0.0
        %2553 = vmatprep.subr.mxu0 0.0
        %2554 = vmatpush1.msra.mxu0 0.0
        %2555 = vmatprep.subr.mxu0 0.0
        %2556 = vmatpush1.msra.mxu0 0.0
        %2557 = vmatprep.subr.mxu0 0.0
        %2558 = vmatpush1.msra.mxu0 0.0
        %2559 = vmatprep.subr.mxu0 0.0
        %2560 = vmatpush1.msra.mxu0 0.0
        %2561 = vmatprep.subr.mxu0 0.0
        %2562 = vmatpush1.msra.mxu0 0.0
        %2563 = vmatprep.subr.mxu0 0.0
        %2564 = vmatpush1.msra.mxu0 0.0
        %2565 = vmatprep.subr.mxu0 0.0
        %2566 = vmatpush1.msra.mxu0 0.0
        %2567 = vmatprep.subr.mxu0 0.0
        %2568 = vmatpush1.msra.mxu0 0.0
        %2569 = vmatprep.subr.mxu0 0.0
        %2570 = vmatpush1.msra.mxu0 0.0
        %2571 = vmatprep.subr.mxu0 0.0
        %2572 = vmatpush1.msra.mxu0 0.0
        %2573 = vmatprep.subr.mxu0 0.0
        %2574 = vmatpush1.msra.mxu0 0.0
        %2575 = vmatprep.subr.mxu0 0.0
        %2576 = vmatpush1.msra.mxu0 0.0
        %2577 = vmatprep.subr.mxu0 0.0
        %2578 = vmatpush1.msra.mxu0 0.0
        %2579 = vmatprep.subr.mxu0 0.0
        %2580 = vmatpush1.msra.mxu0 0.0
        %2581 = vmatprep.subr.mxu0 0.0
        %2582 = vmatpush1.msra.mxu0 0.0
        %2583 = vmatprep.subr.mxu0 0.0
        %2584 = vmatpush1.msra.mxu0 0.0
        %2585 = vmatprep.subr.mxu0 0.0
        %2586 = vmatpush1.msra.mxu0 0.0
        %2587 = vmatprep.subr.mxu0 0.0
        %2588 = vmatpush1.msra.mxu0 0.0
        %2589 = vmatprep.subr.mxu0 0.0
        %2590 = vmatpush1.msra.mxu0 0.0
        %2591 = vmatprep.mubr.f32.mxu0 0.0
        %2592 = vmatmul.mubr.f32.gmra.mrb[0].mxu0 %v2338
        %v2593 = vpop.f32.mrb[0].mxu0
        %v2594 = vadd.f32 0.0, %v2593
        %v2595 = vpop.f32.mrb[0].mxu0
        %v2596 = vadd.f32 0.0, %v2595
        %2597 = vmatprep.mubr.f32.mxu0 0.0
        %2598 = vmatmul.mubr.f32.gmra.mrb[0].mxu0 %v2341
        %v2599 = vpop.f32.mrb[0].mxu0
        %v2600 = vadd.f32 0.0, %v2599
        %v2601 = vpop.f32.mrb[0].mxu0
        %v2602 = vadd.f32 0.0, %v2601
        %2603 = vmatprep.mubr.f32.mxu0 0.0
        %2604 = vmatmul.mubr.f32.gmra.mrb[0].mxu0 %v2344
        %v2605 = vpop.f32.mrb[0].mxu0
        %v2606 = vadd.f32 0.0, %v2605
        %v2607 = vpop.f32.mrb[0].mxu0
        %v2608 = vadd.f32 0.0, %v2607
        %2609 = vmatprep.mubr.f32.mxu0 0.0
        %2610 = vmatmul.mubr.f32.gmra.mrb[0].mxu0 %v2347
        %v2611 = vpop.f32.mrb[0].mxu0
        %v2612 = vadd.f32 0.0, %v2611
        %v2613 = vpop.f32.mrb[0].mxu0
        %v2614 = vadd.f32 0.0, %v2613
        %2615 = vdwg.mxu0
        %2616 = vmatprep.subr.mxu0 %v2018
        %2617 = vmatpush1.msra.mxu0 %v2017
        %2618 = vmatprep.subr.mxu0 %v2020
        %2619 = vmatpush1.msra.mxu0 %v2019
        %2620 = vmatprep.subr.mxu0 %v2022
        %2621 = vmatpush1.msra.mxu0 %v2021
        %2622 = vmatprep.subr.mxu0 %v2024
        %2623 = vmatpush1.msra.mxu0 %v2023
        %2624 = vmatprep.subr.mxu0 0.0
        %2625 = vmatpush1.msra.mxu0 0.0
        %2626 = vmatprep.subr.mxu0 0.0
        %2627 = vmatpush1.msra.mxu0 0.0
        %2628 = vmatprep.subr.mxu0 0.0
        %2629 = vmatpush1.msra.mxu0 0.0
        %2630 = vmatprep.subr.mxu0 0.0
        %2631 = vmatpush1.msra.mxu0 0.0
        %2632 = vmatprep.subr.mxu0 0.0
        %2633 = vmatpush1.msra.mxu0 0.0
        %2634 = vmatprep.subr.mxu0 0.0
        %2635 = vmatpush1.msra.mxu0 0.0
        %2636 = vmatprep.subr.mxu0 0.0
        %2637 = vmatpush1.msra.mxu0 0.0
        %2638 = vmatprep.subr.mxu0 0.0
        %2639 = vmatpush1.msra.mxu0 0.0
        %2640 = vmatprep.subr.mxu0 0.0
        %2641 = vmatpush1.msra.mxu0 0.0
        %2642 = vmatprep.subr.mxu0 0.0
        %2643 = vmatpush1.msra.mxu0 0.0
        %2644 = vmatprep.subr.mxu0 0.0
        %2645 = vmatpush1.msra.mxu0 0.0
        %2646 = vmatprep.subr.mxu0 0.0
        %2647 = vmatpush1.msra.mxu0 0.0
        %2648 = vmatprep.subr.mxu0 0.0
        %2649 = vmatpush1.msra.mxu0 0.0
        %2650 = vmatprep.subr.mxu0 0.0
        %2651 = vmatpush1.msra.mxu0 0.0
        %2652 = vmatprep.subr.mxu0 0.0
        %2653 = vmatpush1.msra.mxu0 0.0
        %2654 = vmatprep.subr.mxu0 0.0
        %2655 = vmatpush1.msra.mxu0 0.0
        %2656 = vmatprep.subr.mxu0 0.0
        %2657 = vmatpush1.msra.mxu0 0.0
        %2658 = vmatprep.subr.mxu0 0.0
        %2659 = vmatpush1.msra.mxu0 0.0
        %2660 = vmatprep.subr.mxu0 0.0
        %2661 = vmatpush1.msra.mxu0 0.0
        %2662 = vmatprep.subr.mxu0 0.0
        %2663 = vmatpush1.msra.mxu0 0.0
        %2664 = vmatprep.subr.mxu0 0.0
        %2665 = vmatpush1.msra.mxu0 0.0
        %2666 = vmatprep.subr.mxu0 0.0
        %2667 = vmatpush1.msra.mxu0 0.0
        %2668 = vmatprep.subr.mxu0 0.0
        %2669 = vmatpush1.msra.mxu0 0.0
        %2670 = vmatprep.subr.mxu0 0.0
        %2671 = vmatpush1.msra.mxu0 0.0
        %2672 = vmatprep.subr.mxu0 0.0
        %2673 = vmatpush1.msra.mxu0 0.0
        %2674 = vmatprep.subr.mxu0 0.0
        %2675 = vmatpush1.msra.mxu0 0.0
        %2676 = vmatprep.subr.mxu0 0.0
        %2677 = vmatpush1.msra.mxu0 0.0
        %2678 = vmatprep.subr.mxu0 0.0
        %2679 = vmatpush1.msra.mxu0 0.0
        %2680 = vmatprep.mubr.f32.mxu0 0.0
        %2681 = vmatmul.mubr.f32.gmra.mrb[0].mxu0 %v2338
        %v2682 = vpop.f32.mrb[0].mxu0
        %v2683 = vadd.f32 0.0, %v2682
        %v2684 = vpop.f32.mrb[0].mxu0
        %v2685 = vadd.f32 0.0, %v2684
        %2686 = vmatprep.mubr.f32.mxu0 0.0
        %2687 = vmatmul.mubr.f32.gmra.mrb[0].mxu0 %v2341
        %v2688 = vpop.f32.mrb[0].mxu0
        %v2689 = vadd.f32 0.0, %v2688
        %v2690 = vpop.f32.mrb[0].mxu0
        %v2691 = vadd.f32 0.0, %v2690
        %2692 = vmatprep.mubr.f32.mxu0 0.0
        %2693 = vmatmul.mubr.f32.gmra.mrb[0].mxu0 %v2344
        %v2694 = vpop.f32.mrb[0].mxu0
        %v2695 = vadd.f32 0.0, %v2694
        %v2696 = vpop.f32.mrb[0].mxu0
        %v2697 = vadd.f32 0.0, %v2696
        %2698 = vmatprep.mubr.f32.mxu0 0.0
        %2699 = vmatmul.mubr.f32.gmra.mrb[0].mxu0 %v2347
        %v2700 = vpop.f32.mrb[0].mxu0
        %v2701 = vadd.f32 0.0, %v2700
        %v2702 = vpop.f32.mrb[0].mxu0
        %v2703 = vadd.f32 0.0, %v2702
        %2704 = vdwg.mxu0
        %2705 = vmatprep.subr.mxu0 %v2042
        %2706 = vmatpush1.msra.mxu0 %v2041
        %2707 = vmatprep.subr.mxu0 %v2044
        %2708 = vmatpush1.msra.mxu0 %v2043
        %2709 = vmatprep.subr.mxu0 %v2046
        %2710 = vmatpush1.msra.mxu0 %v2045
        %2711 = vmatprep.subr.mxu0 %v2048
        %2712 = vmatpush1.msra.mxu0 %v2047
        %2713 = vmatprep.subr.mxu0 0.0
        %2714 = vmatpush1.msra.mxu0 0.0
        %2715 = vmatprep.subr.mxu0 0.0
        %2716 = vmatpush1.msra.mxu0 0.0
        %2717 = vmatprep.subr.mxu0 0.0
        %2718 = vmatpush1.msra.mxu0 0.0
        %2719 = vmatprep.subr.mxu0 0.0
        %2720 = vmatpush1.msra.mxu0 0.0
        %2721 = vmatprep.subr.mxu0 0.0
        %2722 = vmatpush1.msra.mxu0 0.0
        %2723 = vmatprep.subr.mxu0 0.0
        %2724 = vmatpush1.msra.mxu0 0.0
        %2725 = vmatprep.subr.mxu0 0.0
        %2726 = vmatpush1.msra.mxu0 0.0
        %2727 = vmatprep.subr.mxu0 0.0
        %2728 = vmatpush1.msra.mxu0 0.0
        %2729 = vmatprep.subr.mxu0 0.0
        %2730 = vmatpush1.msra.mxu0 0.0
        %2731 = vmatprep.subr.mxu0 0.0
        %2732 = vmatpush1.msra.mxu0 0.0
        %2733 = vmatprep.subr.mxu0 0.0
        %2734 = vmatpush1.msra.mxu0 0.0
        %2735 = vmatprep.subr.mxu0 0.0
        %2736 = vmatpush1.msra.mxu0 0.0
        %2737 = vmatprep.subr.mxu0 0.0
        %2738 = vmatpush1.msra.mxu0 0.0
        %2739 = vmatprep.subr.mxu0 0.0
        %2740 = vmatpush1.msra.mxu0 0.0
        %2741 = vmatprep.subr.mxu0 0.0
        %2742 = vmatpush1.msra.mxu0 0.0
        %2743 = vmatprep.subr.mxu0 0.0
        %2744 = vmatpush1.msra.mxu0 0.0
        %2745 = vmatprep.subr.mxu0 0.0
        %2746 = vmatpush1.msra.mxu0 0.0
        %2747 = vmatprep.subr.mxu0 0.0
        %2748 = vmatpush1.msra.mxu0 0.0
        %2749 = vmatprep.subr.mxu0 0.0
        %2750 = vmatpush1.msra.mxu0 0.0
        %2751 = vmatprep.subr.mxu0 0.0
        %2752 = vmatpush1.msra.mxu0 0.0
        %2753 = vmatprep.subr.mxu0 0.0
        %2754 = vmatpush1.msra.mxu0 0.0
        %2755 = vmatprep.subr.mxu0 0.0
        %2756 = vmatpush1.msra.mxu0 0.0
        %2757 = vmatprep.subr.mxu0 0.0
        %2758 = vmatpush1.msra.mxu0 0.0
        %2759 = vmatprep.subr.mxu0 0.0
        %2760 = vmatpush1.msra.mxu0 0.0
        %2761 = vmatprep.subr.mxu0 0.0
        %2762 = vmatpush1.msra.mxu0 0.0
        %2763 = vmatprep.subr.mxu0 0.0
        %2764 = vmatpush1.msra.mxu0 0.0
        %2765 = vmatprep.subr.mxu0 0.0
        %2766 = vmatpush1.msra.mxu0 0.0
        %2767 = vmatprep.subr.mxu0 0.0
        %2768 = vmatpush1.msra.mxu0 0.0
        %2769 = vmatprep.mubr.f32.mxu0 0.0
        %2770 = vmatmul.mubr.f32.gmra.mrb[0].mxu0 %v2338
        %v2771 = vpop.f32.mrb[0].mxu0
        %v2772 = vadd.f32 0.0, %v2771
        %v2773 = vpop.f32.mrb[0].mxu0
        %v2774 = vadd.f32 0.0, %v2773
        %2775 = vmatprep.mubr.f32.mxu0 0.0
        %2776 = vmatmul.mubr.f32.gmra.mrb[0].mxu0 %v2341
        %v2777 = vpop.f32.mrb[0].mxu0
        %v2778 = vadd.f32 0.0, %v2777
        %v2779 = vpop.f32.mrb[0].mxu0
        %v2780 = vadd.f32 0.0, %v2779
        %2781 = vmatprep.mubr.f32.mxu0 0.0
        %2782 = vmatmul.mubr.f32.gmra.mrb[0].mxu0 %v2344
        %v2783 = vpop.f32.mrb[0].mxu0
        %v2784 = vadd.f32 0.0, %v2783
        %v2785 = vpop.f32.mrb[0].mxu0
        %v2786 = vadd.f32 0.0, %v2785
        %2787 = vmatprep.mubr.f32.mxu0 0.0
        %2788 = vmatmul.mubr.f32.gmra.mrb[0].mxu0 %v2347
        %v2789 = vpop.f32.mrb[0].mxu0
        %v2790 = vadd.f32 0.0, %v2789
        %v2791 = vpop.f32.mrb[0].mxu0
        %v2792 = vadd.f32 0.0, %v2791
        %2793 = vdwg.mxu0
        %2794 = vmatprep.subr.mxu0 %v2066
        %2795 = vmatpush1.msra.mxu0 %v2065
        %2796 = vmatprep.subr.mxu0 %v2068
        %2797 = vmatpush1.msra.mxu0 %v2067
        %2798 = vmatprep.subr.mxu0 %v2070
        %2799 = vmatpush1.msra.mxu0 %v2069
        %2800 = vmatprep.subr.mxu0 %v2072
        %2801 = vmatpush1.msra.mxu0 %v2071
        %2802 = vmatprep.subr.mxu0 0.0
        %2803 = vmatpush1.msra.mxu0 0.0
        %2804 = vmatprep.subr.mxu0 0.0
        %2805 = vmatpush1.msra.mxu0 0.0
        %2806 = vmatprep.subr.mxu0 0.0
        %2807 = vmatpush1.msra.mxu0 0.0
        %2808 = vmatprep.subr.mxu0 0.0
        %2809 = vmatpush1.msra.mxu0 0.0
        %2810 = vmatprep.subr.mxu0 0.0
        %2811 = vmatpush1.msra.mxu0 0.0
        %2812 = vmatprep.subr.mxu0 0.0
        %2813 = vmatpush1.msra.mxu0 0.0
        %2814 = vmatprep.subr.mxu0 0.0
        %2815 = vmatpush1.msra.mxu0 0.0
        %2816 = vmatprep.subr.mxu0 0.0
        %2817 = vmatpush1.msra.mxu0 0.0
        %2818 = vmatprep.subr.mxu0 0.0
        %2819 = vmatpush1.msra.mxu0 0.0
        %2820 = vmatprep.subr.mxu0 0.0
        %2821 = vmatpush1.msra.mxu0 0.0
        %2822 = vmatprep.subr.mxu0 0.0
        %2823 = vmatpush1.msra.mxu0 0.0
        %2824 = vmatprep.subr.mxu0 0.0
        %2825 = vmatpush1.msra.mxu0 0.0
        %2826 = vmatprep.subr.mxu0 0.0
        %2827 = vmatpush1.msra.mxu0 0.0
        %2828 = vmatprep.subr.mxu0 0.0
        %2829 = vmatpush1.msra.mxu0 0.0
        %2830 = vmatprep.subr.mxu0 0.0
        %2831 = vmatpush1.msra.mxu0 0.0
        %2832 = vmatprep.subr.mxu0 0.0
        %2833 = vmatpush1.msra.mxu0 0.0
        %2834 = vmatprep.subr.mxu0 0.0
        %2835 = vmatpush1.msra.mxu0 0.0
        %2836 = vmatprep.subr.mxu0 0.0
        %2837 = vmatpush1.msra.mxu0 0.0
        %2838 = vmatprep.subr.mxu0 0.0
        %2839 = vmatpush1.msra.mxu0 0.0
        %2840 = vmatprep.subr.mxu0 0.0
        %2841 = vmatpush1.msra.mxu0 0.0
        %2842 = vmatprep.subr.mxu0 0.0
        %2843 = vmatpush1.msra.mxu0 0.0
        %2844 = vmatprep.subr.mxu0 0.0
        %2845 = vmatpush1.msra.mxu0 0.0
        %2846 = vmatprep.subr.mxu0 0.0
        %2847 = vmatpush1.msra.mxu0 0.0
        %2848 = vmatprep.subr.mxu0 0.0
        %2849 = vmatpush1.msra.mxu0 0.0
        %2850 = vmatprep.subr.mxu0 0.0
        %2851 = vmatpush1.msra.mxu0 0.0
        %2852 = vmatprep.subr.mxu0 0.0
        %2853 = vmatpush1.msra.mxu0 0.0
        %2854 = vmatprep.subr.mxu0 0.0
        %2855 = vmatpush1.msra.mxu0 0.0
        %2856 = vmatprep.subr.mxu0 0.0
        %2857 = vmatpush1.msra.mxu0 0.0
        %2858 = vmatprep.mubr.f32.mxu0 0.0
        %2859 = vmatmul.mubr.f32.gmra.mrb[0].mxu0 %v2338
        %v2860 = vpop.f32.mrb[0].mxu0
        %v2861 = vadd.f32 0.0, %v2860
        %v2862 = vpop.f32.mrb[0].mxu0
        %v2863 = vadd.f32 0.0, %v2862
        %2864 = vmatprep.mubr.f32.mxu0 0.0
        %2865 = vmatmul.mubr.f32.gmra.mrb[0].mxu0 %v2341
        %v2866 = vpop.f32.mrb[0].mxu0
        %v2867 = vadd.f32 0.0, %v2866
        %v2868 = vpop.f32.mrb[0].mxu0
        %v2869 = vadd.f32 0.0, %v2868
        %2870 = vmatprep.mubr.f32.mxu0 0.0
        %2871 = vmatmul.mubr.f32.gmra.mrb[0].mxu0 %v2344
        %v2872 = vpop.f32.mrb[0].mxu0
        %v2873 = vadd.f32 0.0, %v2872
        %v2874 = vpop.f32.mrb[0].mxu0
        %v2875 = vadd.f32 0.0, %v2874
        %2876 = vmatprep.mubr.f32.mxu0 0.0
        %2877 = vmatmul.mubr.f32.gmra.mrb[0].mxu0 %v2347
        %v2878 = vpop.f32.mrb[0].mxu0
        %v2879 = vadd.f32 0.0, %v2878
        %v2880 = vpop.f32.mrb[0].mxu0
        %v2881 = vadd.f32 0.0, %v2880
        %2882 = vdwg.mxu0
        %2883 = vmatprep.subr.mxu0 %v2090
        %2884 = vmatpush1.msra.mxu0 %v2089
        %2885 = vmatprep.subr.mxu0 %v2092
        %2886 = vmatpush1.msra.mxu0 %v2091
        %2887 = vmatprep.subr.mxu0 %v2094
        %2888 = vmatpush1.msra.mxu0 %v2093
        %2889 = vmatprep.subr.mxu0 %v2096
        %2890 = vmatpush1.msra.mxu0 %v2095
        %2891 = vmatprep.subr.mxu0 0.0
        %2892 = vmatpush1.msra.mxu0 0.0
        %2893 = vmatprep.subr.mxu0 0.0
        %2894 = vmatpush1.msra.mxu0 0.0
        %2895 = vmatprep.subr.mxu0 0.0
        %2896 = vmatpush1.msra.mxu0 0.0
        %2897 = vmatprep.subr.mxu0 0.0
        %2898 = vmatpush1.msra.mxu0 0.0
        %2899 = vmatprep.subr.mxu0 0.0
        %2900 = vmatpush1.msra.mxu0 0.0
        %2901 = vmatprep.subr.mxu0 0.0
        %2902 = vmatpush1.msra.mxu0 0.0
        %2903 = vmatprep.subr.mxu0 0.0
        %2904 = vmatpush1.msra.mxu0 0.0
        %2905 = vmatprep.subr.mxu0 0.0
        %2906 = vmatpush1.msra.mxu0 0.0
        %2907 = vmatprep.subr.mxu0 0.0
        %2908 = vmatpush1.msra.mxu0 0.0
        %2909 = vmatprep.subr.mxu0 0.0
        %2910 = vmatpush1.msra.mxu0 0.0
        %2911 = vmatprep.subr.mxu0 0.0
        %2912 = vmatpush1.msra.mxu0 0.0
        %2913 = vmatprep.subr.mxu0 0.0
        %2914 = vmatpush1.msra.mxu0 0.0
        %2915 = vmatprep.subr.mxu0 0.0
        %2916 = vmatpush1.msra.mxu0 0.0
        %2917 = vmatprep.subr.mxu0 0.0
        %2918 = vmatpush1.msra.mxu0 0.0
        %2919 = vmatprep.subr.mxu0 0.0
        %2920 = vmatpush1.msra.mxu0 0.0
        %2921 = vmatprep.subr.mxu0 0.0
        %2922 = vmatpush1.msra.mxu0 0.0
        %2923 = vmatprep.subr.mxu0 0.0
        %2924 = vmatpush1.msra.mxu0 0.0
        %2925 = vmatprep.subr.mxu0 0.0
        %2926 = vmatpush1.msra.mxu0 0.0
        %2927 = vmatprep.subr.mxu0 0.0
        %2928 = vmatpush1.msra.mxu0 0.0
        %2929 = vmatprep.subr.mxu0 0.0
        %2930 = vmatpush1.msra.mxu0 0.0
        %2931 = vmatprep.subr.mxu0 0.0
        %2932 = vmatpush1.msra.mxu0 0.0
        %2933 = vmatprep.subr.mxu0 0.0
        %2934 = vmatpush1.msra.mxu0 0.0
        %2935 = vmatprep.subr.mxu0 0.0
        %2936 = vmatpush1.msra.mxu0 0.0
        %2937 = vmatprep.subr.mxu0 0.0
        %2938 = vmatpush1.msra.mxu0 0.0
        %2939 = vmatprep.subr.mxu0 0.0
        %2940 = vmatpush1.msra.mxu0 0.0
        %2941 = vmatprep.subr.mxu0 0.0
        %2942 = vmatpush1.msra.mxu0 0.0
        %2943 = vmatprep.subr.mxu0 0.0
        %2944 = vmatpush1.msra.mxu0 0.0
        %2945 = vmatprep.subr.mxu0 0.0
        %2946 = vmatpush1.msra.mxu0 0.0
        %2947 = vmatprep.mubr.f32.mxu0 0.0
        %2948 = vmatmul.mubr.f32.gmra.mrb[0].mxu0 %v2338
        %v2949 = vpop.f32.mrb[0].mxu0
        %v2950 = vadd.f32 0.0, %v2949
        %v2951 = vpop.f32.mrb[0].mxu0
        %v2952 = vadd.f32 0.0, %v2951
        %2953 = vmatprep.mubr.f32.mxu0 0.0
        %2954 = vmatmul.mubr.f32.gmra.mrb[0].mxu0 %v2341
        %v2955 = vpop.f32.mrb[0].mxu0
        %v2956 = vadd.f32 0.0, %v2955
        %v2957 = vpop.f32.mrb[0].mxu0
        %v2958 = vadd.f32 0.0, %v2957
        %2959 = vmatprep.mubr.f32.mxu0 0.0
        %2960 = vmatmul.mubr.f32.gmra.mrb[0].mxu0 %v2344
        %v2961 = vpop.f32.mrb[0].mxu0
        %v2962 = vadd.f32 0.0, %v2961
        %v2963 = vpop.f32.mrb[0].mxu0
        %v2964 = vadd.f32 0.0, %v2963
        %2965 = vmatprep.mubr.f32.mxu0 0.0
        %2966 = vmatmul.mubr.f32.gmra.mrb[0].mxu0 %v2347
        %v2967 = vpop.f32.mrb[0].mxu0
        %v2968 = vadd.f32 0.0, %v2967
        %v2969 = vpop.f32.mrb[0].mxu0
        %v2970 = vadd.f32 0.0, %v2969
        %2971 = vdwg.mxu0
        %2972 = vmatprep.subr.mxu0 %v2114
        %2973 = vmatpush1.msra.mxu0 %v2113
        %2974 = vmatprep.subr.mxu0 %v2116
        %2975 = vmatpush1.msra.mxu0 %v2115
        %2976 = vmatprep.subr.mxu0 %v2118
        %2977 = vmatpush1.msra.mxu0 %v2117
        %2978 = vmatprep.subr.mxu0 %v2120
        %2979 = vmatpush1.msra.mxu0 %v2119
        %2980 = vmatprep.subr.mxu0 0.0
        %2981 = vmatpush1.msra.mxu0 0.0
        %2982 = vmatprep.subr.mxu0 0.0
        %2983 = vmatpush1.msra.mxu0 0.0
        %2984 = vmatprep.subr.mxu0 0.0
        %2985 = vmatpush1.msra.mxu0 0.0
        %2986 = vmatprep.subr.mxu0 0.0
        %2987 = vmatpush1.msra.mxu0 0.0
        %2988 = vmatprep.subr.mxu0 0.0
        %2989 = vmatpush1.msra.mxu0 0.0
        %2990 = vmatprep.subr.mxu0 0.0
        %2991 = vmatpush1.msra.mxu0 0.0
        %2992 = vmatprep.subr.mxu0 0.0
        %2993 = vmatpush1.msra.mxu0 0.0
        %2994 = vmatprep.subr.mxu0 0.0
        %2995 = vmatpush1.msra.mxu0 0.0
        %2996 = vmatprep.subr.mxu0 0.0
        %2997 = vmatpush1.msra.mxu0 0.0
        %2998 = vmatprep.subr.mxu0 0.0
        %2999 = vmatpush1.msra.mxu0 0.0
        %3000 = vmatprep.subr.mxu0 0.0
        %3001 = vmatpush1.msra.mxu0 0.0
        %3002 = vmatprep.subr.mxu0 0.0
        %3003 = vmatpush1.msra.mxu0 0.0
        %3004 = vmatprep.subr.mxu0 0.0
        %3005 = vmatpush1.msra.mxu0 0.0
        %3006 = vmatprep.subr.mxu0 0.0
        %3007 = vmatpush1.msra.mxu0 0.0
        %3008 = vmatprep.subr.mxu0 0.0
        %3009 = vmatpush1.msra.mxu0 0.0
        %3010 = vmatprep.subr.mxu0 0.0
        %3011 = vmatpush1.msra.mxu0 0.0
        %3012 = vmatprep.subr.mxu0 0.0
        %3013 = vmatpush1.msra.mxu0 0.0
        %3014 = vmatprep.subr.mxu0 0.0
        %3015 = vmatpush1.msra.mxu0 0.0
        %3016 = vmatprep.subr.mxu0 0.0
        %3017 = vmatpush1.msra.mxu0 0.0
        %3018 = vmatprep.subr.mxu0 0.0
        %3019 = vmatpush1.msra.mxu0 0.0
        %3020 = vmatprep.subr.mxu0 0.0
        %3021 = vmatpush1.msra.mxu0 0.0
        %3022 = vmatprep.subr.mxu0 0.0
        %3023 = vmatpush1.msra.mxu0 0.0
        %3024 = vmatprep.subr.mxu0 0.0
        %3025 = vmatpush1.msra.mxu0 0.0
        %3026 = vmatprep.subr.mxu0 0.0
        %3027 = vmatpush1.msra.mxu0 0.0
        %3028 = vmatprep.subr.mxu0 0.0
        %3029 = vmatpush1.msra.mxu0 0.0
        %3030 = vmatprep.subr.mxu0 0.0
        %3031 = vmatpush1.msra.mxu0 0.0
        %3032 = vmatprep.subr.mxu0 0.0
        %3033 = vmatpush1.msra.mxu0 0.0
        %3034 = vmatprep.subr.mxu0 0.0
        %3035 = vmatpush1.msra.mxu0 0.0
        %3036 = vmatprep.mubr.f32.mxu0 0.0
        %3037 = vmatmul.mubr.f32.gmra.mrb[0].mxu0 %v2338
        %v3038 = vpop.f32.mrb[0].mxu0
        %v3039 = vadd.f32 0.0, %v3038
        %v3040 = vpop.f32.mrb[0].mxu0
        %v3041 = vadd.f32 0.0, %v3040
        %3042 = vmatprep.mubr.f32.mxu0 0.0
        %3043 = vmatmul.mubr.f32.gmra.mrb[0].mxu0 %v2341
        %v3044 = vpop.f32.mrb[0].mxu0
        %v3045 = vadd.f32 0.0, %v3044
        %v3046 = vpop.f32.mrb[0].mxu0
        %v3047 = vadd.f32 0.0, %v3046
        %3048 = vmatprep.mubr.f32.mxu0 0.0
        %3049 = vmatmul.mubr.f32.gmra.mrb[0].mxu0 %v2344
        %v3050 = vpop.f32.mrb[0].mxu0
        %v3051 = vadd.f32 0.0, %v3050
        %v3052 = vpop.f32.mrb[0].mxu0
        %v3053 = vadd.f32 0.0, %v3052
        %3054 = vmatprep.mubr.f32.mxu0 0.0
        %3055 = vmatmul.mubr.f32.gmra.mrb[0].mxu0 %v2347
        %v3056 = vpop.f32.mrb[0].mxu0
        %v3057 = vadd.f32 0.0, %v3056
        %v3058 = vpop.f32.mrb[0].mxu0
        %v3059 = vadd.f32 0.0, %v3058
        %3060 = vdwg.mxu0
        %3061 = vmatprep.subr.mxu0 %v2138
        %3062 = vmatpush1.msra.mxu0 %v2137
        %3063 = vmatprep.subr.mxu0 %v2140
        %3064 = vmatpush1.msra.mxu0 %v2139
        %3065 = vmatprep.subr.mxu0 %v2142
        %3066 = vmatpush1.msra.mxu0 %v2141
        %3067 = vmatprep.subr.mxu0 %v2144
        %3068 = vmatpush1.msra.mxu0 %v2143
        %3069 = vmatprep.subr.mxu0 0.0
        %3070 = vmatpush1.msra.mxu0 0.0
        %3071 = vmatprep.subr.mxu0 0.0
        %3072 = vmatpush1.msra.mxu0 0.0
        %3073 = vmatprep.subr.mxu0 0.0
        %3074 = vmatpush1.msra.mxu0 0.0
        %3075 = vmatprep.subr.mxu0 0.0
        %3076 = vmatpush1.msra.mxu0 0.0
        %3077 = vmatprep.subr.mxu0 0.0
        %3078 = vmatpush1.msra.mxu0 0.0
        %3079 = vmatprep.subr.mxu0 0.0
        %3080 = vmatpush1.msra.mxu0 0.0
        %3081 = vmatprep.subr.mxu0 0.0
        %3082 = vmatpush1.msra.mxu0 0.0
        %3083 = vmatprep.subr.mxu0 0.0
        %3084 = vmatpush1.msra.mxu0 0.0
        %3085 = vmatprep.subr.mxu0 0.0
        %3086 = vmatpush1.msra.mxu0 0.0
        %3087 = vmatprep.subr.mxu0 0.0
        %3088 = vmatpush1.msra.mxu0 0.0
        %3089 = vmatprep.subr.mxu0 0.0
        %3090 = vmatpush1.msra.mxu0 0.0
        %3091 = vmatprep.subr.mxu0 0.0
        %3092 = vmatpush1.msra.mxu0 0.0
        %3093 = vmatprep.subr.mxu0 0.0
        %3094 = vmatpush1.msra.mxu0 0.0
        %3095 = vmatprep.subr.mxu0 0.0
        %3096 = vmatpush1.msra.mxu0 0.0
        %3097 = vmatprep.subr.mxu0 0.0
        %3098 = vmatpush1.msra.mxu0 0.0
        %3099 = vmatprep.subr.mxu0 0.0
        %3100 = vmatpush1.msra.mxu0 0.0
        %3101 = vmatprep.subr.mxu0 0.0
        %3102 = vmatpush1.msra.mxu0 0.0
        %3103 = vmatprep.subr.mxu0 0.0
        %3104 = vmatpush1.msra.mxu0 0.0
        %3105 = vmatprep.subr.mxu0 0.0
        %3106 = vmatpush1.msra.mxu0 0.0
        %3107 = vmatprep.subr.mxu0 0.0
        %3108 = vmatpush1.msra.mxu0 0.0
        %3109 = vmatprep.subr.mxu0 0.0
        %3110 = vmatpush1.msra.mxu0 0.0
        %3111 = vmatprep.subr.mxu0 0.0
        %3112 = vmatpush1.msra.mxu0 0.0
        %3113 = vmatprep.subr.mxu0 0.0
        %3114 = vmatpush1.msra.mxu0 0.0
        %3115 = vmatprep.subr.mxu0 0.0
        %3116 = vmatpush1.msra.mxu0 0.0
        %3117 = vmatprep.subr.mxu0 0.0
        %3118 = vmatpush1.msra.mxu0 0.0
        %3119 = vmatprep.subr.mxu0 0.0
        %3120 = vmatpush1.msra.mxu0 0.0
        %3121 = vmatprep.subr.mxu0 0.0
        %3122 = vmatpush1.msra.mxu0 0.0
        %3123 = vmatprep.subr.mxu0 0.0
        %3124 = vmatpush1.msra.mxu0 0.0
        %3125 = vmatprep.mubr.f32.mxu0 0.0
        %3126 = vmatmul.mubr.f32.gmra.mrb[0].mxu0 %v2338
        %v3127 = vpop.f32.mrb[0].mxu0
        %v3128 = vadd.f32 0.0, %v3127
        %v3129 = vpop.f32.mrb[0].mxu0
        %v3130 = vadd.f32 0.0, %v3129
        %3131 = vmatprep.mubr.f32.mxu0 0.0
        %3132 = vmatmul.mubr.f32.gmra.mrb[0].mxu0 %v2341
        %v3133 = vpop.f32.mrb[0].mxu0
        %v3134 = vadd.f32 0.0, %v3133
        %v3135 = vpop.f32.mrb[0].mxu0
        %v3136 = vadd.f32 0.0, %v3135
        %3137 = vmatprep.mubr.f32.mxu0 0.0
        %3138 = vmatmul.mubr.f32.gmra.mrb[0].mxu0 %v2344
        %v3139 = vpop.f32.mrb[0].mxu0
        %v3140 = vadd.f32 0.0, %v3139
        %v3141 = vpop.f32.mrb[0].mxu0
        %v3142 = vadd.f32 0.0, %v3141
        %3143 = vmatprep.mubr.f32.mxu0 0.0
        %3144 = vmatmul.mubr.f32.gmra.mrb[0].mxu0 %v2347
        %v3145 = vpop.f32.mrb[0].mxu0
        %v3146 = vadd.f32 0.0, %v3145
        %v3147 = vpop.f32.mrb[0].mxu0
        %v3148 = vadd.f32 0.0, %v3147
        %3149 = vdwg.mxu0
        %3150 = vmatprep.subr.mxu0 %v2178
        %3151 = vmatpush1.msra.mxu0 %v2177
        %3152 = vmatprep.subr.mxu0 %v2180
        %3153 = vmatpush1.msra.mxu0 %v2179
        %3154 = vmatprep.subr.mxu0 %v2182
        %3155 = vmatpush1.msra.mxu0 %v2181
        %3156 = vmatprep.subr.mxu0 %v2184
        %3157 = vmatpush1.msra.mxu0 %v2183
        %3158 = vmatprep.subr.mxu0 0.0
        %3159 = vmatpush1.msra.mxu0 0.0
        %3160 = vmatprep.subr.mxu0 0.0
        %3161 = vmatpush1.msra.mxu0 0.0
        %3162 = vmatprep.subr.mxu0 0.0
        %3163 = vmatpush1.msra.mxu0 0.0
        %3164 = vmatprep.subr.mxu0 0.0
        %3165 = vmatpush1.msra.mxu0 0.0
        %3166 = vmatprep.subr.mxu0 0.0
        %3167 = vmatpush1.msra.mxu0 0.0
        %3168 = vmatprep.subr.mxu0 0.0
        %3169 = vmatpush1.msra.mxu0 0.0
        %3170 = vmatprep.subr.mxu0 0.0
        %3171 = vmatpush1.msra.mxu0 0.0
        %3172 = vmatprep.subr.mxu0 0.0
        %3173 = vmatpush1.msra.mxu0 0.0
        %3174 = vmatprep.subr.mxu0 0.0
        %3175 = vmatpush1.msra.mxu0 0.0
        %3176 = vmatprep.subr.mxu0 0.0
        %3177 = vmatpush1.msra.mxu0 0.0
        %3178 = vmatprep.subr.mxu0 0.0
        %3179 = vmatpush1.msra.mxu0 0.0
        %3180 = vmatprep.subr.mxu0 0.0
        %3181 = vmatpush1.msra.mxu0 0.0
        %3182 = vmatprep.subr.mxu0 0.0
        %3183 = vmatpush1.msra.mxu0 0.0
        %3184 = vmatprep.subr.mxu0 0.0
        %3185 = vmatpush1.msra.mxu0 0.0
        %3186 = vmatprep.subr.mxu0 0.0
        %3187 = vmatpush1.msra.mxu0 0.0
        %3188 = vmatprep.subr.mxu0 0.0
        %3189 = vmatpush1.msra.mxu0 0.0
        %3190 = vmatprep.subr.mxu0 0.0
        %3191 = vmatpush1.msra.mxu0 0.0
        %3192 = vmatprep.subr.mxu0 0.0
        %3193 = vmatpush1.msra.mxu0 0.0
        %3194 = vmatprep.subr.mxu0 0.0
        %3195 = vmatpush1.msra.mxu0 0.0
        %3196 = vmatprep.subr.mxu0 0.0
        %3197 = vmatpush1.msra.mxu0 0.0
        %3198 = vmatprep.subr.mxu0 0.0
        %3199 = vmatpush1.msra.mxu0 0.0
        %3200 = vmatprep.subr.mxu0 0.0
        %3201 = vmatpush1.msra.mxu0 0.0
        %3202 = vmatprep.subr.mxu0 0.0
        %3203 = vmatpush1.msra.mxu0 0.0
        %3204 = vmatprep.subr.mxu0 0.0
        %3205 = vmatpush1.msra.mxu0 0.0
        %3206 = vmatprep.subr.mxu0 0.0
        %3207 = vmatpush1.msra.mxu0 0.0
        %3208 = vmatprep.subr.mxu0 0.0
        %3209 = vmatpush1.msra.mxu0 0.0
        %3210 = vmatprep.subr.mxu0 0.0
        %3211 = vmatpush1.msra.mxu0 0.0
        %3212 = vmatprep.subr.mxu0 0.0
        %3213 = vmatpush1.msra.mxu0 0.0
        %3214 = vmatprep.mubr.f32.mxu0 0.0
        %3215 = vmatmul.mubr.f32.gmra.mrb[0].mxu0 %v2338
        %v3216 = vpop.f32.mrb[0].mxu0
        %v3217 = vadd.f32 0.0, %v3216
        %v3218 = vpop.f32.mrb[0].mxu0
        %v3219 = vadd.f32 0.0, %v3218
        %3220 = vmatprep.mubr.f32.mxu0 0.0
        %3221 = vmatmul.mubr.f32.gmra.mrb[0].mxu0 %v2341
        %v3222 = vpop.f32.mrb[0].mxu0
        %v3223 = vadd.f32 0.0, %v3222
        %v3224 = vpop.f32.mrb[0].mxu0
        %v3225 = vadd.f32 0.0, %v3224
        %3226 = vmatprep.mubr.f32.mxu0 0.0
        %3227 = vmatmul.mubr.f32.gmra.mrb[0].mxu0 %v2344
        %v3228 = vpop.f32.mrb[0].mxu0
        %v3229 = vadd.f32 0.0, %v3228
        %v3230 = vpop.f32.mrb[0].mxu0
        %v3231 = vadd.f32 0.0, %v3230
        %3232 = vmatprep.mubr.f32.mxu0 0.0
        %3233 = vmatmul.mubr.f32.gmra.mrb[0].mxu0 %v2347
        %v3234 = vpop.f32.mrb[0].mxu0
        %v3235 = vadd.f32 0.0, %v3234
        %v3236 = vpop.f32.mrb[0].mxu0
        %v3237 = vadd.f32 0.0, %v3236
        %3238 = vdwg.mxu0
        %3239 = vmatprep.subr.mxu0 %v2218
        %3240 = vmatpush1.msra.mxu0 %v2217
        %3241 = vmatprep.subr.mxu0 %v2220
        %3242 = vmatpush1.msra.mxu0 %v2219
        %3243 = vmatprep.subr.mxu0 %v2222
        %3244 = vmatpush1.msra.mxu0 %v2221
        %3245 = vmatprep.subr.mxu0 %v2224
        %3246 = vmatpush1.msra.mxu0 %v2223
        %3247 = vmatprep.subr.mxu0 0.0
        %3248 = vmatpush1.msra.mxu0 0.0
        %3249 = vmatprep.subr.mxu0 0.0
        %3250 = vmatpush1.msra.mxu0 0.0
        %3251 = vmatprep.subr.mxu0 0.0
        %3252 = vmatpush1.msra.mxu0 0.0
        %3253 = vmatprep.subr.mxu0 0.0
        %3254 = vmatpush1.msra.mxu0 0.0
        %3255 = vmatprep.subr.mxu0 0.0
        %3256 = vmatpush1.msra.mxu0 0.0
        %3257 = vmatprep.subr.mxu0 0.0
        %3258 = vmatpush1.msra.mxu0 0.0
        %3259 = vmatprep.subr.mxu0 0.0
        %3260 = vmatpush1.msra.mxu0 0.0
        %3261 = vmatprep.subr.mxu0 0.0
        %3262 = vmatpush1.msra.mxu0 0.0
        %3263 = vmatprep.subr.mxu0 0.0
        %3264 = vmatpush1.msra.mxu0 0.0
        %3265 = vmatprep.subr.mxu0 0.0
        %3266 = vmatpush1.msra.mxu0 0.0
        %3267 = vmatprep.subr.mxu0 0.0
        %3268 = vmatpush1.msra.mxu0 0.0
        %3269 = vmatprep.subr.mxu0 0.0
        %3270 = vmatpush1.msra.mxu0 0.0
        %3271 = vmatprep.subr.mxu0 0.0
        %3272 = vmatpush1.msra.mxu0 0.0
        %3273 = vmatprep.subr.mxu0 0.0
        %3274 = vmatpush1.msra.mxu0 0.0
        %3275 = vmatprep.subr.mxu0 0.0
        %3276 = vmatpush1.msra.mxu0 0.0
        %3277 = vmatprep.subr.mxu0 0.0
        %3278 = vmatpush1.msra.mxu0 0.0
        %3279 = vmatprep.subr.mxu0 0.0
        %3280 = vmatpush1.msra.mxu0 0.0
        %3281 = vmatprep.subr.mxu0 0.0
        %3282 = vmatpush1.msra.mxu0 0.0
        %3283 = vmatprep.subr.mxu0 0.0
        %3284 = vmatpush1.msra.mxu0 0.0
        %3285 = vmatprep.subr.mxu0 0.0
        %3286 = vmatpush1.msra.mxu0 0.0
        %3287 = vmatprep.subr.mxu0 0.0
        %3288 = vmatpush1.msra.mxu0 0.0
        %3289 = vmatprep.subr.mxu0 0.0
        %3290 = vmatpush1.msra.mxu0 0.0
        %3291 = vmatprep.subr.mxu0 0.0
        %3292 = vmatpush1.msra.mxu0 0.0
        %3293 = vmatprep.subr.mxu0 0.0
        %3294 = vmatpush1.msra.mxu0 0.0
        %3295 = vmatprep.subr.mxu0 0.0
        %3296 = vmatpush1.msra.mxu0 0.0
        %3297 = vmatprep.subr.mxu0 0.0
        %3298 = vmatpush1.msra.mxu0 0.0
        %3299 = vmatprep.subr.mxu0 0.0
        %3300 = vmatpush1.msra.mxu0 0.0
        %3301 = vmatprep.subr.mxu0 0.0
        %3302 = vmatpush1.msra.mxu0 0.0
        %3303 = vmatprep.mubr.f32.mxu0 0.0
        %3304 = vmatmul.mubr.f32.gmra.mrb[0].mxu0 %v2338
        %v3305 = vpop.f32.mrb[0].mxu0
        %v3306 = vadd.f32 0.0, %v3305
        %v3307 = vpop.f32.mrb[0].mxu0
        %v3308 = vadd.f32 0.0, %v3307
        %3309 = vmatprep.mubr.f32.mxu0 0.0
        %3310 = vmatmul.mubr.f32.gmra.mrb[0].mxu0 %v2341
        %v3311 = vpop.f32.mrb[0].mxu0
        %v3312 = vadd.f32 0.0, %v3311
        %v3313 = vpop.f32.mrb[0].mxu0
        %v3314 = vadd.f32 0.0, %v3313
        %3315 = vmatprep.mubr.f32.mxu0 0.0
        %3316 = vmatmul.mubr.f32.gmra.mrb[0].mxu0 %v2344
        %v3317 = vpop.f32.mrb[0].mxu0
        %v3318 = vadd.f32 0.0, %v3317
        %v3319 = vpop.f32.mrb[0].mxu0
        %v3320 = vadd.f32 0.0, %v3319
        %3321 = vmatprep.mubr.f32.mxu0 0.0
        %3322 = vmatmul.mubr.f32.gmra.mrb[0].mxu0 %v2347
        %v3323 = vpop.f32.mrb[0].mxu0
        %v3324 = vadd.f32 0.0, %v3323
        %v3325 = vpop.f32.mrb[0].mxu0
        %v3326 = vadd.f32 0.0, %v3325
        %3327 = vdwg.mxu0
        %3328 = vmatprep.subr.mxu0 %v2274
        %3329 = vmatpush1.msra.mxu0 %v2273
        %3330 = vmatprep.subr.mxu0 %v2276
        %3331 = vmatpush1.msra.mxu0 %v2275
        %3332 = vmatprep.subr.mxu0 %v2278
        %3333 = vmatpush1.msra.mxu0 %v2277
        %3334 = vmatprep.subr.mxu0 %v2280
        %3335 = vmatpush1.msra.mxu0 %v2279
        %3336 = vmatprep.subr.mxu0 0.0
        %3337 = vmatpush1.msra.mxu0 0.0
        %3338 = vmatprep.subr.mxu0 0.0
        %3339 = vmatpush1.msra.mxu0 0.0
        %3340 = vmatprep.subr.mxu0 0.0
        %3341 = vmatpush1.msra.mxu0 0.0
        %3342 = vmatprep.subr.mxu0 0.0
        %3343 = vmatpush1.msra.mxu0 0.0
        %3344 = vmatprep.subr.mxu0 0.0
        %3345 = vmatpush1.msra.mxu0 0.0
        %3346 = vmatprep.subr.mxu0 0.0
        %3347 = vmatpush1.msra.mxu0 0.0
        %3348 = vmatprep.subr.mxu0 0.0
        %3349 = vmatpush1.msra.mxu0 0.0
        %3350 = vmatprep.subr.mxu0 0.0
        %3351 = vmatpush1.msra.mxu0 0.0
        %3352 = vmatprep.subr.mxu0 0.0
        %3353 = vmatpush1.msra.mxu0 0.0
        %3354 = vmatprep.subr.mxu0 0.0
        %3355 = vmatpush1.msra.mxu0 0.0
        %3356 = vmatprep.subr.mxu0 0.0
        %3357 = vmatpush1.msra.mxu0 0.0
        %3358 = vmatprep.subr.mxu0 0.0
        %3359 = vmatpush1.msra.mxu0 0.0
        %3360 = vmatprep.subr.mxu0 0.0
        %3361 = vmatpush1.msra.mxu0 0.0
        %3362 = vmatprep.subr.mxu0 0.0
        %3363 = vmatpush1.msra.mxu0 0.0
        %3364 = vmatprep.subr.mxu0 0.0
        %3365 = vmatpush1.msra.mxu0 0.0
        %3366 = vmatprep.subr.mxu0 0.0
        %3367 = vmatpush1.msra.mxu0 0.0
        %3368 = vmatprep.subr.mxu0 0.0
        %3369 = vmatpush1.msra.mxu0 0.0
        %3370 = vmatprep.subr.mxu0 0.0
        %3371 = vmatpush1.msra.mxu0 0.0
        %3372 = vmatprep.subr.mxu0 0.0
        %3373 = vmatpush1.msra.mxu0 0.0
        %3374 = vmatprep.subr.mxu0 0.0
        %3375 = vmatpush1.msra.mxu0 0.0
        %3376 = vmatprep.subr.mxu0 0.0
        %3377 = vmatpush1.msra.mxu0 0.0
        %3378 = vmatprep.subr.mxu0 0.0
        %3379 = vmatpush1.msra.mxu0 0.0
        %3380 = vmatprep.subr.mxu0 0.0
        %3381 = vmatpush1.msra.mxu0 0.0
        %3382 = vmatprep.subr.mxu0 0.0
        %3383 = vmatpush1.msra.mxu0 0.0
        %3384 = vmatprep.subr.mxu0 0.0
        %3385 = vmatpush1.msra.mxu0 0.0
        %3386 = vmatprep.subr.mxu0 0.0
        %3387 = vmatpush1.msra.mxu0 0.0
        %3388 = vmatprep.subr.mxu0 0.0
        %3389 = vmatpush1.msra.mxu0 0.0
        %3390 = vmatprep.subr.mxu0 0.0
        %3391 = vmatpush1.msra.mxu0 0.0
        %3392 = vmatprep.mubr.f32.mxu0 0.0
        %3393 = vmatmul.mubr.f32.gmra.mrb[0].mxu0 %v2338
        %v3394 = vpop.f32.mrb[0].mxu0
        %v3395 = vadd.f32 0.0, %v3394
        %v3396 = vpop.f32.mrb[0].mxu0
        %v3397 = vadd.f32 0.0, %v3396
        %3398 = vmatprep.mubr.f32.mxu0 0.0
        %3399 = vmatmul.mubr.f32.gmra.mrb[0].mxu0 %v2341
        %v3400 = vpop.f32.mrb[0].mxu0
        %v3401 = vadd.f32 0.0, %v3400
        %v3402 = vpop.f32.mrb[0].mxu0
        %v3403 = vadd.f32 0.0, %v3402
        %3404 = vmatprep.mubr.f32.mxu0 0.0
        %3405 = vmatmul.mubr.f32.gmra.mrb[0].mxu0 %v2344
        %v3406 = vpop.f32.mrb[0].mxu0
        %v3407 = vadd.f32 0.0, %v3406
        %v3408 = vpop.f32.mrb[0].mxu0
        %v3409 = vadd.f32 0.0, %v3408
        %3410 = vmatprep.mubr.f32.mxu0 0.0
        %3411 = vmatmul.mubr.f32.gmra.mrb[0].mxu0 %v2347
        %v3412 = vpop.f32.mrb[0].mxu0
        %v3413 = vadd.f32 0.0, %v3412
        %v3414 = vpop.f32.mrb[0].mxu0
        %v3415 = vadd.f32 0.0, %v3414
        %3416 = vdwg.mxu0
        %3417 = vmatprep.subr.mxu0 %v2330
        %3418 = vmatpush1.msra.mxu0 %v2329
        %3419 = vmatprep.subr.mxu0 %v2332
        %3420 = vmatpush1.msra.mxu0 %v2331
        %3421 = vmatprep.subr.mxu0 %v2334
        %3422 = vmatpush1.msra.mxu0 %v2333
        %3423 = vmatprep.subr.mxu0 %v2336
        %3424 = vmatpush1.msra.mxu0 %v2335
        %3425 = vmatprep.subr.mxu0 0.0
        %3426 = vmatpush1.msra.mxu0 0.0
        %3427 = vmatprep.subr.mxu0 0.0
        %3428 = vmatpush1.msra.mxu0 0.0
        %3429 = vmatprep.subr.mxu0 0.0
        %3430 = vmatpush1.msra.mxu0 0.0
        %3431 = vmatprep.subr.mxu0 0.0
        %3432 = vmatpush1.msra.mxu0 0.0
        %3433 = vmatprep.subr.mxu0 0.0
        %3434 = vmatpush1.msra.mxu0 0.0
        %3435 = vmatprep.subr.mxu0 0.0
        %3436 = vmatpush1.msra.mxu0 0.0
        %3437 = vmatprep.subr.mxu0 0.0
        %3438 = vmatpush1.msra.mxu0 0.0
        %3439 = vmatprep.subr.mxu0 0.0
        %3440 = vmatpush1.msra.mxu0 0.0
        %3441 = vmatprep.subr.mxu0 0.0
        %3442 = vmatpush1.msra.mxu0 0.0
        %3443 = vmatprep.subr.mxu0 0.0
        %3444 = vmatpush1.msra.mxu0 0.0
        %3445 = vmatprep.subr.mxu0 0.0
        %3446 = vmatpush1.msra.mxu0 0.0
        %3447 = vmatprep.subr.mxu0 0.0
        %3448 = vmatpush1.msra.mxu0 0.0
        %3449 = vmatprep.subr.mxu0 0.0
        %3450 = vmatpush1.msra.mxu0 0.0
        %3451 = vmatprep.subr.mxu0 0.0
        %3452 = vmatpush1.msra.mxu0 0.0
        %3453 = vmatprep.subr.mxu0 0.0
        %3454 = vmatpush1.msra.mxu0 0.0
        %3455 = vmatprep.subr.mxu0 0.0
        %3456 = vmatpush1.msra.mxu0 0.0
        %3457 = vmatprep.subr.mxu0 0.0
        %3458 = vmatpush1.msra.mxu0 0.0
        %3459 = vmatprep.subr.mxu0 0.0
        %3460 = vmatpush1.msra.mxu0 0.0
        %3461 = vmatprep.subr.mxu0 0.0
        %3462 = vmatpush1.msra.mxu0 0.0
        %3463 = vmatprep.subr.mxu0 0.0
        %3464 = vmatpush1.msra.mxu0 0.0
        %3465 = vmatprep.subr.mxu0 0.0
        %3466 = vmatpush1.msra.mxu0 0.0
        %3467 = vmatprep.subr.mxu0 0.0
        %3468 = vmatpush1.msra.mxu0 0.0
        %3469 = vmatprep.subr.mxu0 0.0
        %3470 = vmatpush1.msra.mxu0 0.0
        %3471 = vmatprep.subr.mxu0 0.0
        %3472 = vmatpush1.msra.mxu0 0.0
        %3473 = vmatprep.subr.mxu0 0.0
        %3474 = vmatpush1.msra.mxu0 0.0
        %3475 = vmatprep.subr.mxu0 0.0
        %3476 = vmatpush1.msra.mxu0 0.0
        %3477 = vmatprep.subr.mxu0 0.0
        %3478 = vmatpush1.msra.mxu0 0.0
        %3479 = vmatprep.subr.mxu0 0.0
        %3480 = vmatpush1.msra.mxu0 0.0
        %3481 = vmatprep.mubr.f32.mxu0 0.0
        %3482 = vmatmul.mubr.f32.gmra.mrb[0].mxu0 %v2338
        %v3483 = vpop.f32.mrb[0].mxu0
        %v3484 = vadd.f32 0.0, %v3483
        %v3485 = vpop.f32.mrb[0].mxu0
        %v3486 = vadd.f32 0.0, %v3485
        %3487 = vmatprep.mubr.f32.mxu0 0.0
        %3488 = vmatmul.mubr.f32.gmra.mrb[0].mxu0 %v2341
        %v3489 = vpop.f32.mrb[0].mxu0
        %v3490 = vadd.f32 0.0, %v3489
        %v3491 = vpop.f32.mrb[0].mxu0
        %v3492 = vadd.f32 0.0, %v3491
        %3493 = vmatprep.mubr.f32.mxu0 0.0
        %3494 = vmatmul.mubr.f32.gmra.mrb[0].mxu0 %v2344
        %v3495 = vpop.f32.mrb[0].mxu0
        %v3496 = vadd.f32 0.0, %v3495
        %v3497 = vpop.f32.mrb[0].mxu0
        %v3498 = vadd.f32 0.0, %v3497
        %3499 = vmatprep.mubr.f32.mxu0 0.0
        %3500 = vmatmul.mubr.f32.gmra.mrb[0].mxu0 %v2347
        %v3501 = vpop.f32.mrb[0].mxu0
        %v3502 = vadd.f32 0.0, %v3501
        %v3503 = vpop.f32.mrb[0].mxu0
        %v3504 = vadd.f32 0.0, %v3503
        %3505 = vdwg.mxu0
        %3506 = vset.pattern.permute.xlu0 2
        %3507 = vperm.xlu0 %3506, %v283
        %v3508 = vpop.permute.xlu0 %3507
        %3510 = vset.pattern.permute.xlu0 2
        %3511 = vperm.xlu0 %3510, %v284
        %v3512 = vpop.permute.xlu0 %3511
        %3514 = vset.pattern.permute.xlu0 2
        %3515 = vperm.xlu0 %3514, %v285
        %v3516 = vpop.permute.xlu0 %3515
        %3518 = vset.pattern.permute.xlu0 2
        %3519 = vperm.xlu0 %3518, %v286
        %v3520 = vpop.permute.xlu0 %3519
        %v3522 = vadd.f32 %v2416, %v3508
        %v3523 = vadd.f32 %v2418, %v3508
        %v3524 = vadd.f32 %v2422, %v3512
        %v3525 = vadd.f32 %v2424, %v3512
        %v3526 = vadd.f32 %v2428, %v3516
        %v3527 = vadd.f32 %v2430, %v3516
        %v3528 = vadd.f32 %v2434, %v3520
        %v3529 = vadd.f32 %v2436, %v3520
        %v3530 = vtanh.pop %v3522
        %v3531 = vtanh.pop %v3523
        %v3532 = vtanh.pop %v3524
        %v3533 = vtanh.pop %v3525
        %v3534 = vtanh.pop %v3526
        %v3535 = vtanh.pop %v3527
        %v3536 = vtanh.pop %v3528
        %v3537 = vtanh.pop %v3529
        %v3538 = vmul.f32 %v3530, %v3530
        %v3539 = vmul.f32 %v3531, %v3531
        %v3540 = vmul.f32 %v3532, %v3532
        %v3541 = vmul.f32 %v3533, %v3533
        %v3542 = vmul.f32 %v3534, %v3534
        %v3543 = vmul.f32 %v3535, %v3535
        %v3544 = vmul.f32 %v3536, %v3536
        %v3545 = vmul.f32 %v3537, %v3537
        %v3546 = vsub.f32 1.0, %v3538
        %v3547 = vsub.f32 1.0, %v3539
        %v3548 = vsub.f32 1.0, %v3540
        %v3549 = vsub.f32 1.0, %v3541
        %v3550 = vsub.f32 1.0, %v3542
        %v3551 = vsub.f32 1.0, %v3543
        %v3552 = vsub.f32 1.0, %v3544
        %v3553 = vsub.f32 1.0, %v3545
        %v3554 = vmul.f32 %v3530, -2.0
        %v3555 = vmul.f32 %v3531, -2.0
        %v3556 = vmul.f32 %v3532, -2.0
        %v3557 = vmul.f32 %v3533, -2.0
        %v3558 = vmul.f32 %v3534, -2.0
        %v3559 = vmul.f32 %v3535, -2.0
        %v3560 = vmul.f32 %v3536, -2.0
        %v3561 = vmul.f32 %v3537, -2.0
        %v3562 = vmul.f32 %v3554, %v3546
        %v3563 = vmul.f32 %v3555, %v3547
        %v3564 = vmul.f32 %v3556, %v3548
        %v3565 = vmul.f32 %v3557, %v3549
        %v3566 = vmul.f32 %v3558, %v3550
        %v3567 = vmul.f32 %v3559, %v3551
        %v3568 = vmul.f32 %v3560, %v3552
        %v3569 = vmul.f32 %v3561, %v3553
        %v3570 = vmul.f32 %v3546, %v3546
        %v3571 = vmul.f32 %v3547, %v3547
        %v3572 = vmul.f32 %v3548, %v3548
        %v3573 = vmul.f32 %v3549, %v3549
        %v3574 = vmul.f32 %v3550, %v3550
        %v3575 = vmul.f32 %v3551, %v3551
        %v3576 = vmul.f32 %v3552, %v3552
        %v3577 = vmul.f32 %v3553, %v3553
        %v3578 = vmul.f32 %v3530, %v3562
        %v3579 = vmul.f32 %v3531, %v3563
        %v3580 = vmul.f32 %v3532, %v3564
        %v3581 = vmul.f32 %v3533, %v3565
        %v3582 = vmul.f32 %v3534, %v3566
        %v3583 = vmul.f32 %v3535, %v3567
        %v3584 = vmul.f32 %v3536, %v3568
        %v3585 = vmul.f32 %v3537, %v3569
        %v3586 = vadd.f32 %v3570, %v3578
        %v3587 = vadd.f32 %v3571, %v3579
        %v3588 = vadd.f32 %v3572, %v3580
        %v3589 = vadd.f32 %v3573, %v3581
        %v3590 = vadd.f32 %v3574, %v3582
        %v3591 = vadd.f32 %v3575, %v3583
        %v3592 = vadd.f32 %v3576, %v3584
        %v3593 = vadd.f32 %v3577, %v3585
        %v3594 = vmul.f32 %v3586, -2.0
        %v3595 = vmul.f32 %v3587, -2.0
        %v3596 = vmul.f32 %v3588, -2.0
        %v3597 = vmul.f32 %v3589, -2.0
        %v3598 = vmul.f32 %v3590, -2.0
        %v3599 = vmul.f32 %v3591, -2.0
        %v3600 = vmul.f32 %v3592, -2.0
        %v3601 = vmul.f32 %v3593, -2.0
        %v3602 = vmul.f32 %v3562, %v2505
        %v3603 = vmul.f32 %v3563, %v2507
        %v3604 = vmul.f32 %v3564, %v2511
        %v3605 = vmul.f32 %v3565, %v2513
        %v3606 = vmul.f32 %v3566, %v2517
        %v3607 = vmul.f32 %v3567, %v2519
        %v3608 = vmul.f32 %v3568, %v2523
        %v3609 = vmul.f32 %v3569, %v2525
        %v3610 = vmul.f32 %v3562, %v2594
        %v3611 = vmul.f32 %v3563, %v2596
        %v3612 = vmul.f32 %v3564, %v2600
        %v3613 = vmul.f32 %v3565, %v2602
        %v3614 = vmul.f32 %v3566, %v2606
        %v3615 = vmul.f32 %v3567, %v2608
        %v3616 = vmul.f32 %v3568, %v2612
        %v3617 = vmul.f32 %v3569, %v2614
        %v3618 = vmul.f32 %v3562, %v2772
        %v3619 = vmul.f32 %v3563, %v2774
        %v3620 = vmul.f32 %v3564, %v2778
        %v3621 = vmul.f32 %v3565, %v2780
        %v3622 = vmul.f32 %v3566, %v2784
        %v3623 = vmul.f32 %v3567, %v2786
        %v3624 = vmul.f32 %v3568, %v2790
        %v3625 = vmul.f32 %v3569, %v2792
        %v3626 = vmul.f32 %v3562, %v2861
        %v3627 = vmul.f32 %v3563, %v2863
        %v3628 = vmul.f32 %v3564, %v2867
        %v3629 = vmul.f32 %v3565, %v2869
        %v3630 = vmul.f32 %v3566, %v2873
        %v3631 = vmul.f32 %v3567, %v2875
        %v3632 = vmul.f32 %v3568, %v2879
        %v3633 = vmul.f32 %v3569, %v2881
        %v3634 = vmul.f32 %v2505, %v2505
        %v3635 = vmul.f32 %v2507, %v2507
        %v3636 = vmul.f32 %v2511, %v2511
        %v3637 = vmul.f32 %v2513, %v2513
        %v3638 = vmul.f32 %v2517, %v2517
        %v3639 = vmul.f32 %v2519, %v2519
        %v3640 = vmul.f32 %v2523, %v2523
        %v3641 = vmul.f32 %v2525, %v2525
        %v3642 = vmul.f32 %v3594, %v3634
        %v3643 = vmul.f32 %v3595, %v3635
        %v3644 = vmul.f32 %v3596, %v3636
        %v3645 = vmul.f32 %v3597, %v3637
        %v3646 = vmul.f32 %v3598, %v3638
        %v3647 = vmul.f32 %v3599, %v3639
        %v3648 = vmul.f32 %v3600, %v3640
        %v3649 = vmul.f32 %v3601, %v3641
        %v3650 = vmul.f32 %v2594, %v2594
        %v3651 = vmul.f32 %v2596, %v2596
        %v3652 = vmul.f32 %v2600, %v2600
        %v3653 = vmul.f32 %v2602, %v2602
        %v3654 = vmul.f32 %v2606, %v2606
        %v3655 = vmul.f32 %v2608, %v2608
        %v3656 = vmul.f32 %v2612, %v2612
        %v3657 = vmul.f32 %v2614, %v2614
        %v3658 = vmul.f32 %v3594, %v3650
        %v3659 = vmul.f32 %v3595, %v3651
        %v3660 = vmul.f32 %v3596, %v3652
        %v3661 = vmul.f32 %v3597, %v3653
        %v3662 = vmul.f32 %v3598, %v3654
        %v3663 = vmul.f32 %v3599, %v3655
        %v3664 = vmul.f32 %v3600, %v3656
        %v3665 = vmul.f32 %v3601, %v3657
        %v3666 = vmul.f32 %v3546, %v2505
        %v3667 = vmul.f32 %v3547, %v2507
        %v3668 = vmul.f32 %v3548, %v2511
        %v3669 = vmul.f32 %v3549, %v2513
        %v3670 = vmul.f32 %v3550, %v2517
        %v3671 = vmul.f32 %v3551, %v2519
        %v3672 = vmul.f32 %v3552, %v2523
        %v3673 = vmul.f32 %v3553, %v2525
        %v3674 = vmul.f32 %v3546, %v2594
        %v3675 = vmul.f32 %v3547, %v2596
        %v3676 = vmul.f32 %v3548, %v2600
        %v3677 = vmul.f32 %v3549, %v2602
        %v3678 = vmul.f32 %v3550, %v2606
        %v3679 = vmul.f32 %v3551, %v2608
        %v3680 = vmul.f32 %v3552, %v2612
        %v3681 = vmul.f32 %v3553, %v2614
        %v3682 = vmul.f32 %v3546, %v2683
        %v3683 = vmul.f32 %v3547, %v2685
        %v3684 = vmul.f32 %v3548, %v2689
        %v3685 = vmul.f32 %v3549, %v2691
        %v3686 = vmul.f32 %v3550, %v2695
        %v3687 = vmul.f32 %v3551, %v2697
        %v3688 = vmul.f32 %v3552, %v2701
        %v3689 = vmul.f32 %v3553, %v2703
        %v3690 = vmul.f32 %v3602, %v2505
        %v3691 = vmul.f32 %v3603, %v2507
        %v3692 = vmul.f32 %v3604, %v2511
        %v3693 = vmul.f32 %v3605, %v2513
        %v3694 = vmul.f32 %v3606, %v2517
        %v3695 = vmul.f32 %v3607, %v2519
        %v3696 = vmul.f32 %v3608, %v2523
        %v3697 = vmul.f32 %v3609, %v2525
        %v3698 = vmul.f32 %v3546, %v2772
        %v3699 = vmul.f32 %v3547, %v2774
        %v3700 = vmul.f32 %v3548, %v2778
        %v3701 = vmul.f32 %v3549, %v2780
        %v3702 = vmul.f32 %v3550, %v2784
        %v3703 = vmul.f32 %v3551, %v2786
        %v3704 = vmul.f32 %v3552, %v2790
        %v3705 = vmul.f32 %v3553, %v2792
        %v3706 = vadd.f32 %v3690, %v3698
        %v3707 = vadd.f32 %v3691, %v3699
        %v3708 = vadd.f32 %v3692, %v3700
        %v3709 = vadd.f32 %v3693, %v3701
        %v3710 = vadd.f32 %v3694, %v3702
        %v3711 = vadd.f32 %v3695, %v3703
        %v3712 = vadd.f32 %v3696, %v3704
        %v3713 = vadd.f32 %v3697, %v3705
        %v3714 = vmul.f32 %v3610, %v2594
        %v3715 = vmul.f32 %v3611, %v2596
        %v3716 = vmul.f32 %v3612, %v2600
        %v3717 = vmul.f32 %v3613, %v2602
        %v3718 = vmul.f32 %v3614, %v2606
        %v3719 = vmul.f32 %v3615, %v2608
        %v3720 = vmul.f32 %v3616, %v2612
        %v3721 = vmul.f32 %v3617, %v2614
        %v3722 = vmul.f32 %v3546, %v2861
        %v3723 = vmul.f32 %v3547, %v2863
        %v3724 = vmul.f32 %v3548, %v2867
        %v3725 = vmul.f32 %v3549, %v2869
        %v3726 = vmul.f32 %v3550, %v2873
        %v3727 = vmul.f32 %v3551, %v2875
        %v3728 = vmul.f32 %v3552, %v2879
        %v3729 = vmul.f32 %v3553, %v2881
        %v3730 = vadd.f32 %v3714, %v3722
        %v3731 = vadd.f32 %v3715, %v3723
        %v3732 = vadd.f32 %v3716, %v3724
        %v3733 = vadd.f32 %v3717, %v3725
        %v3734 = vadd.f32 %v3718, %v3726
        %v3735 = vadd.f32 %v3719, %v3727
        %v3736 = vadd.f32 %v3720, %v3728
        %v3737 = vadd.f32 %v3721, %v3729
        %v3738 = vmul.f32 %v3602, %v2594
        %v3739 = vmul.f32 %v3603, %v2596
        %v3740 = vmul.f32 %v3604, %v2600
        %v3741 = vmul.f32 %v3605, %v2602
        %v3742 = vmul.f32 %v3606, %v2606
        %v3743 = vmul.f32 %v3607, %v2608
        %v3744 = vmul.f32 %v3608, %v2612
        %v3745 = vmul.f32 %v3609, %v2614
        %v3746 = vmul.f32 %v3546, %v2950
        %v3747 = vmul.f32 %v3547, %v2952
        %v3748 = vmul.f32 %v3548, %v2956
        %v3749 = vmul.f32 %v3549, %v2958
        %v3750 = vmul.f32 %v3550, %v2962
        %v3751 = vmul.f32 %v3551, %v2964
        %v3752 = vmul.f32 %v3552, %v2968
        %v3753 = vmul.f32 %v3553, %v2970
        %v3754 = vadd.f32 %v3738, %v3746
        %v3755 = vadd.f32 %v3739, %v3747
        %v3756 = vadd.f32 %v3740, %v3748
        %v3757 = vadd.f32 %v3741, %v3749
        %v3758 = vadd.f32 %v3742, %v3750
        %v3759 = vadd.f32 %v3743, %v3751
        %v3760 = vadd.f32 %v3744, %v3752
        %v3761 = vadd.f32 %v3745, %v3753
        %v3762 = vmul.f32 %v3602, %v2683
        %v3763 = vmul.f32 %v3603, %v2685
        %v3764 = vmul.f32 %v3604, %v2689
        %v3765 = vmul.f32 %v3605, %v2691
        %v3766 = vmul.f32 %v3606, %v2695
        %v3767 = vmul.f32 %v3607, %v2697
        %v3768 = vmul.f32 %v3608, %v2701
        %v3769 = vmul.f32 %v3609, %v2703
        %v3770 = vmul.f32 %v3546, %v3039
        %v3771 = vmul.f32 %v3547, %v3041
        %v3772 = vmul.f32 %v3548, %v3045
        %v3773 = vmul.f32 %v3549, %v3047
        %v3774 = vmul.f32 %v3550, %v3051
        %v3775 = vmul.f32 %v3551, %v3053
        %v3776 = vmul.f32 %v3552, %v3057
        %v3777 = vmul.f32 %v3553, %v3059
        %v3778 = vadd.f32 %v3762, %v3770
        %v3779 = vadd.f32 %v3763, %v3771
        %v3780 = vadd.f32 %v3764, %v3772
        %v3781 = vadd.f32 %v3765, %v3773
        %v3782 = vadd.f32 %v3766, %v3774
        %v3783 = vadd.f32 %v3767, %v3775
        %v3784 = vadd.f32 %v3768, %v3776
        %v3785 = vadd.f32 %v3769, %v3777
        %v3786 = vmul.f32 %v3610, %v2683
        %v3787 = vmul.f32 %v3611, %v2685
        %v3788 = vmul.f32 %v3612, %v2689
        %v3789 = vmul.f32 %v3613, %v2691
        %v3790 = vmul.f32 %v3614, %v2695
        %v3791 = vmul.f32 %v3615, %v2697
        %v3792 = vmul.f32 %v3616, %v2701
        %v3793 = vmul.f32 %v3617, %v2703
        %v3794 = vmul.f32 %v3546, %v3128
        %v3795 = vmul.f32 %v3547, %v3130
        %v3796 = vmul.f32 %v3548, %v3134
        %v3797 = vmul.f32 %v3549, %v3136
        %v3798 = vmul.f32 %v3550, %v3140
        %v3799 = vmul.f32 %v3551, %v3142
        %v3800 = vmul.f32 %v3552, %v3146
        %v3801 = vmul.f32 %v3553, %v3148
        %v3802 = vadd.f32 %v3786, %v3794
        %v3803 = vadd.f32 %v3787, %v3795
        %v3804 = vadd.f32 %v3788, %v3796
        %v3805 = vadd.f32 %v3789, %v3797
        %v3806 = vadd.f32 %v3790, %v3798
        %v3807 = vadd.f32 %v3791, %v3799
        %v3808 = vadd.f32 %v3792, %v3800
        %v3809 = vadd.f32 %v3793, %v3801
        %v3810 = vmul.f32 %v3618, 3.0
        %v3811 = vmul.f32 %v3619, 3.0
        %v3812 = vmul.f32 %v3620, 3.0
        %v3813 = vmul.f32 %v3621, 3.0
        %v3814 = vmul.f32 %v3622, 3.0
        %v3815 = vmul.f32 %v3623, 3.0
        %v3816 = vmul.f32 %v3624, 3.0
        %v3817 = vmul.f32 %v3625, 3.0
        %v3818 = vadd.f32 %v3642, %v3810
        %v3819 = vadd.f32 %v3643, %v3811
        %v3820 = vadd.f32 %v3644, %v3812
        %v3821 = vadd.f32 %v3645, %v3813
        %v3822 = vadd.f32 %v3646, %v3814
        %v3823 = vadd.f32 %v3647, %v3815
        %v3824 = vadd.f32 %v3648, %v3816
        %v3825 = vadd.f32 %v3649, %v3817
        %v3826 = vmul.f32 %v3818, %v2505
        %v3827 = vmul.f32 %v3819, %v2507
        %v3828 = vmul.f32 %v3820, %v2511
        %v3829 = vmul.f32 %v3821, %v2513
        %v3830 = vmul.f32 %v3822, %v2517
        %v3831 = vmul.f32 %v3823, %v2519
        %v3832 = vmul.f32 %v3824, %v2523
        %v3833 = vmul.f32 %v3825, %v2525
        %v3834 = vmul.f32 %v3546, %v3217
        %v3835 = vmul.f32 %v3547, %v3219
        %v3836 = vmul.f32 %v3548, %v3223
        %v3837 = vmul.f32 %v3549, %v3225
        %v3838 = vmul.f32 %v3550, %v3229
        %v3839 = vmul.f32 %v3551, %v3231
        %v3840 = vmul.f32 %v3552, %v3235
        %v3841 = vmul.f32 %v3553, %v3237
        %v3842 = vadd.f32 %v3826, %v3834
        %v3843 = vadd.f32 %v3827, %v3835
        %v3844 = vadd.f32 %v3828, %v3836
        %v3845 = vadd.f32 %v3829, %v3837
        %v3846 = vadd.f32 %v3830, %v3838
        %v3847 = vadd.f32 %v3831, %v3839
        %v3848 = vadd.f32 %v3832, %v3840
        %v3849 = vadd.f32 %v3833, %v3841
        %v3850 = vmul.f32 %v3626, 3.0
        %v3851 = vmul.f32 %v3627, 3.0
        %v3852 = vmul.f32 %v3628, 3.0
        %v3853 = vmul.f32 %v3629, 3.0
        %v3854 = vmul.f32 %v3630, 3.0
        %v3855 = vmul.f32 %v3631, 3.0
        %v3856 = vmul.f32 %v3632, 3.0
        %v3857 = vmul.f32 %v3633, 3.0
        %v3858 = vadd.f32 %v3658, %v3850
        %v3859 = vadd.f32 %v3659, %v3851
        %v3860 = vadd.f32 %v3660, %v3852
        %v3861 = vadd.f32 %v3661, %v3853
        %v3862 = vadd.f32 %v3662, %v3854
        %v3863 = vadd.f32 %v3663, %v3855
        %v3864 = vadd.f32 %v3664, %v3856
        %v3865 = vadd.f32 %v3665, %v3857
        %v3866 = vmul.f32 %v3858, %v2594
        %v3867 = vmul.f32 %v3859, %v2596
        %v3868 = vmul.f32 %v3860, %v2600
        %v3869 = vmul.f32 %v3861, %v2602
        %v3870 = vmul.f32 %v3862, %v2606
        %v3871 = vmul.f32 %v3863, %v2608
        %v3872 = vmul.f32 %v3864, %v2612
        %v3873 = vmul.f32 %v3865, %v2614
        %v3874 = vmul.f32 %v3546, %v3306
        %v3875 = vmul.f32 %v3547, %v3308
        %v3876 = vmul.f32 %v3548, %v3312
        %v3877 = vmul.f32 %v3549, %v3314
        %v3878 = vmul.f32 %v3550, %v3318
        %v3879 = vmul.f32 %v3551, %v3320
        %v3880 = vmul.f32 %v3552, %v3324
        %v3881 = vmul.f32 %v3553, %v3326
        %v3882 = vadd.f32 %v3866, %v3874
        %v3883 = vadd.f32 %v3867, %v3875
        %v3884 = vadd.f32 %v3868, %v3876
        %v3885 = vadd.f32 %v3869, %v3877
        %v3886 = vadd.f32 %v3870, %v3878
        %v3887 = vadd.f32 %v3871, %v3879
        %v3888 = vadd.f32 %v3872, %v3880
        %v3889 = vadd.f32 %v3873, %v3881
        %v3890 = vadd.f32 %v3642, %v3618
        %v3891 = vadd.f32 %v3643, %v3619
        %v3892 = vadd.f32 %v3644, %v3620
        %v3893 = vadd.f32 %v3645, %v3621
        %v3894 = vadd.f32 %v3646, %v3622
        %v3895 = vadd.f32 %v3647, %v3623
        %v3896 = vadd.f32 %v3648, %v3624
        %v3897 = vadd.f32 %v3649, %v3625
        %v3898 = vmul.f32 %v3890, %v2594
        %v3899 = vmul.f32 %v3891, %v2596
        %v3900 = vmul.f32 %v3892, %v2600
        %v3901 = vmul.f32 %v3893, %v2602
        %v3902 = vmul.f32 %v3894, %v2606
        %v3903 = vmul.f32 %v3895, %v2608
        %v3904 = vmul.f32 %v3896, %v2612
        %v3905 = vmul.f32 %v3897, %v2614
        %v3906 = vmul.f32 %v3602, 2.0
        %v3907 = vmul.f32 %v3603, 2.0
        %v3908 = vmul.f32 %v3604, 2.0
        %v3909 = vmul.f32 %v3605, 2.0
        %v3910 = vmul.f32 %v3606, 2.0
        %v3911 = vmul.f32 %v3607, 2.0
        %v3912 = vmul.f32 %v3608, 2.0
        %v3913 = vmul.f32 %v3609, 2.0
        %v3914 = vmul.f32 %v3906, %v2950
        %v3915 = vmul.f32 %v3907, %v2952
        %v3916 = vmul.f32 %v3908, %v2956
        %v3917 = vmul.f32 %v3909, %v2958
        %v3918 = vmul.f32 %v3910, %v2962
        %v3919 = vmul.f32 %v3911, %v2964
        %v3920 = vmul.f32 %v3912, %v2968
        %v3921 = vmul.f32 %v3913, %v2970
        %v3922 = vadd.f32 %v3898, %v3914
        %v3923 = vadd.f32 %v3899, %v3915
        %v3924 = vadd.f32 %v3900, %v3916
        %v3925 = vadd.f32 %v3901, %v3917
        %v3926 = vadd.f32 %v3902, %v3918
        %v3927 = vadd.f32 %v3903, %v3919
        %v3928 = vadd.f32 %v3904, %v3920
        %v3929 = vadd.f32 %v3905, %v3921
        %v3930 = vmul.f32 %v3546, %v3395
        %v3931 = vmul.f32 %v3547, %v3397
        %v3932 = vmul.f32 %v3548, %v3401
        %v3933 = vmul.f32 %v3549, %v3403
        %v3934 = vmul.f32 %v3550, %v3407
        %v3935 = vmul.f32 %v3551, %v3409
        %v3936 = vmul.f32 %v3552, %v3413
        %v3937 = vmul.f32 %v3553, %v3415
        %v3938 = vadd.f32 %v3922, %v3930
        %v3939 = vadd.f32 %v3923, %v3931
        %v3940 = vadd.f32 %v3924, %v3932
        %v3941 = vadd.f32 %v3925, %v3933
        %v3942 = vadd.f32 %v3926, %v3934
        %v3943 = vadd.f32 %v3927, %v3935
        %v3944 = vadd.f32 %v3928, %v3936
        %v3945 = vadd.f32 %v3929, %v3937
        %v3946 = vadd.f32 %v3658, %v3626
        %v3947 = vadd.f32 %v3659, %v3627
        %v3948 = vadd.f32 %v3660, %v3628
        %v3949 = vadd.f32 %v3661, %v3629
        %v3950 = vadd.f32 %v3662, %v3630
        %v3951 = vadd.f32 %v3663, %v3631
        %v3952 = vadd.f32 %v3664, %v3632
        %v3953 = vadd.f32 %v3665, %v3633
        %v3954 = vmul.f32 %v3946, %v2505
        %v3955 = vmul.f32 %v3947, %v2507
        %v3956 = vmul.f32 %v3948, %v2511
        %v3957 = vmul.f32 %v3949, %v2513
        %v3958 = vmul.f32 %v3950, %v2517
        %v3959 = vmul.f32 %v3951, %v2519
        %v3960 = vmul.f32 %v3952, %v2523
        %v3961 = vmul.f32 %v3953, %v2525
        %v3962 = vmul.f32 %v3610, 2.0
        %v3963 = vmul.f32 %v3611, 2.0
        %v3964 = vmul.f32 %v3612, 2.0
        %v3965 = vmul.f32 %v3613, 2.0
        %v3966 = vmul.f32 %v3614, 2.0
        %v3967 = vmul.f32 %v3615, 2.0
        %v3968 = vmul.f32 %v3616, 2.0
        %v3969 = vmul.f32 %v3617, 2.0
        %v3970 = vmul.f32 %v3962, %v2950
        %v3971 = vmul.f32 %v3963, %v2952
        %v3972 = vmul.f32 %v3964, %v2956
        %v3973 = vmul.f32 %v3965, %v2958
        %v3974 = vmul.f32 %v3966, %v2962
        %v3975 = vmul.f32 %v3967, %v2964
        %v3976 = vmul.f32 %v3968, %v2968
        %v3977 = vmul.f32 %v3969, %v2970
        %v3978 = vadd.f32 %v3954, %v3970
        %v3979 = vadd.f32 %v3955, %v3971
        %v3980 = vadd.f32 %v3956, %v3972
        %v3981 = vadd.f32 %v3957, %v3973
        %v3982 = vadd.f32 %v3958, %v3974
        %v3983 = vadd.f32 %v3959, %v3975
        %v3984 = vadd.f32 %v3960, %v3976
        %v3985 = vadd.f32 %v3961, %v3977
        %v3986 = vmul.f32 %v3546, %v3484
        %v3987 = vmul.f32 %v3547, %v3486
        %v3988 = vmul.f32 %v3548, %v3490
        %v3989 = vmul.f32 %v3549, %v3492
        %v3990 = vmul.f32 %v3550, %v3496
        %v3991 = vmul.f32 %v3551, %v3498
        %v3992 = vmul.f32 %v3552, %v3502
        %v3993 = vmul.f32 %v3553, %v3504
        %v3994 = vadd.f32 %v3978, %v3986
        %v3995 = vadd.f32 %v3979, %v3987
        %v3996 = vadd.f32 %v3980, %v3988
        %v3997 = vadd.f32 %v3981, %v3989
        %v3998 = vadd.f32 %v3982, %v3990
        %v3999 = vadd.f32 %v3983, %v3991
        %v4000 = vadd.f32 %v3984, %v3992
        %v4001 = vadd.f32 %v3985, %v3993
        %v4003 = vsel %vm671, %v271, 0
        %v4006 = vsel %vm671, %v272, 0
        %v4009 = vsel %vm671, %v273, 0
        %v4012 = vsel %vm671, %v274, 0
        %4014 = vmatprep.subr.mxu0 %v3531
        %4015 = vmatpush1.msra.mxu0 %v3530
        %4016 = vmatprep.subr.mxu0 %v3533
        %4017 = vmatpush1.msra.mxu0 %v3532
        %4018 = vmatprep.subr.mxu0 %v3535
        %4019 = vmatpush1.msra.mxu0 %v3534
        %4020 = vmatprep.subr.mxu0 %v3537
        %4021 = vmatpush1.msra.mxu0 %v3536
        %4022 = vmatprep.subr.mxu0 0.0
        %4023 = vmatpush1.msra.mxu0 0.0
        %4024 = vmatprep.subr.mxu0 0.0
        %4025 = vmatpush1.msra.mxu0 0.0
        %4026 = vmatprep.subr.mxu0 0.0
        %4027 = vmatpush1.msra.mxu0 0.0
        %4028 = vmatprep.subr.mxu0 0.0
        %4029 = vmatpush1.msra.mxu0 0.0
        %4030 = vmatprep.subr.mxu0 0.0
        %4031 = vmatpush1.msra.mxu0 0.0
        %4032 = vmatprep.subr.mxu0 0.0
        %4033 = vmatpush1.msra.mxu0 0.0
        %4034 = vmatprep.subr.mxu0 0.0
        %4035 = vmatpush1.msra.mxu0 0.0
        %4036 = vmatprep.subr.mxu0 0.0
        %4037 = vmatpush1.msra.mxu0 0.0
        %4038 = vmatprep.subr.mxu0 0.0
        %4039 = vmatpush1.msra.mxu0 0.0
        %4040 = vmatprep.subr.mxu0 0.0
        %4041 = vmatpush1.msra.mxu0 0.0
        %4042 = vmatprep.subr.mxu0 0.0
        %4043 = vmatpush1.msra.mxu0 0.0
        %4044 = vmatprep.subr.mxu0 0.0
        %4045 = vmatpush1.msra.mxu0 0.0
        %4046 = vmatprep.subr.mxu0 0.0
        %4047 = vmatpush1.msra.mxu0 0.0
        %4048 = vmatprep.subr.mxu0 0.0
        %4049 = vmatpush1.msra.mxu0 0.0
        %4050 = vmatprep.subr.mxu0 0.0
        %4051 = vmatpush1.msra.mxu0 0.0
        %4052 = vmatprep.subr.mxu0 0.0
        %4053 = vmatpush1.msra.mxu0 0.0
        %4054 = vmatprep.subr.mxu0 0.0
        %4055 = vmatpush1.msra.mxu0 0.0
        %4056 = vmatprep.subr.mxu0 0.0
        %4057 = vmatpush1.msra.mxu0 0.0
        %4058 = vmatprep.subr.mxu0 0.0
        %4059 = vmatpush1.msra.mxu0 0.0
        %4060 = vmatprep.subr.mxu0 0.0
        %4061 = vmatpush1.msra.mxu0 0.0
        %4062 = vmatprep.subr.mxu0 0.0
        %4063 = vmatpush1.msra.mxu0 0.0
        %4064 = vmatprep.subr.mxu0 0.0
        %4065 = vmatpush1.msra.mxu0 0.0
        %4066 = vmatprep.subr.mxu0 0.0
        %4067 = vmatpush1.msra.mxu0 0.0
        %4068 = vmatprep.subr.mxu0 0.0
        %4069 = vmatpush1.msra.mxu0 0.0
        %4070 = vmatprep.subr.mxu0 0.0
        %4071 = vmatpush1.msra.mxu0 0.0
        %4072 = vmatprep.subr.mxu0 0.0
        %4073 = vmatpush1.msra.mxu0 0.0
        %4074 = vmatprep.subr.mxu0 0.0
        %4075 = vmatpush1.msra.mxu0 0.0
        %4076 = vmatprep.subr.mxu0 0.0
        %4077 = vmatpush1.msra.mxu0 0.0
        %4078 = vmatprep.mubr.f32.mxu0 0.0
        %4079 = vmatmul.mubr.f32.gmra.mrb[0].mxu0 %v4003
        %v4080 = vpop.f32.mrb[0].mxu0
        %v4081 = vadd.f32 0.0, %v4080
        %v4082 = vpop.f32.mrb[0].mxu0
        %v4083 = vadd.f32 0.0, %v4082
        %4084 = vmatprep.mubr.f32.mxu0 0.0
        %4085 = vmatmul.mubr.f32.gmra.mrb[0].mxu0 %v4006
        %v4086 = vpop.f32.mrb[0].mxu0
        %v4087 = vadd.f32 0.0, %v4086
        %v4088 = vpop.f32.mrb[0].mxu0
        %v4089 = vadd.f32 0.0, %v4088
        %4090 = vmatprep.mubr.f32.mxu0 0.0
        %4091 = vmatmul.mubr.f32.gmra.mrb[0].mxu0 %v4009
        %v4092 = vpop.f32.mrb[0].mxu0
        %v4093 = vadd.f32 0.0, %v4092
        %v4094 = vpop.f32.mrb[0].mxu0
        %v4095 = vadd.f32 0.0, %v4094
        %4096 = vmatprep.mubr.f32.mxu0 0.0
        %4097 = vmatmul.mubr.f32.gmra.mrb[0].mxu0 %v4012
        %v4098 = vpop.f32.mrb[0].mxu0
        %v4099 = vadd.f32 0.0, %v4098
        %v4100 = vpop.f32.mrb[0].mxu0
        %v4101 = vadd.f32 0.0, %v4100
        %4102 = vdwg.mxu0
        %4103 = vmatprep.subr.mxu0 %v3667
        %4104 = vmatpush1.msra.mxu0 %v3666
        %4105 = vmatprep.subr.mxu0 %v3669
        %4106 = vmatpush1.msra.mxu0 %v3668
        %4107 = vmatprep.subr.mxu0 %v3671
        %4108 = vmatpush1.msra.mxu0 %v3670
        %4109 = vmatprep.subr.mxu0 %v3673
        %4110 = vmatpush1.msra.mxu0 %v3672
        %4111 = vmatprep.subr.mxu0 0.0
        %4112 = vmatpush1.msra.mxu0 0.0
        %4113 = vmatprep.subr.mxu0 0.0
        %4114 = vmatpush1.msra.mxu0 0.0
        %4115 = vmatprep.subr.mxu0 0.0
        %4116 = vmatpush1.msra.mxu0 0.0
        %4117 = vmatprep.subr.mxu0 0.0
        %4118 = vmatpush1.msra.mxu0 0.0
        %4119 = vmatprep.subr.mxu0 0.0
        %4120 = vmatpush1.msra.mxu0 0.0
        %4121 = vmatprep.subr.mxu0 0.0
        %4122 = vmatpush1.msra.mxu0 0.0
        %4123 = vmatprep.subr.mxu0 0.0
        %4124 = vmatpush1.msra.mxu0 0.0
        %4125 = vmatprep.subr.mxu0 0.0
        %4126 = vmatpush1.msra.mxu0 0.0
        %4127 = vmatprep.subr.mxu0 0.0
        %4128 = vmatpush1.msra.mxu0 0.0
        %4129 = vmatprep.subr.mxu0 0.0
        %4130 = vmatpush1.msra.mxu0 0.0
        %4131 = vmatprep.subr.mxu0 0.0
        %4132 = vmatpush1.msra.mxu0 0.0
        %4133 = vmatprep.subr.mxu0 0.0
        %4134 = vmatpush1.msra.mxu0 0.0
        %4135 = vmatprep.subr.mxu0 0.0
        %4136 = vmatpush1.msra.mxu0 0.0
        %4137 = vmatprep.subr.mxu0 0.0
        %4138 = vmatpush1.msra.mxu0 0.0
        %4139 = vmatprep.subr.mxu0 0.0
        %4140 = vmatpush1.msra.mxu0 0.0
        %4141 = vmatprep.subr.mxu0 0.0
        %4142 = vmatpush1.msra.mxu0 0.0
        %4143 = vmatprep.subr.mxu0 0.0
        %4144 = vmatpush1.msra.mxu0 0.0
        %4145 = vmatprep.subr.mxu0 0.0
        %4146 = vmatpush1.msra.mxu0 0.0
        %4147 = vmatprep.subr.mxu0 0.0
        %4148 = vmatpush1.msra.mxu0 0.0
        %4149 = vmatprep.subr.mxu0 0.0
        %4150 = vmatpush1.msra.mxu0 0.0
        %4151 = vmatprep.subr.mxu0 0.0
        %4152 = vmatpush1.msra.mxu0 0.0
        %4153 = vmatprep.subr.mxu0 0.0
        %4154 = vmatpush1.msra.mxu0 0.0
        %4155 = vmatprep.subr.mxu0 0.0
        %4156 = vmatpush1.msra.mxu0 0.0
        %4157 = vmatprep.subr.mxu0 0.0
        %4158 = vmatpush1.msra.mxu0 0.0
        %4159 = vmatprep.subr.mxu0 0.0
        %4160 = vmatpush1.msra.mxu0 0.0
        %4161 = vmatprep.subr.mxu0 0.0
        %4162 = vmatpush1.msra.mxu0 0.0
        %4163 = vmatprep.subr.mxu0 0.0
        %4164 = vmatpush1.msra.mxu0 0.0
        %4165 = vmatprep.subr.mxu0 0.0
        %4166 = vmatpush1.msra.mxu0 0.0
        %4167 = vmatprep.mubr.f32.mxu0 0.0
        %4168 = vmatmul.mubr.f32.gmra.mrb[0].mxu0 %v4003
        %v4169 = vpop.f32.mrb[0].mxu0
        %v4170 = vadd.f32 0.0, %v4169
        %v4171 = vpop.f32.mrb[0].mxu0
        %v4172 = vadd.f32 0.0, %v4171
        %4173 = vmatprep.mubr.f32.mxu0 0.0
        %4174 = vmatmul.mubr.f32.gmra.mrb[0].mxu0 %v4006
        %v4175 = vpop.f32.mrb[0].mxu0
        %v4176 = vadd.f32 0.0, %v4175
        %v4177 = vpop.f32.mrb[0].mxu0
        %v4178 = vadd.f32 0.0, %v4177
        %4179 = vmatprep.mubr.f32.mxu0 0.0
        %4180 = vmatmul.mubr.f32.gmra.mrb[0].mxu0 %v4009
        %v4181 = vpop.f32.mrb[0].mxu0
        %v4182 = vadd.f32 0.0, %v4181
        %v4183 = vpop.f32.mrb[0].mxu0
        %v4184 = vadd.f32 0.0, %v4183
        %4185 = vmatprep.mubr.f32.mxu0 0.0
        %4186 = vmatmul.mubr.f32.gmra.mrb[0].mxu0 %v4012
        %v4187 = vpop.f32.mrb[0].mxu0
        %v4188 = vadd.f32 0.0, %v4187
        %v4189 = vpop.f32.mrb[0].mxu0
        %v4190 = vadd.f32 0.0, %v4189
        %4191 = vdwg.mxu0
        %4192 = vmatprep.subr.mxu0 %v3675
        %4193 = vmatpush1.msra.mxu0 %v3674
        %4194 = vmatprep.subr.mxu0 %v3677
        %4195 = vmatpush1.msra.mxu0 %v3676
        %4196 = vmatprep.subr.mxu0 %v3679
        %4197 = vmatpush1.msra.mxu0 %v3678
        %4198 = vmatprep.subr.mxu0 %v3681
        %4199 = vmatpush1.msra.mxu0 %v3680
        %4200 = vmatprep.subr.mxu0 0.0
        %4201 = vmatpush1.msra.mxu0 0.0
        %4202 = vmatprep.subr.mxu0 0.0
        %4203 = vmatpush1.msra.mxu0 0.0
        %4204 = vmatprep.subr.mxu0 0.0
        %4205 = vmatpush1.msra.mxu0 0.0
        %4206 = vmatprep.subr.mxu0 0.0
        %4207 = vmatpush1.msra.mxu0 0.0
        %4208 = vmatprep.subr.mxu0 0.0
        %4209 = vmatpush1.msra.mxu0 0.0
        %4210 = vmatprep.subr.mxu0 0.0
        %4211 = vmatpush1.msra.mxu0 0.0
        %4212 = vmatprep.subr.mxu0 0.0
        %4213 = vmatpush1.msra.mxu0 0.0
        %4214 = vmatprep.subr.mxu0 0.0
        %4215 = vmatpush1.msra.mxu0 0.0
        %4216 = vmatprep.subr.mxu0 0.0
        %4217 = vmatpush1.msra.mxu0 0.0
        %4218 = vmatprep.subr.mxu0 0.0
        %4219 = vmatpush1.msra.mxu0 0.0
        %4220 = vmatprep.subr.mxu0 0.0
        %4221 = vmatpush1.msra.mxu0 0.0
        %4222 = vmatprep.subr.mxu0 0.0
        %4223 = vmatpush1.msra.mxu0 0.0
        %4224 = vmatprep.subr.mxu0 0.0
        %4225 = vmatpush1.msra.mxu0 0.0
        %4226 = vmatprep.subr.mxu0 0.0
        %4227 = vmatpush1.msra.mxu0 0.0
        %4228 = vmatprep.subr.mxu0 0.0
        %4229 = vmatpush1.msra.mxu0 0.0
        %4230 = vmatprep.subr.mxu0 0.0
        %4231 = vmatpush1.msra.mxu0 0.0
        %4232 = vmatprep.subr.mxu0 0.0
        %4233 = vmatpush1.msra.mxu0 0.0
        %4234 = vmatprep.subr.mxu0 0.0
        %4235 = vmatpush1.msra.mxu0 0.0
        %4236 = vmatprep.subr.mxu0 0.0
        %4237 = vmatpush1.msra.mxu0 0.0
        %4238 = vmatprep.subr.mxu0 0.0
        %4239 = vmatpush1.msra.mxu0 0.0
        %4240 = vmatprep.subr.mxu0 0.0
        %4241 = vmatpush1.msra.mxu0 0.0
        %4242 = vmatprep.subr.mxu0 0.0
        %4243 = vmatpush1.msra.mxu0 0.0
        %4244 = vmatprep.subr.mxu0 0.0
        %4245 = vmatpush1.msra.mxu0 0.0
        %4246 = vmatprep.subr.mxu0 0.0
        %4247 = vmatpush1.msra.mxu0 0.0
        %4248 = vmatprep.subr.mxu0 0.0
        %4249 = vmatpush1.msra.mxu0 0.0
        %4250 = vmatprep.subr.mxu0 0.0
        %4251 = vmatpush1.msra.mxu0 0.0
        %4252 = vmatprep.subr.mxu0 0.0
        %4253 = vmatpush1.msra.mxu0 0.0
        %4254 = vmatprep.subr.mxu0 0.0
        %4255 = vmatpush1.msra.mxu0 0.0
        %4256 = vmatprep.mubr.f32.mxu0 0.0
        %4257 = vmatmul.mubr.f32.gmra.mrb[0].mxu0 %v4003
        %v4258 = vpop.f32.mrb[0].mxu0
        %v4259 = vadd.f32 0.0, %v4258
        %v4260 = vpop.f32.mrb[0].mxu0
        %v4261 = vadd.f32 0.0, %v4260
        %4262 = vmatprep.mubr.f32.mxu0 0.0
        %4263 = vmatmul.mubr.f32.gmra.mrb[0].mxu0 %v4006
        %v4264 = vpop.f32.mrb[0].mxu0
        %v4265 = vadd.f32 0.0, %v4264
        %v4266 = vpop.f32.mrb[0].mxu0
        %v4267 = vadd.f32 0.0, %v4266
        %4268 = vmatprep.mubr.f32.mxu0 0.0
        %4269 = vmatmul.mubr.f32.gmra.mrb[0].mxu0 %v4009
        %v4270 = vpop.f32.mrb[0].mxu0
        %v4271 = vadd.f32 0.0, %v4270
        %v4272 = vpop.f32.mrb[0].mxu0
        %v4273 = vadd.f32 0.0, %v4272
        %4274 = vmatprep.mubr.f32.mxu0 0.0
        %4275 = vmatmul.mubr.f32.gmra.mrb[0].mxu0 %v4012
        %v4276 = vpop.f32.mrb[0].mxu0
        %v4277 = vadd.f32 0.0, %v4276
        %v4278 = vpop.f32.mrb[0].mxu0
        %v4279 = vadd.f32 0.0, %v4278
        %4280 = vdwg.mxu0
        %4281 = vmatprep.subr.mxu0 %v3683
        %4282 = vmatpush1.msra.mxu0 %v3682
        %4283 = vmatprep.subr.mxu0 %v3685
        %4284 = vmatpush1.msra.mxu0 %v3684
        %4285 = vmatprep.subr.mxu0 %v3687
        %4286 = vmatpush1.msra.mxu0 %v3686
        %4287 = vmatprep.subr.mxu0 %v3689
        %4288 = vmatpush1.msra.mxu0 %v3688
        %4289 = vmatprep.subr.mxu0 0.0
        %4290 = vmatpush1.msra.mxu0 0.0
        %4291 = vmatprep.subr.mxu0 0.0
        %4292 = vmatpush1.msra.mxu0 0.0
        %4293 = vmatprep.subr.mxu0 0.0
        %4294 = vmatpush1.msra.mxu0 0.0
        %4295 = vmatprep.subr.mxu0 0.0
        %4296 = vmatpush1.msra.mxu0 0.0
        %4297 = vmatprep.subr.mxu0 0.0
        %4298 = vmatpush1.msra.mxu0 0.0
        %4299 = vmatprep.subr.mxu0 0.0
        %4300 = vmatpush1.msra.mxu0 0.0
        %4301 = vmatprep.subr.mxu0 0.0
        %4302 = vmatpush1.msra.mxu0 0.0
        %4303 = vmatprep.subr.mxu0 0.0
        %4304 = vmatpush1.msra.mxu0 0.0
        %4305 = vmatprep.subr.mxu0 0.0
        %4306 = vmatpush1.msra.mxu0 0.0
        %4307 = vmatprep.subr.mxu0 0.0
        %4308 = vmatpush1.msra.mxu0 0.0
        %4309 = vmatprep.subr.mxu0 0.0
        %4310 = vmatpush1.msra.mxu0 0.0
        %4311 = vmatprep.subr.mxu0 0.0
        %4312 = vmatpush1.msra.mxu0 0.0
        %4313 = vmatprep.subr.mxu0 0.0
        %4314 = vmatpush1.msra.mxu0 0.0
        %4315 = vmatprep.subr.mxu0 0.0
        %4316 = vmatpush1.msra.mxu0 0.0
        %4317 = vmatprep.subr.mxu0 0.0
        %4318 = vmatpush1.msra.mxu0 0.0
        %4319 = vmatprep.subr.mxu0 0.0
        %4320 = vmatpush1.msra.mxu0 0.0
        %4321 = vmatprep.subr.mxu0 0.0
        %4322 = vmatpush1.msra.mxu0 0.0
        %4323 = vmatprep.subr.mxu0 0.0
        %4324 = vmatpush1.msra.mxu0 0.0
        %4325 = vmatprep.subr.mxu0 0.0
        %4326 = vmatpush1.msra.mxu0 0.0
        %4327 = vmatprep.subr.mxu0 0.0
        %4328 = vmatpush1.msra.mxu0 0.0
        %4329 = vmatprep.subr.mxu0 0.0
        %4330 = vmatpush1.msra.mxu0 0.0
        %4331 = vmatprep.subr.mxu0 0.0
        %4332 = vmatpush1.msra.mxu0 0.0
        %4333 = vmatprep.subr.mxu0 0.0
        %4334 = vmatpush1.msra.mxu0 0.0
        %4335 = vmatprep.subr.mxu0 0.0
        %4336 = vmatpush1.msra.mxu0 0.0
        %4337 = vmatprep.subr.mxu0 0.0
        %4338 = vmatpush1.msra.mxu0 0.0
        %4339 = vmatprep.subr.mxu0 0.0
        %4340 = vmatpush1.msra.mxu0 0.0
        %4341 = vmatprep.subr.mxu0 0.0
        %4342 = vmatpush1.msra.mxu0 0.0
        %4343 = vmatprep.subr.mxu0 0.0
        %4344 = vmatpush1.msra.mxu0 0.0
        %4345 = vmatprep.mubr.f32.mxu0 0.0
        %4346 = vmatmul.mubr.f32.gmra.mrb[0].mxu0 %v4003
        %v4347 = vpop.f32.mrb[0].mxu0
        %v4348 = vadd.f32 0.0, %v4347
        %v4349 = vpop.f32.mrb[0].mxu0
        %v4350 = vadd.f32 0.0, %v4349
        %4351 = vmatprep.mubr.f32.mxu0 0.0
        %4352 = vmatmul.mubr.f32.gmra.mrb[0].mxu0 %v4006
        %v4353 = vpop.f32.mrb[0].mxu0
        %v4354 = vadd.f32 0.0, %v4353
        %v4355 = vpop.f32.mrb[0].mxu0
        %v4356 = vadd.f32 0.0, %v4355
        %4357 = vmatprep.mubr.f32.mxu0 0.0
        %4358 = vmatmul.mubr.f32.gmra.mrb[0].mxu0 %v4009
        %v4359 = vpop.f32.mrb[0].mxu0
        %v4360 = vadd.f32 0.0, %v4359
        %v4361 = vpop.f32.mrb[0].mxu0
        %v4362 = vadd.f32 0.0, %v4361
        %4363 = vmatprep.mubr.f32.mxu0 0.0
        %4364 = vmatmul.mubr.f32.gmra.mrb[0].mxu0 %v4012
        %v4365 = vpop.f32.mrb[0].mxu0
        %v4366 = vadd.f32 0.0, %v4365
        %v4367 = vpop.f32.mrb[0].mxu0
        %v4368 = vadd.f32 0.0, %v4367
        %4369 = vdwg.mxu0
        %4370 = vmatprep.subr.mxu0 %v3707
        %4371 = vmatpush1.msra.mxu0 %v3706
        %4372 = vmatprep.subr.mxu0 %v3709
        %4373 = vmatpush1.msra.mxu0 %v3708
        %4374 = vmatprep.subr.mxu0 %v3711
        %4375 = vmatpush1.msra.mxu0 %v3710
        %4376 = vmatprep.subr.mxu0 %v3713
        %4377 = vmatpush1.msra.mxu0 %v3712
        %4378 = vmatprep.subr.mxu0 0.0
        %4379 = vmatpush1.msra.mxu0 0.0
        %4380 = vmatprep.subr.mxu0 0.0
        %4381 = vmatpush1.msra.mxu0 0.0
        %4382 = vmatprep.subr.mxu0 0.0
        %4383 = vmatpush1.msra.mxu0 0.0
        %4384 = vmatprep.subr.mxu0 0.0
        %4385 = vmatpush1.msra.mxu0 0.0
        %4386 = vmatprep.subr.mxu0 0.0
        %4387 = vmatpush1.msra.mxu0 0.0
        %4388 = vmatprep.subr.mxu0 0.0
        %4389 = vmatpush1.msra.mxu0 0.0
        %4390 = vmatprep.subr.mxu0 0.0
        %4391 = vmatpush1.msra.mxu0 0.0
        %4392 = vmatprep.subr.mxu0 0.0
        %4393 = vmatpush1.msra.mxu0 0.0
        %4394 = vmatprep.subr.mxu0 0.0
        %4395 = vmatpush1.msra.mxu0 0.0
        %4396 = vmatprep.subr.mxu0 0.0
        %4397 = vmatpush1.msra.mxu0 0.0
        %4398 = vmatprep.subr.mxu0 0.0
        %4399 = vmatpush1.msra.mxu0 0.0
        %4400 = vmatprep.subr.mxu0 0.0
        %4401 = vmatpush1.msra.mxu0 0.0
        %4402 = vmatprep.subr.mxu0 0.0
        %4403 = vmatpush1.msra.mxu0 0.0
        %4404 = vmatprep.subr.mxu0 0.0
        %4405 = vmatpush1.msra.mxu0 0.0
        %4406 = vmatprep.subr.mxu0 0.0
        %4407 = vmatpush1.msra.mxu0 0.0
        %4408 = vmatprep.subr.mxu0 0.0
        %4409 = vmatpush1.msra.mxu0 0.0
        %4410 = vmatprep.subr.mxu0 0.0
        %4411 = vmatpush1.msra.mxu0 0.0
        %4412 = vmatprep.subr.mxu0 0.0
        %4413 = vmatpush1.msra.mxu0 0.0
        %4414 = vmatprep.subr.mxu0 0.0
        %4415 = vmatpush1.msra.mxu0 0.0
        %4416 = vmatprep.subr.mxu0 0.0
        %4417 = vmatpush1.msra.mxu0 0.0
        %4418 = vmatprep.subr.mxu0 0.0
        %4419 = vmatpush1.msra.mxu0 0.0
        %4420 = vmatprep.subr.mxu0 0.0
        %4421 = vmatpush1.msra.mxu0 0.0
        %4422 = vmatprep.subr.mxu0 0.0
        %4423 = vmatpush1.msra.mxu0 0.0
        %4424 = vmatprep.subr.mxu0 0.0
        %4425 = vmatpush1.msra.mxu0 0.0
        %4426 = vmatprep.subr.mxu0 0.0
        %4427 = vmatpush1.msra.mxu0 0.0
        %4428 = vmatprep.subr.mxu0 0.0
        %4429 = vmatpush1.msra.mxu0 0.0
        %4430 = vmatprep.subr.mxu0 0.0
        %4431 = vmatpush1.msra.mxu0 0.0
        %4432 = vmatprep.subr.mxu0 0.0
        %4433 = vmatpush1.msra.mxu0 0.0
        %4434 = vmatprep.mubr.f32.mxu0 0.0
        %4435 = vmatmul.mubr.f32.gmra.mrb[0].mxu0 %v4003
        %v4436 = vpop.f32.mrb[0].mxu0
        %v4437 = vadd.f32 0.0, %v4436
        %v4438 = vpop.f32.mrb[0].mxu0
        %v4439 = vadd.f32 0.0, %v4438
        %4440 = vmatprep.mubr.f32.mxu0 0.0
        %4441 = vmatmul.mubr.f32.gmra.mrb[0].mxu0 %v4006
        %v4442 = vpop.f32.mrb[0].mxu0
        %v4443 = vadd.f32 0.0, %v4442
        %v4444 = vpop.f32.mrb[0].mxu0
        %v4445 = vadd.f32 0.0, %v4444
        %4446 = vmatprep.mubr.f32.mxu0 0.0
        %4447 = vmatmul.mubr.f32.gmra.mrb[0].mxu0 %v4009
        %v4448 = vpop.f32.mrb[0].mxu0
        %v4449 = vadd.f32 0.0, %v4448
        %v4450 = vpop.f32.mrb[0].mxu0
        %v4451 = vadd.f32 0.0, %v4450
        %4452 = vmatprep.mubr.f32.mxu0 0.0
        %4453 = vmatmul.mubr.f32.gmra.mrb[0].mxu0 %v4012
        %v4454 = vpop.f32.mrb[0].mxu0
        %v4455 = vadd.f32 0.0, %v4454
        %v4456 = vpop.f32.mrb[0].mxu0
        %v4457 = vadd.f32 0.0, %v4456
        %4458 = vdwg.mxu0
        %4459 = vmatprep.subr.mxu0 %v3731
        %4460 = vmatpush1.msra.mxu0 %v3730
        %4461 = vmatprep.subr.mxu0 %v3733
        %4462 = vmatpush1.msra.mxu0 %v3732
        %4463 = vmatprep.subr.mxu0 %v3735
        %4464 = vmatpush1.msra.mxu0 %v3734
        %4465 = vmatprep.subr.mxu0 %v3737
        %4466 = vmatpush1.msra.mxu0 %v3736
        %4467 = vmatprep.subr.mxu0 0.0
        %4468 = vmatpush1.msra.mxu0 0.0
        %4469 = vmatprep.subr.mxu0 0.0
        %4470 = vmatpush1.msra.mxu0 0.0
        %4471 = vmatprep.subr.mxu0 0.0
        %4472 = vmatpush1.msra.mxu0 0.0
        %4473 = vmatprep.subr.mxu0 0.0
        %4474 = vmatpush1.msra.mxu0 0.0
        %4475 = vmatprep.subr.mxu0 0.0
        %4476 = vmatpush1.msra.mxu0 0.0
        %4477 = vmatprep.subr.mxu0 0.0
        %4478 = vmatpush1.msra.mxu0 0.0
        %4479 = vmatprep.subr.mxu0 0.0
        %4480 = vmatpush1.msra.mxu0 0.0
        %4481 = vmatprep.subr.mxu0 0.0
        %4482 = vmatpush1.msra.mxu0 0.0
        %4483 = vmatprep.subr.mxu0 0.0
        %4484 = vmatpush1.msra.mxu0 0.0
        %4485 = vmatprep.subr.mxu0 0.0
        %4486 = vmatpush1.msra.mxu0 0.0
        %4487 = vmatprep.subr.mxu0 0.0
        %4488 = vmatpush1.msra.mxu0 0.0
        %4489 = vmatprep.subr.mxu0 0.0
        %4490 = vmatpush1.msra.mxu0 0.0
        %4491 = vmatprep.subr.mxu0 0.0
        %4492 = vmatpush1.msra.mxu0 0.0
        %4493 = vmatprep.subr.mxu0 0.0
        %4494 = vmatpush1.msra.mxu0 0.0
        %4495 = vmatprep.subr.mxu0 0.0
        %4496 = vmatpush1.msra.mxu0 0.0
        %4497 = vmatprep.subr.mxu0 0.0
        %4498 = vmatpush1.msra.mxu0 0.0
        %4499 = vmatprep.subr.mxu0 0.0
        %4500 = vmatpush1.msra.mxu0 0.0
        %4501 = vmatprep.subr.mxu0 0.0
        %4502 = vmatpush1.msra.mxu0 0.0
        %4503 = vmatprep.subr.mxu0 0.0
        %4504 = vmatpush1.msra.mxu0 0.0
        %4505 = vmatprep.subr.mxu0 0.0
        %4506 = vmatpush1.msra.mxu0 0.0
        %4507 = vmatprep.subr.mxu0 0.0
        %4508 = vmatpush1.msra.mxu0 0.0
        %4509 = vmatprep.subr.mxu0 0.0
        %4510 = vmatpush1.msra.mxu0 0.0
        %4511 = vmatprep.subr.mxu0 0.0
        %4512 = vmatpush1.msra.mxu0 0.0
        %4513 = vmatprep.subr.mxu0 0.0
        %4514 = vmatpush1.msra.mxu0 0.0
        %4515 = vmatprep.subr.mxu0 0.0
        %4516 = vmatpush1.msra.mxu0 0.0
        %4517 = vmatprep.subr.mxu0 0.0
        %4518 = vmatpush1.msra.mxu0 0.0
        %4519 = vmatprep.subr.mxu0 0.0
        %4520 = vmatpush1.msra.mxu0 0.0
        %4521 = vmatprep.subr.mxu0 0.0
        %4522 = vmatpush1.msra.mxu0 0.0
        %4523 = vmatprep.mubr.f32.mxu0 0.0
        %4524 = vmatmul.mubr.f32.gmra.mrb[0].mxu0 %v4003
        %v4525 = vpop.f32.mrb[0].mxu0
        %v4526 = vadd.f32 0.0, %v4525
        %v4527 = vpop.f32.mrb[0].mxu0
        %v4528 = vadd.f32 0.0, %v4527
        %4529 = vmatprep.mubr.f32.mxu0 0.0
        %4530 = vmatmul.mubr.f32.gmra.mrb[0].mxu0 %v4006
        %v4531 = vpop.f32.mrb[0].mxu0
        %v4532 = vadd.f32 0.0, %v4531
        %v4533 = vpop.f32.mrb[0].mxu0
        %v4534 = vadd.f32 0.0, %v4533
        %4535 = vmatprep.mubr.f32.mxu0 0.0
        %4536 = vmatmul.mubr.f32.gmra.mrb[0].mxu0 %v4009
        %v4537 = vpop.f32.mrb[0].mxu0
        %v4538 = vadd.f32 0.0, %v4537
        %v4539 = vpop.f32.mrb[0].mxu0
        %v4540 = vadd.f32 0.0, %v4539
        %4541 = vmatprep.mubr.f32.mxu0 0.0
        %4542 = vmatmul.mubr.f32.gmra.mrb[0].mxu0 %v4012
        %v4543 = vpop.f32.mrb[0].mxu0
        %v4544 = vadd.f32 0.0, %v4543
        %v4545 = vpop.f32.mrb[0].mxu0
        %v4546 = vadd.f32 0.0, %v4545
        %4547 = vdwg.mxu0
        %4548 = vmatprep.subr.mxu0 %v3755
        %4549 = vmatpush1.msra.mxu0 %v3754
        %4550 = vmatprep.subr.mxu0 %v3757
        %4551 = vmatpush1.msra.mxu0 %v3756
        %4552 = vmatprep.subr.mxu0 %v3759
        %4553 = vmatpush1.msra.mxu0 %v3758
        %4554 = vmatprep.subr.mxu0 %v3761
        %4555 = vmatpush1.msra.mxu0 %v3760
        %4556 = vmatprep.subr.mxu0 0.0
        %4557 = vmatpush1.msra.mxu0 0.0
        %4558 = vmatprep.subr.mxu0 0.0
        %4559 = vmatpush1.msra.mxu0 0.0
        %4560 = vmatprep.subr.mxu0 0.0
        %4561 = vmatpush1.msra.mxu0 0.0
        %4562 = vmatprep.subr.mxu0 0.0
        %4563 = vmatpush1.msra.mxu0 0.0
        %4564 = vmatprep.subr.mxu0 0.0
        %4565 = vmatpush1.msra.mxu0 0.0
        %4566 = vmatprep.subr.mxu0 0.0
        %4567 = vmatpush1.msra.mxu0 0.0
        %4568 = vmatprep.subr.mxu0 0.0
        %4569 = vmatpush1.msra.mxu0 0.0
        %4570 = vmatprep.subr.mxu0 0.0
        %4571 = vmatpush1.msra.mxu0 0.0
        %4572 = vmatprep.subr.mxu0 0.0
        %4573 = vmatpush1.msra.mxu0 0.0
        %4574 = vmatprep.subr.mxu0 0.0
        %4575 = vmatpush1.msra.mxu0 0.0
        %4576 = vmatprep.subr.mxu0 0.0
        %4577 = vmatpush1.msra.mxu0 0.0
        %4578 = vmatprep.subr.mxu0 0.0
        %4579 = vmatpush1.msra.mxu0 0.0
        %4580 = vmatprep.subr.mxu0 0.0
        %4581 = vmatpush1.msra.mxu0 0.0
        %4582 = vmatprep.subr.mxu0 0.0
        %4583 = vmatpush1.msra.mxu0 0.0
        %4584 = vmatprep.subr.mxu0 0.0
        %4585 = vmatpush1.msra.mxu0 0.0
        %4586 = vmatprep.subr.mxu0 0.0
        %4587 = vmatpush1.msra.mxu0 0.0
        %4588 = vmatprep.subr.mxu0 0.0
        %4589 = vmatpush1.msra.mxu0 0.0
        %4590 = vmatprep.subr.mxu0 0.0
        %4591 = vmatpush1.msra.mxu0 0.0
        %4592 = vmatprep.subr.mxu0 0.0
        %4593 = vmatpush1.msra.mxu0 0.0
        %4594 = vmatprep.subr.mxu0 0.0
        %4595 = vmatpush1.msra.mxu0 0.0
        %4596 = vmatprep.subr.mxu0 0.0
        %4597 = vmatpush1.msra.mxu0 0.0
        %4598 = vmatprep.subr.mxu0 0.0
        %4599 = vmatpush1.msra.mxu0 0.0
        %4600 = vmatprep.subr.mxu0 0.0
        %4601 = vmatpush1.msra.mxu0 0.0
        %4602 = vmatprep.subr.mxu0 0.0
        %4603 = vmatpush1.msra.mxu0 0.0
        %4604 = vmatprep.subr.mxu0 0.0
        %4605 = vmatpush1.msra.mxu0 0.0
        %4606 = vmatprep.subr.mxu0 0.0
        %4607 = vmatpush1.msra.mxu0 0.0
        %4608 = vmatprep.subr.mxu0 0.0
        %4609 = vmatpush1.msra.mxu0 0.0
        %4610 = vmatprep.subr.mxu0 0.0
        %4611 = vmatpush1.msra.mxu0 0.0
        %4612 = vmatprep.mubr.f32.mxu0 0.0
        %4613 = vmatmul.mubr.f32.gmra.mrb[0].mxu0 %v4003
        %v4614 = vpop.f32.mrb[0].mxu0
        %v4615 = vadd.f32 0.0, %v4614
        %v4616 = vpop.f32.mrb[0].mxu0
        %v4617 = vadd.f32 0.0, %v4616
        %4618 = vmatprep.mubr.f32.mxu0 0.0
        %4619 = vmatmul.mubr.f32.gmra.mrb[0].mxu0 %v4006
        %v4620 = vpop.f32.mrb[0].mxu0
        %v4621 = vadd.f32 0.0, %v4620
        %v4622 = vpop.f32.mrb[0].mxu0
        %v4623 = vadd.f32 0.0, %v4622
        %4624 = vmatprep.mubr.f32.mxu0 0.0
        %4625 = vmatmul.mubr.f32.gmra.mrb[0].mxu0 %v4009
        %v4626 = vpop.f32.mrb[0].mxu0
        %v4627 = vadd.f32 0.0, %v4626
        %v4628 = vpop.f32.mrb[0].mxu0
        %v4629 = vadd.f32 0.0, %v4628
        %4630 = vmatprep.mubr.f32.mxu0 0.0
        %4631 = vmatmul.mubr.f32.gmra.mrb[0].mxu0 %v4012
        %v4632 = vpop.f32.mrb[0].mxu0
        %v4633 = vadd.f32 0.0, %v4632
        %v4634 = vpop.f32.mrb[0].mxu0
        %v4635 = vadd.f32 0.0, %v4634
        %4636 = vdwg.mxu0
        %4637 = vmatprep.subr.mxu0 %v3779
        %4638 = vmatpush1.msra.mxu0 %v3778
        %4639 = vmatprep.subr.mxu0 %v3781
        %4640 = vmatpush1.msra.mxu0 %v3780
        %4641 = vmatprep.subr.mxu0 %v3783
        %4642 = vmatpush1.msra.mxu0 %v3782
        %4643 = vmatprep.subr.mxu0 %v3785
        %4644 = vmatpush1.msra.mxu0 %v3784
        %4645 = vmatprep.subr.mxu0 0.0
        %4646 = vmatpush1.msra.mxu0 0.0
        %4647 = vmatprep.subr.mxu0 0.0
        %4648 = vmatpush1.msra.mxu0 0.0
        %4649 = vmatprep.subr.mxu0 0.0
        %4650 = vmatpush1.msra.mxu0 0.0
        %4651 = vmatprep.subr.mxu0 0.0
        %4652 = vmatpush1.msra.mxu0 0.0
        %4653 = vmatprep.subr.mxu0 0.0
        %4654 = vmatpush1.msra.mxu0 0.0
        %4655 = vmatprep.subr.mxu0 0.0
        %4656 = vmatpush1.msra.mxu0 0.0
        %4657 = vmatprep.subr.mxu0 0.0
        %4658 = vmatpush1.msra.mxu0 0.0
        %4659 = vmatprep.subr.mxu0 0.0
        %4660 = vmatpush1.msra.mxu0 0.0
        %4661 = vmatprep.subr.mxu0 0.0
        %4662 = vmatpush1.msra.mxu0 0.0
        %4663 = vmatprep.subr.mxu0 0.0
        %4664 = vmatpush1.msra.mxu0 0.0
        %4665 = vmatprep.subr.mxu0 0.0
        %4666 = vmatpush1.msra.mxu0 0.0
        %4667 = vmatprep.subr.mxu0 0.0
        %4668 = vmatpush1.msra.mxu0 0.0
        %4669 = vmatprep.subr.mxu0 0.0
        %4670 = vmatpush1.msra.mxu0 0.0
        %4671 = vmatprep.subr.mxu0 0.0
        %4672 = vmatpush1.msra.mxu0 0.0
        %4673 = vmatprep.subr.mxu0 0.0
        %4674 = vmatpush1.msra.mxu0 0.0
        %4675 = vmatprep.subr.mxu0 0.0
        %4676 = vmatpush1.msra.mxu0 0.0
        %4677 = vmatprep.subr.mxu0 0.0
        %4678 = vmatpush1.msra.mxu0 0.0
        %4679 = vmatprep.subr.mxu0 0.0
        %4680 = vmatpush1.msra.mxu0 0.0
        %4681 = vmatprep.subr.mxu0 0.0
        %4682 = vmatpush1.msra.mxu0 0.0
        %4683 = vmatprep.subr.mxu0 0.0
        %4684 = vmatpush1.msra.mxu0 0.0
        %4685 = vmatprep.subr.mxu0 0.0
        %4686 = vmatpush1.msra.mxu0 0.0
        %4687 = vmatprep.subr.mxu0 0.0
        %4688 = vmatpush1.msra.mxu0 0.0
        %4689 = vmatprep.subr.mxu0 0.0
        %4690 = vmatpush1.msra.mxu0 0.0
        %4691 = vmatprep.subr.mxu0 0.0
        %4692 = vmatpush1.msra.mxu0 0.0
        %4693 = vmatprep.subr.mxu0 0.0
        %4694 = vmatpush1.msra.mxu0 0.0
        %4695 = vmatprep.subr.mxu0 0.0
        %4696 = vmatpush1.msra.mxu0 0.0
        %4697 = vmatprep.subr.mxu0 0.0
        %4698 = vmatpush1.msra.mxu0 0.0
        %4699 = vmatprep.subr.mxu0 0.0
        %4700 = vmatpush1.msra.mxu0 0.0
        %4701 = vmatprep.mubr.f32.mxu0 0.0
        %4702 = vmatmul.mubr.f32.gmra.mrb[0].mxu0 %v4003
        %v4703 = vpop.f32.mrb[0].mxu0
        %v4704 = vadd.f32 0.0, %v4703
        %v4705 = vpop.f32.mrb[0].mxu0
        %v4706 = vadd.f32 0.0, %v4705
        %4707 = vmatprep.mubr.f32.mxu0 0.0
        %4708 = vmatmul.mubr.f32.gmra.mrb[0].mxu0 %v4006
        %v4709 = vpop.f32.mrb[0].mxu0
        %v4710 = vadd.f32 0.0, %v4709
        %v4711 = vpop.f32.mrb[0].mxu0
        %v4712 = vadd.f32 0.0, %v4711
        %4713 = vmatprep.mubr.f32.mxu0 0.0
        %4714 = vmatmul.mubr.f32.gmra.mrb[0].mxu0 %v4009
        %v4715 = vpop.f32.mrb[0].mxu0
        %v4716 = vadd.f32 0.0, %v4715
        %v4717 = vpop.f32.mrb[0].mxu0
        %v4718 = vadd.f32 0.0, %v4717
        %4719 = vmatprep.mubr.f32.mxu0 0.0
        %4720 = vmatmul.mubr.f32.gmra.mrb[0].mxu0 %v4012
        %v4721 = vpop.f32.mrb[0].mxu0
        %v4722 = vadd.f32 0.0, %v4721
        %v4723 = vpop.f32.mrb[0].mxu0
        %v4724 = vadd.f32 0.0, %v4723
        %4725 = vdwg.mxu0
        %4726 = vmatprep.subr.mxu0 %v3803
        %4727 = vmatpush1.msra.mxu0 %v3802
        %4728 = vmatprep.subr.mxu0 %v3805
        %4729 = vmatpush1.msra.mxu0 %v3804
        %4730 = vmatprep.subr.mxu0 %v3807
        %4731 = vmatpush1.msra.mxu0 %v3806
        %4732 = vmatprep.subr.mxu0 %v3809
        %4733 = vmatpush1.msra.mxu0 %v3808
        %4734 = vmatprep.subr.mxu0 0.0
        %4735 = vmatpush1.msra.mxu0 0.0
        %4736 = vmatprep.subr.mxu0 0.0
        %4737 = vmatpush1.msra.mxu0 0.0
        %4738 = vmatprep.subr.mxu0 0.0
        %4739 = vmatpush1.msra.mxu0 0.0
        %4740 = vmatprep.subr.mxu0 0.0
        %4741 = vmatpush1.msra.mxu0 0.0
        %4742 = vmatprep.subr.mxu0 0.0
        %4743 = vmatpush1.msra.mxu0 0.0
        %4744 = vmatprep.subr.mxu0 0.0
        %4745 = vmatpush1.msra.mxu0 0.0
        %4746 = vmatprep.subr.mxu0 0.0
        %4747 = vmatpush1.msra.mxu0 0.0
        %4748 = vmatprep.subr.mxu0 0.0
        %4749 = vmatpush1.msra.mxu0 0.0
        %4750 = vmatprep.subr.mxu0 0.0
        %4751 = vmatpush1.msra.mxu0 0.0
        %4752 = vmatprep.subr.mxu0 0.0
        %4753 = vmatpush1.msra.mxu0 0.0
        %4754 = vmatprep.subr.mxu0 0.0
        %4755 = vmatpush1.msra.mxu0 0.0
        %4756 = vmatprep.subr.mxu0 0.0
        %4757 = vmatpush1.msra.mxu0 0.0
        %4758 = vmatprep.subr.mxu0 0.0
        %4759 = vmatpush1.msra.mxu0 0.0
        %4760 = vmatprep.subr.mxu0 0.0
        %4761 = vmatpush1.msra.mxu0 0.0
        %4762 = vmatprep.subr.mxu0 0.0
        %4763 = vmatpush1.msra.mxu0 0.0
        %4764 = vmatprep.subr.mxu0 0.0
        %4765 = vmatpush1.msra.mxu0 0.0
        %4766 = vmatprep.subr.mxu0 0.0
        %4767 = vmatpush1.msra.mxu0 0.0
        %4768 = vmatprep.subr.mxu0 0.0
        %4769 = vmatpush1.msra.mxu0 0.0
        %4770 = vmatprep.subr.mxu0 0.0
        %4771 = vmatpush1.msra.mxu0 0.0
        %4772 = vmatprep.subr.mxu0 0.0
        %4773 = vmatpush1.msra.mxu0 0.0
        %4774 = vmatprep.subr.mxu0 0.0
        %4775 = vmatpush1.msra.mxu0 0.0
        %4776 = vmatprep.subr.mxu0 0.0
        %4777 = vmatpush1.msra.mxu0 0.0
        %4778 = vmatprep.subr.mxu0 0.0
        %4779 = vmatpush1.msra.mxu0 0.0
        %4780 = vmatprep.subr.mxu0 0.0
        %4781 = vmatpush1.msra.mxu0 0.0
        %4782 = vmatprep.subr.mxu0 0.0
        %4783 = vmatpush1.msra.mxu0 0.0
        %4784 = vmatprep.subr.mxu0 0.0
        %4785 = vmatpush1.msra.mxu0 0.0
        %4786 = vmatprep.subr.mxu0 0.0
        %4787 = vmatpush1.msra.mxu0 0.0
        %4788 = vmatprep.subr.mxu0 0.0
        %4789 = vmatpush1.msra.mxu0 0.0
        %4790 = vmatprep.mubr.f32.mxu0 0.0
        %4791 = vmatmul.mubr.f32.gmra.mrb[0].mxu0 %v4003
        %v4792 = vpop.f32.mrb[0].mxu0
        %v4793 = vadd.f32 0.0, %v4792
        %v4794 = vpop.f32.mrb[0].mxu0
        %v4795 = vadd.f32 0.0, %v4794
        %4796 = vmatprep.mubr.f32.mxu0 0.0
        %4797 = vmatmul.mubr.f32.gmra.mrb[0].mxu0 %v4006
        %v4798 = vpop.f32.mrb[0].mxu0
        %v4799 = vadd.f32 0.0, %v4798
        %v4800 = vpop.f32.mrb[0].mxu0
        %v4801 = vadd.f32 0.0, %v4800
        %4802 = vmatprep.mubr.f32.mxu0 0.0
        %4803 = vmatmul.mubr.f32.gmra.mrb[0].mxu0 %v4009
        %v4804 = vpop.f32.mrb[0].mxu0
        %v4805 = vadd.f32 0.0, %v4804
        %v4806 = vpop.f32.mrb[0].mxu0
        %v4807 = vadd.f32 0.0, %v4806
        %4808 = vmatprep.mubr.f32.mxu0 0.0
        %4809 = vmatmul.mubr.f32.gmra.mrb[0].mxu0 %v4012
        %v4810 = vpop.f32.mrb[0].mxu0
        %v4811 = vadd.f32 0.0, %v4810
        %v4812 = vpop.f32.mrb[0].mxu0
        %v4813 = vadd.f32 0.0, %v4812
        %4814 = vdwg.mxu0
        %4815 = vmatprep.subr.mxu0 %v3843
        %4816 = vmatpush1.msra.mxu0 %v3842
        %4817 = vmatprep.subr.mxu0 %v3845
        %4818 = vmatpush1.msra.mxu0 %v3844
        %4819 = vmatprep.subr.mxu0 %v3847
        %4820 = vmatpush1.msra.mxu0 %v3846
        %4821 = vmatprep.subr.mxu0 %v3849
        %4822 = vmatpush1.msra.mxu0 %v3848
        %4823 = vmatprep.subr.mxu0 0.0
        %4824 = vmatpush1.msra.mxu0 0.0
        %4825 = vmatprep.subr.mxu0 0.0
        %4826 = vmatpush1.msra.mxu0 0.0
        %4827 = vmatprep.subr.mxu0 0.0
        %4828 = vmatpush1.msra.mxu0 0.0
        %4829 = vmatprep.subr.mxu0 0.0
        %4830 = vmatpush1.msra.mxu0 0.0
        %4831 = vmatprep.subr.mxu0 0.0
        %4832 = vmatpush1.msra.mxu0 0.0
        %4833 = vmatprep.subr.mxu0 0.0
        %4834 = vmatpush1.msra.mxu0 0.0
        %4835 = vmatprep.subr.mxu0 0.0
        %4836 = vmatpush1.msra.mxu0 0.0
        %4837 = vmatprep.subr.mxu0 0.0
        %4838 = vmatpush1.msra.mxu0 0.0
        %4839 = vmatprep.subr.mxu0 0.0
        %4840 = vmatpush1.msra.mxu0 0.0
        %4841 = vmatprep.subr.mxu0 0.0
        %4842 = vmatpush1.msra.mxu0 0.0
        %4843 = vmatprep.subr.mxu0 0.0
        %4844 = vmatpush1.msra.mxu0 0.0
        %4845 = vmatprep.subr.mxu0 0.0
        %4846 = vmatpush1.msra.mxu0 0.0
        %4847 = vmatprep.subr.mxu0 0.0
        %4848 = vmatpush1.msra.mxu0 0.0
        %4849 = vmatprep.subr.mxu0 0.0
        %4850 = vmatpush1.msra.mxu0 0.0
        %4851 = vmatprep.subr.mxu0 0.0
        %4852 = vmatpush1.msra.mxu0 0.0
        %4853 = vmatprep.subr.mxu0 0.0
        %4854 = vmatpush1.msra.mxu0 0.0
        %4855 = vmatprep.subr.mxu0 0.0
        %4856 = vmatpush1.msra.mxu0 0.0
        %4857 = vmatprep.subr.mxu0 0.0
        %4858 = vmatpush1.msra.mxu0 0.0
        %4859 = vmatprep.subr.mxu0 0.0
        %4860 = vmatpush1.msra.mxu0 0.0
        %4861 = vmatprep.subr.mxu0 0.0
        %4862 = vmatpush1.msra.mxu0 0.0
        %4863 = vmatprep.subr.mxu0 0.0
        %4864 = vmatpush1.msra.mxu0 0.0
        %4865 = vmatprep.subr.mxu0 0.0
        %4866 = vmatpush1.msra.mxu0 0.0
        %4867 = vmatprep.subr.mxu0 0.0
        %4868 = vmatpush1.msra.mxu0 0.0
        %4869 = vmatprep.subr.mxu0 0.0
        %4870 = vmatpush1.msra.mxu0 0.0
        %4871 = vmatprep.subr.mxu0 0.0
        %4872 = vmatpush1.msra.mxu0 0.0
        %4873 = vmatprep.subr.mxu0 0.0
        %4874 = vmatpush1.msra.mxu0 0.0
        %4875 = vmatprep.subr.mxu0 0.0
        %4876 = vmatpush1.msra.mxu0 0.0
        %4877 = vmatprep.subr.mxu0 0.0
        %4878 = vmatpush1.msra.mxu0 0.0
        %4879 = vmatprep.mubr.f32.mxu0 0.0
        %4880 = vmatmul.mubr.f32.gmra.mrb[0].mxu0 %v4003
        %v4881 = vpop.f32.mrb[0].mxu0
        %v4882 = vadd.f32 0.0, %v4881
        %v4883 = vpop.f32.mrb[0].mxu0
        %v4884 = vadd.f32 0.0, %v4883
        %4885 = vmatprep.mubr.f32.mxu0 0.0
        %4886 = vmatmul.mubr.f32.gmra.mrb[0].mxu0 %v4006
        %v4887 = vpop.f32.mrb[0].mxu0
        %v4888 = vadd.f32 0.0, %v4887
        %v4889 = vpop.f32.mrb[0].mxu0
        %v4890 = vadd.f32 0.0, %v4889
        %4891 = vmatprep.mubr.f32.mxu0 0.0
        %4892 = vmatmul.mubr.f32.gmra.mrb[0].mxu0 %v4009
        %v4893 = vpop.f32.mrb[0].mxu0
        %v4894 = vadd.f32 0.0, %v4893
        %v4895 = vpop.f32.mrb[0].mxu0
        %v4896 = vadd.f32 0.0, %v4895
        %4897 = vmatprep.mubr.f32.mxu0 0.0
        %4898 = vmatmul.mubr.f32.gmra.mrb[0].mxu0 %v4012
        %v4899 = vpop.f32.mrb[0].mxu0
        %v4900 = vadd.f32 0.0, %v4899
        %v4901 = vpop.f32.mrb[0].mxu0
        %v4902 = vadd.f32 0.0, %v4901
        %4903 = vdwg.mxu0
        %4904 = vmatprep.subr.mxu0 %v3883
        %4905 = vmatpush1.msra.mxu0 %v3882
        %4906 = vmatprep.subr.mxu0 %v3885
        %4907 = vmatpush1.msra.mxu0 %v3884
        %4908 = vmatprep.subr.mxu0 %v3887
        %4909 = vmatpush1.msra.mxu0 %v3886
        %4910 = vmatprep.subr.mxu0 %v3889
        %4911 = vmatpush1.msra.mxu0 %v3888
        %4912 = vmatprep.subr.mxu0 0.0
        %4913 = vmatpush1.msra.mxu0 0.0
        %4914 = vmatprep.subr.mxu0 0.0
        %4915 = vmatpush1.msra.mxu0 0.0
        %4916 = vmatprep.subr.mxu0 0.0
        %4917 = vmatpush1.msra.mxu0 0.0
        %4918 = vmatprep.subr.mxu0 0.0
        %4919 = vmatpush1.msra.mxu0 0.0
        %4920 = vmatprep.subr.mxu0 0.0
        %4921 = vmatpush1.msra.mxu0 0.0
        %4922 = vmatprep.subr.mxu0 0.0
        %4923 = vmatpush1.msra.mxu0 0.0
        %4924 = vmatprep.subr.mxu0 0.0
        %4925 = vmatpush1.msra.mxu0 0.0
        %4926 = vmatprep.subr.mxu0 0.0
        %4927 = vmatpush1.msra.mxu0 0.0
        %4928 = vmatprep.subr.mxu0 0.0
        %4929 = vmatpush1.msra.mxu0 0.0
        %4930 = vmatprep.subr.mxu0 0.0
        %4931 = vmatpush1.msra.mxu0 0.0
        %4932 = vmatprep.subr.mxu0 0.0
        %4933 = vmatpush1.msra.mxu0 0.0
        %4934 = vmatprep.subr.mxu0 0.0
        %4935 = vmatpush1.msra.mxu0 0.0
        %4936 = vmatprep.subr.mxu0 0.0
        %4937 = vmatpush1.msra.mxu0 0.0
        %4938 = vmatprep.subr.mxu0 0.0
        %4939 = vmatpush1.msra.mxu0 0.0
        %4940 = vmatprep.subr.mxu0 0.0
        %4941 = vmatpush1.msra.mxu0 0.0
        %4942 = vmatprep.subr.mxu0 0.0
        %4943 = vmatpush1.msra.mxu0 0.0
        %4944 = vmatprep.subr.mxu0 0.0
        %4945 = vmatpush1.msra.mxu0 0.0
        %4946 = vmatprep.subr.mxu0 0.0
        %4947 = vmatpush1.msra.mxu0 0.0
        %4948 = vmatprep.subr.mxu0 0.0
        %4949 = vmatpush1.msra.mxu0 0.0
        %4950 = vmatprep.subr.mxu0 0.0
        %4951 = vmatpush1.msra.mxu0 0.0
        %4952 = vmatprep.subr.mxu0 0.0
        %4953 = vmatpush1.msra.mxu0 0.0
        %4954 = vmatprep.subr.mxu0 0.0
        %4955 = vmatpush1.msra.mxu0 0.0
        %4956 = vmatprep.subr.mxu0 0.0
        %4957 = vmatpush1.msra.mxu0 0.0
        %4958 = vmatprep.subr.mxu0 0.0
        %4959 = vmatpush1.msra.mxu0 0.0
        %4960 = vmatprep.subr.mxu0 0.0
        %4961 = vmatpush1.msra.mxu0 0.0
        %4962 = vmatprep.subr.mxu0 0.0
        %4963 = vmatpush1.msra.mxu0 0.0
        %4964 = vmatprep.subr.mxu0 0.0
        %4965 = vmatpush1.msra.mxu0 0.0
        %4966 = vmatprep.subr.mxu0 0.0
        %4967 = vmatpush1.msra.mxu0 0.0
        %4968 = vmatprep.mubr.f32.mxu0 0.0
        %4969 = vmatmul.mubr.f32.gmra.mrb[0].mxu0 %v4003
        %v4970 = vpop.f32.mrb[0].mxu0
        %v4971 = vadd.f32 0.0, %v4970
        %v4972 = vpop.f32.mrb[0].mxu0
        %v4973 = vadd.f32 0.0, %v4972
        %4974 = vmatprep.mubr.f32.mxu0 0.0
        %4975 = vmatmul.mubr.f32.gmra.mrb[0].mxu0 %v4006
        %v4976 = vpop.f32.mrb[0].mxu0
        %v4977 = vadd.f32 0.0, %v4976
        %v4978 = vpop.f32.mrb[0].mxu0
        %v4979 = vadd.f32 0.0, %v4978
        %4980 = vmatprep.mubr.f32.mxu0 0.0
        %4981 = vmatmul.mubr.f32.gmra.mrb[0].mxu0 %v4009
        %v4982 = vpop.f32.mrb[0].mxu0
        %v4983 = vadd.f32 0.0, %v4982
        %v4984 = vpop.f32.mrb[0].mxu0
        %v4985 = vadd.f32 0.0, %v4984
        %4986 = vmatprep.mubr.f32.mxu0 0.0
        %4987 = vmatmul.mubr.f32.gmra.mrb[0].mxu0 %v4012
        %v4988 = vpop.f32.mrb[0].mxu0
        %v4989 = vadd.f32 0.0, %v4988
        %v4990 = vpop.f32.mrb[0].mxu0
        %v4991 = vadd.f32 0.0, %v4990
        %4992 = vdwg.mxu0
        %4993 = vmatprep.subr.mxu0 %v3939
        %4994 = vmatpush1.msra.mxu0 %v3938
        %4995 = vmatprep.subr.mxu0 %v3941
        %4996 = vmatpush1.msra.mxu0 %v3940
        %4997 = vmatprep.subr.mxu0 %v3943
        %4998 = vmatpush1.msra.mxu0 %v3942
        %4999 = vmatprep.subr.mxu0 %v3945
        %5000 = vmatpush1.msra.mxu0 %v3944
        %5001 = vmatprep.subr.mxu0 0.0
        %5002 = vmatpush1.msra.mxu0 0.0
        %5003 = vmatprep.subr.mxu0 0.0
        %5004 = vmatpush1.msra.mxu0 0.0
        %5005 = vmatprep.subr.mxu0 0.0
        %5006 = vmatpush1.msra.mxu0 0.0
        %5007 = vmatprep.subr.mxu0 0.0
        %5008 = vmatpush1.msra.mxu0 0.0
        %5009 = vmatprep.subr.mxu0 0.0
        %5010 = vmatpush1.msra.mxu0 0.0
        %5011 = vmatprep.subr.mxu0 0.0
        %5012 = vmatpush1.msra.mxu0 0.0
        %5013 = vmatprep.subr.mxu0 0.0
        %5014 = vmatpush1.msra.mxu0 0.0
        %5015 = vmatprep.subr.mxu0 0.0
        %5016 = vmatpush1.msra.mxu0 0.0
        %5017 = vmatprep.subr.mxu0 0.0
        %5018 = vmatpush1.msra.mxu0 0.0
        %5019 = vmatprep.subr.mxu0 0.0
        %5020 = vmatpush1.msra.mxu0 0.0
        %5021 = vmatprep.subr.mxu0 0.0
        %5022 = vmatpush1.msra.mxu0 0.0
        %5023 = vmatprep.subr.mxu0 0.0
        %5024 = vmatpush1.msra.mxu0 0.0
        %5025 = vmatprep.subr.mxu0 0.0
        %5026 = vmatpush1.msra.mxu0 0.0
        %5027 = vmatprep.subr.mxu0 0.0
        %5028 = vmatpush1.msra.mxu0 0.0
        %5029 = vmatprep.subr.mxu0 0.0
        %5030 = vmatpush1.msra.mxu0 0.0
        %5031 = vmatprep.subr.mxu0 0.0
        %5032 = vmatpush1.msra.mxu0 0.0
        %5033 = vmatprep.subr.mxu0 0.0
        %5034 = vmatpush1.msra.mxu0 0.0
        %5035 = vmatprep.subr.mxu0 0.0
        %5036 = vmatpush1.msra.mxu0 0.0
        %5037 = vmatprep.subr.mxu0 0.0
        %5038 = vmatpush1.msra.mxu0 0.0
        %5039 = vmatprep.subr.mxu0 0.0
        %5040 = vmatpush1.msra.mxu0 0.0
        %5041 = vmatprep.subr.mxu0 0.0
        %5042 = vmatpush1.msra.mxu0 0.0
        %5043 = vmatprep.subr.mxu0 0.0
        %5044 = vmatpush1.msra.mxu0 0.0
        %5045 = vmatprep.subr.mxu0 0.0
        %5046 = vmatpush1.msra.mxu0 0.0
        %5047 = vmatprep.subr.mxu0 0.0
        %5048 = vmatpush1.msra.mxu0 0.0
        %5049 = vmatprep.subr.mxu0 0.0
        %5050 = vmatpush1.msra.mxu0 0.0
        %5051 = vmatprep.subr.mxu0 0.0
        %5052 = vmatpush1.msra.mxu0 0.0
        %5053 = vmatprep.subr.mxu0 0.0
        %5054 = vmatpush1.msra.mxu0 0.0
        %5055 = vmatprep.subr.mxu0 0.0
        %5056 = vmatpush1.msra.mxu0 0.0
        %5057 = vmatprep.mubr.f32.mxu0 0.0
        %5058 = vmatmul.mubr.f32.gmra.mrb[0].mxu0 %v4003
        %v5059 = vpop.f32.mrb[0].mxu0
        %v5060 = vadd.f32 0.0, %v5059
        %v5061 = vpop.f32.mrb[0].mxu0
        %v5062 = vadd.f32 0.0, %v5061
        %5063 = vmatprep.mubr.f32.mxu0 0.0
        %5064 = vmatmul.mubr.f32.gmra.mrb[0].mxu0 %v4006
        %v5065 = vpop.f32.mrb[0].mxu0
        %v5066 = vadd.f32 0.0, %v5065
        %v5067 = vpop.f32.mrb[0].mxu0
        %v5068 = vadd.f32 0.0, %v5067
        %5069 = vmatprep.mubr.f32.mxu0 0.0
        %5070 = vmatmul.mubr.f32.gmra.mrb[0].mxu0 %v4009
        %v5071 = vpop.f32.mrb[0].mxu0
        %v5072 = vadd.f32 0.0, %v5071
        %v5073 = vpop.f32.mrb[0].mxu0
        %v5074 = vadd.f32 0.0, %v5073
        %5075 = vmatprep.mubr.f32.mxu0 0.0
        %5076 = vmatmul.mubr.f32.gmra.mrb[0].mxu0 %v4012
        %v5077 = vpop.f32.mrb[0].mxu0
        %v5078 = vadd.f32 0.0, %v5077
        %v5079 = vpop.f32.mrb[0].mxu0
        %v5080 = vadd.f32 0.0, %v5079
        %5081 = vdwg.mxu0
        %5082 = vmatprep.subr.mxu0 %v3995
        %5083 = vmatpush1.msra.mxu0 %v3994
        %5084 = vmatprep.subr.mxu0 %v3997
        %5085 = vmatpush1.msra.mxu0 %v3996
        %5086 = vmatprep.subr.mxu0 %v3999
        %5087 = vmatpush1.msra.mxu0 %v3998
        %5088 = vmatprep.subr.mxu0 %v4001
        %5089 = vmatpush1.msra.mxu0 %v4000
        %5090 = vmatprep.subr.mxu0 0.0
        %5091 = vmatpush1.msra.mxu0 0.0
        %5092 = vmatprep.subr.mxu0 0.0
        %5093 = vmatpush1.msra.mxu0 0.0
        %5094 = vmatprep.subr.mxu0 0.0
        %5095 = vmatpush1.msra.mxu0 0.0
        %5096 = vmatprep.subr.mxu0 0.0
        %5097 = vmatpush1.msra.mxu0 0.0
        %5098 = vmatprep.subr.mxu0 0.0
        %5099 = vmatpush1.msra.mxu0 0.0
        %5100 = vmatprep.subr.mxu0 0.0
        %5101 = vmatpush1.msra.mxu0 0.0
        %5102 = vmatprep.subr.mxu0 0.0
        %5103 = vmatpush1.msra.mxu0 0.0
        %5104 = vmatprep.subr.mxu0 0.0
        %5105 = vmatpush1.msra.mxu0 0.0
        %5106 = vmatprep.subr.mxu0 0.0
        %5107 = vmatpush1.msra.mxu0 0.0
        %5108 = vmatprep.subr.mxu0 0.0
        %5109 = vmatpush1.msra.mxu0 0.0
        %5110 = vmatprep.subr.mxu0 0.0
        %5111 = vmatpush1.msra.mxu0 0.0
        %5112 = vmatprep.subr.mxu0 0.0
        %5113 = vmatpush1.msra.mxu0 0.0
        %5114 = vmatprep.subr.mxu0 0.0
        %5115 = vmatpush1.msra.mxu0 0.0
        %5116 = vmatprep.subr.mxu0 0.0
        %5117 = vmatpush1.msra.mxu0 0.0
        %5118 = vmatprep.subr.mxu0 0.0
        %5119 = vmatpush1.msra.mxu0 0.0
        %5120 = vmatprep.subr.mxu0 0.0
        %5121 = vmatpush1.msra.mxu0 0.0
        %5122 = vmatprep.subr.mxu0 0.0
        %5123 = vmatpush1.msra.mxu0 0.0
        %5124 = vmatprep.subr.mxu0 0.0
        %5125 = vmatpush1.msra.mxu0 0.0
        %5126 = vmatprep.subr.mxu0 0.0
        %5127 = vmatpush1.msra.mxu0 0.0
        %5128 = vmatprep.subr.mxu0 0.0
        %5129 = vmatpush1.msra.mxu0 0.0
        %5130 = vmatprep.subr.mxu0 0.0
        %5131 = vmatpush1.msra.mxu0 0.0
        %5132 = vmatprep.subr.mxu0 0.0
        %5133 = vmatpush1.msra.mxu0 0.0
        %5134 = vmatprep.subr.mxu0 0.0
        %5135 = vmatpush1.msra.mxu0 0.0
        %5136 = vmatprep.subr.mxu0 0.0
        %5137 = vmatpush1.msra.mxu0 0.0
        %5138 = vmatprep.subr.mxu0 0.0
        %5139 = vmatpush1.msra.mxu0 0.0
        %5140 = vmatprep.subr.mxu0 0.0
        %5141 = vmatpush1.msra.mxu0 0.0
        %5142 = vmatprep.subr.mxu0 0.0
        %5143 = vmatpush1.msra.mxu0 0.0
        %5144 = vmatprep.subr.mxu0 0.0
        %5145 = vmatpush1.msra.mxu0 0.0
        %5146 = vmatprep.mubr.f32.mxu0 0.0
        %5147 = vmatmul.mubr.f32.gmra.mrb[0].mxu0 %v4003
        %v5148 = vpop.f32.mrb[0].mxu0
        %v5149 = vadd.f32 0.0, %v5148
        %v5150 = vpop.f32.mrb[0].mxu0
        %v5151 = vadd.f32 0.0, %v5150
        %5152 = vmatprep.mubr.f32.mxu0 0.0
        %5153 = vmatmul.mubr.f32.gmra.mrb[0].mxu0 %v4006
        %v5154 = vpop.f32.mrb[0].mxu0
        %v5155 = vadd.f32 0.0, %v5154
        %v5156 = vpop.f32.mrb[0].mxu0
        %v5157 = vadd.f32 0.0, %v5156
        %5158 = vmatprep.mubr.f32.mxu0 0.0
        %5159 = vmatmul.mubr.f32.gmra.mrb[0].mxu0 %v4009
        %v5160 = vpop.f32.mrb[0].mxu0
        %v5161 = vadd.f32 0.0, %v5160
        %v5162 = vpop.f32.mrb[0].mxu0
        %v5163 = vadd.f32 0.0, %v5162
        %5164 = vmatprep.mubr.f32.mxu0 0.0
        %5165 = vmatmul.mubr.f32.gmra.mrb[0].mxu0 %v4012
        %v5166 = vpop.f32.mrb[0].mxu0
        %v5167 = vadd.f32 0.0, %v5166
        %v5168 = vpop.f32.mrb[0].mxu0
        %v5169 = vadd.f32 0.0, %v5168
        %5170 = vdwg.mxu0
        %5171 = vset.pattern.permute.xlu0 3
        %5172 = vperm.xlu0 %5171, %v283
        %v5173 = vpop.permute.xlu0 %5172
        %5175 = vset.pattern.permute.xlu0 3
        %5176 = vperm.xlu0 %5175, %v284
        %v5177 = vpop.permute.xlu0 %5176
        %5179 = vset.pattern.permute.xlu0 3
        %5180 = vperm.xlu0 %5179, %v285
        %v5181 = vpop.permute.xlu0 %5180
        %5183 = vset.pattern.permute.xlu0 3
        %5184 = vperm.xlu0 %5183, %v286
        %v5185 = vpop.permute.xlu0 %5184
        %v5187 = vadd.f32 %v4081, %v5173
        %v5188 = vadd.f32 %v4083, %v5173
        %v5189 = vadd.f32 %v4087, %v5177
        %v5190 = vadd.f32 %v4089, %v5177
        %v5191 = vadd.f32 %v4093, %v5181
        %v5192 = vadd.f32 %v4095, %v5181
        %v5193 = vadd.f32 %v4099, %v5185
        %v5194 = vadd.f32 %v4101, %v5185
        %v5195 = vtanh.pop %v5187
        %v5196 = vtanh.pop %v5188
        %v5197 = vtanh.pop %v5189
        %v5198 = vtanh.pop %v5190
        %v5199 = vtanh.pop %v5191
        %v5200 = vtanh.pop %v5192
        %v5201 = vtanh.pop %v5193
        %v5202 = vtanh.pop %v5194
        %v5203 = vmul.f32 %v5195, %v5195
        %v5204 = vmul.f32 %v5196, %v5196
        %v5205 = vmul.f32 %v5197, %v5197
        %v5206 = vmul.f32 %v5198, %v5198
        %v5207 = vmul.f32 %v5199, %v5199
        %v5208 = vmul.f32 %v5200, %v5200
        %v5209 = vmul.f32 %v5201, %v5201
        %v5210 = vmul.f32 %v5202, %v5202
        %v5211 = vsub.f32 1.0, %v5203
        %v5212 = vsub.f32 1.0, %v5204
        %v5213 = vsub.f32 1.0, %v5205
        %v5214 = vsub.f32 1.0, %v5206
        %v5215 = vsub.f32 1.0, %v5207
        %v5216 = vsub.f32 1.0, %v5208
        %v5217 = vsub.f32 1.0, %v5209
        %v5218 = vsub.f32 1.0, %v5210
        %v5219 = vmul.f32 %v5195, -2.0
        %v5220 = vmul.f32 %v5196, -2.0
        %v5221 = vmul.f32 %v5197, -2.0
        %v5222 = vmul.f32 %v5198, -2.0
        %v5223 = vmul.f32 %v5199, -2.0
        %v5224 = vmul.f32 %v5200, -2.0
        %v5225 = vmul.f32 %v5201, -2.0
        %v5226 = vmul.f32 %v5202, -2.0
        %v5227 = vmul.f32 %v5219, %v5211
        %v5228 = vmul.f32 %v5220, %v5212
        %v5229 = vmul.f32 %v5221, %v5213
        %v5230 = vmul.f32 %v5222, %v5214
        %v5231 = vmul.f32 %v5223, %v5215
        %v5232 = vmul.f32 %v5224, %v5216
        %v5233 = vmul.f32 %v5225, %v5217
        %v5234 = vmul.f32 %v5226, %v5218
        %v5235 = vmul.f32 %v5211, %v5211
        %v5236 = vmul.f32 %v5212, %v5212
        %v5237 = vmul.f32 %v5213, %v5213
        %v5238 = vmul.f32 %v5214, %v5214
        %v5239 = vmul.f32 %v5215, %v5215
        %v5240 = vmul.f32 %v5216, %v5216
        %v5241 = vmul.f32 %v5217, %v5217
        %v5242 = vmul.f32 %v5218, %v5218
        %v5243 = vmul.f32 %v5195, %v5227
        %v5244 = vmul.f32 %v5196, %v5228
        %v5245 = vmul.f32 %v5197, %v5229
        %v5246 = vmul.f32 %v5198, %v5230
        %v5247 = vmul.f32 %v5199, %v5231
        %v5248 = vmul.f32 %v5200, %v5232
        %v5249 = vmul.f32 %v5201, %v5233
        %v5250 = vmul.f32 %v5202, %v5234
        %v5251 = vadd.f32 %v5235, %v5243
        %v5252 = vadd.f32 %v5236, %v5244
        %v5253 = vadd.f32 %v5237, %v5245
        %v5254 = vadd.f32 %v5238, %v5246
        %v5255 = vadd.f32 %v5239, %v5247
        %v5256 = vadd.f32 %v5240, %v5248
        %v5257 = vadd.f32 %v5241, %v5249
        %v5258 = vadd.f32 %v5242, %v5250
        %v5259 = vmul.f32 %v5251, -2.0
        %v5260 = vmul.f32 %v5252, -2.0
        %v5261 = vmul.f32 %v5253, -2.0
        %v5262 = vmul.f32 %v5254, -2.0
        %v5263 = vmul.f32 %v5255, -2.0
        %v5264 = vmul.f32 %v5256, -2.0
        %v5265 = vmul.f32 %v5257, -2.0
        %v5266 = vmul.f32 %v5258, -2.0
        %v5267 = vmul.f32 %v5227, %v4170
        %v5268 = vmul.f32 %v5228, %v4172
        %v5269 = vmul.f32 %v5229, %v4176
        %v5270 = vmul.f32 %v5230, %v4178
        %v5271 = vmul.f32 %v5231, %v4182
        %v5272 = vmul.f32 %v5232, %v4184
        %v5273 = vmul.f32 %v5233, %v4188
        %v5274 = vmul.f32 %v5234, %v4190
        %v5275 = vmul.f32 %v5227, %v4259
        %v5276 = vmul.f32 %v5228, %v4261
        %v5277 = vmul.f32 %v5229, %v4265
        %v5278 = vmul.f32 %v5230, %v4267
        %v5279 = vmul.f32 %v5231, %v4271
        %v5280 = vmul.f32 %v5232, %v4273
        %v5281 = vmul.f32 %v5233, %v4277
        %v5282 = vmul.f32 %v5234, %v4279
        %v5283 = vmul.f32 %v5227, %v4437
        %v5284 = vmul.f32 %v5228, %v4439
        %v5285 = vmul.f32 %v5229, %v4443
        %v5286 = vmul.f32 %v5230, %v4445
        %v5287 = vmul.f32 %v5231, %v4449
        %v5288 = vmul.f32 %v5232, %v4451
        %v5289 = vmul.f32 %v5233, %v4455
        %v5290 = vmul.f32 %v5234, %v4457
        %v5291 = vmul.f32 %v5227, %v4526
        %v5292 = vmul.f32 %v5228, %v4528
        %v5293 = vmul.f32 %v5229, %v4532
        %v5294 = vmul.f32 %v5230, %v4534
        %v5295 = vmul.f32 %v5231, %v4538
        %v5296 = vmul.f32 %v5232, %v4540
        %v5297 = vmul.f32 %v5233, %v4544
        %v5298 = vmul.f32 %v5234, %v4546
        %v5299 = vmul.f32 %v4170, %v4170
        %v5300 = vmul.f32 %v4172, %v4172
        %v5301 = vmul.f32 %v4176, %v4176
        %v5302 = vmul.f32 %v4178, %v4178
        %v5303 = vmul.f32 %v4182, %v4182
        %v5304 = vmul.f32 %v4184, %v4184
        %v5305 = vmul.f32 %v4188, %v4188
        %v5306 = vmul.f32 %v4190, %v4190
        %v5307 = vmul.f32 %v5259, %v5299
        %v5308 = vmul.f32 %v5260, %v5300
        %v5309 = vmul.f32 %v5261, %v5301
        %v5310 = vmul.f32 %v5262, %v5302
        %v5311 = vmul.f32 %v5263, %v5303
        %v5312 = vmul.f32 %v5264, %v5304
        %v5313 = vmul.f32 %v5265, %v5305
        %v5314 = vmul.f32 %v5266, %v5306
        %v5315 = vmul.f32 %v4259, %v4259
        %v5316 = vmul.f32 %v4261, %v4261
        %v5317 = vmul.f32 %v4265, %v4265
        %v5318 = vmul.f32 %v4267, %v4267
        %v5319 = vmul.f32 %v4271, %v4271
        %v5320 = vmul.f32 %v4273, %v4273
        %v5321 = vmul.f32 %v4277, %v4277
        %v5322 = vmul.f32 %v4279, %v4279
        %v5323 = vmul.f32 %v5259, %v5315
        %v5324 = vmul.f32 %v5260, %v5316
        %v5325 = vmul.f32 %v5261, %v5317
        %v5326 = vmul.f32 %v5262, %v5318
        %v5327 = vmul.f32 %v5263, %v5319
        %v5328 = vmul.f32 %v5264, %v5320
        %v5329 = vmul.f32 %v5265, %v5321
        %v5330 = vmul.f32 %v5266, %v5322
        %v5331 = vmul.f32 %v5211, %v4170
        %v5332 = vmul.f32 %v5212, %v4172
        %v5333 = vmul.f32 %v5213, %v4176
        %v5334 = vmul.f32 %v5214, %v4178
        %v5335 = vmul.f32 %v5215, %v4182
        %v5336 = vmul.f32 %v5216, %v4184
        %v5337 = vmul.f32 %v5217, %v4188
        %v5338 = vmul.f32 %v5218, %v4190
        %v5339 = vmul.f32 %v5211, %v4259
        %v5340 = vmul.f32 %v5212, %v4261
        %v5341 = vmul.f32 %v5213, %v4265
        %v5342 = vmul.f32 %v5214, %v4267
        %v5343 = vmul.f32 %v5215, %v4271
        %v5344 = vmul.f32 %v5216, %v4273
        %v5345 = vmul.f32 %v5217, %v4277
        %v5346 = vmul.f32 %v5218, %v4279
        %v5347 = vmul.f32 %v5267, %v4170
        %v5348 = vmul.f32 %v5268, %v4172
        %v5349 = vmul.f32 %v5269, %v4176
        %v5350 = vmul.f32 %v5270, %v4178
        %v5351 = vmul.f32 %v5271, %v4182
        %v5352 = vmul.f32 %v5272, %v4184
        %v5353 = vmul.f32 %v5273, %v4188
        %v5354 = vmul.f32 %v5274, %v4190
        %v5355 = vmul.f32 %v5211, %v4437
        %v5356 = vmul.f32 %v5212, %v4439
        %v5357 = vmul.f32 %v5213, %v4443
        %v5358 = vmul.f32 %v5214, %v4445
        %v5359 = vmul.f32 %v5215, %v4449
        %v5360 = vmul.f32 %v5216, %v4451
        %v5361 = vmul.f32 %v5217, %v4455
        %v5362 = vmul.f32 %v5218, %v4457
        %v5363 = vadd.f32 %v5347, %v5355
        %v5364 = vadd.f32 %v5348, %v5356
        %v5365 = vadd.f32 %v5349, %v5357
        %v5366 = vadd.f32 %v5350, %v5358
        %v5367 = vadd.f32 %v5351, %v5359
        %v5368 = vadd.f32 %v5352, %v5360
        %v5369 = vadd.f32 %v5353, %v5361
        %v5370 = vadd.f32 %v5354, %v5362
        %v5371 = vmul.f32 %v5275, %v4259
        %v5372 = vmul.f32 %v5276, %v4261
        %v5373 = vmul.f32 %v5277, %v4265
        %v5374 = vmul.f32 %v5278, %v4267
        %v5375 = vmul.f32 %v5279, %v4271
        %v5376 = vmul.f32 %v5280, %v4273
        %v5377 = vmul.f32 %v5281, %v4277
        %v5378 = vmul.f32 %v5282, %v4279
        %v5379 = vmul.f32 %v5211, %v4526
        %v5380 = vmul.f32 %v5212, %v4528
        %v5381 = vmul.f32 %v5213, %v4532
        %v5382 = vmul.f32 %v5214, %v4534
        %v5383 = vmul.f32 %v5215, %v4538
        %v5384 = vmul.f32 %v5216, %v4540
        %v5385 = vmul.f32 %v5217, %v4544
        %v5386 = vmul.f32 %v5218, %v4546
        %v5387 = vadd.f32 %v5371, %v5379
        %v5388 = vadd.f32 %v5372, %v5380
        %v5389 = vadd.f32 %v5373, %v5381
        %v5390 = vadd.f32 %v5374, %v5382
        %v5391 = vadd.f32 %v5375, %v5383
        %v5392 = vadd.f32 %v5376, %v5384
        %v5393 = vadd.f32 %v5377, %v5385
        %v5394 = vadd.f32 %v5378, %v5386
        %v5395 = vmul.f32 %v5267, %v4259
        %v5396 = vmul.f32 %v5268, %v4261
        %v5397 = vmul.f32 %v5269, %v4265
        %v5398 = vmul.f32 %v5270, %v4267
        %v5399 = vmul.f32 %v5271, %v4271
        %v5400 = vmul.f32 %v5272, %v4273
        %v5401 = vmul.f32 %v5273, %v4277
        %v5402 = vmul.f32 %v5274, %v4279
        %v5403 = vmul.f32 %v5211, %v4615
        %v5404 = vmul.f32 %v5212, %v4617
        %v5405 = vmul.f32 %v5213, %v4621
        %v5406 = vmul.f32 %v5214, %v4623
        %v5407 = vmul.f32 %v5215, %v4627
        %v5408 = vmul.f32 %v5216, %v4629
        %v5409 = vmul.f32 %v5217, %v4633
        %v5410 = vmul.f32 %v5218, %v4635
        %v5411 = vadd.f32 %v5395, %v5403
        %v5412 = vadd.f32 %v5396, %v5404
        %v5413 = vadd.f32 %v5397, %v5405
        %v5414 = vadd.f32 %v5398, %v5406
        %v5415 = vadd.f32 %v5399, %v5407
        %v5416 = vadd.f32 %v5400, %v5408
        %v5417 = vadd.f32 %v5401, %v5409
        %v5418 = vadd.f32 %v5402, %v5410
        %v5419 = vmul.f32 %v5267, %v4348
        %v5420 = vmul.f32 %v5268, %v4350
        %v5421 = vmul.f32 %v5269, %v4354
        %v5422 = vmul.f32 %v5270, %v4356
        %v5423 = vmul.f32 %v5271, %v4360
        %v5424 = vmul.f32 %v5272, %v4362
        %v5425 = vmul.f32 %v5273, %v4366
        %v5426 = vmul.f32 %v5274, %v4368
        %v5427 = vmul.f32 %v5211, %v4704
        %v5428 = vmul.f32 %v5212, %v4706
        %v5429 = vmul.f32 %v5213, %v4710
        %v5430 = vmul.f32 %v5214, %v4712
        %v5431 = vmul.f32 %v5215, %v4716
        %v5432 = vmul.f32 %v5216, %v4718
        %v5433 = vmul.f32 %v5217, %v4722
        %v5434 = vmul.f32 %v5218, %v4724
        %v5435 = vadd.f32 %v5419, %v5427
        %v5436 = vadd.f32 %v5420, %v5428
        %v5437 = vadd.f32 %v5421, %v5429
        %v5438 = vadd.f32 %v5422, %v5430
        %v5439 = vadd.f32 %v5423, %v5431
        %v5440 = vadd.f32 %v5424, %v5432
        %v5441 = vadd.f32 %v5425, %v5433
        %v5442 = vadd.f32 %v5426, %v5434
        %v5443 = vmul.f32 %v5275, %v4348
        %v5444 = vmul.f32 %v5276, %v4350
        %v5445 = vmul.f32 %v5277, %v4354
        %v5446 = vmul.f32 %v5278, %v4356
        %v5447 = vmul.f32 %v5279, %v4360
        %v5448 = vmul.f32 %v5280, %v4362
        %v5449 = vmul.f32 %v5281, %v4366
        %v5450 = vmul.f32 %v5282, %v4368
        %v5451 = vmul.f32 %v5211, %v4793
        %v5452 = vmul.f32 %v5212, %v4795
        %v5453 = vmul.f32 %v5213, %v4799
        %v5454 = vmul.f32 %v5214, %v4801
        %v5455 = vmul.f32 %v5215, %v4805
        %v5456 = vmul.f32 %v5216, %v4807
        %v5457 = vmul.f32 %v5217, %v4811
        %v5458 = vmul.f32 %v5218, %v4813
        %v5459 = vadd.f32 %v5443, %v5451
        %v5460 = vadd.f32 %v5444, %v5452
        %v5461 = vadd.f32 %v5445, %v5453
        %v5462 = vadd.f32 %v5446, %v5454
        %v5463 = vadd.f32 %v5447, %v5455
        %v5464 = vadd.f32 %v5448, %v5456
        %v5465 = vadd.f32 %v5449, %v5457
        %v5466 = vadd.f32 %v5450, %v5458
        %v5467 = vmul.f32 %v5283, 3.0
        %v5468 = vmul.f32 %v5284, 3.0
        %v5469 = vmul.f32 %v5285, 3.0
        %v5470 = vmul.f32 %v5286, 3.0
        %v5471 = vmul.f32 %v5287, 3.0
        %v5472 = vmul.f32 %v5288, 3.0
        %v5473 = vmul.f32 %v5289, 3.0
        %v5474 = vmul.f32 %v5290, 3.0
        %v5475 = vadd.f32 %v5307, %v5467
        %v5476 = vadd.f32 %v5308, %v5468
        %v5477 = vadd.f32 %v5309, %v5469
        %v5478 = vadd.f32 %v5310, %v5470
        %v5479 = vadd.f32 %v5311, %v5471
        %v5480 = vadd.f32 %v5312, %v5472
        %v5481 = vadd.f32 %v5313, %v5473
        %v5482 = vadd.f32 %v5314, %v5474
        %v5483 = vmul.f32 %v5475, %v4170
        %v5484 = vmul.f32 %v5476, %v4172
        %v5485 = vmul.f32 %v5477, %v4176
        %v5486 = vmul.f32 %v5478, %v4178
        %v5487 = vmul.f32 %v5479, %v4182
        %v5488 = vmul.f32 %v5480, %v4184
        %v5489 = vmul.f32 %v5481, %v4188
        %v5490 = vmul.f32 %v5482, %v4190
        %v5491 = vmul.f32 %v5211, %v4882
        %v5492 = vmul.f32 %v5212, %v4884
        %v5493 = vmul.f32 %v5213, %v4888
        %v5494 = vmul.f32 %v5214, %v4890
        %v5495 = vmul.f32 %v5215, %v4894
        %v5496 = vmul.f32 %v5216, %v4896
        %v5497 = vmul.f32 %v5217, %v4900
        %v5498 = vmul.f32 %v5218, %v4902
        %v5499 = vadd.f32 %v5483, %v5491
        %v5500 = vadd.f32 %v5484, %v5492
        %v5501 = vadd.f32 %v5485, %v5493
        %v5502 = vadd.f32 %v5486, %v5494
        %v5503 = vadd.f32 %v5487, %v5495
        %v5504 = vadd.f32 %v5488, %v5496
        %v5505 = vadd.f32 %v5489, %v5497
        %v5506 = vadd.f32 %v5490, %v5498
        %v5507 = vmul.f32 %v5291, 3.0
        %v5508 = vmul.f32 %v5292, 3.0
        %v5509 = vmul.f32 %v5293, 3.0
        %v5510 = vmul.f32 %v5294, 3.0
        %v5511 = vmul.f32 %v5295, 3.0
        %v5512 = vmul.f32 %v5296, 3.0
        %v5513 = vmul.f32 %v5297, 3.0
        %v5514 = vmul.f32 %v5298, 3.0
        %v5515 = vadd.f32 %v5323, %v5507
        %v5516 = vadd.f32 %v5324, %v5508
        %v5517 = vadd.f32 %v5325, %v5509
        %v5518 = vadd.f32 %v5326, %v5510
        %v5519 = vadd.f32 %v5327, %v5511
        %v5520 = vadd.f32 %v5328, %v5512
        %v5521 = vadd.f32 %v5329, %v5513
        %v5522 = vadd.f32 %v5330, %v5514
        %v5523 = vmul.f32 %v5515, %v4259
        %v5524 = vmul.f32 %v5516, %v4261
        %v5525 = vmul.f32 %v5517, %v4265
        %v5526 = vmul.f32 %v5518, %v4267
        %v5527 = vmul.f32 %v5519, %v4271
        %v5528 = vmul.f32 %v5520, %v4273
        %v5529 = vmul.f32 %v5521, %v4277
        %v5530 = vmul.f32 %v5522, %v4279
        %v5531 = vmul.f32 %v5211, %v4971
        %v5532 = vmul.f32 %v5212, %v4973
        %v5533 = vmul.f32 %v5213, %v4977
        %v5534 = vmul.f32 %v5214, %v4979
        %v5535 = vmul.f32 %v5215, %v4983
        %v5536 = vmul.f32 %v5216, %v4985
        %v5537 = vmul.f32 %v5217, %v4989
        %v5538 = vmul.f32 %v5218, %v4991
        %v5539 = vadd.f32 %v5523, %v5531
        %v5540 = vadd.f32 %v5524, %v5532
        %v5541 = vadd.f32 %v5525, %v5533
        %v5542 = vadd.f32 %v5526, %v5534
        %v5543 = vadd.f32 %v5527, %v5535
        %v5544 = vadd.f32 %v5528, %v5536
        %v5545 = vadd.f32 %v5529, %v5537
        %v5546 = vadd.f32 %v5530, %v5538
        %v5547 = vadd.f32 %v5307, %v5283
        %v5548 = vadd.f32 %v5308, %v5284
        %v5549 = vadd.f32 %v5309, %v5285
        %v5550 = vadd.f32 %v5310, %v5286
        %v5551 = vadd.f32 %v5311, %v5287
        %v5552 = vadd.f32 %v5312, %v5288
        %v5553 = vadd.f32 %v5313, %v5289
        %v5554 = vadd.f32 %v5314, %v5290
        %v5555 = vmul.f32 %v5547, %v4259
        %v5556 = vmul.f32 %v5548, %v4261
        %v5557 = vmul.f32 %v5549, %v4265
        %v5558 = vmul.f32 %v5550, %v4267
        %v5559 = vmul.f32 %v5551, %v4271
        %v5560 = vmul.f32 %v5552, %v4273
        %v5561 = vmul.f32 %v5553, %v4277
        %v5562 = vmul.f32 %v5554, %v4279
        %v5563 = vmul.f32 %v5267, 2.0
        %v5564 = vmul.f32 %v5268, 2.0
        %v5565 = vmul.f32 %v5269, 2.0
        %v5566 = vmul.f32 %v5270, 2.0
        %v5567 = vmul.f32 %v5271, 2.0
        %v5568 = vmul.f32 %v5272, 2.0
        %v5569 = vmul.f32 %v5273, 2.0
        %v5570 = vmul.f32 %v5274, 2.0
        %v5571 = vmul.f32 %v5563, %v4615
        %v5572 = vmul.f32 %v5564, %v4617
        %v5573 = vmul.f32 %v5565, %v4621
        %v5574 = vmul.f32 %v5566, %v4623
        %v5575 = vmul.f32 %v5567, %v4627
        %v5576 = vmul.f32 %v5568, %v4629
        %v5577 = vmul.f32 %v5569, %v4633
        %v5578 = vmul.f32 %v5570, %v4635
        %v5579 = vadd.f32 %v5555, %v5571
        %v5580 = vadd.f32 %v5556, %v5572
        %v5581 = vadd.f32 %v5557, %v5573
        %v5582 = vadd.f32 %v5558, %v5574
        %v5583 = vadd.f32 %v5559, %v5575
        %v5584 = vadd.f32 %v5560, %v5576
        %v5585 = vadd.f32 %v5561, %v5577
        %v5586 = vadd.f32 %v5562, %v5578
        %v5587 = vmul.f32 %v5211, %v5060
        %v5588 = vmul.f32 %v5212, %v5062
        %v5589 = vmul.f32 %v5213, %v5066
        %v5590 = vmul.f32 %v5214, %v5068
        %v5591 = vmul.f32 %v5215, %v5072
        %v5592 = vmul.f32 %v5216, %v5074
        %v5593 = vmul.f32 %v5217, %v5078
        %v5594 = vmul.f32 %v5218, %v5080
        %v5595 = vadd.f32 %v5579, %v5587
        %v5596 = vadd.f32 %v5580, %v5588
        %v5597 = vadd.f32 %v5581, %v5589
        %v5598 = vadd.f32 %v5582, %v5590
        %v5599 = vadd.f32 %v5583, %v5591
        %v5600 = vadd.f32 %v5584, %v5592
        %v5601 = vadd.f32 %v5585, %v5593
        %v5602 = vadd.f32 %v5586, %v5594
        %v5603 = vadd.f32 %v5323, %v5291
        %v5604 = vadd.f32 %v5324, %v5292
        %v5605 = vadd.f32 %v5325, %v5293
        %v5606 = vadd.f32 %v5326, %v5294
        %v5607 = vadd.f32 %v5327, %v5295
        %v5608 = vadd.f32 %v5328, %v5296
        %v5609 = vadd.f32 %v5329, %v5297
        %v5610 = vadd.f32 %v5330, %v5298
        %v5611 = vmul.f32 %v5603, %v4170
        %v5612 = vmul.f32 %v5604, %v4172
        %v5613 = vmul.f32 %v5605, %v4176
        %v5614 = vmul.f32 %v5606, %v4178
        %v5615 = vmul.f32 %v5607, %v4182
        %v5616 = vmul.f32 %v5608, %v4184
        %v5617 = vmul.f32 %v5609, %v4188
        %v5618 = vmul.f32 %v5610, %v4190
        %v5619 = vmul.f32 %v5275, 2.0
        %v5620 = vmul.f32 %v5276, 2.0
        %v5621 = vmul.f32 %v5277, 2.0
        %v5622 = vmul.f32 %v5278, 2.0
        %v5623 = vmul.f32 %v5279, 2.0
        %v5624 = vmul.f32 %v5280, 2.0
        %v5625 = vmul.f32 %v5281, 2.0
        %v5626 = vmul.f32 %v5282, 2.0
        %v5627 = vmul.f32 %v5619, %v4615
        %v5628 = vmul.f32 %v5620, %v4617
        %v5629 = vmul.f32 %v5621, %v4621
        %v5630 = vmul.f32 %v5622, %v4623
        %v5631 = vmul.f32 %v5623, %v4627
        %v5632 = vmul.f32 %v5624, %v4629
        %v5633 = vmul.f32 %v5625, %v4633
        %v5634 = vmul.f32 %v5626, %v4635
        %v5635 = vadd.f32 %v5611, %v5627
        %v5636 = vadd.f32 %v5612, %v5628
        %v5637 = vadd.f32 %v5613, %v5629
        %v5638 = vadd.f32 %v5614, %v5630
        %v5639 = vadd.f32 %v5615, %v5631
        %v5640 = vadd.f32 %v5616, %v5632
        %v5641 = vadd.f32 %v5617, %v5633
        %v5642 = vadd.f32 %v5618, %v5634
        %v5643 = vmul.f32 %v5211, %v5149
        %v5644 = vmul.f32 %v5212, %v5151
        %v5645 = vmul.f32 %v5213, %v5155
        %v5646 = vmul.f32 %v5214, %v5157
        %v5647 = vmul.f32 %v5215, %v5161
        %v5648 = vmul.f32 %v5216, %v5163
        %v5649 = vmul.f32 %v5217, %v5167
        %v5650 = vmul.f32 %v5218, %v5169
        %v5651 = vadd.f32 %v5635, %v5643
        %v5652 = vadd.f32 %v5636, %v5644
        %v5653 = vadd.f32 %v5637, %v5645
        %v5654 = vadd.f32 %v5638, %v5646
        %v5655 = vadd.f32 %v5639, %v5647
        %v5656 = vadd.f32 %v5640, %v5648
        %v5657 = vadd.f32 %v5641, %v5649
        %v5658 = vadd.f32 %v5642, %v5650
        %v5660 = vsel %vm671, %v280, 0
        %5662 = vmatprep.subr.mxu0 %v5332
        %5663 = vmatpush1.msra.mxu0 %v5331
        %5664 = vmatprep.subr.mxu0 %v5334
        %5665 = vmatpush1.msra.mxu0 %v5333
        %5666 = vmatprep.subr.mxu0 %v5336
        %5667 = vmatpush1.msra.mxu0 %v5335
        %5668 = vmatprep.subr.mxu0 %v5338
        %5669 = vmatpush1.msra.mxu0 %v5337
        %5670 = vmatprep.subr.mxu0 0.0
        %5671 = vmatpush1.msra.mxu0 0.0
        %5672 = vmatprep.subr.mxu0 0.0
        %5673 = vmatpush1.msra.mxu0 0.0
        %5674 = vmatprep.subr.mxu0 0.0
        %5675 = vmatpush1.msra.mxu0 0.0
        %5676 = vmatprep.subr.mxu0 0.0
        %5677 = vmatpush1.msra.mxu0 0.0
        %5678 = vmatprep.subr.mxu0 0.0
        %5679 = vmatpush1.msra.mxu0 0.0
        %5680 = vmatprep.subr.mxu0 0.0
        %5681 = vmatpush1.msra.mxu0 0.0
        %5682 = vmatprep.subr.mxu0 0.0
        %5683 = vmatpush1.msra.mxu0 0.0
        %5684 = vmatprep.subr.mxu0 0.0
        %5685 = vmatpush1.msra.mxu0 0.0
        %5686 = vmatprep.subr.mxu0 0.0
        %5687 = vmatpush1.msra.mxu0 0.0
        %5688 = vmatprep.subr.mxu0 0.0
        %5689 = vmatpush1.msra.mxu0 0.0
        %5690 = vmatprep.subr.mxu0 0.0
        %5691 = vmatpush1.msra.mxu0 0.0
        %5692 = vmatprep.subr.mxu0 0.0
        %5693 = vmatpush1.msra.mxu0 0.0
        %5694 = vmatprep.subr.mxu0 0.0
        %5695 = vmatpush1.msra.mxu0 0.0
        %5696 = vmatprep.subr.mxu0 0.0
        %5697 = vmatpush1.msra.mxu0 0.0
        %5698 = vmatprep.subr.mxu0 0.0
        %5699 = vmatpush1.msra.mxu0 0.0
        %5700 = vmatprep.subr.mxu0 0.0
        %5701 = vmatpush1.msra.mxu0 0.0
        %5702 = vmatprep.subr.mxu0 0.0
        %5703 = vmatpush1.msra.mxu0 0.0
        %5704 = vmatprep.subr.mxu0 0.0
        %5705 = vmatpush1.msra.mxu0 0.0
        %5706 = vmatprep.subr.mxu0 0.0
        %5707 = vmatpush1.msra.mxu0 0.0
        %5708 = vmatprep.subr.mxu0 0.0
        %5709 = vmatpush1.msra.mxu0 0.0
        %5710 = vmatprep.subr.mxu0 0.0
        %5711 = vmatpush1.msra.mxu0 0.0
        %5712 = vmatprep.subr.mxu0 0.0
        %5713 = vmatpush1.msra.mxu0 0.0
        %5714 = vmatprep.subr.mxu0 0.0
        %5715 = vmatpush1.msra.mxu0 0.0
        %5716 = vmatprep.subr.mxu0 0.0
        %5717 = vmatpush1.msra.mxu0 0.0
        %5718 = vmatprep.subr.mxu0 0.0
        %5719 = vmatpush1.msra.mxu0 0.0
        %5720 = vmatprep.subr.mxu0 0.0
        %5721 = vmatpush1.msra.mxu0 0.0
        %5722 = vmatprep.subr.mxu0 0.0
        %5723 = vmatpush1.msra.mxu0 0.0
        %5724 = vmatprep.subr.mxu0 0.0
        %5725 = vmatpush1.msra.mxu0 0.0
        %5726 = vmatprep.mubr.f32.mxu0 0.0
        %5727 = vmatmul.mubr.f32.gmra.mrb[0].mxu0 %v5660
        %v5728 = vpop.f32.mrb[0].mxu0
        %v5729 = vadd.f32 0.0, %v5728
        %v5730 = vpop.f32.mrb[0].mxu0
        %v5731 = vadd.f32 0.0, %v5730
        %5732 = vdwg.mxu0
        %5733 = vmatprep.subr.mxu0 %v5340
        %5734 = vmatpush1.msra.mxu0 %v5339
        %5735 = vmatprep.subr.mxu0 %v5342
        %5736 = vmatpush1.msra.mxu0 %v5341
        %5737 = vmatprep.subr.mxu0 %v5344
        %5738 = vmatpush1.msra.mxu0 %v5343
        %5739 = vmatprep.subr.mxu0 %v5346
        %5740 = vmatpush1.msra.mxu0 %v5345
        %5741 = vmatprep.subr.mxu0 0.0
        %5742 = vmatpush1.msra.mxu0 0.0
        %5743 = vmatprep.subr.mxu0 0.0
        %5744 = vmatpush1.msra.mxu0 0.0
        %5745 = vmatprep.subr.mxu0 0.0
        %5746 = vmatpush1.msra.mxu0 0.0
        %5747 = vmatprep.subr.mxu0 0.0
        %5748 = vmatpush1.msra.mxu0 0.0
        %5749 = vmatprep.subr.mxu0 0.0
        %5750 = vmatpush1.msra.mxu0 0.0
        %5751 = vmatprep.subr.mxu0 0.0
        %5752 = vmatpush1.msra.mxu0 0.0
        %5753 = vmatprep.subr.mxu0 0.0
        %5754 = vmatpush1.msra.mxu0 0.0
        %5755 = vmatprep.subr.mxu0 0.0
        %5756 = vmatpush1.msra.mxu0 0.0
        %5757 = vmatprep.subr.mxu0 0.0
        %5758 = vmatpush1.msra.mxu0 0.0
        %5759 = vmatprep.subr.mxu0 0.0
        %5760 = vmatpush1.msra.mxu0 0.0
        %5761 = vmatprep.subr.mxu0 0.0
        %5762 = vmatpush1.msra.mxu0 0.0
        %5763 = vmatprep.subr.mxu0 0.0
        %5764 = vmatpush1.msra.mxu0 0.0
        %5765 = vmatprep.subr.mxu0 0.0
        %5766 = vmatpush1.msra.mxu0 0.0
        %5767 = vmatprep.subr.mxu0 0.0
        %5768 = vmatpush1.msra.mxu0 0.0
        %5769 = vmatprep.subr.mxu0 0.0
        %5770 = vmatpush1.msra.mxu0 0.0
        %5771 = vmatprep.subr.mxu0 0.0
        %5772 = vmatpush1.msra.mxu0 0.0
        %5773 = vmatprep.subr.mxu0 0.0
        %5774 = vmatpush1.msra.mxu0 0.0
        %5775 = vmatprep.subr.mxu0 0.0
        %5776 = vmatpush1.msra.mxu0 0.0
        %5777 = vmatprep.subr.mxu0 0.0
        %5778 = vmatpush1.msra.mxu0 0.0
        %5779 = vmatprep.subr.mxu0 0.0
        %5780 = vmatpush1.msra.mxu0 0.0
        %5781 = vmatprep.subr.mxu0 0.0
        %5782 = vmatpush1.msra.mxu0 0.0
        %5783 = vmatprep.subr.mxu0 0.0
        %5784 = vmatpush1.msra.mxu0 0.0
        %5785 = vmatprep.subr.mxu0 0.0
        %5786 = vmatpush1.msra.mxu0 0.0
        %5787 = vmatprep.subr.mxu0 0.0
        %5788 = vmatpush1.msra.mxu0 0.0
        %5789 = vmatprep.subr.mxu0 0.0
        %5790 = vmatpush1.msra.mxu0 0.0
        %5791 = vmatprep.subr.mxu0 0.0
        %5792 = vmatpush1.msra.mxu0 0.0
        %5793 = vmatprep.subr.mxu0 0.0
        %5794 = vmatpush1.msra.mxu0 0.0
        %5795 = vmatprep.subr.mxu0 0.0
        %5796 = vmatpush1.msra.mxu0 0.0
        %5797 = vmatprep.mubr.f32.mxu0 0.0
        %5798 = vmatmul.mubr.f32.gmra.mrb[0].mxu0 %v5660
        %v5799 = vpop.f32.mrb[0].mxu0
        %v5800 = vadd.f32 0.0, %v5799
        %v5801 = vpop.f32.mrb[0].mxu0
        %v5802 = vadd.f32 0.0, %v5801
        %5803 = vdwg.mxu0
        %5804 = vmatprep.subr.mxu0 %v5364
        %5805 = vmatpush1.msra.mxu0 %v5363
        %5806 = vmatprep.subr.mxu0 %v5366
        %5807 = vmatpush1.msra.mxu0 %v5365
        %5808 = vmatprep.subr.mxu0 %v5368
        %5809 = vmatpush1.msra.mxu0 %v5367
        %5810 = vmatprep.subr.mxu0 %v5370
        %5811 = vmatpush1.msra.mxu0 %v5369
        %5812 = vmatprep.subr.mxu0 0.0
        %5813 = vmatpush1.msra.mxu0 0.0
        %5814 = vmatprep.subr.mxu0 0.0
        %5815 = vmatpush1.msra.mxu0 0.0
        %5816 = vmatprep.subr.mxu0 0.0
        %5817 = vmatpush1.msra.mxu0 0.0
        %5818 = vmatprep.subr.mxu0 0.0
        %5819 = vmatpush1.msra.mxu0 0.0
        %5820 = vmatprep.subr.mxu0 0.0
        %5821 = vmatpush1.msra.mxu0 0.0
        %5822 = vmatprep.subr.mxu0 0.0
        %5823 = vmatpush1.msra.mxu0 0.0
        %5824 = vmatprep.subr.mxu0 0.0
        %5825 = vmatpush1.msra.mxu0 0.0
        %5826 = vmatprep.subr.mxu0 0.0
        %5827 = vmatpush1.msra.mxu0 0.0
        %5828 = vmatprep.subr.mxu0 0.0
        %5829 = vmatpush1.msra.mxu0 0.0
        %5830 = vmatprep.subr.mxu0 0.0
        %5831 = vmatpush1.msra.mxu0 0.0
        %5832 = vmatprep.subr.mxu0 0.0
        %5833 = vmatpush1.msra.mxu0 0.0
        %5834 = vmatprep.subr.mxu0 0.0
        %5835 = vmatpush1.msra.mxu0 0.0
        %5836 = vmatprep.subr.mxu0 0.0
        %5837 = vmatpush1.msra.mxu0 0.0
        %5838 = vmatprep.subr.mxu0 0.0
        %5839 = vmatpush1.msra.mxu0 0.0
        %5840 = vmatprep.subr.mxu0 0.0
        %5841 = vmatpush1.msra.mxu0 0.0
        %5842 = vmatprep.subr.mxu0 0.0
        %5843 = vmatpush1.msra.mxu0 0.0
        %5844 = vmatprep.subr.mxu0 0.0
        %5845 = vmatpush1.msra.mxu0 0.0
        %5846 = vmatprep.subr.mxu0 0.0
        %5847 = vmatpush1.msra.mxu0 0.0
        %5848 = vmatprep.subr.mxu0 0.0
        %5849 = vmatpush1.msra.mxu0 0.0
        %5850 = vmatprep.subr.mxu0 0.0
        %5851 = vmatpush1.msra.mxu0 0.0
        %5852 = vmatprep.subr.mxu0 0.0
        %5853 = vmatpush1.msra.mxu0 0.0
        %5854 = vmatprep.subr.mxu0 0.0
        %5855 = vmatpush1.msra.mxu0 0.0
        %5856 = vmatprep.subr.mxu0 0.0
        %5857 = vmatpush1.msra.mxu0 0.0
        %5858 = vmatprep.subr.mxu0 0.0
        %5859 = vmatpush1.msra.mxu0 0.0
        %5860 = vmatprep.subr.mxu0 0.0
        %5861 = vmatpush1.msra.mxu0 0.0
        %5862 = vmatprep.subr.mxu0 0.0
        %5863 = vmatpush1.msra.mxu0 0.0
        %5864 = vmatprep.subr.mxu0 0.0
        %5865 = vmatpush1.msra.mxu0 0.0
        %5866 = vmatprep.subr.mxu0 0.0
        %5867 = vmatpush1.msra.mxu0 0.0
        %5868 = vmatprep.mubr.f32.mxu0 0.0
        %5869 = vmatmul.mubr.f32.gmra.mrb[0].mxu0 %v5660
        %v5870 = vpop.f32.mrb[0].mxu0
        %v5871 = vadd.f32 0.0, %v5870
        %v5872 = vpop.f32.mrb[0].mxu0
        %v5873 = vadd.f32 0.0, %v5872
        %5874 = vdwg.mxu0
        %5875 = vmatprep.subr.mxu0 %v5388
        %5876 = vmatpush1.msra.mxu0 %v5387
        %5877 = vmatprep.subr.mxu0 %v5390
        %5878 = vmatpush1.msra.mxu0 %v5389
        %5879 = vmatprep.subr.mxu0 %v5392
        %5880 = vmatpush1.msra.mxu0 %v5391
        %5881 = vmatprep.subr.mxu0 %v5394
        %5882 = vmatpush1.msra.mxu0 %v5393
        %5883 = vmatprep.subr.mxu0 0.0
        %5884 = vmatpush1.msra.mxu0 0.0
        %5885 = vmatprep.subr.mxu0 0.0
        %5886 = vmatpush1.msra.mxu0 0.0
        %5887 = vmatprep.subr.mxu0 0.0
        %5888 = vmatpush1.msra.mxu0 0.0
        %5889 = vmatprep.subr.mxu0 0.0
        %5890 = vmatpush1.msra.mxu0 0.0
        %5891 = vmatprep.subr.mxu0 0.0
        %5892 = vmatpush1.msra.mxu0 0.0
        %5893 = vmatprep.subr.mxu0 0.0
        %5894 = vmatpush1.msra.mxu0 0.0
        %5895 = vmatprep.subr.mxu0 0.0
        %5896 = vmatpush1.msra.mxu0 0.0
        %5897 = vmatprep.subr.mxu0 0.0
        %5898 = vmatpush1.msra.mxu0 0.0
        %5899 = vmatprep.subr.mxu0 0.0
        %5900 = vmatpush1.msra.mxu0 0.0
        %5901 = vmatprep.subr.mxu0 0.0
        %5902 = vmatpush1.msra.mxu0 0.0
        %5903 = vmatprep.subr.mxu0 0.0
        %5904 = vmatpush1.msra.mxu0 0.0
        %5905 = vmatprep.subr.mxu0 0.0
        %5906 = vmatpush1.msra.mxu0 0.0
        %5907 = vmatprep.subr.mxu0 0.0
        %5908 = vmatpush1.msra.mxu0 0.0
        %5909 = vmatprep.subr.mxu0 0.0
        %5910 = vmatpush1.msra.mxu0 0.0
        %5911 = vmatprep.subr.mxu0 0.0
        %5912 = vmatpush1.msra.mxu0 0.0
        %5913 = vmatprep.subr.mxu0 0.0
        %5914 = vmatpush1.msra.mxu0 0.0
        %5915 = vmatprep.subr.mxu0 0.0
        %5916 = vmatpush1.msra.mxu0 0.0
        %5917 = vmatprep.subr.mxu0 0.0
        %5918 = vmatpush1.msra.mxu0 0.0
        %5919 = vmatprep.subr.mxu0 0.0
        %5920 = vmatpush1.msra.mxu0 0.0
        %5921 = vmatprep.subr.mxu0 0.0
        %5922 = vmatpush1.msra.mxu0 0.0
        %5923 = vmatprep.subr.mxu0 0.0
        %5924 = vmatpush1.msra.mxu0 0.0
        %5925 = vmatprep.subr.mxu0 0.0
        %5926 = vmatpush1.msra.mxu0 0.0
        %5927 = vmatprep.subr.mxu0 0.0
        %5928 = vmatpush1.msra.mxu0 0.0
        %5929 = vmatprep.subr.mxu0 0.0
        %5930 = vmatpush1.msra.mxu0 0.0
        %5931 = vmatprep.subr.mxu0 0.0
        %5932 = vmatpush1.msra.mxu0 0.0
        %5933 = vmatprep.subr.mxu0 0.0
        %5934 = vmatpush1.msra.mxu0 0.0
        %5935 = vmatprep.subr.mxu0 0.0
        %5936 = vmatpush1.msra.mxu0 0.0
        %5937 = vmatprep.subr.mxu0 0.0
        %5938 = vmatpush1.msra.mxu0 0.0
        %5939 = vmatprep.mubr.f32.mxu0 0.0
        %5940 = vmatmul.mubr.f32.gmra.mrb[0].mxu0 %v5660
        %v5941 = vpop.f32.mrb[0].mxu0
        %v5942 = vadd.f32 0.0, %v5941
        %v5943 = vpop.f32.mrb[0].mxu0
        %v5944 = vadd.f32 0.0, %v5943
        %5945 = vdwg.mxu0
        %5946 = vmatprep.subr.mxu0 %v5412
        %5947 = vmatpush1.msra.mxu0 %v5411
        %5948 = vmatprep.subr.mxu0 %v5414
        %5949 = vmatpush1.msra.mxu0 %v5413
        %5950 = vmatprep.subr.mxu0 %v5416
        %5951 = vmatpush1.msra.mxu0 %v5415
        %5952 = vmatprep.subr.mxu0 %v5418
        %5953 = vmatpush1.msra.mxu0 %v5417
        %5954 = vmatprep.subr.mxu0 0.0
        %5955 = vmatpush1.msra.mxu0 0.0
        %5956 = vmatprep.subr.mxu0 0.0
        %5957 = vmatpush1.msra.mxu0 0.0
        %5958 = vmatprep.subr.mxu0 0.0
        %5959 = vmatpush1.msra.mxu0 0.0
        %5960 = vmatprep.subr.mxu0 0.0
        %5961 = vmatpush1.msra.mxu0 0.0
        %5962 = vmatprep.subr.mxu0 0.0
        %5963 = vmatpush1.msra.mxu0 0.0
        %5964 = vmatprep.subr.mxu0 0.0
        %5965 = vmatpush1.msra.mxu0 0.0
        %5966 = vmatprep.subr.mxu0 0.0
        %5967 = vmatpush1.msra.mxu0 0.0
        %5968 = vmatprep.subr.mxu0 0.0
        %5969 = vmatpush1.msra.mxu0 0.0
        %5970 = vmatprep.subr.mxu0 0.0
        %5971 = vmatpush1.msra.mxu0 0.0
        %5972 = vmatprep.subr.mxu0 0.0
        %5973 = vmatpush1.msra.mxu0 0.0
        %5974 = vmatprep.subr.mxu0 0.0
        %5975 = vmatpush1.msra.mxu0 0.0
        %5976 = vmatprep.subr.mxu0 0.0
        %5977 = vmatpush1.msra.mxu0 0.0
        %5978 = vmatprep.subr.mxu0 0.0
        %5979 = vmatpush1.msra.mxu0 0.0
        %5980 = vmatprep.subr.mxu0 0.0
        %5981 = vmatpush1.msra.mxu0 0.0
        %5982 = vmatprep.subr.mxu0 0.0
        %5983 = vmatpush1.msra.mxu0 0.0
        %5984 = vmatprep.subr.mxu0 0.0
        %5985 = vmatpush1.msra.mxu0 0.0
        %5986 = vmatprep.subr.mxu0 0.0
        %5987 = vmatpush1.msra.mxu0 0.0
        %5988 = vmatprep.subr.mxu0 0.0
        %5989 = vmatpush1.msra.mxu0 0.0
        %5990 = vmatprep.subr.mxu0 0.0
        %5991 = vmatpush1.msra.mxu0 0.0
        %5992 = vmatprep.subr.mxu0 0.0
        %5993 = vmatpush1.msra.mxu0 0.0
        %5994 = vmatprep.subr.mxu0 0.0
        %5995 = vmatpush1.msra.mxu0 0.0
        %5996 = vmatprep.subr.mxu0 0.0
        %5997 = vmatpush1.msra.mxu0 0.0
        %5998 = vmatprep.subr.mxu0 0.0
        %5999 = vmatpush1.msra.mxu0 0.0
        %6000 = vmatprep.subr.mxu0 0.0
        %6001 = vmatpush1.msra.mxu0 0.0
        %6002 = vmatprep.subr.mxu0 0.0
        %6003 = vmatpush1.msra.mxu0 0.0
        %6004 = vmatprep.subr.mxu0 0.0
        %6005 = vmatpush1.msra.mxu0 0.0
        %6006 = vmatprep.subr.mxu0 0.0
        %6007 = vmatpush1.msra.mxu0 0.0
        %6008 = vmatprep.subr.mxu0 0.0
        %6009 = vmatpush1.msra.mxu0 0.0
        %6010 = vmatprep.mubr.f32.mxu0 0.0
        %6011 = vmatmul.mubr.f32.gmra.mrb[0].mxu0 %v5660
        %v6012 = vpop.f32.mrb[0].mxu0
        %v6013 = vadd.f32 0.0, %v6012
        %v6014 = vpop.f32.mrb[0].mxu0
        %v6015 = vadd.f32 0.0, %v6014
        %6016 = vdwg.mxu0
        %6017 = vmatprep.subr.mxu0 %v5436
        %6018 = vmatpush1.msra.mxu0 %v5435
        %6019 = vmatprep.subr.mxu0 %v5438
        %6020 = vmatpush1.msra.mxu0 %v5437
        %6021 = vmatprep.subr.mxu0 %v5440
        %6022 = vmatpush1.msra.mxu0 %v5439
        %6023 = vmatprep.subr.mxu0 %v5442
        %6024 = vmatpush1.msra.mxu0 %v5441
        %6025 = vmatprep.subr.mxu0 0.0
        %6026 = vmatpush1.msra.mxu0 0.0
        %6027 = vmatprep.subr.mxu0 0.0
        %6028 = vmatpush1.msra.mxu0 0.0
        %6029 = vmatprep.subr.mxu0 0.0
        %6030 = vmatpush1.msra.mxu0 0.0
        %6031 = vmatprep.subr.mxu0 0.0
        %6032 = vmatpush1.msra.mxu0 0.0
        %6033 = vmatprep.subr.mxu0 0.0
        %6034 = vmatpush1.msra.mxu0 0.0
        %6035 = vmatprep.subr.mxu0 0.0
        %6036 = vmatpush1.msra.mxu0 0.0
        %6037 = vmatprep.subr.mxu0 0.0
        %6038 = vmatpush1.msra.mxu0 0.0
        %6039 = vmatprep.subr.mxu0 0.0
        %6040 = vmatpush1.msra.mxu0 0.0
        %6041 = vmatprep.subr.mxu0 0.0
        %6042 = vmatpush1.msra.mxu0 0.0
        %6043 = vmatprep.subr.mxu0 0.0
        %6044 = vmatpush1.msra.mxu0 0.0
        %6045 = vmatprep.subr.mxu0 0.0
        %6046 = vmatpush1.msra.mxu0 0.0
        %6047 = vmatprep.subr.mxu0 0.0
        %6048 = vmatpush1.msra.mxu0 0.0
        %6049 = vmatprep.subr.mxu0 0.0
        %6050 = vmatpush1.msra.mxu0 0.0
        %6051 = vmatprep.subr.mxu0 0.0
        %6052 = vmatpush1.msra.mxu0 0.0
        %6053 = vmatprep.subr.mxu0 0.0
        %6054 = vmatpush1.msra.mxu0 0.0
        %6055 = vmatprep.subr.mxu0 0.0
        %6056 = vmatpush1.msra.mxu0 0.0
        %6057 = vmatprep.subr.mxu0 0.0
        %6058 = vmatpush1.msra.mxu0 0.0
        %6059 = vmatprep.subr.mxu0 0.0
        %6060 = vmatpush1.msra.mxu0 0.0
        %6061 = vmatprep.subr.mxu0 0.0
        %6062 = vmatpush1.msra.mxu0 0.0
        %6063 = vmatprep.subr.mxu0 0.0
        %6064 = vmatpush1.msra.mxu0 0.0
        %6065 = vmatprep.subr.mxu0 0.0
        %6066 = vmatpush1.msra.mxu0 0.0
        %6067 = vmatprep.subr.mxu0 0.0
        %6068 = vmatpush1.msra.mxu0 0.0
        %6069 = vmatprep.subr.mxu0 0.0
        %6070 = vmatpush1.msra.mxu0 0.0
        %6071 = vmatprep.subr.mxu0 0.0
        %6072 = vmatpush1.msra.mxu0 0.0
        %6073 = vmatprep.subr.mxu0 0.0
        %6074 = vmatpush1.msra.mxu0 0.0
        %6075 = vmatprep.subr.mxu0 0.0
        %6076 = vmatpush1.msra.mxu0 0.0
        %6077 = vmatprep.subr.mxu0 0.0
        %6078 = vmatpush1.msra.mxu0 0.0
        %6079 = vmatprep.subr.mxu0 0.0
        %6080 = vmatpush1.msra.mxu0 0.0
        %6081 = vmatprep.mubr.f32.mxu0 0.0
        %6082 = vmatmul.mubr.f32.gmra.mrb[0].mxu0 %v5660
        %v6083 = vpop.f32.mrb[0].mxu0
        %v6084 = vadd.f32 0.0, %v6083
        %v6085 = vpop.f32.mrb[0].mxu0
        %v6086 = vadd.f32 0.0, %v6085
        %6087 = vdwg.mxu0
        %6088 = vmatprep.subr.mxu0 %v5460
        %6089 = vmatpush1.msra.mxu0 %v5459
        %6090 = vmatprep.subr.mxu0 %v5462
        %6091 = vmatpush1.msra.mxu0 %v5461
        %6092 = vmatprep.subr.mxu0 %v5464
        %6093 = vmatpush1.msra.mxu0 %v5463
        %6094 = vmatprep.subr.mxu0 %v5466
        %6095 = vmatpush1.msra.mxu0 %v5465
        %6096 = vmatprep.subr.mxu0 0.0
        %6097 = vmatpush1.msra.mxu0 0.0
        %6098 = vmatprep.subr.mxu0 0.0
        %6099 = vmatpush1.msra.mxu0 0.0
        %6100 = vmatprep.subr.mxu0 0.0
        %6101 = vmatpush1.msra.mxu0 0.0
        %6102 = vmatprep.subr.mxu0 0.0
        %6103 = vmatpush1.msra.mxu0 0.0
        %6104 = vmatprep.subr.mxu0 0.0
        %6105 = vmatpush1.msra.mxu0 0.0
        %6106 = vmatprep.subr.mxu0 0.0
        %6107 = vmatpush1.msra.mxu0 0.0
        %6108 = vmatprep.subr.mxu0 0.0
        %6109 = vmatpush1.msra.mxu0 0.0
        %6110 = vmatprep.subr.mxu0 0.0
        %6111 = vmatpush1.msra.mxu0 0.0
        %6112 = vmatprep.subr.mxu0 0.0
        %6113 = vmatpush1.msra.mxu0 0.0
        %6114 = vmatprep.subr.mxu0 0.0
        %6115 = vmatpush1.msra.mxu0 0.0
        %6116 = vmatprep.subr.mxu0 0.0
        %6117 = vmatpush1.msra.mxu0 0.0
        %6118 = vmatprep.subr.mxu0 0.0
        %6119 = vmatpush1.msra.mxu0 0.0
        %6120 = vmatprep.subr.mxu0 0.0
        %6121 = vmatpush1.msra.mxu0 0.0
        %6122 = vmatprep.subr.mxu0 0.0
        %6123 = vmatpush1.msra.mxu0 0.0
        %6124 = vmatprep.subr.mxu0 0.0
        %6125 = vmatpush1.msra.mxu0 0.0
        %6126 = vmatprep.subr.mxu0 0.0
        %6127 = vmatpush1.msra.mxu0 0.0
        %6128 = vmatprep.subr.mxu0 0.0
        %6129 = vmatpush1.msra.mxu0 0.0
        %6130 = vmatprep.subr.mxu0 0.0
        %6131 = vmatpush1.msra.mxu0 0.0
        %6132 = vmatprep.subr.mxu0 0.0
        %6133 = vmatpush1.msra.mxu0 0.0
        %6134 = vmatprep.subr.mxu0 0.0
        %6135 = vmatpush1.msra.mxu0 0.0
        %6136 = vmatprep.subr.mxu0 0.0
        %6137 = vmatpush1.msra.mxu0 0.0
        %6138 = vmatprep.subr.mxu0 0.0
        %6139 = vmatpush1.msra.mxu0 0.0
        %6140 = vmatprep.subr.mxu0 0.0
        %6141 = vmatpush1.msra.mxu0 0.0
        %6142 = vmatprep.subr.mxu0 0.0
        %6143 = vmatpush1.msra.mxu0 0.0
        %6144 = vmatprep.subr.mxu0 0.0
        %6145 = vmatpush1.msra.mxu0 0.0
        %6146 = vmatprep.subr.mxu0 0.0
        %6147 = vmatpush1.msra.mxu0 0.0
        %6148 = vmatprep.subr.mxu0 0.0
        %6149 = vmatpush1.msra.mxu0 0.0
        %6150 = vmatprep.subr.mxu0 0.0
        %6151 = vmatpush1.msra.mxu0 0.0
        %6152 = vmatprep.mubr.f32.mxu0 0.0
        %6153 = vmatmul.mubr.f32.gmra.mrb[0].mxu0 %v5660
        %v6154 = vpop.f32.mrb[0].mxu0
        %v6155 = vadd.f32 0.0, %v6154
        %v6156 = vpop.f32.mrb[0].mxu0
        %v6157 = vadd.f32 0.0, %v6156
        %6158 = vdwg.mxu0
        %6159 = vmatprep.subr.mxu0 %v5500
        %6160 = vmatpush1.msra.mxu0 %v5499
        %6161 = vmatprep.subr.mxu0 %v5502
        %6162 = vmatpush1.msra.mxu0 %v5501
        %6163 = vmatprep.subr.mxu0 %v5504
        %6164 = vmatpush1.msra.mxu0 %v5503
        %6165 = vmatprep.subr.mxu0 %v5506
        %6166 = vmatpush1.msra.mxu0 %v5505
        %6167 = vmatprep.subr.mxu0 0.0
        %6168 = vmatpush1.msra.mxu0 0.0
        %6169 = vmatprep.subr.mxu0 0.0
        %6170 = vmatpush1.msra.mxu0 0.0
        %6171 = vmatprep.subr.mxu0 0.0
        %6172 = vmatpush1.msra.mxu0 0.0
        %6173 = vmatprep.subr.mxu0 0.0
        %6174 = vmatpush1.msra.mxu0 0.0
        %6175 = vmatprep.subr.mxu0 0.0
        %6176 = vmatpush1.msra.mxu0 0.0
        %6177 = vmatprep.subr.mxu0 0.0
        %6178 = vmatpush1.msra.mxu0 0.0
        %6179 = vmatprep.subr.mxu0 0.0
        %6180 = vmatpush1.msra.mxu0 0.0
        %6181 = vmatprep.subr.mxu0 0.0
        %6182 = vmatpush1.msra.mxu0 0.0
        %6183 = vmatprep.subr.mxu0 0.0
        %6184 = vmatpush1.msra.mxu0 0.0
        %6185 = vmatprep.subr.mxu0 0.0
        %6186 = vmatpush1.msra.mxu0 0.0
        %6187 = vmatprep.subr.mxu0 0.0
        %6188 = vmatpush1.msra.mxu0 0.0
        %6189 = vmatprep.subr.mxu0 0.0
        %6190 = vmatpush1.msra.mxu0 0.0
        %6191 = vmatprep.subr.mxu0 0.0
        %6192 = vmatpush1.msra.mxu0 0.0
        %6193 = vmatprep.subr.mxu0 0.0
        %6194 = vmatpush1.msra.mxu0 0.0
        %6195 = vmatprep.subr.mxu0 0.0
        %6196 = vmatpush1.msra.mxu0 0.0
        %6197 = vmatprep.subr.mxu0 0.0
        %6198 = vmatpush1.msra.mxu0 0.0
        %6199 = vmatprep.subr.mxu0 0.0
        %6200 = vmatpush1.msra.mxu0 0.0
        %6201 = vmatprep.subr.mxu0 0.0
        %6202 = vmatpush1.msra.mxu0 0.0
        %6203 = vmatprep.subr.mxu0 0.0
        %6204 = vmatpush1.msra.mxu0 0.0
        %6205 = vmatprep.subr.mxu0 0.0
        %6206 = vmatpush1.msra.mxu0 0.0
        %6207 = vmatprep.subr.mxu0 0.0
        %6208 = vmatpush1.msra.mxu0 0.0
        %6209 = vmatprep.subr.mxu0 0.0
        %6210 = vmatpush1.msra.mxu0 0.0
        %6211 = vmatprep.subr.mxu0 0.0
        %6212 = vmatpush1.msra.mxu0 0.0
        %6213 = vmatprep.subr.mxu0 0.0
        %6214 = vmatpush1.msra.mxu0 0.0
        %6215 = vmatprep.subr.mxu0 0.0
        %6216 = vmatpush1.msra.mxu0 0.0
        %6217 = vmatprep.subr.mxu0 0.0
        %6218 = vmatpush1.msra.mxu0 0.0
        %6219 = vmatprep.subr.mxu0 0.0
        %6220 = vmatpush1.msra.mxu0 0.0
        %6221 = vmatprep.subr.mxu0 0.0
        %6222 = vmatpush1.msra.mxu0 0.0
        %6223 = vmatprep.mubr.f32.mxu0 0.0
        %6224 = vmatmul.mubr.f32.gmra.mrb[0].mxu0 %v5660
        %v6225 = vpop.f32.mrb[0].mxu0
        %v6226 = vadd.f32 0.0, %v6225
        %v6227 = vpop.f32.mrb[0].mxu0
        %v6228 = vadd.f32 0.0, %v6227
        %6229 = vdwg.mxu0
        %6230 = vmatprep.subr.mxu0 %v5540
        %6231 = vmatpush1.msra.mxu0 %v5539
        %6232 = vmatprep.subr.mxu0 %v5542
        %6233 = vmatpush1.msra.mxu0 %v5541
        %6234 = vmatprep.subr.mxu0 %v5544
        %6235 = vmatpush1.msra.mxu0 %v5543
        %6236 = vmatprep.subr.mxu0 %v5546
        %6237 = vmatpush1.msra.mxu0 %v5545
        %6238 = vmatprep.subr.mxu0 0.0
        %6239 = vmatpush1.msra.mxu0 0.0
        %6240 = vmatprep.subr.mxu0 0.0
        %6241 = vmatpush1.msra.mxu0 0.0
        %6242 = vmatprep.subr.mxu0 0.0
        %6243 = vmatpush1.msra.mxu0 0.0
        %6244 = vmatprep.subr.mxu0 0.0
        %6245 = vmatpush1.msra.mxu0 0.0
        %6246 = vmatprep.subr.mxu0 0.0
        %6247 = vmatpush1.msra.mxu0 0.0
        %6248 = vmatprep.subr.mxu0 0.0
        %6249 = vmatpush1.msra.mxu0 0.0
        %6250 = vmatprep.subr.mxu0 0.0
        %6251 = vmatpush1.msra.mxu0 0.0
        %6252 = vmatprep.subr.mxu0 0.0
        %6253 = vmatpush1.msra.mxu0 0.0
        %6254 = vmatprep.subr.mxu0 0.0
        %6255 = vmatpush1.msra.mxu0 0.0
        %6256 = vmatprep.subr.mxu0 0.0
        %6257 = vmatpush1.msra.mxu0 0.0
        %6258 = vmatprep.subr.mxu0 0.0
        %6259 = vmatpush1.msra.mxu0 0.0
        %6260 = vmatprep.subr.mxu0 0.0
        %6261 = vmatpush1.msra.mxu0 0.0
        %6262 = vmatprep.subr.mxu0 0.0
        %6263 = vmatpush1.msra.mxu0 0.0
        %6264 = vmatprep.subr.mxu0 0.0
        %6265 = vmatpush1.msra.mxu0 0.0
        %6266 = vmatprep.subr.mxu0 0.0
        %6267 = vmatpush1.msra.mxu0 0.0
        %6268 = vmatprep.subr.mxu0 0.0
        %6269 = vmatpush1.msra.mxu0 0.0
        %6270 = vmatprep.subr.mxu0 0.0
        %6271 = vmatpush1.msra.mxu0 0.0
        %6272 = vmatprep.subr.mxu0 0.0
        %6273 = vmatpush1.msra.mxu0 0.0
        %6274 = vmatprep.subr.mxu0 0.0
        %6275 = vmatpush1.msra.mxu0 0.0
        %6276 = vmatprep.subr.mxu0 0.0
        %6277 = vmatpush1.msra.mxu0 0.0
        %6278 = vmatprep.subr.mxu0 0.0
        %6279 = vmatpush1.msra.mxu0 0.0
        %6280 = vmatprep.subr.mxu0 0.0
        %6281 = vmatpush1.msra.mxu0 0.0
        %6282 = vmatprep.subr.mxu0 0.0
        %6283 = vmatpush1.msra.mxu0 0.0
        %6284 = vmatprep.subr.mxu0 0.0
        %6285 = vmatpush1.msra.mxu0 0.0
        %6286 = vmatprep.subr.mxu0 0.0
        %6287 = vmatpush1.msra.mxu0 0.0
        %6288 = vmatprep.subr.mxu0 0.0
        %6289 = vmatpush1.msra.mxu0 0.0
        %6290 = vmatprep.subr.mxu0 0.0
        %6291 = vmatpush1.msra.mxu0 0.0
        %6292 = vmatprep.subr.mxu0 0.0
        %6293 = vmatpush1.msra.mxu0 0.0
        %6294 = vmatprep.mubr.f32.mxu0 0.0
        %6295 = vmatmul.mubr.f32.gmra.mrb[0].mxu0 %v5660
        %v6296 = vpop.f32.mrb[0].mxu0
        %v6297 = vadd.f32 0.0, %v6296
        %v6298 = vpop.f32.mrb[0].mxu0
        %v6299 = vadd.f32 0.0, %v6298
        %6300 = vdwg.mxu0
        %6301 = vmatprep.subr.mxu0 %v5596
        %6302 = vmatpush1.msra.mxu0 %v5595
        %6303 = vmatprep.subr.mxu0 %v5598
        %6304 = vmatpush1.msra.mxu0 %v5597
        %6305 = vmatprep.subr.mxu0 %v5600
        %6306 = vmatpush1.msra.mxu0 %v5599
        %6307 = vmatprep.subr.mxu0 %v5602
        %6308 = vmatpush1.msra.mxu0 %v5601
        %6309 = vmatprep.subr.mxu0 0.0
        %6310 = vmatpush1.msra.mxu0 0.0
        %6311 = vmatprep.subr.mxu0 0.0
        %6312 = vmatpush1.msra.mxu0 0.0
        %6313 = vmatprep.subr.mxu0 0.0
        %6314 = vmatpush1.msra.mxu0 0.0
        %6315 = vmatprep.subr.mxu0 0.0
        %6316 = vmatpush1.msra.mxu0 0.0
        %6317 = vmatprep.subr.mxu0 0.0
        %6318 = vmatpush1.msra.mxu0 0.0
        %6319 = vmatprep.subr.mxu0 0.0
        %6320 = vmatpush1.msra.mxu0 0.0
        %6321 = vmatprep.subr.mxu0 0.0
        %6322 = vmatpush1.msra.mxu0 0.0
        %6323 = vmatprep.subr.mxu0 0.0
        %6324 = vmatpush1.msra.mxu0 0.0
        %6325 = vmatprep.subr.mxu0 0.0
        %6326 = vmatpush1.msra.mxu0 0.0
        %6327 = vmatprep.subr.mxu0 0.0
        %6328 = vmatpush1.msra.mxu0 0.0
        %6329 = vmatprep.subr.mxu0 0.0
        %6330 = vmatpush1.msra.mxu0 0.0
        %6331 = vmatprep.subr.mxu0 0.0
        %6332 = vmatpush1.msra.mxu0 0.0
        %6333 = vmatprep.subr.mxu0 0.0
        %6334 = vmatpush1.msra.mxu0 0.0
        %6335 = vmatprep.subr.mxu0 0.0
        %6336 = vmatpush1.msra.mxu0 0.0
        %6337 = vmatprep.subr.mxu0 0.0
        %6338 = vmatpush1.msra.mxu0 0.0
        %6339 = vmatprep.subr.mxu0 0.0
        %6340 = vmatpush1.msra.mxu0 0.0
        %6341 = vmatprep.subr.mxu0 0.0
        %6342 = vmatpush1.msra.mxu0 0.0
        %6343 = vmatprep.subr.mxu0 0.0
        %6344 = vmatpush1.msra.mxu0 0.0
        %6345 = vmatprep.subr.mxu0 0.0
        %6346 = vmatpush1.msra.mxu0 0.0
        %6347 = vmatprep.subr.mxu0 0.0
        %6348 = vmatpush1.msra.mxu0 0.0
        %6349 = vmatprep.subr.mxu0 0.0
        %6350 = vmatpush1.msra.mxu0 0.0
        %6351 = vmatprep.subr.mxu0 0.0
        %6352 = vmatpush1.msra.mxu0 0.0
        %6353 = vmatprep.subr.mxu0 0.0
        %6354 = vmatpush1.msra.mxu0 0.0
        %6355 = vmatprep.subr.mxu0 0.0
        %6356 = vmatpush1.msra.mxu0 0.0
        %6357 = vmatprep.subr.mxu0 0.0
        %6358 = vmatpush1.msra.mxu0 0.0
        %6359 = vmatprep.subr.mxu0 0.0
        %6360 = vmatpush1.msra.mxu0 0.0
        %6361 = vmatprep.subr.mxu0 0.0
        %6362 = vmatpush1.msra.mxu0 0.0
        %6363 = vmatprep.subr.mxu0 0.0
        %6364 = vmatpush1.msra.mxu0 0.0
        %6365 = vmatprep.mubr.f32.mxu0 0.0
        %6366 = vmatmul.mubr.f32.gmra.mrb[0].mxu0 %v5660
        %v6367 = vpop.f32.mrb[0].mxu0
        %v6368 = vadd.f32 0.0, %v6367
        %v6369 = vpop.f32.mrb[0].mxu0
        %v6370 = vadd.f32 0.0, %v6369
        %6371 = vdwg.mxu0
        %6372 = vmatprep.subr.mxu0 %v5652
        %6373 = vmatpush1.msra.mxu0 %v5651
        %6374 = vmatprep.subr.mxu0 %v5654
        %6375 = vmatpush1.msra.mxu0 %v5653
        %6376 = vmatprep.subr.mxu0 %v5656
        %6377 = vmatpush1.msra.mxu0 %v5655
        %6378 = vmatprep.subr.mxu0 %v5658
        %6379 = vmatpush1.msra.mxu0 %v5657
        %6380 = vmatprep.subr.mxu0 0.0
        %6381 = vmatpush1.msra.mxu0 0.0
        %6382 = vmatprep.subr.mxu0 0.0
        %6383 = vmatpush1.msra.mxu0 0.0
        %6384 = vmatprep.subr.mxu0 0.0
        %6385 = vmatpush1.msra.mxu0 0.0
        %6386 = vmatprep.subr.mxu0 0.0
        %6387 = vmatpush1.msra.mxu0 0.0
        %6388 = vmatprep.subr.mxu0 0.0
        %6389 = vmatpush1.msra.mxu0 0.0
        %6390 = vmatprep.subr.mxu0 0.0
        %6391 = vmatpush1.msra.mxu0 0.0
        %6392 = vmatprep.subr.mxu0 0.0
        %6393 = vmatpush1.msra.mxu0 0.0
        %6394 = vmatprep.subr.mxu0 0.0
        %6395 = vmatpush1.msra.mxu0 0.0
        %6396 = vmatprep.subr.mxu0 0.0
        %6397 = vmatpush1.msra.mxu0 0.0
        %6398 = vmatprep.subr.mxu0 0.0
        %6399 = vmatpush1.msra.mxu0 0.0
        %6400 = vmatprep.subr.mxu0 0.0
        %6401 = vmatpush1.msra.mxu0 0.0
        %6402 = vmatprep.subr.mxu0 0.0
        %6403 = vmatpush1.msra.mxu0 0.0
        %6404 = vmatprep.subr.mxu0 0.0
        %6405 = vmatpush1.msra.mxu0 0.0
        %6406 = vmatprep.subr.mxu0 0.0
        %6407 = vmatpush1.msra.mxu0 0.0
        %6408 = vmatprep.subr.mxu0 0.0
        %6409 = vmatpush1.msra.mxu0 0.0
        %6410 = vmatprep.subr.mxu0 0.0
        %6411 = vmatpush1.msra.mxu0 0.0
        %6412 = vmatprep.subr.mxu0 0.0
        %6413 = vmatpush1.msra.mxu0 0.0
        %6414 = vmatprep.subr.mxu0 0.0
        %6415 = vmatpush1.msra.mxu0 0.0
        %6416 = vmatprep.subr.mxu0 0.0
        %6417 = vmatpush1.msra.mxu0 0.0
        %6418 = vmatprep.subr.mxu0 0.0
        %6419 = vmatpush1.msra.mxu0 0.0
        %6420 = vmatprep.subr.mxu0 0.0
        %6421 = vmatpush1.msra.mxu0 0.0
        %6422 = vmatprep.subr.mxu0 0.0
        %6423 = vmatpush1.msra.mxu0 0.0
        %6424 = vmatprep.subr.mxu0 0.0
        %6425 = vmatpush1.msra.mxu0 0.0
        %6426 = vmatprep.subr.mxu0 0.0
        %6427 = vmatpush1.msra.mxu0 0.0
        %6428 = vmatprep.subr.mxu0 0.0
        %6429 = vmatpush1.msra.mxu0 0.0
        %6430 = vmatprep.subr.mxu0 0.0
        %6431 = vmatpush1.msra.mxu0 0.0
        %6432 = vmatprep.subr.mxu0 0.0
        %6433 = vmatpush1.msra.mxu0 0.0
        %6434 = vmatprep.subr.mxu0 0.0
        %6435 = vmatpush1.msra.mxu0 0.0
        %6436 = vmatprep.mubr.f32.mxu0 0.0
        %6437 = vmatmul.mubr.f32.gmra.mrb[0].mxu0 %v5660
        %v6438 = vpop.f32.mrb[0].mxu0
        %v6439 = vadd.f32 0.0, %v6438
        %v6440 = vpop.f32.mrb[0].mxu0
        %v6441 = vadd.f32 0.0, %v6440
        %6442 = vdwg.mxu0
        %v6444 = vsel %vm671, %v276, 0
        %v6447 = vsel %vm671, %v277, 0
        %v6450 = vsel %vm671, %v278, 0
        %v6453 = vsel %vm671, %v279, 0
        %6455 = vmatprep.subr.mxu0 %v3531
        %6456 = vmatpush1.msra.mxu0 %v3530
        %6457 = vmatprep.subr.mxu0 %v3533
        %6458 = vmatpush1.msra.mxu0 %v3532
        %6459 = vmatprep.subr.mxu0 %v3535
        %6460 = vmatpush1.msra.mxu0 %v3534
        %6461 = vmatprep.subr.mxu0 %v3537
        %6462 = vmatpush1.msra.mxu0 %v3536
        %6463 = vmatprep.subr.mxu0 0.0
        %6464 = vmatpush1.msra.mxu0 0.0
        %6465 = vmatprep.subr.mxu0 0.0
        %6466 = vmatpush1.msra.mxu0 0.0
        %6467 = vmatprep.subr.mxu0 0.0
        %6468 = vmatpush1.msra.mxu0 0.0
        %6469 = vmatprep.subr.mxu0 0.0
        %6470 = vmatpush1.msra.mxu0 0.0
        %6471 = vmatprep.subr.mxu0 0.0
        %6472 = vmatpush1.msra.mxu0 0.0
        %6473 = vmatprep.subr.mxu0 0.0
        %6474 = vmatpush1.msra.mxu0 0.0
        %6475 = vmatprep.subr.mxu0 0.0
        %6476 = vmatpush1.msra.mxu0 0.0
        %6477 = vmatprep.subr.mxu0 0.0
        %6478 = vmatpush1.msra.mxu0 0.0
        %6479 = vmatprep.subr.mxu0 0.0
        %6480 = vmatpush1.msra.mxu0 0.0
        %6481 = vmatprep.subr.mxu0 0.0
        %6482 = vmatpush1.msra.mxu0 0.0
        %6483 = vmatprep.subr.mxu0 0.0
        %6484 = vmatpush1.msra.mxu0 0.0
        %6485 = vmatprep.subr.mxu0 0.0
        %6486 = vmatpush1.msra.mxu0 0.0
        %6487 = vmatprep.subr.mxu0 0.0
        %6488 = vmatpush1.msra.mxu0 0.0
        %6489 = vmatprep.subr.mxu0 0.0
        %6490 = vmatpush1.msra.mxu0 0.0
        %6491 = vmatprep.subr.mxu0 0.0
        %6492 = vmatpush1.msra.mxu0 0.0
        %6493 = vmatprep.subr.mxu0 0.0
        %6494 = vmatpush1.msra.mxu0 0.0
        %6495 = vmatprep.subr.mxu0 0.0
        %6496 = vmatpush1.msra.mxu0 0.0
        %6497 = vmatprep.subr.mxu0 0.0
        %6498 = vmatpush1.msra.mxu0 0.0
        %6499 = vmatprep.subr.mxu0 0.0
        %6500 = vmatpush1.msra.mxu0 0.0
        %6501 = vmatprep.subr.mxu0 0.0
        %6502 = vmatpush1.msra.mxu0 0.0
        %6503 = vmatprep.subr.mxu0 0.0
        %6504 = vmatpush1.msra.mxu0 0.0
        %6505 = vmatprep.subr.mxu0 0.0
        %6506 = vmatpush1.msra.mxu0 0.0
        %6507 = vmatprep.subr.mxu0 0.0
        %6508 = vmatpush1.msra.mxu0 0.0
        %6509 = vmatprep.subr.mxu0 0.0
        %6510 = vmatpush1.msra.mxu0 0.0
        %6511 = vmatprep.subr.mxu0 0.0
        %6512 = vmatpush1.msra.mxu0 0.0
        %6513 = vmatprep.subr.mxu0 0.0
        %6514 = vmatpush1.msra.mxu0 0.0
        %6515 = vmatprep.subr.mxu0 0.0
        %6516 = vmatpush1.msra.mxu0 0.0
        %6517 = vmatprep.subr.mxu0 0.0
        %6518 = vmatpush1.msra.mxu0 0.0
        %6519 = vmatprep.mubr.f32.mxu0 0.0
        %6520 = vmatmul.mubr.f32.gmra.mrb[0].mxu0 %v6444
        %v6521 = vpop.f32.mrb[0].mxu0
        %v6522 = vadd.f32 0.0, %v6521
        %v6523 = vpop.f32.mrb[0].mxu0
        %v6524 = vadd.f32 0.0, %v6523
        %6525 = vmatprep.mubr.f32.mxu0 0.0
        %6526 = vmatmul.mubr.f32.gmra.mrb[0].mxu0 %v6447
        %v6527 = vpop.f32.mrb[0].mxu0
        %v6528 = vadd.f32 0.0, %v6527
        %v6529 = vpop.f32.mrb[0].mxu0
        %v6530 = vadd.f32 0.0, %v6529
        %6531 = vmatprep.mubr.f32.mxu0 0.0
        %6532 = vmatmul.mubr.f32.gmra.mrb[0].mxu0 %v6450
        %v6533 = vpop.f32.mrb[0].mxu0
        %v6534 = vadd.f32 0.0, %v6533
        %v6535 = vpop.f32.mrb[0].mxu0
        %v6536 = vadd.f32 0.0, %v6535
        %6537 = vmatprep.mubr.f32.mxu0 0.0
        %6538 = vmatmul.mubr.f32.gmra.mrb[0].mxu0 %v6453
        %v6539 = vpop.f32.mrb[0].mxu0
        %v6540 = vadd.f32 0.0, %v6539
        %v6541 = vpop.f32.mrb[0].mxu0
        %v6542 = vadd.f32 0.0, %v6541
        %6543 = vdwg.mxu0
        %6544 = vmatprep.subr.mxu0 %v3667
        %6545 = vmatpush1.msra.mxu0 %v3666
        %6546 = vmatprep.subr.mxu0 %v3669
        %6547 = vmatpush1.msra.mxu0 %v3668
        %6548 = vmatprep.subr.mxu0 %v3671
        %6549 = vmatpush1.msra.mxu0 %v3670
        %6550 = vmatprep.subr.mxu0 %v3673
        %6551 = vmatpush1.msra.mxu0 %v3672
        %6552 = vmatprep.subr.mxu0 0.0
        %6553 = vmatpush1.msra.mxu0 0.0
        %6554 = vmatprep.subr.mxu0 0.0
        %6555 = vmatpush1.msra.mxu0 0.0
        %6556 = vmatprep.subr.mxu0 0.0
        %6557 = vmatpush1.msra.mxu0 0.0
        %6558 = vmatprep.subr.mxu0 0.0
        %6559 = vmatpush1.msra.mxu0 0.0
        %6560 = vmatprep.subr.mxu0 0.0
        %6561 = vmatpush1.msra.mxu0 0.0
        %6562 = vmatprep.subr.mxu0 0.0
        %6563 = vmatpush1.msra.mxu0 0.0
        %6564 = vmatprep.subr.mxu0 0.0
        %6565 = vmatpush1.msra.mxu0 0.0
        %6566 = vmatprep.subr.mxu0 0.0
        %6567 = vmatpush1.msra.mxu0 0.0
        %6568 = vmatprep.subr.mxu0 0.0
        %6569 = vmatpush1.msra.mxu0 0.0
        %6570 = vmatprep.subr.mxu0 0.0
        %6571 = vmatpush1.msra.mxu0 0.0
        %6572 = vmatprep.subr.mxu0 0.0
        %6573 = vmatpush1.msra.mxu0 0.0
        %6574 = vmatprep.subr.mxu0 0.0
        %6575 = vmatpush1.msra.mxu0 0.0
        %6576 = vmatprep.subr.mxu0 0.0
        %6577 = vmatpush1.msra.mxu0 0.0
        %6578 = vmatprep.subr.mxu0 0.0
        %6579 = vmatpush1.msra.mxu0 0.0
        %6580 = vmatprep.subr.mxu0 0.0
        %6581 = vmatpush1.msra.mxu0 0.0
        %6582 = vmatprep.subr.mxu0 0.0
        %6583 = vmatpush1.msra.mxu0 0.0
        %6584 = vmatprep.subr.mxu0 0.0
        %6585 = vmatpush1.msra.mxu0 0.0
        %6586 = vmatprep.subr.mxu0 0.0
        %6587 = vmatpush1.msra.mxu0 0.0
        %6588 = vmatprep.subr.mxu0 0.0
        %6589 = vmatpush1.msra.mxu0 0.0
        %6590 = vmatprep.subr.mxu0 0.0
        %6591 = vmatpush1.msra.mxu0 0.0
        %6592 = vmatprep.subr.mxu0 0.0
        %6593 = vmatpush1.msra.mxu0 0.0
        %6594 = vmatprep.subr.mxu0 0.0
        %6595 = vmatpush1.msra.mxu0 0.0
        %6596 = vmatprep.subr.mxu0 0.0
        %6597 = vmatpush1.msra.mxu0 0.0
        %6598 = vmatprep.subr.mxu0 0.0
        %6599 = vmatpush1.msra.mxu0 0.0
        %6600 = vmatprep.subr.mxu0 0.0
        %6601 = vmatpush1.msra.mxu0 0.0
        %6602 = vmatprep.subr.mxu0 0.0
        %6603 = vmatpush1.msra.mxu0 0.0
        %6604 = vmatprep.subr.mxu0 0.0
        %6605 = vmatpush1.msra.mxu0 0.0
        %6606 = vmatprep.subr.mxu0 0.0
        %6607 = vmatpush1.msra.mxu0 0.0
        %6608 = vmatprep.mubr.f32.mxu0 0.0
        %6609 = vmatmul.mubr.f32.gmra.mrb[0].mxu0 %v6444
        %v6610 = vpop.f32.mrb[0].mxu0
        %v6611 = vadd.f32 0.0, %v6610
        %v6612 = vpop.f32.mrb[0].mxu0
        %v6613 = vadd.f32 0.0, %v6612
        %6614 = vmatprep.mubr.f32.mxu0 0.0
        %6615 = vmatmul.mubr.f32.gmra.mrb[0].mxu0 %v6447
        %v6616 = vpop.f32.mrb[0].mxu0
        %v6617 = vadd.f32 0.0, %v6616
        %v6618 = vpop.f32.mrb[0].mxu0
        %v6619 = vadd.f32 0.0, %v6618
        %6620 = vmatprep.mubr.f32.mxu0 0.0
        %6621 = vmatmul.mubr.f32.gmra.mrb[0].mxu0 %v6450
        %v6622 = vpop.f32.mrb[0].mxu0
        %v6623 = vadd.f32 0.0, %v6622
        %v6624 = vpop.f32.mrb[0].mxu0
        %v6625 = vadd.f32 0.0, %v6624
        %6626 = vmatprep.mubr.f32.mxu0 0.0
        %6627 = vmatmul.mubr.f32.gmra.mrb[0].mxu0 %v6453
        %v6628 = vpop.f32.mrb[0].mxu0
        %v6629 = vadd.f32 0.0, %v6628
        %v6630 = vpop.f32.mrb[0].mxu0
        %v6631 = vadd.f32 0.0, %v6630
        %6632 = vdwg.mxu0
        %6633 = vmatprep.subr.mxu0 %v3675
        %6634 = vmatpush1.msra.mxu0 %v3674
        %6635 = vmatprep.subr.mxu0 %v3677
        %6636 = vmatpush1.msra.mxu0 %v3676
        %6637 = vmatprep.subr.mxu0 %v3679
        %6638 = vmatpush1.msra.mxu0 %v3678
        %6639 = vmatprep.subr.mxu0 %v3681
        %6640 = vmatpush1.msra.mxu0 %v3680
        %6641 = vmatprep.subr.mxu0 0.0
        %6642 = vmatpush1.msra.mxu0 0.0
        %6643 = vmatprep.subr.mxu0 0.0
        %6644 = vmatpush1.msra.mxu0 0.0
        %6645 = vmatprep.subr.mxu0 0.0
        %6646 = vmatpush1.msra.mxu0 0.0
        %6647 = vmatprep.subr.mxu0 0.0
        %6648 = vmatpush1.msra.mxu0 0.0
        %6649 = vmatprep.subr.mxu0 0.0
        %6650 = vmatpush1.msra.mxu0 0.0
        %6651 = vmatprep.subr.mxu0 0.0
        %6652 = vmatpush1.msra.mxu0 0.0
        %6653 = vmatprep.subr.mxu0 0.0
        %6654 = vmatpush1.msra.mxu0 0.0
        %6655 = vmatprep.subr.mxu0 0.0
        %6656 = vmatpush1.msra.mxu0 0.0
        %6657 = vmatprep.subr.mxu0 0.0
        %6658 = vmatpush1.msra.mxu0 0.0
        %6659 = vmatprep.subr.mxu0 0.0
        %6660 = vmatpush1.msra.mxu0 0.0
        %6661 = vmatprep.subr.mxu0 0.0
        %6662 = vmatpush1.msra.mxu0 0.0
        %6663 = vmatprep.subr.mxu0 0.0
        %6664 = vmatpush1.msra.mxu0 0.0
        %6665 = vmatprep.subr.mxu0 0.0
        %6666 = vmatpush1.msra.mxu0 0.0
        %6667 = vmatprep.subr.mxu0 0.0
        %6668 = vmatpush1.msra.mxu0 0.0
        %6669 = vmatprep.subr.mxu0 0.0
        %6670 = vmatpush1.msra.mxu0 0.0
        %6671 = vmatprep.subr.mxu0 0.0
        %6672 = vmatpush1.msra.mxu0 0.0
        %6673 = vmatprep.subr.mxu0 0.0
        %6674 = vmatpush1.msra.mxu0 0.0
        %6675 = vmatprep.subr.mxu0 0.0
        %6676 = vmatpush1.msra.mxu0 0.0
        %6677 = vmatprep.subr.mxu0 0.0
        %6678 = vmatpush1.msra.mxu0 0.0
        %6679 = vmatprep.subr.mxu0 0.0
        %6680 = vmatpush1.msra.mxu0 0.0
        %6681 = vmatprep.subr.mxu0 0.0
        %6682 = vmatpush1.msra.mxu0 0.0
        %6683 = vmatprep.subr.mxu0 0.0
        %6684 = vmatpush1.msra.mxu0 0.0
        %6685 = vmatprep.subr.mxu0 0.0
        %6686 = vmatpush1.msra.mxu0 0.0
        %6687 = vmatprep.subr.mxu0 0.0
        %6688 = vmatpush1.msra.mxu0 0.0
        %6689 = vmatprep.subr.mxu0 0.0
        %6690 = vmatpush1.msra.mxu0 0.0
        %6691 = vmatprep.subr.mxu0 0.0
        %6692 = vmatpush1.msra.mxu0 0.0
        %6693 = vmatprep.subr.mxu0 0.0
        %6694 = vmatpush1.msra.mxu0 0.0
        %6695 = vmatprep.subr.mxu0 0.0
        %6696 = vmatpush1.msra.mxu0 0.0
        %6697 = vmatprep.mubr.f32.mxu0 0.0
        %6698 = vmatmul.mubr.f32.gmra.mrb[0].mxu0 %v6444
        %v6699 = vpop.f32.mrb[0].mxu0
        %v6700 = vadd.f32 0.0, %v6699
        %v6701 = vpop.f32.mrb[0].mxu0
        %v6702 = vadd.f32 0.0, %v6701
        %6703 = vmatprep.mubr.f32.mxu0 0.0
        %6704 = vmatmul.mubr.f32.gmra.mrb[0].mxu0 %v6447
        %v6705 = vpop.f32.mrb[0].mxu0
        %v6706 = vadd.f32 0.0, %v6705
        %v6707 = vpop.f32.mrb[0].mxu0
        %v6708 = vadd.f32 0.0, %v6707
        %6709 = vmatprep.mubr.f32.mxu0 0.0
        %6710 = vmatmul.mubr.f32.gmra.mrb[0].mxu0 %v6450
        %v6711 = vpop.f32.mrb[0].mxu0
        %v6712 = vadd.f32 0.0, %v6711
        %v6713 = vpop.f32.mrb[0].mxu0
        %v6714 = vadd.f32 0.0, %v6713
        %6715 = vmatprep.mubr.f32.mxu0 0.0
        %6716 = vmatmul.mubr.f32.gmra.mrb[0].mxu0 %v6453
        %v6717 = vpop.f32.mrb[0].mxu0
        %v6718 = vadd.f32 0.0, %v6717
        %v6719 = vpop.f32.mrb[0].mxu0
        %v6720 = vadd.f32 0.0, %v6719
        %6721 = vdwg.mxu0
        %6722 = vset.pattern.permute.xlu0 4
        %6723 = vperm.xlu0 %6722, %v283
        %v6724 = vpop.permute.xlu0 %6723
        %6726 = vset.pattern.permute.xlu0 4
        %6727 = vperm.xlu0 %6726, %v284
        %v6728 = vpop.permute.xlu0 %6727
        %6730 = vset.pattern.permute.xlu0 4
        %6731 = vperm.xlu0 %6730, %v285
        %v6732 = vpop.permute.xlu0 %6731
        %6734 = vset.pattern.permute.xlu0 4
        %6735 = vperm.xlu0 %6734, %v286
        %v6736 = vpop.permute.xlu0 %6735
        %v6738 = vadd.f32 %v6522, %v6724
        %v6739 = vadd.f32 %v6524, %v6724
        %v6740 = vadd.f32 %v6528, %v6728
        %v6741 = vadd.f32 %v6530, %v6728
        %v6742 = vadd.f32 %v6534, %v6732
        %v6743 = vadd.f32 %v6536, %v6732
        %v6744 = vadd.f32 %v6540, %v6736
        %v6745 = vadd.f32 %v6542, %v6736
        %v6746 = vtanh.pop %v6738
        %v6747 = vtanh.pop %v6739
        %v6748 = vtanh.pop %v6740
        %v6749 = vtanh.pop %v6741
        %v6750 = vtanh.pop %v6742
        %v6751 = vtanh.pop %v6743
        %v6752 = vtanh.pop %v6744
        %v6753 = vtanh.pop %v6745
        %v6754 = vmul.f32 %v6746, %v6746
        %v6755 = vmul.f32 %v6747, %v6747
        %v6756 = vmul.f32 %v6748, %v6748
        %v6757 = vmul.f32 %v6749, %v6749
        %v6758 = vmul.f32 %v6750, %v6750
        %v6759 = vmul.f32 %v6751, %v6751
        %v6760 = vmul.f32 %v6752, %v6752
        %v6761 = vmul.f32 %v6753, %v6753
        %v6762 = vsub.f32 1.0, %v6754
        %v6763 = vsub.f32 1.0, %v6755
        %v6764 = vsub.f32 1.0, %v6756
        %v6765 = vsub.f32 1.0, %v6757
        %v6766 = vsub.f32 1.0, %v6758
        %v6767 = vsub.f32 1.0, %v6759
        %v6768 = vsub.f32 1.0, %v6760
        %v6769 = vsub.f32 1.0, %v6761
        %v6770 = vmul.f32 %v6762, %v6611
        %v6771 = vmul.f32 %v6763, %v6613
        %v6772 = vmul.f32 %v6764, %v6617
        %v6773 = vmul.f32 %v6765, %v6619
        %v6774 = vmul.f32 %v6766, %v6623
        %v6775 = vmul.f32 %v6767, %v6625
        %v6776 = vmul.f32 %v6768, %v6629
        %v6777 = vmul.f32 %v6769, %v6631
        %v6778 = vmul.f32 %v6762, %v6700
        %v6779 = vmul.f32 %v6763, %v6702
        %v6780 = vmul.f32 %v6764, %v6706
        %v6781 = vmul.f32 %v6765, %v6708
        %v6782 = vmul.f32 %v6766, %v6712
        %v6783 = vmul.f32 %v6767, %v6714
        %v6784 = vmul.f32 %v6768, %v6718
        %v6785 = vmul.f32 %v6769, %v6720
        %v6787 = vsel %vm671, %v282, 0
        %6789 = vmatprep.subr.mxu0 %v6747
        %6790 = vmatpush1.msra.mxu0 %v6746
        %6791 = vmatprep.subr.mxu0 %v6749
        %6792 = vmatpush1.msra.mxu0 %v6748
        %6793 = vmatprep.subr.mxu0 %v6751
        %6794 = vmatpush1.msra.mxu0 %v6750
        %6795 = vmatprep.subr.mxu0 %v6753
        %6796 = vmatpush1.msra.mxu0 %v6752
        %6797 = vmatprep.subr.mxu0 0.0
        %6798 = vmatpush1.msra.mxu0 0.0
        %6799 = vmatprep.subr.mxu0 0.0
        %6800 = vmatpush1.msra.mxu0 0.0
        %6801 = vmatprep.subr.mxu0 0.0
        %6802 = vmatpush1.msra.mxu0 0.0
        %6803 = vmatprep.subr.mxu0 0.0
        %6804 = vmatpush1.msra.mxu0 0.0
        %6805 = vmatprep.subr.mxu0 0.0
        %6806 = vmatpush1.msra.mxu0 0.0
        %6807 = vmatprep.subr.mxu0 0.0
        %6808 = vmatpush1.msra.mxu0 0.0
        %6809 = vmatprep.subr.mxu0 0.0
        %6810 = vmatpush1.msra.mxu0 0.0
        %6811 = vmatprep.subr.mxu0 0.0
        %6812 = vmatpush1.msra.mxu0 0.0
        %6813 = vmatprep.subr.mxu0 0.0
        %6814 = vmatpush1.msra.mxu0 0.0
        %6815 = vmatprep.subr.mxu0 0.0
        %6816 = vmatpush1.msra.mxu0 0.0
        %6817 = vmatprep.subr.mxu0 0.0
        %6818 = vmatpush1.msra.mxu0 0.0
        %6819 = vmatprep.subr.mxu0 0.0
        %6820 = vmatpush1.msra.mxu0 0.0
        %6821 = vmatprep.subr.mxu0 0.0
        %6822 = vmatpush1.msra.mxu0 0.0
        %6823 = vmatprep.subr.mxu0 0.0
        %6824 = vmatpush1.msra.mxu0 0.0
        %6825 = vmatprep.subr.mxu0 0.0
        %6826 = vmatpush1.msra.mxu0 0.0
        %6827 = vmatprep.subr.mxu0 0.0
        %6828 = vmatpush1.msra.mxu0 0.0
        %6829 = vmatprep.subr.mxu0 0.0
        %6830 = vmatpush1.msra.mxu0 0.0
        %6831 = vmatprep.subr.mxu0 0.0
        %6832 = vmatpush1.msra.mxu0 0.0
        %6833 = vmatprep.subr.mxu0 0.0
        %6834 = vmatpush1.msra.mxu0 0.0
        %6835 = vmatprep.subr.mxu0 0.0
        %6836 = vmatpush1.msra.mxu0 0.0
        %6837 = vmatprep.subr.mxu0 0.0
        %6838 = vmatpush1.msra.mxu0 0.0
        %6839 = vmatprep.subr.mxu0 0.0
        %6840 = vmatpush1.msra.mxu0 0.0
        %6841 = vmatprep.subr.mxu0 0.0
        %6842 = vmatpush1.msra.mxu0 0.0
        %6843 = vmatprep.subr.mxu0 0.0
        %6844 = vmatpush1.msra.mxu0 0.0
        %6845 = vmatprep.subr.mxu0 0.0
        %6846 = vmatpush1.msra.mxu0 0.0
        %6847 = vmatprep.subr.mxu0 0.0
        %6848 = vmatpush1.msra.mxu0 0.0
        %6849 = vmatprep.subr.mxu0 0.0
        %6850 = vmatpush1.msra.mxu0 0.0
        %6851 = vmatprep.subr.mxu0 0.0
        %6852 = vmatpush1.msra.mxu0 0.0
        %6853 = vmatprep.mubr.f32.mxu0 0.0
        %6854 = vmatmul.mubr.f32.gmra.mrb[0].mxu0 %v6787
        %v6855 = vpop.f32.mrb[0].mxu0
        %v6856 = vadd.f32 0.0, %v6855
        %v6857 = vpop.f32.mrb[0].mxu0
        %v6858 = vadd.f32 0.0, %v6857
        %6859 = vdwg.mxu0
        %6860 = vmatprep.subr.mxu0 %v6771
        %6861 = vmatpush1.msra.mxu0 %v6770
        %6862 = vmatprep.subr.mxu0 %v6773
        %6863 = vmatpush1.msra.mxu0 %v6772
        %6864 = vmatprep.subr.mxu0 %v6775
        %6865 = vmatpush1.msra.mxu0 %v6774
        %6866 = vmatprep.subr.mxu0 %v6777
        %6867 = vmatpush1.msra.mxu0 %v6776
        %6868 = vmatprep.subr.mxu0 0.0
        %6869 = vmatpush1.msra.mxu0 0.0
        %6870 = vmatprep.subr.mxu0 0.0
        %6871 = vmatpush1.msra.mxu0 0.0
        %6872 = vmatprep.subr.mxu0 0.0
        %6873 = vmatpush1.msra.mxu0 0.0
        %6874 = vmatprep.subr.mxu0 0.0
        %6875 = vmatpush1.msra.mxu0 0.0
        %6876 = vmatprep.subr.mxu0 0.0
        %6877 = vmatpush1.msra.mxu0 0.0
        %6878 = vmatprep.subr.mxu0 0.0
        %6879 = vmatpush1.msra.mxu0 0.0
        %6880 = vmatprep.subr.mxu0 0.0
        %6881 = vmatpush1.msra.mxu0 0.0
        %6882 = vmatprep.subr.mxu0 0.0
        %6883 = vmatpush1.msra.mxu0 0.0
        %6884 = vmatprep.subr.mxu0 0.0
        %6885 = vmatpush1.msra.mxu0 0.0
        %6886 = vmatprep.subr.mxu0 0.0
        %6887 = vmatpush1.msra.mxu0 0.0
        %6888 = vmatprep.subr.mxu0 0.0
        %6889 = vmatpush1.msra.mxu0 0.0
        %6890 = vmatprep.subr.mxu0 0.0
        %6891 = vmatpush1.msra.mxu0 0.0
        %6892 = vmatprep.subr.mxu0 0.0
        %6893 = vmatpush1.msra.mxu0 0.0
        %6894 = vmatprep.subr.mxu0 0.0
        %6895 = vmatpush1.msra.mxu0 0.0
        %6896 = vmatprep.subr.mxu0 0.0
        %6897 = vmatpush1.msra.mxu0 0.0
        %6898 = vmatprep.subr.mxu0 0.0
        %6899 = vmatpush1.msra.mxu0 0.0
        %6900 = vmatprep.subr.mxu0 0.0
        %6901 = vmatpush1.msra.mxu0 0.0
        %6902 = vmatprep.subr.mxu0 0.0
        %6903 = vmatpush1.msra.mxu0 0.0
        %6904 = vmatprep.subr.mxu0 0.0
        %6905 = vmatpush1.msra.mxu0 0.0
        %6906 = vmatprep.subr.mxu0 0.0
        %6907 = vmatpush1.msra.mxu0 0.0
        %6908 = vmatprep.subr.mxu0 0.0
        %6909 = vmatpush1.msra.mxu0 0.0
        %6910 = vmatprep.subr.mxu0 0.0
        %6911 = vmatpush1.msra.mxu0 0.0
        %6912 = vmatprep.subr.mxu0 0.0
        %6913 = vmatpush1.msra.mxu0 0.0
        %6914 = vmatprep.subr.mxu0 0.0
        %6915 = vmatpush1.msra.mxu0 0.0
        %6916 = vmatprep.subr.mxu0 0.0
        %6917 = vmatpush1.msra.mxu0 0.0
        %6918 = vmatprep.subr.mxu0 0.0
        %6919 = vmatpush1.msra.mxu0 0.0
        %6920 = vmatprep.subr.mxu0 0.0
        %6921 = vmatpush1.msra.mxu0 0.0
        %6922 = vmatprep.subr.mxu0 0.0
        %6923 = vmatpush1.msra.mxu0 0.0
        %6924 = vmatprep.mubr.f32.mxu0 0.0
        %6925 = vmatmul.mubr.f32.gmra.mrb[0].mxu0 %v6787
        %v6926 = vpop.f32.mrb[0].mxu0
        %v6927 = vadd.f32 0.0, %v6926
        %v6928 = vpop.f32.mrb[0].mxu0
        %v6929 = vadd.f32 0.0, %v6928
        %6930 = vdwg.mxu0
        %6931 = vmatprep.subr.mxu0 %v6779
        %6932 = vmatpush1.msra.mxu0 %v6778
        %6933 = vmatprep.subr.mxu0 %v6781
        %6934 = vmatpush1.msra.mxu0 %v6780
        %6935 = vmatprep.subr.mxu0 %v6783
        %6936 = vmatpush1.msra.mxu0 %v6782
        %6937 = vmatprep.subr.mxu0 %v6785
        %6938 = vmatpush1.msra.mxu0 %v6784
        %6939 = vmatprep.subr.mxu0 0.0
        %6940 = vmatpush1.msra.mxu0 0.0
        %6941 = vmatprep.subr.mxu0 0.0
        %6942 = vmatpush1.msra.mxu0 0.0
        %6943 = vmatprep.subr.mxu0 0.0
        %6944 = vmatpush1.msra.mxu0 0.0
        %6945 = vmatprep.subr.mxu0 0.0
        %6946 = vmatpush1.msra.mxu0 0.0
        %6947 = vmatprep.subr.mxu0 0.0
        %6948 = vmatpush1.msra.mxu0 0.0
        %6949 = vmatprep.subr.mxu0 0.0
        %6950 = vmatpush1.msra.mxu0 0.0
        %6951 = vmatprep.subr.mxu0 0.0
        %6952 = vmatpush1.msra.mxu0 0.0
        %6953 = vmatprep.subr.mxu0 0.0
        %6954 = vmatpush1.msra.mxu0 0.0
        %6955 = vmatprep.subr.mxu0 0.0
        %6956 = vmatpush1.msra.mxu0 0.0
        %6957 = vmatprep.subr.mxu0 0.0
        %6958 = vmatpush1.msra.mxu0 0.0
        %6959 = vmatprep.subr.mxu0 0.0
        %6960 = vmatpush1.msra.mxu0 0.0
        %6961 = vmatprep.subr.mxu0 0.0
        %6962 = vmatpush1.msra.mxu0 0.0
        %6963 = vmatprep.subr.mxu0 0.0
        %6964 = vmatpush1.msra.mxu0 0.0
        %6965 = vmatprep.subr.mxu0 0.0
        %6966 = vmatpush1.msra.mxu0 0.0
        %6967 = vmatprep.subr.mxu0 0.0
        %6968 = vmatpush1.msra.mxu0 0.0
        %6969 = vmatprep.subr.mxu0 0.0
        %6970 = vmatpush1.msra.mxu0 0.0
        %6971 = vmatprep.subr.mxu0 0.0
        %6972 = vmatpush1.msra.mxu0 0.0
        %6973 = vmatprep.subr.mxu0 0.0
        %6974 = vmatpush1.msra.mxu0 0.0
        %6975 = vmatprep.subr.mxu0 0.0
        %6976 = vmatpush1.msra.mxu0 0.0
        %6977 = vmatprep.subr.mxu0 0.0
        %6978 = vmatpush1.msra.mxu0 0.0
        %6979 = vmatprep.subr.mxu0 0.0
        %6980 = vmatpush1.msra.mxu0 0.0
        %6981 = vmatprep.subr.mxu0 0.0
        %6982 = vmatpush1.msra.mxu0 0.0
        %6983 = vmatprep.subr.mxu0 0.0
        %6984 = vmatpush1.msra.mxu0 0.0
        %6985 = vmatprep.subr.mxu0 0.0
        %6986 = vmatpush1.msra.mxu0 0.0
        %6987 = vmatprep.subr.mxu0 0.0
        %6988 = vmatpush1.msra.mxu0 0.0
        %6989 = vmatprep.subr.mxu0 0.0
        %6990 = vmatpush1.msra.mxu0 0.0
        %6991 = vmatprep.subr.mxu0 0.0
        %6992 = vmatpush1.msra.mxu0 0.0
        %6993 = vmatprep.subr.mxu0 0.0
        %6994 = vmatpush1.msra.mxu0 0.0
        %6995 = vmatprep.mubr.f32.mxu0 0.0
        %6996 = vmatmul.mubr.f32.gmra.mrb[0].mxu0 %v6787
        %v6997 = vpop.f32.mrb[0].mxu0
        %v6998 = vadd.f32 0.0, %v6997
        %v6999 = vpop.f32.mrb[0].mxu0
        %v7000 = vadd.f32 0.0, %v6999
        %7001 = vdwg.mxu0
        %s7002 = sld [smem:[#allocation6]]
        %s7003 = sld [smem:[#allocation6 + $0x1]]
        %v7004 = vsub.f32 0.0, %v5729
        %v7005 = vsub.f32 0.0, %v5731
        %v7006 = vsub.f32 0.0, %v6084
        %v7007 = vsub.f32 0.0, %v6086
        %v7008 = vsub.f32 0.0, %v5871
        %v7009 = vsub.f32 0.0, %v5873
        %v7010 = vsub.f32 0.0, %v6013
        %v7011 = vsub.f32 0.0, %v6015
        %v7012 = vsub.f32 0.0, %v6226
        %v7013 = vsub.f32 0.0, %v6228
        %v7014 = vsub.f32 0.0, %v6439
        %v7015 = vsub.f32 0.0, %v6441
        %v7016 = vmul.f32 %v5800, %v6013
        %v7017 = vmul.f32 %v5802, %v6015
        %v7018 = vadd.f32 %v6155, %v7016
        %v7019 = vadd.f32 %v6157, %v7017
        %v7020 = vmul.f32 %v7004, %v5942
        %v7021 = vmul.f32 %v7005, %v5944
        %v7022 = vadd.f32 %v7018, %v7020
        %v7023 = vadd.f32 %v7019, %v7021
        %v7024 = vstv %s7002
        %v7025 = vmul.f32 %v7024, %v7022
        %v7026 = vmul.f32 %v7024, %v7023
        %v7029 = vrot.slane %v5729, 1
        %v7030 = vrot.slane %v5731, 1
        %v7033 = vadd.f32 %v7025, %v7029
        %v7034 = vadd.f32 %v7026, %v7030
        %v7035 = vadd.f32 %v6368, %v6297
        %v7036 = vadd.f32 %v6370, %v6299
        %v7037 = vstv %s7003
        %v7038 = vmul.f32 %v7037, %v7035
        %v7039 = vmul.f32 %v7037, %v7036
        %v7040 = vsub.f32 %v7033, %v7038
        %v7041 = vsub.f32 %v7034, %v7039
        %v7042 = vmul.f32 %v5800, %v7008
        %v7043 = vmul.f32 %v5802, %v7009
        %v7044 = vadd.f32 %v7006, %v7042
        %v7045 = vadd.f32 %v7007, %v7043
        %v7046 = vmul.f32 %v7004, %v7010
        %v7047 = vmul.f32 %v7005, %v7011
        %v7048 = vadd.f32 %v7044, %v7046
        %v7049 = vadd.f32 %v7045, %v7047
        %v7050 = vmul.f32 %v7024, %v7048
        %v7051 = vmul.f32 %v7024, %v7049
        %v7054 = vrot.slane %v5800, 1
        %v7055 = vrot.slane %v5802, 1
        %v7058 = vadd.f32 %v7050, %v7054
        %v7059 = vadd.f32 %v7051, %v7055
        %v7060 = vadd.f32 %v7012, %v7014
        %v7061 = vadd.f32 %v7013, %v7015
        %v7062 = vmul.f32 %v7037, %v7060
        %v7063 = vmul.f32 %v7037, %v7061
        %v7064 = vsub.f32 %v7058, %v7062
        %v7065 = vsub.f32 %v7059, %v7063
        %7067 = vset.pattern.permute.xlu0 6
        %7068 = vperm.xlu0 %7067, %v287
        %v7069 = vpop.permute.xlu0 %7068
        %v7070 = vrot.slane %v7069, 7
        %v7072 = vadd.f32 %v6856, %v7070
        %v7073 = vadd.f32 %v6858, %v7070
        %v7074 = vsub.f32 0.0, %v6927
        %v7075 = vsub.f32 0.0, %v6929
        %v7078 = vrot.slane %v7072, 1
        %v7079 = vrot.slane %v7073, 1
        %v7084 = vrot.slane %v6998, 7
        %v7085 = vrot.slane %v7000, 7
        %v7090 = vrot.slane %v7074, 6
        %v7091 = vrot.slane %v7075, 6
        %v7096 = vrot.slane %v7040, 5
        %v7097 = vrot.slane %v7041, 5
        %v7102 = vrot.slane %v7064, 4
        %v7103 = vrot.slane %v7065, 4
        %vm7106 = vcmask 1040384
        %v7107 = vsel %vm7106, %v7078, %v7084
        %v7108 = vsel %vm7106, %v7079, %v7085
        %vm7109 = vcmask 1041408
        %v7110 = vsel %vm7109, %v7107, %v7090
        %v7111 = vsel %vm7109, %v7108, %v7091
        %vm7112 = vcmask 1042432
        %v7113 = vsel %vm7112, %v7110, %v7096
        %v7114 = vsel %vm7112, %v7111, %v7097
        %vm7115 = vcmask 1043456
        %v7116 = vsel %vm7115, %v7113, %v7102
        %v7117 = vsel %vm7115, %v7114, %v7103
        %vm7118 = vcmask 1044480
        %v7119 = vsel %vm7118, %v7116, 0.0
        %v7120 = vsel %vm7118, %v7117, 0.0
        %7121 = vst [vmem:[%s247] sm:$0xff] %v7119
        %7122 = vst [vmem:[%s247 + $0x8] sm:$0xff] %v7120
        %s7123 = sand.u32 %s139, 1
        %s7124 = scalar_lea.sflag [#allocation4], %s7123
        %s7125 = sand.u32 %s139, 1
        %s7126 = smul.addr %s7125, 16
        %s7127 = scalar_lea.vmem [#allocation7], %s7126
        // Predicated region
        $region49: #{tpu_custom_call.1} parent=39 // pred_check
          %p7128 = pneg %p149
        $region50: #{tpu_custom_call.1} parent=39 // pred_check_branch
          %7130 = sbr.rel (%p7128) target = $region52
        $region51: #{tpu_custom_call.1} parent=39 // pred_region
          %s7131 = smul.u32 2, %s21
          %s7133 = ssub.s32 256, 256
          %7134 = vsyncadd %s7124, %s7133
          %s7135 = smul.addr %s7131, 128
          %s7136 = scalar_lea.hbm %s5, %s7135
          %s7138 = sshll.u32 %s7127, 4
          %s7139 = int_to_ptr.vmem [resolvable:$true] %s7138
          %7141 = dma.vmem_to_hbm [thread:$0]  %s7139, 256, %s7136, %s7124
        $region52: #{tpu_custom_call.1} parent=39 // pred_fallthru
          _
      $region40: #{tpu_custom_call.1} parent=5 // pred_fallthru
        _
      %p7142 = scmp.le.s32.totalorder 2, %s16
      // Predicated region
      $region53: #{tpu_custom_call.1} parent=5 // pred_check
        %p7143 = pneg %p7142
      $region54: #{tpu_custom_call.1} parent=5 // pred_check_branch
        %7145 = sbr.rel (%p7143) target = $region56
      $region55: #{tpu_custom_call.1} parent=5 // pred_region
        %s7146 = ssub.s32 %s16, 2
        // Predicated region
        $region57: #{tpu_custom_call.1} parent=55 // pred_check
          %p7147 = pneg %p155
        $region58: #{tpu_custom_call.1} parent=55 // pred_check_branch
          %7149 = sbr.rel (%p7147) target = $region60
        $region59: #{tpu_custom_call.1} parent=55 // pred_region
          %s7150 = sand.u32 %s140, 1
          %s7151 = scalar_lea.sflag [#allocation4], %s7150
          %s7152 = sand.u32 %s140, 1
          %s7153 = smul.addr %s7152, 16
          %s7154 = scalar_lea.vmem [#allocation7], %s7153
          %7155 = dma.done %s7151, 256
        $region60: #{tpu_custom_call.1} parent=55 // pred_fallthru
          _
      $region56: #{tpu_custom_call.1} parent=5 // pred_fallthru
        _
    $region6: #{tpu_custom_call.1} parent=1 // loop_footer
      %s20 = sadd.s32 1, %s16
    $region7: #{tpu_custom_call.1} parent=1 // loop_footer_branch
      %15 = sbr.rel target = $region3
    $region8: #{tpu_custom_call.1} parent=1 // loop_exit
      _
    %7156 = vsyncpa [#allocation3], 1
    %s7157 = scalar_lea.sflag [#allocation3], 1
    %7158 = vsyncpa %s7157, 1
    %7159 = vsyncpa [#allocation4], 1
    %s7160 = scalar_lea.sflag [#allocation4], 1
    %7161 = vsyncpa %s7160, 1
    %7162 = vsyncpa [#allocation5], 1
    %s7163 = scalar_lea.sflag [#allocation5], 1
    %7164 = vsyncpa %s7163, 1

</llo_original>
